<compile_context>
chip_gen: v6e
topology: v6e:2x2x1
jax: 0.10.0
libtpu: 0.0.40
codegen_flags: <defaults>
</compile_context>

<pallas_src>
import functools

import jax
import jax.numpy as jnp
from jax.experimental import pallas as pl
from jax.experimental.pallas import tpu as pltpu


C_REAL = 80      # real MixBlock width (efficientnet-b0 stage width)
C_PAD = 128      # lane-padded width used inside the kernel
C_HEAD = 1280    # efficientnet-b0 head width
C_CAT = 2 * C_HEAD
MAX_TM = 1024    # row-tile cap: keeps (TM,1280) f32 temps inside v7x's 64 MiB VMEM


# ------------------------------- fused kernel -------------------------------

def _fused_kernel(tm, l_rows, inv_l, needs_mask,
                  x0_ref, x1_ref,
                  ws0_ref, bs0_ref, ws1_ref, bs1_ref,
                  wm01_ref, bm01_ref, wm10_ref, bm10_ref,
                  wh0_ref, bh0_ref, wh1_ref, bh1_ref,
                  wfc_ref, bfc_ref,
                  out_ref,
                  acc0_ref, acc1_ref):
    t = pl.program_id(1)

    @pl.when(t == 0)
    def _init():
        acc0_ref[...] = jnp.zeros_like(acc0_ref)
        acc1_ref[...] = jnp.zeros_like(acc1_ref)

    x0 = x0_ref[0].astype(jnp.float32)        # (TM, 3) rows of view 0
    x1 = x1_ref[0].astype(jnp.float32)        # (TM, 3) rows of view 1

    # TODO(synk): EfficientNet.feature_to_1 is an external pretrained backbone;
    # stand-in = 1x1 conv 3->80 (padded to 128 lanes), computed as 3 VPU
    # broadcast-FMAs (a K=3 MXU matmul wastes >97% of the systolic array and
    # forces a lane-sparse relayout, so it stays off the MXU).
    ws0 = ws0_ref[...]
    ws1 = ws1_ref[...]
    f0 = (x0[:, 0:1] * ws0[0:1, :] + x0[:, 1:2] * ws0[1:2, :]
          + x0[:, 2:3] * ws0[2:3, :] + bs0_ref[...])
    f1 = (x1[:, 0:1] * ws1[0:1, :] + x1[:, 1:2] * ws1[1:2, :]
          + x1[:, 2:3] * ws1[2:3, :] + bs1_ref[...])

    # TODO(synk): MixBlock(80) source not provided; stand-in = residual cross
    # 1x1-conv mix between the two streams.
    f0b = f0.astype(jnp.bfloat16)
    f1b = f1.astype(jnp.bfloat16)
    m0 = f0 + jnp.dot(f1b, wm10_ref[...], preferred_element_type=jnp.float32) + bm10_ref[...]
    m1 = f1 + jnp.dot(f0b, wm01_ref[...], preferred_element_type=jnp.float32) + bm01_ref[...]

    # TODO(synk): EfficientNet.feature_1_to_end stand-in = 1x1 conv 80->1280.
    g0 = jnp.dot(m0.astype(jnp.bfloat16), wh0_ref[...],
                 preferred_element_type=jnp.float32) + bh0_ref[...]
    g1 = jnp.dot(m1.astype(jnp.bfloat16), wh1_ref[...],
                 preferred_element_type=jnp.float32) + bh1_ref[...]

    # _norm_fea: ReLU + global-average-pool (accumulated as an f32 sum).
    r0 = jnp.maximum(g0, 0.0)
    r1 = jnp.maximum(g1, 0.0)

    if needs_mask:
        # Tail-tile masking: rows past the image length contribute nothing.
        # jnp.where is a select, so garbage/NaN in the padded edge block
        # cannot leak into the pooled sum.
        row = jax.lax.broadcasted_iota(jnp.int32, (tm, 1), 0)
        valid = row < (l_rows - t * tm)
        r0 = jnp.where(valid, r0, 0.0)
        r1 = jnp.where(valid, r1, 0.0)

    # Keep 8 sublanes live in the accumulator: the per-tile reduction is a
    # leading-axis sum (pure VPU vreg adds, hides under MXU slack); the single
    # cross-sublane XLU 8->1 reduce happens once in the finalize block.
    acc0_ref[...] += jnp.sum(r0.reshape(tm // 8, 8, C_HEAD), axis=0)
    acc1_ref[...] += jnp.sum(r1.reshape(tm // 8, 8, C_HEAD), axis=0)

    @pl.when(t == pl.num_programs(1) - 1)
    def _finalize():
        v0 = jnp.sum(acc0_ref[...], axis=0, keepdims=True) * inv_l   # (1,1280) mean
        v1 = jnp.sum(acc1_ref[...], axis=0, keepdims=True) * inv_l
        # concat(v0, v1) @ W_fc + b_fc  ==  v0 @ W_fc[:1280] + v1 @ W_fc[1280:]
        d0 = jnp.sum(v0 * wfc_ref[:, :C_HEAD], axis=1, keepdims=True)
        d1 = jnp.sum(v1 * wfc_ref[:, C_HEAD:], axis=1, keepdims=True)
        logit = d0 + d1 + bfc_ref[...]                  # (1, 1)
        # Dropout(p=0.2) is identity in eval mode; sigmoid on the EUP.
        sig = jax.nn.sigmoid(logit)
        out_ref[...] = jnp.zeros(out_ref.shape, out_ref.dtype) + sig


# --------------------------------- wrapper ----------------------------------

def _pick_row_tile(l):
    """Fixed-size row tile (multiple of 8); tail handled by cdiv grid + masking."""
    if l >= MAX_TM:
        return MAX_TM
    return (l // 8) * 8


def _const_spec(shape):
    nd = len(shape)
    return pl.BlockSpec(shape, lambda *_: (0,) * nd)


def fused_forward(x0_rows, x1_rows, p):
    """x*_rows: (B, H*W, 3) bf16 channels-last rows.  Returns (B,) f32."""
    B, L, cin = x0_rows.shape
    assert L >= 8, "image must have at least 8 pixels"
    tm = _pick_row_tile(L)
    num_t = pl.cdiv(L, tm)
    needs_mask = (L % tm) != 0
    inv_l = 1.0 / float(L)
    # TODO(synk): inv_l / L baked in as Python constants -> recompile per (H,W);
    # pass via SMEM scalar prefetch if image sizes vary at runtime.

    kernel = functools.partial(_fused_kernel, tm, L, inv_l, needs_mask)

    x_spec = pl.BlockSpec((1, tm, cin), lambda b, t: (b, t, 0))
    in_specs = [
        x_spec, x_spec,
        _const_spec((3, C_PAD)), _const_spec((1, C_PAD)),        # stem 0
        _const_spec((3, C_PAD)), _const_spec((1, C_PAD)),        # stem 1
        _const_spec((C_PAD, C_PAD)), _const_spec((1, C_PAD)),    # mix 0->1
        _const_spec((C_PAD, C_PAD)), _const_spec((1, C_PAD)),    # mix 1->0
        _const_spec((C_PAD, C_HEAD)), _const_spec((1, C_HEAD)),  # head 0
        _const_spec((C_PAD, C_HEAD)), _const_spec((1, C_HEAD)),  # head 1
        _const_spec((1, C_CAT)), _const_spec((1, 1)),            # fc
    ]
    # Lane-dense (8,128) output tile; scalar result broadcast, sliced outside.
    out_spec = pl.BlockSpec((1, 8, 128), lambda b, t: (b, 0, 0))

    grid_spec = pltpu.PrefetchScalarGridSpec(
        num_scalar_prefetch=0,
        grid=(B, num_t),
        in_specs=in_specs,
        out_specs=out_spec,
        scratch_shapes=[pltpu.VMEM((8, C_HEAD), jnp.float32),
                        pltpu.VMEM((8, C_HEAD), jnp.float32)],
    )

    # Larger tiles need more headroom for the (TM,1280) f32 temps; stay below
    # v7x's 64 MiB physical VMEM.
    vmem_limit = (48 if tm >= 768 else 32) * 1024 * 1024

    out = pl.pallas_call(
        kernel,
        out_shape=jax.ShapeDtypeStruct((B, 8, 128), jnp.float32),
        grid_spec=grid_spec,
        compiler_params=pltpu.CompilerParams(
            dimension_semantics=("parallel", "arbitrary"),
            vmem_limit_bytes=vmem_limit,
        ),
    )(x0_rows, x1_rows,
      p["ws0"], p["bs0"], p["ws1"], p["bs1"],
      p["wm01"], p["bm01"], p["wm10"], p["bm10"],
      p["wh0"], p["bh0"], p["wh1"], p["bh1"],
      p["wfc"], p["bfc"])

    return out[:, 0, 0]                                   # F.sigmoid(...).flatten()


def model_forward(params, x):
    """x: (2, B, 3, H, W) float32 — x[0], x[1] are the two NCHW input views."""
    B, C, H, W = x.shape[1:]
    L = H * W
    # TODO(synk): ideally accept NHWC input so this transpose is preprocessing.
    x0 = jnp.transpose(x[0], (0, 2, 3, 1)).reshape(B, L, C).astype(jnp.bfloat16)
    x1 = jnp.transpose(x[1], (0, 2, 3, 1)).reshape(B, L, C).astype(jnp.bfloat16)
    return fused_forward(x0, x1, params)


# ------------------------- parameters (deterministic) ------------------------

def init_params(key):
    ks = jax.random.split(key, 7)

    def lin(k, cin, cout, scale=0.05):
        kw, kb = jax.random.split(k)
        return (scale * jax.random.normal(kw, (cin, cout), jnp.float32),
                scale * jax.random.normal(kb, (1, cout), jnp.float32))

    return {
        "e1_stem": lin(ks[0], 3, C_REAL),       # efficient1.feature_to_1 stand-in
        "e2_stem": lin(ks[1], 3, C_REAL),       # efficient2.feature_to_1 stand-in
        "mix_01": lin(ks[2], C_REAL, C_REAL),   # MixBlock cross path 0->1
        "mix_10": lin(ks[3], C_REAL, C_REAL),   # MixBlock cross path 1->0
        "e1_head": lin(ks[4], C_REAL, C_HEAD),  # efficient1.feature_1_to_end stand-in
        "e2_head": lin(ks[5], C_REAL, C_HEAD),  # efficient2.feature_1_to_end stand-in
        "fc": lin(ks[6], C_CAT, 1),             # nn.Linear(2560, 1)
    }


def prepare_params(params):
    """Zero-pad 80-wide weights to 128 lanes; bf16 MXU weights, f32 VPU/bias."""
    def pad2(a, rows, cols, dtype):
        return jnp.pad(a, ((0, rows - a.shape[0]), (0, cols - a.shape[1]))).astype(dtype)

    bf16, f32 = jnp.bfloat16, jnp.float32
    return {
        # stem weights stay f32: they feed VPU FMAs, not the MXU.
        "ws0": pad2(params["e1_stem"][0], 3, C_PAD, f32),
        "bs0": pad2(params["e1_stem"][1], 1, C_PAD, f32),
        "ws1": pad2(params["e2_stem"][0], 3, C_PAD, f32),
        "bs1": pad2(params["e2_stem"][1], 1, C_PAD, f32),
        "wm01": pad2(params["mix_01"][0], C_PAD, C_PAD, bf16),
        "bm01": pad2(params["mix_01"][1], 1, C_PAD, f32),
        "wm10": pad2(params["mix_10"][0], C_PAD, C_PAD, bf16),
        "bm10": pad2(params["mix_10"][1], 1, C_PAD, f32),
        "wh0": pad2(params["e1_head"][0], C_PAD, C_HEAD, bf16),
        "bh0": params["e1_head"][1].astype(f32),
        "wh1": pad2(params["e2_head"][0], C_PAD, C_HEAD, bf16),
        "bh1": params["e2_head"][1].astype(f32),
        "wfc": params["fc"][0].T.astype(f32),    # (1, 2560)
        "bfc": params["fc"][1].astype(f32),      # (1, 1)
    }


# ----------------------------------- main ------------------------------------

if __name__ == "__main__":
    key = jax.random.PRNGKey(0)
    kparam, kx1, kx2 = jax.random.split(key, 3)

    params = prepare_params(init_params(kparam))

    # Aligned-L case (H*W divisible by the row tile).
    B, C, H, W = 2, 3, 16, 16
    x = jax.random.normal(kx1, (2, B, C, H, W), jnp.float32)
    out = jax.block_until_ready(jax.jit(model_forward)(params, x))
    assert out.shape == (B,)
    assert bool(jnp.all(jnp.isfinite(out)))
    assert bool(jnp.all((out >= 0.0) & (out <= 1.0)))

    # Unaligned-L case exercising the cdiv-grid + tail-row-mask path.
    xu = jax.random.normal(kx2, (2, B, C, 10, 10), jnp.float32)
    out_u = jax.block_until_ready(jax.jit(model_forward)(params, xu))
    assert out_u.shape == (B,)
    assert bool(jnp.all(jnp.isfinite(out_u)))
    assert bool(jnp.all((out_u >= 0.0) & (out_u <= 1.0)))

    print("KERNEL_OK")
</pallas_src>

<mosaic_0001>
module attributes {stable_mosaic.version = 11 : i64} {
  func.func @_fused_kernel(%arg0: i32, %arg1: i32, %arg2: memref<1x256x3xbf16, #tpu.memory_space<vmem>>, %arg3: memref<1x256x3xbf16, #tpu.memory_space<vmem>>, %arg4: memref<3x128xf32, #tpu.memory_space<vmem>>, %arg5: memref<1x128xf32, #tpu.memory_space<vmem>>, %arg6: memref<3x128xf32, #tpu.memory_space<vmem>>, %arg7: memref<1x128xf32, #tpu.memory_space<vmem>>, %arg8: memref<128x128xbf16, #tpu.memory_space<vmem>>, %arg9: memref<1x128xf32, #tpu.memory_space<vmem>>, %arg10: memref<128x128xbf16, #tpu.memory_space<vmem>>, %arg11: memref<1x128xf32, #tpu.memory_space<vmem>>, %arg12: memref<128x1280xbf16, #tpu.memory_space<vmem>>, %arg13: memref<1x1280xf32, #tpu.memory_space<vmem>>, %arg14: memref<128x1280xbf16, #tpu.memory_space<vmem>>, %arg15: memref<1x1280xf32, #tpu.memory_space<vmem>>, %arg16: memref<1x2560xf32, #tpu.memory_space<vmem>>, %arg17: memref<1x1xf32, #tpu.memory_space<vmem>>, %arg18: memref<1x8x128xf32, #tpu.memory_space<vmem>>, %arg19: memref<8x1280xf32, #tpu.memory_space<vmem>>, %arg20: memref<8x1280xf32, #tpu.memory_space<vmem>>) attributes {dimension_semantics = [#tpu.dimension_semantics<parallel>, #tpu.dimension_semantics<arbitrary>], iteration_bounds = array<i64: 2, 1>, scalar_prefetch = 0 : i64, scratch_operands = 2 : i64, tpu.core_type = #tpu.core_type<tc>, window_params = [{transform_indices = @transform_0, window_bounds = array<i64: 1, 256, 3>}, {transform_indices = @transform_1, window_bounds = array<i64: 1, 256, 3>}, {pipeline_mode = #tpu.pipeline_mode<synchronous>, transform_indices = @transform_2, window_bounds = array<i64: 3, 128>}, {pipeline_mode = #tpu.pipeline_mode<synchronous>, transform_indices = @transform_3, window_bounds = array<i64: 1, 128>}, {pipeline_mode = #tpu.pipeline_mode<synchronous>, transform_indices = @transform_4, window_bounds = array<i64: 3, 128>}, {pipeline_mode = #tpu.pipeline_mode<synchronous>, transform_indices = @transform_5, window_bounds = array<i64: 1, 128>}, {pipeline_mode = #tpu.pipeline_mode<synchronous>, transform_indices = @transform_6, window_bounds = array<i64: 128, 128>}, {pipeline_mode = #tpu.pipeline_mode<synchronous>, transform_indices = @transform_7, window_bounds = array<i64: 1, 128>}, {pipeline_mode = #tpu.pipeline_mode<synchronous>, transform_indices = @transform_8, window_bounds = array<i64: 128, 128>}, {pipeline_mode = #tpu.pipeline_mode<synchronous>, transform_indices = @transform_9, window_bounds = array<i64: 1, 128>}, {pipeline_mode = #tpu.pipeline_mode<synchronous>, transform_indices = @transform_10, window_bounds = array<i64: 128, 1280>}, {pipeline_mode = #tpu.pipeline_mode<synchronous>, transform_indices = @transform_11, window_bounds = array<i64: 1, 1280>}, {pipeline_mode = #tpu.pipeline_mode<synchronous>, transform_indices = @transform_12, window_bounds = array<i64: 128, 1280>}, {pipeline_mode = #tpu.pipeline_mode<synchronous>, transform_indices = @transform_13, window_bounds = array<i64: 1, 1280>}, {pipeline_mode = #tpu.pipeline_mode<synchronous>, transform_indices = @transform_14, window_bounds = array<i64: 1, 2560>}, {pipeline_mode = #tpu.pipeline_mode<synchronous>, transform_indices = @transform_15, window_bounds = array<i64: 1, 1>}, {transform_indices = @transform_16, window_bounds = array<i64: 1, 8, 128>}]} {
    %c0_i32 = arith.constant 0 : i32
    %0 = arith.cmpi eq, %arg1, %c0_i32 : i32
    %1 = arith.extui %0 : i1 to i32
    %c0_i32_0 = arith.constant 0 : i32
    %2 = arith.cmpi ne, %1, %c0_i32_0 : i32
    scf.if %2 {
      %cst_47 = arith.constant 0.000000e+00 : f32
      %94 = vector.broadcast %cst_47 : f32 to vector<8x1280xf32>
      %c0_48 = arith.constant 0 : index
      %c0_49 = arith.constant 0 : index
      %95 = vector.load %arg19[%c0_48, %c0_49] : memref<8x1280xf32, #tpu.memory_space<vmem>>, vector<8x1280xf32>
      tpu.vector_store %arg19[%c0_48, %c0_49], %94 {strides = array<i32>} : memref<8x1280xf32, #tpu.memory_space<vmem>>, vector<8x1280xf32>,
      %cst_50 = arith.constant 0.000000e+00 : f32
      %96 = vector.broadcast %cst_50 : f32 to vector<8x1280xf32>
      %c0_51 = arith.constant 0 : index
      %c0_52 = arith.constant 0 : index
      %97 = vector.load %arg20[%c0_51, %c0_52] : memref<8x1280xf32, #tpu.memory_space<vmem>>, vector<8x1280xf32>
      tpu.vector_store %arg20[%c0_51, %c0_52], %96 {strides = array<i32>} : memref<8x1280xf32, #tpu.memory_space<vmem>>, vector<8x1280xf32>,
    } else {
    }
    %c0 = arith.constant 0 : index
    %c0_1 = arith.constant 0 : index
    %c0_2 = arith.constant 0 : index
    %3 = vector.load %arg2[%c0, %c0_1, %c0_2] : memref<1x256x3xbf16, #tpu.memory_space<vmem>>, vector<1x256x3xbf16>
    %4 = vector.shape_cast %3 : vector<1x256x3xbf16> to vector<256x3xbf16>
    %5 = arith.extf %4 : vector<256x3xbf16> to vector<256x3xf32>
    %c0_3 = arith.constant 0 : index
    %c0_4 = arith.constant 0 : index
    %c0_5 = arith.constant 0 : index
    %6 = vector.load %arg3[%c0_3, %c0_4, %c0_5] : memref<1x256x3xbf16, #tpu.memory_space<vmem>>, vector<1x256x3xbf16>
    %7 = vector.shape_cast %6 : vector<1x256x3xbf16> to vector<256x3xbf16>
    %8 = arith.extf %7 : vector<256x3xbf16> to vector<256x3xf32>
    %c0_6 = arith.constant 0 : index
    %c0_7 = arith.constant 0 : index
    %9 = vector.load %arg4[%c0_6, %c0_7] : memref<3x128xf32, #tpu.memory_space<vmem>>, vector<3x128xf32>
    %c0_8 = arith.constant 0 : index
    %c0_9 = arith.constant 0 : index
    %10 = vector.load %arg6[%c0_8, %c0_9] : memref<3x128xf32, #tpu.memory_space<vmem>>, vector<3x128xf32>
    %11 = vector.extract_strided_slice %5 {offsets = [0, 0], sizes = [256, 1], strides = [1, 1]} : vector<256x3xf32> to vector<256x1xf32>
    %12 = vector.extract_strided_slice %9 {offsets = [0, 0], sizes = [1, 128], strides = [1, 1]} : vector<3x128xf32> to vector<1x128xf32>
    %13 = vector.broadcast %11 : vector<256x1xf32> to vector<256x128xf32>
    %14 = vector.broadcast %12 : vector<1x128xf32> to vector<256x128xf32>
    %15 = arith.mulf %13, %14 : vector<256x128xf32>
    %16 = vector.extract_strided_slice %5 {offsets = [0, 1], sizes = [256, 1], strides = [1, 1]} : vector<256x3xf32> to vector<256x1xf32>
    %17 = vector.extract_strided_slice %9 {offsets = [1, 0], sizes = [1, 128], strides = [1, 1]} : vector<3x128xf32> to vector<1x128xf32>
    %18 = vector.broadcast %16 : vector<256x1xf32> to vector<256x128xf32>
    %19 = vector.broadcast %17 : vector<1x128xf32> to vector<256x128xf32>
    %20 = arith.mulf %18, %19 : vector<256x128xf32>
    %21 = arith.addf %15, %20 : vector<256x128xf32>
    %22 = vector.extract_strided_slice %5 {offsets = [0, 2], sizes = [256, 1], strides = [1, 1]} : vector<256x3xf32> to vector<256x1xf32>
    %23 = vector.extract_strided_slice %9 {offsets = [2, 0], sizes = [1, 128], strides = [1, 1]} : vector<3x128xf32> to vector<1x128xf32>
    %24 = vector.broadcast %22 : vector<256x1xf32> to vector<256x128xf32>
    %25 = vector.broadcast %23 : vector<1x128xf32> to vector<256x128xf32>
    %26 = arith.mulf %24, %25 : vector<256x128xf32>
    %27 = arith.addf %21, %26 : vector<256x128xf32>
    %c0_10 = arith.constant 0 : index
    %c0_11 = arith.constant 0 : index
    %28 = vector.load %arg5[%c0_10, %c0_11] : memref<1x128xf32, #tpu.memory_space<vmem>>, vector<1x128xf32>
    %29 = vector.broadcast %28 : vector<1x128xf32> to vector<256x128xf32>
    %30 = arith.addf %27, %29 : vector<256x128xf32>
    %31 = vector.extract_strided_slice %8 {offsets = [0, 0], sizes = [256, 1], strides = [1, 1]} : vector<256x3xf32> to vector<256x1xf32>
    %32 = vector.extract_strided_slice %10 {offsets = [0, 0], sizes = [1, 128], strides = [1, 1]} : vector<3x128xf32> to vector<1x128xf32>
    %33 = vector.broadcast %31 : vector<256x1xf32> to vector<256x128xf32>
    %34 = vector.broadcast %32 : vector<1x128xf32> to vector<256x128xf32>
    %35 = arith.mulf %33, %34 : vector<256x128xf32>
    %36 = vector.extract_strided_slice %8 {offsets = [0, 1], sizes = [256, 1], strides = [1, 1]} : vector<256x3xf32> to vector<256x1xf32>
    %37 = vector.extract_strided_slice %10 {offsets = [1, 0], sizes = [1, 128], strides = [1, 1]} : vector<3x128xf32> to vector<1x128xf32>
    %38 = vector.broadcast %36 : vector<256x1xf32> to vector<256x128xf32>
    %39 = vector.broadcast %37 : vector<1x128xf32> to vector<256x128xf32>
    %40 = arith.mulf %38, %39 : vector<256x128xf32>
    %41 = arith.addf %35, %40 : vector<256x128xf32>
    %42 = vector.extract_strided_slice %8 {offsets = [0, 2], sizes = [256, 1], strides = [1, 1]} : vector<256x3xf32> to vector<256x1xf32>
    %43 = vector.extract_strided_slice %10 {offsets = [2, 0], sizes = [1, 128], strides = [1, 1]} : vector<3x128xf32> to vector<1x128xf32>
    %44 = vector.broadcast %42 : vector<256x1xf32> to vector<256x128xf32>
    %45 = vector.broadcast %43 : vector<1x128xf32> to vector<256x128xf32>
    %46 = arith.mulf %44, %45 : vector<256x128xf32>
    %47 = arith.addf %41, %46 : vector<256x128xf32>
    %c0_12 = arith.constant 0 : index
    %c0_13 = arith.constant 0 : index
    %48 = vector.load %arg7[%c0_12, %c0_13] : memref<1x128xf32, #tpu.memory_space<vmem>>, vector<1x128xf32>
    %49 = vector.broadcast %48 : vector<1x128xf32> to vector<256x128xf32>
    %50 = arith.addf %47, %49 : vector<256x128xf32>
    %51 = arith.truncf %30 : vector<256x128xf32> to vector<256x128xbf16>
    %52 = arith.truncf %50 : vector<256x128xf32> to vector<256x128xbf16>
    %c0_14 = arith.constant 0 : index
    %c0_15 = arith.constant 0 : index
    %53 = vector.load %arg10[%c0_14, %c0_15] : memref<128x128xbf16, #tpu.memory_space<vmem>>, vector<128x128xbf16>
    %cst = arith.constant dense<0.000000e+00> : vector<256x128xf32>
    %54 = tpu.matmul %52, %53, %cst {dimension_numbers = #tpu.dot_dimension_numbers<[1], [0], [0], [1], [0, 0, 1, 1], [], []>} : vector<256x128xbf16>, vector<128x128xbf16>, vector<256x128xf32> -> vector<256x128xf32>
    %55 = arith.addf %30, %54 : vector<256x128xf32>
    %c0_16 = arith.constant 0 : index
    %c0_17 = arith.constant 0 : index
    %56 = vector.load %arg11[%c0_16, %c0_17] : memref<1x128xf32, #tpu.memory_space<vmem>>, vector<1x128xf32>
    %57 = vector.broadcast %56 : vector<1x128xf32> to vector<256x128xf32>
    %58 = arith.addf %55, %57 : vector<256x128xf32>
    %c0_18 = arith.constant 0 : index
    %c0_19 = arith.constant 0 : index
    %59 = vector.load %arg8[%c0_18, %c0_19] : memref<128x128xbf16, #tpu.memory_space<vmem>>, vector<128x128xbf16>
    %cst_20 = arith.constant dense<0.000000e+00> : vector<256x128xf32>
    %60 = tpu.matmul %51, %59, %cst_20 {dimension_numbers = #tpu.dot_dimension_numbers<[1], [0], [0], [1], [0, 0, 1, 1], [], []>} : vector<256x128xbf16>, vector<128x128xbf16>, vector<256x128xf32> -> vector<256x128xf32>
    %61 = arith.addf %50, %60 : vector<256x128xf32>
    %c0_21 = arith.constant 0 : index
    %c0_22 = arith.constant 0 : index
    %62 = vector.load %arg9[%c0_21, %c0_22] : memref<1x128xf32, #tpu.memory_space<vmem>>, vector<1x128xf32>
    %63 = vector.broadcast %62 : vector<1x128xf32> to vector<256x128xf32>
    %64 = arith.addf %61, %63 : vector<256x128xf32>
    %65 = arith.truncf %58 : vector<256x128xf32> to vector<256x128xbf16>
    %c0_23 = arith.constant 0 : index
    %c0_24 = arith.constant 0 : index
    %66 = vector.load %arg12[%c0_23, %c0_24] : memref<128x1280xbf16, #tpu.memory_space<vmem>>, vector<128x1280xbf16>
    %cst_25 = arith.constant dense<0.000000e+00> : vector<256x1280xf32>
    %67 = tpu.matmul %65, %66, %cst_25 {dimension_numbers = #tpu.dot_dimension_numbers<[1], [0], [0], [1], [0, 0, 1, 1], [], []>} : vector<256x128xbf16>, vector<128x1280xbf16>, vector<256x1280xf32> -> vector<256x1280xf32>
    %c0_26 = arith.constant 0 : index
    %c0_27 = arith.constant 0 : index
    %68 = vector.load %arg13[%c0_26, %c0_27] : memref<1x1280xf32, #tpu.memory_space<vmem>>, vector<1x1280xf32>
    %69 = vector.broadcast %68 : vector<1x1280xf32> to vector<256x1280xf32>
    %70 = arith.addf %67, %69 : vector<256x1280xf32>
    %71 = arith.truncf %64 : vector<256x128xf32> to vector<256x128xbf16>
    %c0_28 = arith.constant 0 : index
    %c0_29 = arith.constant 0 : index
    %72 = vector.load %arg14[%c0_28, %c0_29] : memref<128x1280xbf16, #tpu.memory_space<vmem>>, vector<128x1280xbf16>
    %cst_30 = arith.constant dense<0.000000e+00> : vector<256x1280xf32>
    %73 = tpu.matmul %71, %72, %cst_30 {dimension_numbers = #tpu.dot_dimension_numbers<[1], [0], [0], [1], [0, 0, 1, 1], [], []>} : vector<256x128xbf16>, vector<128x1280xbf16>, vector<256x1280xf32> -> vector<256x1280xf32>
    %c0_31 = arith.constant 0 : index
    %c0_32 = arith.constant 0 : index
    %74 = vector.load %arg15[%c0_31, %c0_32] : memref<1x1280xf32, #tpu.memory_space<vmem>>, vector<1x1280xf32>
    %75 = vector.broadcast %74 : vector<1x1280xf32> to vector<256x1280xf32>
    %76 = arith.addf %73, %75 : vector<256x1280xf32>
    %cst_33 = arith.constant 0.000000e+00 : f32
    %77 = vector.broadcast %cst_33 : f32 to vector<256x1280xf32>
    %78 = arith.maximumf %70, %77 : vector<256x1280xf32>
    %cst_34 = arith.constant 0.000000e+00 : f32
    %79 = vector.broadcast %cst_34 : f32 to vector<256x1280xf32>
    %80 = arith.maximumf %76, %79 : vector<256x1280xf32>
    %c0_35 = arith.constant 0 : index
    %c0_36 = arith.constant 0 : index
    %81 = vector.load %arg19[%c0_35, %c0_36] : memref<8x1280xf32, #tpu.memory_space<vmem>>, vector<8x1280xf32>
    %82 = vector.shape_cast %78 : vector<256x1280xf32> to vector<32x8x1280xf32>
    %cst_37 = arith.constant dense<0.000000e+00> : vector<8x1280xf32>
    %83 = vector.multi_reduction <add>, %82, %cst_37 [0] : vector<32x8x1280xf32> to vector<8x1280xf32>
    %84 = arith.addf %81, %83 : vector<8x1280xf32>
    %c0_38 = arith.constant 0 : index
    %c0_39 = arith.constant 0 : index
    %85 = vector.load %arg19[%c0_38, %c0_39] : memref<8x1280xf32, #tpu.memory_space<vmem>>, vector<8x1280xf32>
    tpu.vector_store %arg19[%c0_38, %c0_39], %84 {strides = array<i32>} : memref<8x1280xf32, #tpu.memory_space<vmem>>, vector<8x1280xf32>,
    %c0_40 = arith.constant 0 : index
    %c0_41 = arith.constant 0 : index
    %86 = vector.load %arg20[%c0_40, %c0_41] : memref<8x1280xf32, #tpu.memory_space<vmem>>, vector<8x1280xf32>
    %87 = vector.shape_cast %80 : vector<256x1280xf32> to vector<32x8x1280xf32>
    %cst_42 = arith.constant dense<0.000000e+00> : vector<8x1280xf32>
    %88 = vector.multi_reduction <add>, %87, %cst_42 [0] : vector<32x8x1280xf32> to vector<8x1280xf32>
    %89 = arith.addf %86, %88 : vector<8x1280xf32>
    %c0_43 = arith.constant 0 : index
    %c0_44 = arith.constant 0 : index
    %90 = vector.load %arg20[%c0_43, %c0_44] : memref<8x1280xf32, #tpu.memory_space<vmem>>, vector<8x1280xf32>
    tpu.vector_store %arg20[%c0_43, %c0_44], %89 {strides = array<i32>} : memref<8x1280xf32, #tpu.memory_space<vmem>>, vector<8x1280xf32>,
    %c0_i32_45 = arith.constant 0 : i32
    %91 = arith.cmpi eq, %arg1, %c0_i32_45 : i32
    %92 = arith.extui %91 : i1 to i32
    %c0_i32_46 = arith.constant 0 : i32
    %93 = arith.cmpi ne, %92, %c0_i32_46 : i32
    scf.if %93 {
      %c0_47 = arith.constant 0 : index
      %c0_48 = arith.constant 0 : index
      %94 = vector.load %arg19[%c0_47, %c0_48] : memref<8x1280xf32, #tpu.memory_space<vmem>>, vector<8x1280xf32>
      %cst_49 = arith.constant dense<0.000000e+00> : vector<1280xf32>
      %95 = vector.multi_reduction <add>, %94, %cst_49 [0] : vector<8x1280xf32> to vector<1280xf32>
      %96 = vector.shape_cast %95 : vector<1280xf32> to vector<1x1280xf32>
      %cst_50 = arith.constant 3.906250e-03 : f32
      %97 = vector.broadcast %cst_50 : f32 to vector<1x1280xf32>
      %98 = arith.mulf %96, %97 : vector<1x1280xf32>
      %c0_51 = arith.constant 0 : index
      %c0_52 = arith.constant 0 : index
      %99 = vector.load %arg20[%c0_51, %c0_52] : memref<8x1280xf32, #tpu.memory_space<vmem>>, vector<8x1280xf32>
      %cst_53 = arith.constant dense<0.000000e+00> : vector<1280xf32>
      %100 = vector.multi_reduction <add>, %99, %cst_53 [0] : vector<8x1280xf32> to vector<1280xf32>
      %101 = vector.shape_cast %100 : vector<1280xf32> to vector<1x1280xf32>
      %cst_54 = arith.constant 3.906250e-03 : f32
      %102 = vector.broadcast %cst_54 : f32 to vector<1x1280xf32>
      %103 = arith.mulf %101, %102 : vector<1x1280xf32>
      %c0_55 = arith.constant 0 : index
      %c0_56 = arith.constant 0 : index
      %104 = vector.load %arg16[%c0_55, %c0_56] : memref<1x2560xf32, #tpu.memory_space<vmem>>, vector<1x1280xf32>
      %105 = arith.mulf %98, %104 : vector<1x1280xf32>
      %cst_57 = arith.constant dense<0.000000e+00> : vector<1xf32>
      %106 = vector.multi_reduction <add>, %105, %cst_57 [1] : vector<1x1280xf32> to vector<1xf32>
      %107 = vector.shape_cast %106 : vector<1xf32> to vector<1x1xf32>
      %c0_58 = arith.constant 0 : index
      %c1280 = arith.constant 1280 : index
      %108 = vector.load %arg16[%c0_58, %c1280] : memref<1x2560xf32, #tpu.memory_space<vmem>>, vector<1x1280xf32>
      %109 = arith.mulf %103, %108 : vector<1x1280xf32>
      %cst_59 = arith.constant dense<0.000000e+00> : vector<1xf32>
      %110 = vector.multi_reduction <add>, %109, %cst_59 [1] : vector<1x1280xf32> to vector<1xf32>
      %111 = vector.shape_cast %110 : vector<1xf32> to vector<1x1xf32>
      %112 = arith.addf %107, %111 : vector<1x1xf32>
      %c0_60 = arith.constant 0 : index
      %c0_61 = arith.constant 0 : index
      %113 = vector.load %arg17[%c0_60, %c0_61] : memref<1x1xf32, #tpu.memory_space<vmem>>, vector<1x1xf32>
      %114 = arith.addf %112, %113 : vector<1x1xf32>
      %115 = arith.negf %114 : vector<1x1xf32>
      %116 = math.exp %115 : vector<1x1xf32>
      %cst_62 = arith.constant 1.000000e+00 : f32
      %117 = vector.broadcast %cst_62 : f32 to vector<1x1xf32>
      %118 = arith.addf %117, %116 : vector<1x1xf32>
      %119 = arith.divf %117, %118 : vector<1x1xf32>
      %cst_63 = arith.constant 0.000000e+00 : f32
      %120 = vector.broadcast %cst_63 : f32 to vector<1x8x128xf32>
      %121 = vector.shape_cast %119 : vector<1x1xf32> to vector<1x1x1xf32>
      %122 = vector.broadcast %121 : vector<1x1x1xf32> to vector<1x8x128xf32>
      %123 = arith.addf %120, %122 : vector<1x8x128xf32>
      %c0_64 = arith.constant 0 : index
      %c0_65 = arith.constant 0 : index
      %c0_66 = arith.constant 0 : index
      %124 = vector.load %arg18[%c0_64, %c0_65, %c0_66] : memref<1x8x128xf32, #tpu.memory_space<vmem>>, vector<1x8x128xf32>
      tpu.vector_store %arg18[%c0_64, %c0_65, %c0_66], %123 {strides = array<i32>} : memref<1x8x128xf32, #tpu.memory_space<vmem>>, vector<1x8x128xf32>,
    } else {
    }
    return
  }
  func.func @transform_0(%arg0: i32, %arg1: i32) -> (i32, i32, i32) {
    %c0_i32 = arith.constant 0 : i32
    %c0_i32_0 = arith.constant 0 : i32
    return %arg0, %arg1, %c0_i32 : i32, i32, i32
  }
  func.func @transform_1(%arg0: i32, %arg1: i32) -> (i32, i32, i32) {
    %c0_i32 = arith.constant 0 : i32
    %c0_i32_0 = arith.constant 0 : i32
    return %arg0, %arg1, %c0_i32 : i32, i32, i32
  }
  func.func @transform_2(%arg0: i32, %arg1: i32) -> (i32, i32) {
    %c0_i32 = arith.constant 0 : i32
    %c0_i32_0 = arith.constant 0 : i32
    %c0_i32_1 = arith.constant 0 : i32
    return %c0_i32, %c0_i32_0 : i32, i32
  }
  func.func @transform_3(%arg0: i32, %arg1: i32) -> (i32, i32) {
    %c0_i32 = arith.constant 0 : i32
    %c0_i32_0 = arith.constant 0 : i32
    %c0_i32_1 = arith.constant 0 : i32
    return %c0_i32, %c0_i32_0 : i32, i32
  }
  func.func @transform_4(%arg0: i32, %arg1: i32) -> (i32, i32) {
    %c0_i32 = arith.constant 0 : i32
    %c0_i32_0 = arith.constant 0 : i32
    %c0_i32_1 = arith.constant 0 : i32
    return %c0_i32, %c0_i32_0 : i32, i32
  }
  func.func @transform_5(%arg0: i32, %arg1: i32) -> (i32, i32) {
    %c0_i32 = arith.constant 0 : i32
    %c0_i32_0 = arith.constant 0 : i32
    %c0_i32_1 = arith.constant 0 : i32
    return %c0_i32, %c0_i32_0 : i32, i32
  }
  func.func @transform_6(%arg0: i32, %arg1: i32) -> (i32, i32) {
    %c0_i32 = arith.constant 0 : i32
    %c0_i32_0 = arith.constant 0 : i32
    %c0_i32_1 = arith.constant 0 : i32
    return %c0_i32, %c0_i32_0 : i32, i32
  }
  func.func @transform_7(%arg0: i32, %arg1: i32) -> (i32, i32) {
    %c0_i32 = arith.constant 0 : i32
    %c0_i32_0 = arith.constant 0 : i32
    %c0_i32_1 = arith.constant 0 : i32
    return %c0_i32, %c0_i32_0 : i32, i32
  }
  func.func @transform_8(%arg0: i32, %arg1: i32) -> (i32, i32) {
    %c0_i32 = arith.constant 0 : i32
    %c0_i32_0 = arith.constant 0 : i32
    %c0_i32_1 = arith.constant 0 : i32
    return %c0_i32, %c0_i32_0 : i32, i32
  }
  func.func @transform_9(%arg0: i32, %arg1: i32) -> (i32, i32) {
    %c0_i32 = arith.constant 0 : i32
    %c0_i32_0 = arith.constant 0 : i32
    %c0_i32_1 = arith.constant 0 : i32
    return %c0_i32, %c0_i32_0 : i32, i32
  }
  func.func @transform_10(%arg0: i32, %arg1: i32) -> (i32, i32) {
    %c0_i32 = arith.constant 0 : i32
    %c0_i32_0 = arith.constant 0 : i32
    %c0_i32_1 = arith.constant 0 : i32
    return %c0_i32, %c0_i32_0 : i32, i32
  }
  func.func @transform_11(%arg0: i32, %arg1: i32) -> (i32, i32) {
    %c0_i32 = arith.constant 0 : i32
    %c0_i32_0 = arith.constant 0 : i32
    %c0_i32_1 = arith.constant 0 : i32
    return %c0_i32, %c0_i32_0 : i32, i32
  }
  func.func @transform_12(%arg0: i32, %arg1: i32) -> (i32, i32) {
    %c0_i32 = arith.constant 0 : i32
    %c0_i32_0 = arith.constant 0 : i32
    %c0_i32_1 = arith.constant 0 : i32
    return %c0_i32, %c0_i32_0 : i32, i32
  }
  func.func @transform_13(%arg0: i32, %arg1: i32) -> (i32, i32) {
    %c0_i32 = arith.constant 0 : i32
    %c0_i32_0 = arith.constant 0 : i32
    %c0_i32_1 = arith.constant 0 : i32
    return %c0_i32, %c0_i32_0 : i32, i32
  }
  func.func @transform_14(%arg0: i32, %arg1: i32) -> (i32, i32) {
    %c0_i32 = arith.constant 0 : i32
    %c0_i32_0 = arith.constant 0 : i32
    %c0_i32_1 = arith.constant 0 : i32
    return %c0_i32, %c0_i32_0 : i32, i32
  }
  func.func @transform_15(%arg0: i32, %arg1: i32) -> (i32, i32) {
    %c0_i32 = arith.constant 0 : i32
    %c0_i32_0 = arith.constant 0 : i32
    %c0_i32_1 = arith.constant 0 : i32
    return %c0_i32, %c0_i32_0 : i32, i32
  }
  func.func @transform_16(%arg0: i32, %arg1: i32) -> (i32, i32, i32) {
    %c0_i32 = arith.constant 0 : i32
    %c0_i32_0 = arith.constant 0 : i32
    %c0_i32_1 = arith.constant 0 : i32
    return %arg0, %c0_i32, %c0_i32_0 : i32, i32, i32
  }
}

</mosaic_0001>

<llo_original>
// kernel: model_forward.1
$region0: #{model_forward.1}
  #allocation0 [shape = 'u32[]', space=smem, size = 0x4, offset = 0x4, fixed_abs, tag = 'smem constant byte address 0x4 - core index']
  #allocation1 [shape = 'u32[144,128]{1,0:T(1,128)}', space=vmem, size = 0x12000, scoped, tag = 'internal scratch']
  #allocation2 [shape = 'f32[8,1280]{1,0:T(8,128)}', space=vmem, size = 0xa000, scoped, tag = 'scratch operand']
  #allocation3 [shape = 'f32[8,1280]{1,0:T(8,128)}', space=vmem, size = 0xa000, scoped, tag = 'scratch operand']
  #allocation4 [shape = 'f32[1,1]{1,0:T(1,128)S(1)}', space=vmem, size = 0x200, scoped, tag = 'scoped memory for model_forward.1']
  %s0 = inlined_call_operand.vmem [shape: bf16[2,256,3], index: 0, kind: input, shape index: {}]
  %s1 = inlined_call_operand.vmem [shape: bf16[2,256,3], index: 1, kind: input, shape index: {}]
  %s2 = inlined_call_operand.vmem [shape: f32[3,128], index: 2, kind: input, shape index: {}]
  %s3 = inlined_call_operand.vmem [shape: f32[1,128], index: 3, kind: input, shape index: {}]
  %s4 = inlined_call_operand.vmem [shape: f32[3,128], index: 4, kind: input, shape index: {}]
  %s5 = inlined_call_operand.vmem [shape: f32[1,128], index: 5, kind: input, shape index: {}]
  %s6 = inlined_call_operand.vmem [shape: bf16[128,128], index: 6, kind: input, shape index: {}]
  %s7 = inlined_call_operand.vmem [shape: f32[1,128], index: 7, kind: input, shape index: {}]
  %s8 = inlined_call_operand.vmem [shape: bf16[128,128], index: 8, kind: input, shape index: {}]
  %s9 = inlined_call_operand.vmem [shape: f32[1,128], index: 9, kind: input, shape index: {}]
  %s10 = inlined_call_operand.vmem [shape: bf16[128,1280], index: 10, kind: input, shape index: {}]
  %s11 = inlined_call_operand.vmem [shape: f32[1,1280], index: 11, kind: input, shape index: {}]
  %s12 = inlined_call_operand.hbm [shape: bf16[128,1280], index: 12, kind: input, shape index: {}]
  %s13 = inlined_call_operand.vmem [shape: f32[1,1280], index: 13, kind: input, shape index: {}]
  %s14 = inlined_call_operand.vmem [shape: f32[1,2560], index: 14, kind: input, shape index: {}]
  %s15 = inlined_call_operand.<no memory space> [shape: f32[1,1], index: 15, kind: input, shape index: {}]
  %s16 = inlined_call_operand.vmem [shape: f32[2,8,128], index: 16, kind: output, shape index: {}]
  %s17 = sld [smem:[#allocation0]]
  $region109: #{model_forward.1} parent=0
    _
  %s19 = ssub.s32 1, %s17
  %s20 = scalar_select 0, %s19, %s17
  %v21 = vstv %s15
  %22 = vst [vmem:[#allocation4] sm:$0x1] %v21
  $region1: #{model_forward.1} parent=0
    #allocation5 [shape = 'u8[327680]{0}', space=vmem, size = 0x50000, scoped, tag = 'input window, operand 12, single buffered']
    #allocation6 [shape = 's32[2]{0}', space=sflag, size = 0x8, scoped, tag = 'scoped memory for model_forward.1']
    %23 = vsyncpa [#allocation6], 0
    loop: start=0, step=1, limit=4
    $region2: #{model_forward.1} parent=1 // loop_pre_header
      _
    $region3: #{model_forward.1} parent=1 // loop_header
      %s25 = sphi 0, %s29
      %p26 = scmp.ge.s32.totalorder %s25, 4
      %s32 = sphi 0, %s44
      %s33 = sphi 0, %s40
      %s34 = sphi 0, %s32
      %s35 = sphi 0, %s33
      %s36 = sphi 0, %s34
      %s37 = sphi 0, %s35
      %s49 = sphi 0, %s51
      %s52 = sphi 0, %s49
      %s53 = sphi 0, %s52
      %s69 = sphi 0, %s53
      %s77 = sphi 0, %s79
      %s80 = sphi 0, %s77
      %s81 = sphi 0, %s80
      %s97 = sphi 0, %s81
      %s101 = sphi 0, %s101
      %s103 = sphi 0, %s101
      %s104 = sphi 0, %s103
      %s118 = sphi 0, %s104
      %s122 = sphi 0, %s122
      %s124 = sphi 0, %s122
      %s125 = sphi 0, %s124
      %s139 = sphi 0, %s125
      %s143 = sphi 0, %s143
      %s145 = sphi 0, %s143
      %s146 = sphi 0, %s145
      %s160 = sphi 0, %s146
      %s164 = sphi 0, %s164
      %s166 = sphi 0, %s164
      %s167 = sphi 0, %s166
      %s181 = sphi 0, %s167
      %s185 = sphi 0, %s185
      %s187 = sphi 0, %s185
      %s188 = sphi 0, %s187
      %s202 = sphi 0, %s188
      %s206 = sphi 0, %s206
      %s208 = sphi 0, %s206
      %s209 = sphi 0, %s208
      %s223 = sphi 0, %s209
      %s227 = sphi 0, %s227
      %s229 = sphi 0, %s227
      %s230 = sphi 0, %s229
      %s244 = sphi 0, %s230
      %s248 = sphi 0, %s248
      %s250 = sphi 0, %s248
      %s251 = sphi 0, %s250
      %s265 = sphi 0, %s251
      %s269 = sphi 0, %s269
      %s271 = sphi 0, %s269
      %s272 = sphi 0, %s271
      %s286 = sphi 0, %s272
      %s290 = sphi 0, %s290
      %s292 = sphi 0, %s290
      %s293 = sphi 0, %s292
      %s307 = sphi 0, %s293
      %s311 = sphi 0, %s311
      %s313 = sphi 0, %s311
      %s314 = sphi 0, %s313
      %s328 = sphi 0, %s314
      %s332 = sphi 0, %s332
      %s334 = sphi 0, %s332
      %s335 = sphi 0, %s334
      %s349 = sphi 0, %s335
      %s353 = sphi 0, %s353
      %s355 = sphi 0, %s353
      %s356 = sphi 0, %s355
      %s370 = sphi 0, %s356
      %s374 = sphi 0, %s374
      %s376 = sphi 0, %s374
      %s377 = sphi 0, %s376
      %s391 = sphi 0, %s377
      %s397 = sphi 0, %s399
      %s400 = sphi 0, %s397
      %s401 = sphi 0, %s400
      %s417 = sphi 0, %s401
    $region4: #{model_forward.1} parent=1 // loop_header_branch
      %28 = sbr.rel (%p26) target = $region8
    $region5: #{model_forward.1} parent=1 // loop_body
      %s30 = ssub.s32 %s25, 1
      %s31 = ssub.s32 %s25, 2
      %s38 = sadd.s32 1, %s33
      %p39 = scmp.ge.s32.totalorder %s38, 1
      %s40 = scalar_select %p39, 0, %s38
      %s41 = sadd.s32 1, %s32
      %s42 = scalar_select %p39, %s41, %s32
      %p43 = scmp.ge.s32.totalorder %s42, 2
      %s44 = scalar_select %p43, 0, %s42
      %s45 = ssub.s32 %s32, %s44
      %s46 = ssub.s32 %s33, %s40
      %s47 = sor.u32 %s45, %s46
      %p48 = scmp.eq.s32.totalorder %s47, 0
      %s50 = sadd.s32 %s49, 1
      %s51 = scalar_select %p48, %s49, %s50
      %p54 = pneg %p48
      %p55 = scmp.eq.s32.totalorder %s25, 1
      %p56 = por %p54, %p55
      %p57 = scmp.ne.s32.totalorder %s49, %s52
      %p58 = scmp.eq.s32.totalorder %s25, 0
      %p59 = por %p57, %p58
      %p60 = scmp.ne.s32.totalorder %s49, %s52
      %p61 = scmp.eq.s32.totalorder %s30, 1
      %p62 = por %p60, %p61
      %p63 = scmp.ne.s32.totalorder %s52, %s53
      %p64 = scmp.eq.s32.totalorder %s30, 0
      %p65 = por %p63, %p64
      %p66 = scmp.ne.s32.totalorder %s52, %s53
      %p67 = scmp.eq.s32.totalorder %s31, 1
      %p68 = por %p66, %p67
      %p70 = scmp.ne.s32.totalorder %s53, %s69
      %p71 = scmp.eq.s32.totalorder %s31, 0
      %p72 = por %p70, %p71
      %s73 = ssub.s32 %s32, %s44
      %s74 = ssub.s32 %s33, %s40
      %s75 = sor.u32 %s73, %s74
      %p76 = scmp.eq.s32.totalorder %s75, 0
      %s78 = sadd.s32 %s77, 1
      %s79 = scalar_select %p76, %s77, %s78
      %p82 = pneg %p76
      %p83 = scmp.eq.s32.totalorder %s25, 1
      %p84 = por %p82, %p83
      %p85 = scmp.ne.s32.totalorder %s77, %s80
      %p86 = scmp.eq.s32.totalorder %s25, 0
      %p87 = por %p85, %p86
      %p88 = scmp.ne.s32.totalorder %s77, %s80
      %p89 = scmp.eq.s32.totalorder %s30, 1
      %p90 = por %p88, %p89
      %p91 = scmp.ne.s32.totalorder %s80, %s81
      %p92 = scmp.eq.s32.totalorder %s30, 0
      %p93 = por %p91, %p92
      %p94 = scmp.ne.s32.totalorder %s80, %s81
      %p95 = scmp.eq.s32.totalorder %s31, 1
      %p96 = por %p94, %p95
      %p98 = scmp.ne.s32.totalorder %s81, %s97
      %p99 = scmp.eq.s32.totalorder %s31, 0
      %p100 = por %p98, %p99
      %s102 = sadd.s32 %s101, 1
      %p105 = scmp.eq.s32.totalorder %s25, 1
      %p106 = scmp.ne.s32.totalorder %s101, %s103
      %p107 = scmp.eq.s32.totalorder %s25, 0
      %p108 = por %p106, %p107
      %p109 = scmp.ne.s32.totalorder %s101, %s103
      %p110 = scmp.eq.s32.totalorder %s30, 1
      %p111 = por %p109, %p110
      %p112 = scmp.ne.s32.totalorder %s103, %s104
      %p113 = scmp.eq.s32.totalorder %s30, 0
      %p114 = por %p112, %p113
      %p115 = scmp.ne.s32.totalorder %s103, %s104
      %p116 = scmp.eq.s32.totalorder %s31, 1
      %p117 = por %p115, %p116
      %p119 = scmp.ne.s32.totalorder %s104, %s118
      %p120 = scmp.eq.s32.totalorder %s31, 0
      %p121 = por %p119, %p120
      %s123 = sadd.s32 %s122, 1
      %p126 = scmp.eq.s32.totalorder %s25, 1
      %p127 = scmp.ne.s32.totalorder %s122, %s124
      %p128 = scmp.eq.s32.totalorder %s25, 0
      %p129 = por %p127, %p128
      %p130 = scmp.ne.s32.totalorder %s122, %s124
      %p131 = scmp.eq.s32.totalorder %s30, 1
      %p132 = por %p130, %p131
      %p133 = scmp.ne.s32.totalorder %s124, %s125
      %p134 = scmp.eq.s32.totalorder %s30, 0
      %p135 = por %p133, %p134
      %p136 = scmp.ne.s32.totalorder %s124, %s125
      %p137 = scmp.eq.s32.totalorder %s31, 1
      %p138 = por %p136, %p137
      %p140 = scmp.ne.s32.totalorder %s125, %s139
      %p141 = scmp.eq.s32.totalorder %s31, 0
      %p142 = por %p140, %p141
      %s144 = sadd.s32 %s143, 1
      %p147 = scmp.eq.s32.totalorder %s25, 1
      %p148 = scmp.ne.s32.totalorder %s143, %s145
      %p149 = scmp.eq.s32.totalorder %s25, 0
      %p150 = por %p148, %p149
      %p151 = scmp.ne.s32.totalorder %s143, %s145
      %p152 = scmp.eq.s32.totalorder %s30, 1
      %p153 = por %p151, %p152
      %p154 = scmp.ne.s32.totalorder %s145, %s146
      %p155 = scmp.eq.s32.totalorder %s30, 0
      %p156 = por %p154, %p155
      %p157 = scmp.ne.s32.totalorder %s145, %s146
      %p158 = scmp.eq.s32.totalorder %s31, 1
      %p159 = por %p157, %p158
      %p161 = scmp.ne.s32.totalorder %s146, %s160
      %p162 = scmp.eq.s32.totalorder %s31, 0
      %p163 = por %p161, %p162
      %s165 = sadd.s32 %s164, 1
      %p168 = scmp.eq.s32.totalorder %s25, 1
      %p169 = scmp.ne.s32.totalorder %s164, %s166
      %p170 = scmp.eq.s32.totalorder %s25, 0
      %p171 = por %p169, %p170
      %p172 = scmp.ne.s32.totalorder %s164, %s166
      %p173 = scmp.eq.s32.totalorder %s30, 1
      %p174 = por %p172, %p173
      %p175 = scmp.ne.s32.totalorder %s166, %s167
      %p176 = scmp.eq.s32.totalorder %s30, 0
      %p177 = por %p175, %p176
      %p178 = scmp.ne.s32.totalorder %s166, %s167
      %p179 = scmp.eq.s32.totalorder %s31, 1
      %p180 = por %p178, %p179
      %p182 = scmp.ne.s32.totalorder %s167, %s181
      %p183 = scmp.eq.s32.totalorder %s31, 0
      %p184 = por %p182, %p183
      %s186 = sadd.s32 %s185, 1
      %p189 = scmp.eq.s32.totalorder %s25, 1
      %p190 = scmp.ne.s32.totalorder %s185, %s187
      %p191 = scmp.eq.s32.totalorder %s25, 0
      %p192 = por %p190, %p191
      %p193 = scmp.ne.s32.totalorder %s185, %s187
      %p194 = scmp.eq.s32.totalorder %s30, 1
      %p195 = por %p193, %p194
      %p196 = scmp.ne.s32.totalorder %s187, %s188
      %p197 = scmp.eq.s32.totalorder %s30, 0
      %p198 = por %p196, %p197
      %p199 = scmp.ne.s32.totalorder %s187, %s188
      %p200 = scmp.eq.s32.totalorder %s31, 1
      %p201 = por %p199, %p200
      %p203 = scmp.ne.s32.totalorder %s188, %s202
      %p204 = scmp.eq.s32.totalorder %s31, 0
      %p205 = por %p203, %p204
      %s207 = sadd.s32 %s206, 1
      %p210 = scmp.eq.s32.totalorder %s25, 1
      %p211 = scmp.ne.s32.totalorder %s206, %s208
      %p212 = scmp.eq.s32.totalorder %s25, 0
      %p213 = por %p211, %p212
      %p214 = scmp.ne.s32.totalorder %s206, %s208
      %p215 = scmp.eq.s32.totalorder %s30, 1
      %p216 = por %p214, %p215
      %p217 = scmp.ne.s32.totalorder %s208, %s209
      %p218 = scmp.eq.s32.totalorder %s30, 0
      %p219 = por %p217, %p218
      %p220 = scmp.ne.s32.totalorder %s208, %s209
      %p221 = scmp.eq.s32.totalorder %s31, 1
      %p222 = por %p220, %p221
      %p224 = scmp.ne.s32.totalorder %s209, %s223
      %p225 = scmp.eq.s32.totalorder %s31, 0
      %p226 = por %p224, %p225
      %s228 = sadd.s32 %s227, 1
      %p231 = scmp.eq.s32.totalorder %s25, 1
      %p232 = scmp.ne.s32.totalorder %s227, %s229
      %p233 = scmp.eq.s32.totalorder %s25, 0
      %p234 = por %p232, %p233
      %p235 = scmp.ne.s32.totalorder %s227, %s229
      %p236 = scmp.eq.s32.totalorder %s30, 1
      %p237 = por %p235, %p236
      %p238 = scmp.ne.s32.totalorder %s229, %s230
      %p239 = scmp.eq.s32.totalorder %s30, 0
      %p240 = por %p238, %p239
      %p241 = scmp.ne.s32.totalorder %s229, %s230
      %p242 = scmp.eq.s32.totalorder %s31, 1
      %p243 = por %p241, %p242
      %p245 = scmp.ne.s32.totalorder %s230, %s244
      %p246 = scmp.eq.s32.totalorder %s31, 0
      %p247 = por %p245, %p246
      %s249 = sadd.s32 %s248, 1
      %p252 = scmp.eq.s32.totalorder %s25, 1
      %p253 = scmp.ne.s32.totalorder %s248, %s250
      %p254 = scmp.eq.s32.totalorder %s25, 0
      %p255 = por %p253, %p254
      %p256 = scmp.ne.s32.totalorder %s248, %s250
      %p257 = scmp.eq.s32.totalorder %s30, 1
      %p258 = por %p256, %p257
      %p259 = scmp.ne.s32.totalorder %s250, %s251
      %p260 = scmp.eq.s32.totalorder %s30, 0
      %p261 = por %p259, %p260
      %p262 = scmp.ne.s32.totalorder %s250, %s251
      %p263 = scmp.eq.s32.totalorder %s31, 1
      %p264 = por %p262, %p263
      %p266 = scmp.ne.s32.totalorder %s251, %s265
      %p267 = scmp.eq.s32.totalorder %s31, 0
      %p268 = por %p266, %p267
      %s270 = sadd.s32 %s269, 1
      %p273 = scmp.eq.s32.totalorder %s25, 1
      %p274 = scmp.ne.s32.totalorder %s269, %s271
      %p275 = scmp.eq.s32.totalorder %s25, 0
      %p276 = por %p274, %p275
      %p277 = scmp.ne.s32.totalorder %s269, %s271
      %p278 = scmp.eq.s32.totalorder %s30, 1
      %p279 = por %p277, %p278
      %p280 = scmp.ne.s32.totalorder %s271, %s272
      %p281 = scmp.eq.s32.totalorder %s30, 0
      %p282 = por %p280, %p281
      %p283 = scmp.ne.s32.totalorder %s271, %s272
      %p284 = scmp.eq.s32.totalorder %s31, 1
      %p285 = por %p283, %p284
      %p287 = scmp.ne.s32.totalorder %s272, %s286
      %p288 = scmp.eq.s32.totalorder %s31, 0
      %p289 = por %p287, %p288
      %s291 = sadd.s32 %s290, 1
      %p294 = scmp.eq.s32.totalorder %s25, 1
      %p295 = scmp.ne.s32.totalorder %s290, %s292
      %p296 = scmp.eq.s32.totalorder %s25, 0
      %p297 = por %p295, %p296
      %p298 = scmp.ne.s32.totalorder %s290, %s292
      %p299 = scmp.eq.s32.totalorder %s30, 1
      %p300 = por %p298, %p299
      %p301 = scmp.ne.s32.totalorder %s292, %s293
      %p302 = scmp.eq.s32.totalorder %s30, 0
      %p303 = por %p301, %p302
      %p304 = scmp.ne.s32.totalorder %s292, %s293
      %p305 = scmp.eq.s32.totalorder %s31, 1
      %p306 = por %p304, %p305
      %p308 = scmp.ne.s32.totalorder %s293, %s307
      %p309 = scmp.eq.s32.totalorder %s31, 0
      %p310 = por %p308, %p309
      %s312 = sadd.s32 %s311, 1
      %p315 = scmp.eq.s32.totalorder %s25, 1
      %p316 = scmp.ne.s32.totalorder %s311, %s313
      %p317 = scmp.eq.s32.totalorder %s25, 0
      %p318 = por %p316, %p317
      %p319 = scmp.ne.s32.totalorder %s311, %s313
      %p320 = scmp.eq.s32.totalorder %s30, 1
      %p321 = por %p319, %p320
      %p322 = scmp.ne.s32.totalorder %s313, %s314
      %p323 = scmp.eq.s32.totalorder %s30, 0
      %p324 = por %p322, %p323
      %p325 = scmp.ne.s32.totalorder %s313, %s314
      %p326 = scmp.eq.s32.totalorder %s31, 1
      %p327 = por %p325, %p326
      %p329 = scmp.ne.s32.totalorder %s314, %s328
      %p330 = scmp.eq.s32.totalorder %s31, 0
      %p331 = por %p329, %p330
      %s333 = sadd.s32 %s332, 1
      %p336 = scmp.eq.s32.totalorder %s25, 1
      %p337 = scmp.ne.s32.totalorder %s332, %s334
      %p338 = scmp.eq.s32.totalorder %s25, 0
      %p339 = por %p337, %p338
      %p340 = scmp.ne.s32.totalorder %s332, %s334
      %p341 = scmp.eq.s32.totalorder %s30, 1
      %p342 = por %p340, %p341
      %p343 = scmp.ne.s32.totalorder %s334, %s335
      %p344 = scmp.eq.s32.totalorder %s30, 0
      %p345 = por %p343, %p344
      %p346 = scmp.ne.s32.totalorder %s334, %s335
      %p347 = scmp.eq.s32.totalorder %s31, 1
      %p348 = por %p346, %p347
      %p350 = scmp.ne.s32.totalorder %s335, %s349
      %p351 = scmp.eq.s32.totalorder %s31, 0
      %p352 = por %p350, %p351
      %s354 = sadd.s32 %s353, 1
      %p357 = scmp.eq.s32.totalorder %s25, 1
      %p358 = scmp.ne.s32.totalorder %s353, %s355
      %p359 = scmp.eq.s32.totalorder %s25, 0
      %p360 = por %p358, %p359
      %p361 = scmp.ne.s32.totalorder %s353, %s355
      %p362 = scmp.eq.s32.totalorder %s30, 1
      %p363 = por %p361, %p362
      %p364 = scmp.ne.s32.totalorder %s355, %s356
      %p365 = scmp.eq.s32.totalorder %s30, 0
      %p366 = por %p364, %p365
      %p367 = scmp.ne.s32.totalorder %s355, %s356
      %p368 = scmp.eq.s32.totalorder %s31, 1
      %p369 = por %p367, %p368
      %p371 = scmp.ne.s32.totalorder %s356, %s370
      %p372 = scmp.eq.s32.totalorder %s31, 0
      %p373 = por %p371, %p372
      %s375 = sadd.s32 %s374, 1
      %p378 = scmp.eq.s32.totalorder %s25, 1
      %p379 = scmp.ne.s32.totalorder %s374, %s376
      %p380 = scmp.eq.s32.totalorder %s25, 0
      %p381 = por %p379, %p380
      %p382 = scmp.ne.s32.totalorder %s374, %s376
      %p383 = scmp.eq.s32.totalorder %s30, 1
      %p384 = por %p382, %p383
      %p385 = scmp.ne.s32.totalorder %s376, %s377
      %p386 = scmp.eq.s32.totalorder %s30, 0
      %p387 = por %p385, %p386
      %p388 = scmp.ne.s32.totalorder %s376, %s377
      %p389 = scmp.eq.s32.totalorder %s31, 1
      %p390 = por %p388, %p389
      %p392 = scmp.ne.s32.totalorder %s377, %s391
      %p393 = scmp.eq.s32.totalorder %s31, 0
      %p394 = por %p392, %p393
      %s395 = ssub.s32 %s32, %s44
      %p396 = scmp.eq.s32.totalorder %s395, 0
      %s398 = sadd.s32 %s397, 1
      %s399 = scalar_select %p396, %s397, %s398
      %p402 = pneg %p396
      %p403 = scmp.eq.s32.totalorder %s25, 1
      %p404 = por %p402, %p403
      %p405 = scmp.ne.s32.totalorder %s397, %s400
      %p406 = scmp.eq.s32.totalorder %s25, 0
      %p407 = por %p405, %p406
      %p408 = scmp.ne.s32.totalorder %s397, %s400
      %p409 = scmp.eq.s32.totalorder %s30, 1
      %p410 = por %p408, %p409
      %p411 = scmp.ne.s32.totalorder %s400, %s401
      %p412 = scmp.eq.s32.totalorder %s30, 0
      %p413 = por %p411, %p412
      %p414 = scmp.ne.s32.totalorder %s400, %s401
      %p415 = scmp.eq.s32.totalorder %s31, 1
      %p416 = por %p414, %p415
      %p418 = scmp.ne.s32.totalorder %s401, %s417
      %p419 = scmp.eq.s32.totalorder %s31, 0
      %p420 = por %p418, %p419
      %p421 = scmp.le.s32.totalorder 1, %s25
      %p422 = scmp.lt.s32.totalorder %s25, 3
      %p423 = pnand %p421, %p422
      %p424 = pneg %p423
      // Predicated region
      $region9: #{model_forward.1} parent=5 // pred_check
        _
      $region10: #{model_forward.1} parent=5 // pred_check_branch
        %426 = sbr.rel (%p423) target = $region12
      $region11: #{model_forward.1} parent=5 // pred_region
        %s427 = ssub.s32 %s25, 1
        // Predicated region
        $region13: #{model_forward.1} parent=11 // pred_check
          %p428 = pneg %p114
        $region14: #{model_forward.1} parent=11 // pred_check_branch
          %430 = sbr.rel (%p428) target = $region16
        $region15: #{model_forward.1} parent=11 // pred_region
          _
        $region16: #{model_forward.1} parent=11 // pred_fallthru
          _
        // Predicated region
        $region17: #{model_forward.1} parent=11 // pred_check
          %p431 = pneg %p135
        $region18: #{model_forward.1} parent=11 // pred_check_branch
          %433 = sbr.rel (%p431) target = $region20
        $region19: #{model_forward.1} parent=11 // pred_region
          _
        $region20: #{model_forward.1} parent=11 // pred_fallthru
          _
        // Predicated region
        $region21: #{model_forward.1} parent=11 // pred_check
          %p434 = pneg %p156
        $region22: #{model_forward.1} parent=11 // pred_check_branch
          %436 = sbr.rel (%p434) target = $region24
        $region23: #{model_forward.1} parent=11 // pred_region
          _
        $region24: #{model_forward.1} parent=11 // pred_fallthru
          _
        // Predicated region
        $region25: #{model_forward.1} parent=11 // pred_check
          %p437 = pneg %p177
        $region26: #{model_forward.1} parent=11 // pred_check_branch
          %439 = sbr.rel (%p437) target = $region28
        $region27: #{model_forward.1} parent=11 // pred_region
          _
        $region28: #{model_forward.1} parent=11 // pred_fallthru
          _
        // Predicated region
        $region29: #{model_forward.1} parent=11 // pred_check
          %p440 = pneg %p198
        $region30: #{model_forward.1} parent=11 // pred_check_branch
          %442 = sbr.rel (%p440) target = $region32
        $region31: #{model_forward.1} parent=11 // pred_region
          _
        $region32: #{model_forward.1} parent=11 // pred_fallthru
          _
        // Predicated region
        $region33: #{model_forward.1} parent=11 // pred_check
          %p443 = pneg %p219
        $region34: #{model_forward.1} parent=11 // pred_check_branch
          %445 = sbr.rel (%p443) target = $region36
        $region35: #{model_forward.1} parent=11 // pred_region
          _
        $region36: #{model_forward.1} parent=11 // pred_fallthru
          _
        // Predicated region
        $region37: #{model_forward.1} parent=11 // pred_check
          %p446 = pneg %p240
        $region38: #{model_forward.1} parent=11 // pred_check_branch
          %448 = sbr.rel (%p446) target = $region40
        $region39: #{model_forward.1} parent=11 // pred_region
          _
        $region40: #{model_forward.1} parent=11 // pred_fallthru
          _
        // Predicated region
        $region41: #{model_forward.1} parent=11 // pred_check
          %p449 = pneg %p261
        $region42: #{model_forward.1} parent=11 // pred_check_branch
          %451 = sbr.rel (%p449) target = $region44
        $region43: #{model_forward.1} parent=11 // pred_region
          _
        $region44: #{model_forward.1} parent=11 // pred_fallthru
          _
        // Predicated region
        $region45: #{model_forward.1} parent=11 // pred_check
          %p452 = pneg %p282
        $region46: #{model_forward.1} parent=11 // pred_check_branch
          %454 = sbr.rel (%p452) target = $region48
        $region47: #{model_forward.1} parent=11 // pred_region
          _
        $region48: #{model_forward.1} parent=11 // pred_fallthru
          _
        // Predicated region
        $region49: #{model_forward.1} parent=11 // pred_check
          %p455 = pneg %p303
        $region50: #{model_forward.1} parent=11 // pred_check_branch
          %457 = sbr.rel (%p455) target = $region52
        $region51: #{model_forward.1} parent=11 // pred_region
          _
        $region52: #{model_forward.1} parent=11 // pred_fallthru
          _
        // Predicated region
        $region53: #{model_forward.1} parent=11 // pred_check
          %p458 = pneg %p324
        $region54: #{model_forward.1} parent=11 // pred_check_branch
          %460 = sbr.rel (%p458) target = $region56
        $region55: #{model_forward.1} parent=11 // pred_region
          %s462 = ssub.s32 10240, 10240
          %463 = vsyncadd [#allocation6], %s462
          %s464 = sshll.u32 [#allocation5], 4
          %s465 = int_to_ptr.vmem [resolvable:$true] %s464
          %470 = dma.hbm_to_vmem [thread:$0]  %s12, 10240, %s465, [#allocation6], 640, 640, 40
        $region56: #{model_forward.1} parent=11 // pred_fallthru
          _
        // Predicated region
        $region57: #{model_forward.1} parent=11 // pred_check
          %p471 = pneg %p345
        $region58: #{model_forward.1} parent=11 // pred_check_branch
          %473 = sbr.rel (%p471) target = $region60
        $region59: #{model_forward.1} parent=11 // pred_region
          _
        $region60: #{model_forward.1} parent=11 // pred_fallthru
          _
        // Predicated region
        $region61: #{model_forward.1} parent=11 // pred_check
          %p474 = pneg %p366
        $region62: #{model_forward.1} parent=11 // pred_check_branch
          %476 = sbr.rel (%p474) target = $region64
        $region63: #{model_forward.1} parent=11 // pred_region
          _
        $region64: #{model_forward.1} parent=11 // pred_fallthru
          _
        // Predicated region
        $region65: #{model_forward.1} parent=11 // pred_check
          %p477 = pneg %p387
        $region66: #{model_forward.1} parent=11 // pred_check_branch
          %479 = sbr.rel (%p477) target = $region68
        $region67: #{model_forward.1} parent=11 // pred_region
          _
        $region68: #{model_forward.1} parent=11 // pred_fallthru
          _
      $region12: #{model_forward.1} parent=5 // pred_fallthru
        _
      %p480 = scmp.lt.s32.totalorder %s25, 2
      // Predicated region
      $region69: #{model_forward.1} parent=5 // pred_check
        %p481 = pneg %p480
      $region70: #{model_forward.1} parent=5 // pred_check_branch
        %483 = sbr.rel (%p481) target = $region72
      $region71: #{model_forward.1} parent=5 // pred_region
        // Predicated region
        $region73: #{model_forward.1} parent=71 // pred_check
          %p484 = pneg %p59
        $region74: #{model_forward.1} parent=71 // pred_check_branch
          %486 = sbr.rel (%p484) target = $region76
        $region75: #{model_forward.1} parent=71 // pred_region
          %s487 = smul.u32 32, %s33
          %p488 = scmp.lt.s32.totalorder %s32, 1
          %s489 = scalar_select %p488, %s32, 1
          %p490 = scmp.lt.s32.totalorder %s487, 31
          %s491 = scalar_select %p490, %s487, 31
          %s492 = smul.addr %s489, 32
          %s493 = sadd.s32 %s491, %s492
          %s494 = smul.addr %s493, 4
          %s495 = scalar_lea.vmem %s0, %s494
          %s496 = smul.u32 32, %s33
        $region76: #{model_forward.1} parent=71 // pred_fallthru
          _
        // Predicated region
        $region77: #{model_forward.1} parent=71 // pred_check
          %p497 = pneg %p87
        $region78: #{model_forward.1} parent=71 // pred_check_branch
          %499 = sbr.rel (%p497) target = $region80
        $region79: #{model_forward.1} parent=71 // pred_region
          %s500 = smul.u32 32, %s33
          %p501 = scmp.lt.s32.totalorder %s32, 1
          %s502 = scalar_select %p501, %s32, 1
          %p503 = scmp.lt.s32.totalorder %s500, 31
          %s504 = scalar_select %p503, %s500, 31
          %s505 = smul.addr %s502, 32
          %s506 = sadd.s32 %s504, %s505
          %s507 = smul.addr %s506, 4
          %s508 = scalar_lea.vmem %s1, %s507
          %s509 = smul.u32 32, %s33
        $region80: #{model_forward.1} parent=71 // pred_fallthru
          _
      $region72: #{model_forward.1} parent=5 // pred_fallthru
        _
      %p510 = scmp.le.s32.totalorder 1, %s25
      %p511 = scmp.lt.s32.totalorder %s25, 3
      %p512 = pnand %p510, %p511
      %p513 = pneg %p512
      // Predicated region
      $region81: #{model_forward.1} parent=5 // pred_check
        _
      $region82: #{model_forward.1} parent=5 // pred_check_branch
        %515 = sbr.rel (%p512) target = $region84
      $region83: #{model_forward.1} parent=5 // pred_region
        %s516 = ssub.s32 %s25, 1
        // Predicated region
        $region85: #{model_forward.1} parent=83 // pred_check
          %p517 = pneg %p324
        $region86: #{model_forward.1} parent=83 // pred_check_branch
          %519 = sbr.rel (%p517) target = $region88
        $region87: #{model_forward.1} parent=83 // pred_region
          %520 = dma.done [#allocation6], 10240
        $region88: #{model_forward.1} parent=83 // pred_fallthru
          _
        %s521 = smul.u32 32, %s35
        %p522 = scmp.lt.s32.totalorder %s34, 1
        %s523 = scalar_select %p522, %s34, 1
        %p524 = scmp.lt.s32.totalorder %s521, 31
        %s525 = scalar_select %p524, %s521, 31
        %s526 = smul.addr %s523, 32
        %s527 = sadd.s32 %s525, %s526
        %s528 = smul.addr %s527, 4
        %s529 = scalar_lea.vmem %s0, %s528
        %p530 = pneg %p65
        %p531 = pneg %p62
        %s532 = smul.u32 32, %s35
        %p533 = scmp.lt.s32.totalorder %s34, 1
        %s534 = scalar_select %p533, %s34, 1
        %p535 = scmp.lt.s32.totalorder %s532, 31
        %s536 = scalar_select %p535, %s532, 31
        %s537 = smul.addr %s534, 32
        %s538 = sadd.s32 %s536, %s537
        %s539 = smul.addr %s538, 4
        %s540 = scalar_lea.vmem %s1, %s539
        %p541 = pneg %p93
        %p542 = pneg %p90
        %p543 = pneg %p114
        %p544 = pneg %p111
        %p545 = pneg %p135
        %p546 = pneg %p132
        %p547 = pneg %p156
        %p548 = pneg %p153
        %p549 = pneg %p177
        %p550 = pneg %p174
        %p551 = pneg %p198
        %p552 = pneg %p195
        %p553 = pneg %p219
        %p554 = pneg %p216
        %p555 = pneg %p240
        %p556 = pneg %p237
        %p557 = pneg %p261
        %p558 = pneg %p258
        %p559 = pneg %p282
        %p560 = pneg %p279
        %p561 = pneg %p303
        %p562 = pneg %p300
        %p563 = pneg %p324
        %p564 = pneg %p321
        %p565 = pneg %p345
        %p566 = pneg %p342
        %p567 = pneg %p366
        %p568 = pneg %p363
        %p569 = pneg %p387
        %p570 = pneg %p384
        %p571 = pneg %p413
        %p572 = pneg %p410
        %p573 = scmp.lt.s32.totalorder %s34, 1
        %s574 = scalar_select %p573, %s34, 1
        %s575 = smul.addr %s574, 8
        %s576 = scalar_lea.vmem %s16, %s575
        %s577 = smul.u32 32, %s35
        %p578 = scmp.lt.s32.totalorder %s34, 1
        %s579 = scalar_select %p578, %s34, 1
        %p580 = scmp.lt.s32.totalorder %s577, 31
        %s581 = scalar_select %p580, %s577, 31
        %s582 = smul.addr %s579, 32
        %s583 = sadd.s32 %s581, %s582
        %s584 = smul.addr %s583, 4
        %s585 = scalar_lea.vmem %s0, %s584
        %s586 = smul.u32 32, %s35
        %s587 = smul.u32 32, %s35
        %p588 = scmp.lt.s32.totalorder %s34, 1
        %s589 = scalar_select %p588, %s34, 1
        %p590 = scmp.lt.s32.totalorder %s587, 31
        %s591 = scalar_select %p590, %s587, 31
        %s592 = smul.addr %s589, 32
        %s593 = sadd.s32 %s591, %s592
        %s594 = smul.addr %s593, 4
        %s595 = scalar_lea.vmem %s1, %s594
        %s596 = smul.u32 32, %s35
        %p597 = scmp.lt.s32.totalorder %s34, 1
        %s598 = scalar_select %p597, %s34, 1
        %s599 = smul.addr %s598, 8
        %s600 = scalar_lea.vmem %s16, %s599
        %p602 = scmp.eq.s32.totalorder %s35, 0
        // Predicated region
        $region89: #{model_forward.1} parent=83 // pred_check
          %p603 = pneg %p602
        $region90: #{model_forward.1} parent=83 // pred_check_branch
          %605 = sbr.rel (%p603) target = $region92
        $region91: #{model_forward.1} parent=83 // pred_region
          %606 = vst [vmem:[#allocation2] sm:$0xff] 0.0
          %607 = vst [vmem:[#allocation2 + $0x8] sm:$0xff] 0.0
          %608 = vst [vmem:[#allocation2 + $0x10] sm:$0xff] 0.0
          %609 = vst [vmem:[#allocation2 + $0x18] sm:$0xff] 0.0
          %610 = vst [vmem:[#allocation2 + $0x20] sm:$0xff] 0.0
          %611 = vst [vmem:[#allocation2 + $0x28] sm:$0xff] 0.0
          %612 = vst [vmem:[#allocation2 + $0x30] sm:$0xff] 0.0
          %613 = vst [vmem:[#allocation2 + $0x38] sm:$0xff] 0.0
          %614 = vst [vmem:[#allocation2 + $0x40] sm:$0xff] 0.0
          %615 = vst [vmem:[#allocation2 + $0x48] sm:$0xff] 0.0
          %616 = vst [vmem:[#allocation3] sm:$0xff] 0.0
          %617 = vst [vmem:[#allocation3 + $0x8] sm:$0xff] 0.0
          %618 = vst [vmem:[#allocation3 + $0x10] sm:$0xff] 0.0
          %619 = vst [vmem:[#allocation3 + $0x18] sm:$0xff] 0.0
          %620 = vst [vmem:[#allocation3 + $0x20] sm:$0xff] 0.0
          %621 = vst [vmem:[#allocation3 + $0x28] sm:$0xff] 0.0
          %622 = vst [vmem:[#allocation3 + $0x30] sm:$0xff] 0.0
          %623 = vst [vmem:[#allocation3 + $0x38] sm:$0xff] 0.0
          %624 = vst [vmem:[#allocation3 + $0x40] sm:$0xff] 0.0
          %625 = vst [vmem:[#allocation3 + $0x48] sm:$0xff] 0.0
        $region92: #{model_forward.1} parent=83 // pred_fallthru
          _
        %v626 = vld [vmem:[%s585] sm:$0xf]
        %v627 = vld [vmem:[%s585 + $0x4] sm:$0xf]
        %v628 = vld [vmem:[%s585 + $0x8] sm:$0xf]
        %v629 = vld [vmem:[%s585 + $0xc] sm:$0xf]
        %v630 = vld [vmem:[%s585 + $0x10] sm:$0xf]
        %v631 = vld [vmem:[%s585 + $0x14] sm:$0xf]
        %v632 = vld [vmem:[%s585 + $0x18] sm:$0xf]
        %v633 = vld [vmem:[%s585 + $0x1c] sm:$0xf]
        %v634 = vld [vmem:[%s585 + $0x20] sm:$0xf]
        %v635 = vld [vmem:[%s585 + $0x24] sm:$0xf]
        %v636 = vld [vmem:[%s585 + $0x28] sm:$0xf]
        %v637 = vld [vmem:[%s585 + $0x2c] sm:$0xf]
        %v638 = vld [vmem:[%s585 + $0x30] sm:$0xf]
        %v639 = vld [vmem:[%s585 + $0x34] sm:$0xf]
        %v640 = vld [vmem:[%s585 + $0x38] sm:$0xf]
        %v641 = vld [vmem:[%s585 + $0x3c] sm:$0xf]
        %v642 = vld [vmem:[%s585 + $0x40] sm:$0xf]
        %v643 = vld [vmem:[%s585 + $0x44] sm:$0xf]
        %v644 = vld [vmem:[%s585 + $0x48] sm:$0xf]
        %v645 = vld [vmem:[%s585 + $0x4c] sm:$0xf]
        %v646 = vld [vmem:[%s585 + $0x50] sm:$0xf]
        %v647 = vld [vmem:[%s585 + $0x54] sm:$0xf]
        %v648 = vld [vmem:[%s585 + $0x58] sm:$0xf]
        %v649 = vld [vmem:[%s585 + $0x5c] sm:$0xf]
        %v650 = vld [vmem:[%s585 + $0x60] sm:$0xf]
        %v651 = vld [vmem:[%s585 + $0x64] sm:$0xf]
        %v652 = vld [vmem:[%s585 + $0x68] sm:$0xf]
        %v653 = vld [vmem:[%s585 + $0x6c] sm:$0xf]
        %v654 = vld [vmem:[%s585 + $0x70] sm:$0xf]
        %v655 = vld [vmem:[%s585 + $0x74] sm:$0xf]
        %v656 = vld [vmem:[%s585 + $0x78] sm:$0xf]
        %v657 = vld [vmem:[%s585 + $0x7c] sm:$0xf]
        %v658 = vunpack.c.l.bf16 %v626
        %v659 = vunpack.c.l.bf16 %v627
        %v660 = vunpack.c.l.bf16 %v628
        %v661 = vunpack.c.l.bf16 %v629
        %v662 = vunpack.c.l.bf16 %v630
        %v663 = vunpack.c.l.bf16 %v631
        %v664 = vunpack.c.l.bf16 %v632
        %v665 = vunpack.c.l.bf16 %v633
        %v666 = vunpack.c.l.bf16 %v634
        %v667 = vunpack.c.l.bf16 %v635
        %v668 = vunpack.c.l.bf16 %v636
        %v669 = vunpack.c.l.bf16 %v637
        %v670 = vunpack.c.l.bf16 %v638
        %v671 = vunpack.c.l.bf16 %v639
        %v672 = vunpack.c.l.bf16 %v640
        %v673 = vunpack.c.l.bf16 %v641
        %v674 = vunpack.c.l.bf16 %v642
        %v675 = vunpack.c.l.bf16 %v643
        %v676 = vunpack.c.l.bf16 %v644
        %v677 = vunpack.c.l.bf16 %v645
        %v678 = vunpack.c.l.bf16 %v646
        %v679 = vunpack.c.l.bf16 %v647
        %v680 = vunpack.c.l.bf16 %v648
        %v681 = vunpack.c.l.bf16 %v649
        %v682 = vunpack.c.l.bf16 %v650
        %v683 = vunpack.c.l.bf16 %v651
        %v684 = vunpack.c.l.bf16 %v652
        %v685 = vunpack.c.l.bf16 %v653
        %v686 = vunpack.c.l.bf16 %v654
        %v687 = vunpack.c.l.bf16 %v655
        %v688 = vunpack.c.l.bf16 %v656
        %v689 = vunpack.c.l.bf16 %v657
        %v690 = vld [vmem:[%s595] sm:$0xf]
        %v691 = vld [vmem:[%s595 + $0x4] sm:$0xf]
        %v692 = vld [vmem:[%s595 + $0x8] sm:$0xf]
        %v693 = vld [vmem:[%s595 + $0xc] sm:$0xf]
        %v694 = vld [vmem:[%s595 + $0x10] sm:$0xf]
        %v695 = vld [vmem:[%s595 + $0x14] sm:$0xf]
        %v696 = vld [vmem:[%s595 + $0x18] sm:$0xf]
        %v697 = vld [vmem:[%s595 + $0x1c] sm:$0xf]
        %v698 = vld [vmem:[%s595 + $0x20] sm:$0xf]
        %v699 = vld [vmem:[%s595 + $0x24] sm:$0xf]
        %v700 = vld [vmem:[%s595 + $0x28] sm:$0xf]
        %v701 = vld [vmem:[%s595 + $0x2c] sm:$0xf]
        %v702 = vld [vmem:[%s595 + $0x30] sm:$0xf]
        %v703 = vld [vmem:[%s595 + $0x34] sm:$0xf]
        %v704 = vld [vmem:[%s595 + $0x38] sm:$0xf]
        %v705 = vld [vmem:[%s595 + $0x3c] sm:$0xf]
        %v706 = vld [vmem:[%s595 + $0x40] sm:$0xf]
        %v707 = vld [vmem:[%s595 + $0x44] sm:$0xf]
        %v708 = vld [vmem:[%s595 + $0x48] sm:$0xf]
        %v709 = vld [vmem:[%s595 + $0x4c] sm:$0xf]
        %v710 = vld [vmem:[%s595 + $0x50] sm:$0xf]
        %v711 = vld [vmem:[%s595 + $0x54] sm:$0xf]
        %v712 = vld [vmem:[%s595 + $0x58] sm:$0xf]
        %v713 = vld [vmem:[%s595 + $0x5c] sm:$0xf]
        %v714 = vld [vmem:[%s595 + $0x60] sm:$0xf]
        %v715 = vld [vmem:[%s595 + $0x64] sm:$0xf]
        %v716 = vld [vmem:[%s595 + $0x68] sm:$0xf]
        %v717 = vld [vmem:[%s595 + $0x6c] sm:$0xf]
        %v718 = vld [vmem:[%s595 + $0x70] sm:$0xf]
        %v719 = vld [vmem:[%s595 + $0x74] sm:$0xf]
        %v720 = vld [vmem:[%s595 + $0x78] sm:$0xf]
        %v721 = vld [vmem:[%s595 + $0x7c] sm:$0xf]
        %v722 = vunpack.c.l.bf16 %v690
        %v723 = vunpack.c.l.bf16 %v691
        %v724 = vunpack.c.l.bf16 %v692
        %v725 = vunpack.c.l.bf16 %v693
        %v726 = vunpack.c.l.bf16 %v694
        %v727 = vunpack.c.l.bf16 %v695
        %v728 = vunpack.c.l.bf16 %v696
        %v729 = vunpack.c.l.bf16 %v697
        %v730 = vunpack.c.l.bf16 %v698
        %v731 = vunpack.c.l.bf16 %v699
        %v732 = vunpack.c.l.bf16 %v700
        %v733 = vunpack.c.l.bf16 %v701
        %v734 = vunpack.c.l.bf16 %v702
        %v735 = vunpack.c.l.bf16 %v703
        %v736 = vunpack.c.l.bf16 %v704
        %v737 = vunpack.c.l.bf16 %v705
        %v738 = vunpack.c.l.bf16 %v706
        %v739 = vunpack.c.l.bf16 %v707
        %v740 = vunpack.c.l.bf16 %v708
        %v741 = vunpack.c.l.bf16 %v709
        %v742 = vunpack.c.l.bf16 %v710
        %v743 = vunpack.c.l.bf16 %v711
        %v744 = vunpack.c.l.bf16 %v712
        %v745 = vunpack.c.l.bf16 %v713
        %v746 = vunpack.c.l.bf16 %v714
        %v747 = vunpack.c.l.bf16 %v715
        %v748 = vunpack.c.l.bf16 %v716
        %v749 = vunpack.c.l.bf16 %v717
        %v750 = vunpack.c.l.bf16 %v718
        %v751 = vunpack.c.l.bf16 %v719
        %v752 = vunpack.c.l.bf16 %v720
        %v753 = vunpack.c.l.bf16 %v721
        %v754 = vld [vmem:[%s2] sm:$0x7]
        %v755 = vld [vmem:[%s4] sm:$0x7]
        %757 = vset.pattern.permute.xlu0 0
        %758 = vperm.xlu0 %757, %v658
        %v759 = vpop.permute.xlu0 %758
        %762 = vset.pattern.permute.xlu0 0
        %763 = vperm.xlu0 %762, %v659
        %v764 = vpop.permute.xlu0 %763
        %767 = vset.pattern.permute.xlu0 0
        %768 = vperm.xlu0 %767, %v660
        %v769 = vpop.permute.xlu0 %768
        %772 = vset.pattern.permute.xlu0 0
        %773 = vperm.xlu0 %772, %v661
        %v774 = vpop.permute.xlu0 %773
        %777 = vset.pattern.permute.xlu0 0
        %778 = vperm.xlu0 %777, %v662
        %v779 = vpop.permute.xlu0 %778
        %782 = vset.pattern.permute.xlu0 0
        %783 = vperm.xlu0 %782, %v663
        %v784 = vpop.permute.xlu0 %783
        %787 = vset.pattern.permute.xlu0 0
        %788 = vperm.xlu0 %787, %v664
        %v789 = vpop.permute.xlu0 %788
        %792 = vset.pattern.permute.xlu0 0
        %793 = vperm.xlu0 %792, %v665
        %v794 = vpop.permute.xlu0 %793
        %797 = vset.pattern.permute.xlu0 0
        %798 = vperm.xlu0 %797, %v666
        %v799 = vpop.permute.xlu0 %798
        %802 = vset.pattern.permute.xlu0 0
        %803 = vperm.xlu0 %802, %v667
        %v804 = vpop.permute.xlu0 %803
        %807 = vset.pattern.permute.xlu0 0
        %808 = vperm.xlu0 %807, %v668
        %v809 = vpop.permute.xlu0 %808
        %812 = vset.pattern.permute.xlu0 0
        %813 = vperm.xlu0 %812, %v669
        %v814 = vpop.permute.xlu0 %813
        %817 = vset.pattern.permute.xlu0 0
        %818 = vperm.xlu0 %817, %v670
        %v819 = vpop.permute.xlu0 %818
        %822 = vset.pattern.permute.xlu0 0
        %823 = vperm.xlu0 %822, %v671
        %v824 = vpop.permute.xlu0 %823
        %827 = vset.pattern.permute.xlu0 0
        %828 = vperm.xlu0 %827, %v672
        %v829 = vpop.permute.xlu0 %828
        %832 = vset.pattern.permute.xlu0 0
        %833 = vperm.xlu0 %832, %v673
        %v834 = vpop.permute.xlu0 %833
        %837 = vset.pattern.permute.xlu0 0
        %838 = vperm.xlu0 %837, %v674
        %v839 = vpop.permute.xlu0 %838
        %842 = vset.pattern.permute.xlu0 0
        %843 = vperm.xlu0 %842, %v675
        %v844 = vpop.permute.xlu0 %843
        %847 = vset.pattern.permute.xlu0 0
        %848 = vperm.xlu0 %847, %v676
        %v849 = vpop.permute.xlu0 %848
        %852 = vset.pattern.permute.xlu0 0
        %853 = vperm.xlu0 %852, %v677
        %v854 = vpop.permute.xlu0 %853
        %857 = vset.pattern.permute.xlu0 0
        %858 = vperm.xlu0 %857, %v678
        %v859 = vpop.permute.xlu0 %858
        %862 = vset.pattern.permute.xlu0 0
        %863 = vperm.xlu0 %862, %v679
        %v864 = vpop.permute.xlu0 %863
        %867 = vset.pattern.permute.xlu0 0
        %868 = vperm.xlu0 %867, %v680
        %v869 = vpop.permute.xlu0 %868
        %872 = vset.pattern.permute.xlu0 0
        %873 = vperm.xlu0 %872, %v681
        %v874 = vpop.permute.xlu0 %873
        %877 = vset.pattern.permute.xlu0 0
        %878 = vperm.xlu0 %877, %v682
        %v879 = vpop.permute.xlu0 %878
        %882 = vset.pattern.permute.xlu0 0
        %883 = vperm.xlu0 %882, %v683
        %v884 = vpop.permute.xlu0 %883
        %887 = vset.pattern.permute.xlu0 0
        %888 = vperm.xlu0 %887, %v684
        %v889 = vpop.permute.xlu0 %888
        %892 = vset.pattern.permute.xlu0 0
        %893 = vperm.xlu0 %892, %v685
        %v894 = vpop.permute.xlu0 %893
        %897 = vset.pattern.permute.xlu0 0
        %898 = vperm.xlu0 %897, %v686
        %v899 = vpop.permute.xlu0 %898
        %902 = vset.pattern.permute.xlu0 0
        %903 = vperm.xlu0 %902, %v687
        %v904 = vpop.permute.xlu0 %903
        %907 = vset.pattern.permute.xlu0 0
        %908 = vperm.xlu0 %907, %v688
        %v909 = vpop.permute.xlu0 %908
        %912 = vset.pattern.permute.xlu0 0
        %913 = vperm.xlu0 %912, %v689
        %v914 = vpop.permute.xlu0 %913
        %v916 = vlaneseq
        %v917 = vshrl.u32 %v916, 7
        %v918 = vsub.s32 0, %v917
        %v919 = vrot.slane %v754, %v918
        %v920 = vmul.f32 %v759, %v919
        %v921 = vmul.f32 %v764, %v919
        %v922 = vmul.f32 %v769, %v919
        %v923 = vmul.f32 %v774, %v919
        %v924 = vmul.f32 %v779, %v919
        %v925 = vmul.f32 %v784, %v919
        %v926 = vmul.f32 %v789, %v919
        %v927 = vmul.f32 %v794, %v919
        %v928 = vmul.f32 %v799, %v919
        %v929 = vmul.f32 %v804, %v919
        %v930 = vmul.f32 %v809, %v919
        %v931 = vmul.f32 %v814, %v919
        %v932 = vmul.f32 %v819, %v919
        %v933 = vmul.f32 %v824, %v919
        %v934 = vmul.f32 %v829, %v919
        %v935 = vmul.f32 %v834, %v919
        %v936 = vmul.f32 %v839, %v919
        %v937 = vmul.f32 %v844, %v919
        %v938 = vmul.f32 %v849, %v919
        %v939 = vmul.f32 %v854, %v919
        %v940 = vmul.f32 %v859, %v919
        %v941 = vmul.f32 %v864, %v919
        %v942 = vmul.f32 %v869, %v919
        %v943 = vmul.f32 %v874, %v919
        %v944 = vmul.f32 %v879, %v919
        %v945 = vmul.f32 %v884, %v919
        %v946 = vmul.f32 %v889, %v919
        %v947 = vmul.f32 %v894, %v919
        %v948 = vmul.f32 %v899, %v919
        %v949 = vmul.f32 %v904, %v919
        %v950 = vmul.f32 %v909, %v919
        %v951 = vmul.f32 %v914, %v919
        %952 = vset.pattern.permute.xlu0 1
        %953 = vperm.xlu0 %952, %v658
        %v954 = vpop.permute.xlu0 %953
        %956 = vset.pattern.permute.xlu0 1
        %957 = vperm.xlu0 %956, %v659
        %v958 = vpop.permute.xlu0 %957
        %960 = vset.pattern.permute.xlu0 1
        %961 = vperm.xlu0 %960, %v660
        %v962 = vpop.permute.xlu0 %961
        %964 = vset.pattern.permute.xlu0 1
        %965 = vperm.xlu0 %964, %v661
        %v966 = vpop.permute.xlu0 %965
        %968 = vset.pattern.permute.xlu0 1
        %969 = vperm.xlu0 %968, %v662
        %v970 = vpop.permute.xlu0 %969
        %972 = vset.pattern.permute.xlu0 1
        %973 = vperm.xlu0 %972, %v663
        %v974 = vpop.permute.xlu0 %973
        %976 = vset.pattern.permute.xlu0 1
        %977 = vperm.xlu0 %976, %v664
        %v978 = vpop.permute.xlu0 %977
        %980 = vset.pattern.permute.xlu0 1
        %981 = vperm.xlu0 %980, %v665
        %v982 = vpop.permute.xlu0 %981
        %984 = vset.pattern.permute.xlu0 1
        %985 = vperm.xlu0 %984, %v666
        %v986 = vpop.permute.xlu0 %985
        %988 = vset.pattern.permute.xlu0 1
        %989 = vperm.xlu0 %988, %v667
        %v990 = vpop.permute.xlu0 %989
        %992 = vset.pattern.permute.xlu0 1
        %993 = vperm.xlu0 %992, %v668
        %v994 = vpop.permute.xlu0 %993
        %996 = vset.pattern.permute.xlu0 1
        %997 = vperm.xlu0 %996, %v669
        %v998 = vpop.permute.xlu0 %997
        %1000 = vset.pattern.permute.xlu0 1
        %1001 = vperm.xlu0 %1000, %v670
        %v1002 = vpop.permute.xlu0 %1001
        %1004 = vset.pattern.permute.xlu0 1
        %1005 = vperm.xlu0 %1004, %v671
        %v1006 = vpop.permute.xlu0 %1005
        %1008 = vset.pattern.permute.xlu0 1
        %1009 = vperm.xlu0 %1008, %v672
        %v1010 = vpop.permute.xlu0 %1009
        %1012 = vset.pattern.permute.xlu0 1
        %1013 = vperm.xlu0 %1012, %v673
        %v1014 = vpop.permute.xlu0 %1013
        %1016 = vset.pattern.permute.xlu0 1
        %1017 = vperm.xlu0 %1016, %v674
        %v1018 = vpop.permute.xlu0 %1017
        %1020 = vset.pattern.permute.xlu0 1
        %1021 = vperm.xlu0 %1020, %v675
        %v1022 = vpop.permute.xlu0 %1021
        %1024 = vset.pattern.permute.xlu0 1
        %1025 = vperm.xlu0 %1024, %v676
        %v1026 = vpop.permute.xlu0 %1025
        %1028 = vset.pattern.permute.xlu0 1
        %1029 = vperm.xlu0 %1028, %v677
        %v1030 = vpop.permute.xlu0 %1029
        %1032 = vset.pattern.permute.xlu0 1
        %1033 = vperm.xlu0 %1032, %v678
        %v1034 = vpop.permute.xlu0 %1033
        %1036 = vset.pattern.permute.xlu0 1
        %1037 = vperm.xlu0 %1036, %v679
        %v1038 = vpop.permute.xlu0 %1037
        %1040 = vset.pattern.permute.xlu0 1
        %1041 = vperm.xlu0 %1040, %v680
        %v1042 = vpop.permute.xlu0 %1041
        %1044 = vset.pattern.permute.xlu0 1
        %1045 = vperm.xlu0 %1044, %v681
        %v1046 = vpop.permute.xlu0 %1045
        %1048 = vset.pattern.permute.xlu0 1
        %1049 = vperm.xlu0 %1048, %v682
        %v1050 = vpop.permute.xlu0 %1049
        %1052 = vset.pattern.permute.xlu0 1
        %1053 = vperm.xlu0 %1052, %v683
        %v1054 = vpop.permute.xlu0 %1053
        %1056 = vset.pattern.permute.xlu0 1
        %1057 = vperm.xlu0 %1056, %v684
        %v1058 = vpop.permute.xlu0 %1057
        %1060 = vset.pattern.permute.xlu0 1
        %1061 = vperm.xlu0 %1060, %v685
        %v1062 = vpop.permute.xlu0 %1061
        %1064 = vset.pattern.permute.xlu0 1
        %1065 = vperm.xlu0 %1064, %v686
        %v1066 = vpop.permute.xlu0 %1065
        %1068 = vset.pattern.permute.xlu0 1
        %1069 = vperm.xlu0 %1068, %v687
        %v1070 = vpop.permute.xlu0 %1069
        %1072 = vset.pattern.permute.xlu0 1
        %1073 = vperm.xlu0 %1072, %v688
        %v1074 = vpop.permute.xlu0 %1073
        %1076 = vset.pattern.permute.xlu0 1
        %1077 = vperm.xlu0 %1076, %v689
        %v1078 = vpop.permute.xlu0 %1077
        %v1080 = vlaneseq
        %v1081 = vshrl.u32 %v1080, 7
        %v1082 = vsub.s32 1, %v1081
        %v1083 = vrot.slane %v754, %v1082
        %v1084 = vmul.f32 %v954, %v1083
        %v1085 = vmul.f32 %v958, %v1083
        %v1086 = vmul.f32 %v962, %v1083
        %v1087 = vmul.f32 %v966, %v1083
        %v1088 = vmul.f32 %v970, %v1083
        %v1089 = vmul.f32 %v974, %v1083
        %v1090 = vmul.f32 %v978, %v1083
        %v1091 = vmul.f32 %v982, %v1083
        %v1092 = vmul.f32 %v986, %v1083
        %v1093 = vmul.f32 %v990, %v1083
        %v1094 = vmul.f32 %v994, %v1083
        %v1095 = vmul.f32 %v998, %v1083
        %v1096 = vmul.f32 %v1002, %v1083
        %v1097 = vmul.f32 %v1006, %v1083
        %v1098 = vmul.f32 %v1010, %v1083
        %v1099 = vmul.f32 %v1014, %v1083
        %v1100 = vmul.f32 %v1018, %v1083
        %v1101 = vmul.f32 %v1022, %v1083
        %v1102 = vmul.f32 %v1026, %v1083
        %v1103 = vmul.f32 %v1030, %v1083
        %v1104 = vmul.f32 %v1034, %v1083
        %v1105 = vmul.f32 %v1038, %v1083
        %v1106 = vmul.f32 %v1042, %v1083
        %v1107 = vmul.f32 %v1046, %v1083
        %v1108 = vmul.f32 %v1050, %v1083
        %v1109 = vmul.f32 %v1054, %v1083
        %v1110 = vmul.f32 %v1058, %v1083
        %v1111 = vmul.f32 %v1062, %v1083
        %v1112 = vmul.f32 %v1066, %v1083
        %v1113 = vmul.f32 %v1070, %v1083
        %v1114 = vmul.f32 %v1074, %v1083
        %v1115 = vmul.f32 %v1078, %v1083
        %v1116 = vadd.f32 %v920, %v1084
        %v1117 = vadd.f32 %v921, %v1085
        %v1118 = vadd.f32 %v922, %v1086
        %v1119 = vadd.f32 %v923, %v1087
        %v1120 = vadd.f32 %v924, %v1088
        %v1121 = vadd.f32 %v925, %v1089
        %v1122 = vadd.f32 %v926, %v1090
        %v1123 = vadd.f32 %v927, %v1091
        %v1124 = vadd.f32 %v928, %v1092
        %v1125 = vadd.f32 %v929, %v1093
        %v1126 = vadd.f32 %v930, %v1094
        %v1127 = vadd.f32 %v931, %v1095
        %v1128 = vadd.f32 %v932, %v1096
        %v1129 = vadd.f32 %v933, %v1097
        %v1130 = vadd.f32 %v934, %v1098
        %v1131 = vadd.f32 %v935, %v1099
        %v1132 = vadd.f32 %v936, %v1100
        %v1133 = vadd.f32 %v937, %v1101
        %v1134 = vadd.f32 %v938, %v1102
        %v1135 = vadd.f32 %v939, %v1103
        %v1136 = vadd.f32 %v940, %v1104
        %v1137 = vadd.f32 %v941, %v1105
        %v1138 = vadd.f32 %v942, %v1106
        %v1139 = vadd.f32 %v943, %v1107
        %v1140 = vadd.f32 %v944, %v1108
        %v1141 = vadd.f32 %v945, %v1109
        %v1142 = vadd.f32 %v946, %v1110
        %v1143 = vadd.f32 %v947, %v1111
        %v1144 = vadd.f32 %v948, %v1112
        %v1145 = vadd.f32 %v949, %v1113
        %v1146 = vadd.f32 %v950, %v1114
        %v1147 = vadd.f32 %v951, %v1115
        %1148 = vset.pattern.permute.xlu0 2
        %1149 = vperm.xlu0 %1148, %v658
        %v1150 = vpop.permute.xlu0 %1149
        %1152 = vset.pattern.permute.xlu0 2
        %1153 = vperm.xlu0 %1152, %v659
        %v1154 = vpop.permute.xlu0 %1153
        %1156 = vset.pattern.permute.xlu0 2
        %1157 = vperm.xlu0 %1156, %v660
        %v1158 = vpop.permute.xlu0 %1157
        %1160 = vset.pattern.permute.xlu0 2
        %1161 = vperm.xlu0 %1160, %v661
        %v1162 = vpop.permute.xlu0 %1161
        %1164 = vset.pattern.permute.xlu0 2
        %1165 = vperm.xlu0 %1164, %v662
        %v1166 = vpop.permute.xlu0 %1165
        %1168 = vset.pattern.permute.xlu0 2
        %1169 = vperm.xlu0 %1168, %v663
        %v1170 = vpop.permute.xlu0 %1169
        %1172 = vset.pattern.permute.xlu0 2
        %1173 = vperm.xlu0 %1172, %v664
        %v1174 = vpop.permute.xlu0 %1173
        %1176 = vset.pattern.permute.xlu0 2
        %1177 = vperm.xlu0 %1176, %v665
        %v1178 = vpop.permute.xlu0 %1177
        %1180 = vset.pattern.permute.xlu0 2
        %1181 = vperm.xlu0 %1180, %v666
        %v1182 = vpop.permute.xlu0 %1181
        %1184 = vset.pattern.permute.xlu0 2
        %1185 = vperm.xlu0 %1184, %v667
        %v1186 = vpop.permute.xlu0 %1185
        %1188 = vset.pattern.permute.xlu0 2
        %1189 = vperm.xlu0 %1188, %v668
        %v1190 = vpop.permute.xlu0 %1189
        %1192 = vset.pattern.permute.xlu0 2
        %1193 = vperm.xlu0 %1192, %v669
        %v1194 = vpop.permute.xlu0 %1193
        %1196 = vset.pattern.permute.xlu0 2
        %1197 = vperm.xlu0 %1196, %v670
        %v1198 = vpop.permute.xlu0 %1197
        %1200 = vset.pattern.permute.xlu0 2
        %1201 = vperm.xlu0 %1200, %v671
        %v1202 = vpop.permute.xlu0 %1201
        %1204 = vset.pattern.permute.xlu0 2
        %1205 = vperm.xlu0 %1204, %v672
        %v1206 = vpop.permute.xlu0 %1205
        %1208 = vset.pattern.permute.xlu0 2
        %1209 = vperm.xlu0 %1208, %v673
        %v1210 = vpop.permute.xlu0 %1209
        %1212 = vset.pattern.permute.xlu0 2
        %1213 = vperm.xlu0 %1212, %v674
        %v1214 = vpop.permute.xlu0 %1213
        %1216 = vset.pattern.permute.xlu0 2
        %1217 = vperm.xlu0 %1216, %v675
        %v1218 = vpop.permute.xlu0 %1217
        %1220 = vset.pattern.permute.xlu0 2
        %1221 = vperm.xlu0 %1220, %v676
        %v1222 = vpop.permute.xlu0 %1221
        %1224 = vset.pattern.permute.xlu0 2
        %1225 = vperm.xlu0 %1224, %v677
        %v1226 = vpop.permute.xlu0 %1225
        %1228 = vset.pattern.permute.xlu0 2
        %1229 = vperm.xlu0 %1228, %v678
        %v1230 = vpop.permute.xlu0 %1229
        %1232 = vset.pattern.permute.xlu0 2
        %1233 = vperm.xlu0 %1232, %v679
        %v1234 = vpop.permute.xlu0 %1233
        %1236 = vset.pattern.permute.xlu0 2
        %1237 = vperm.xlu0 %1236, %v680
        %v1238 = vpop.permute.xlu0 %1237
        %1240 = vset.pattern.permute.xlu0 2
        %1241 = vperm.xlu0 %1240, %v681
        %v1242 = vpop.permute.xlu0 %1241
        %1244 = vset.pattern.permute.xlu0 2
        %1245 = vperm.xlu0 %1244, %v682
        %v1246 = vpop.permute.xlu0 %1245
        %1248 = vset.pattern.permute.xlu0 2
        %1249 = vperm.xlu0 %1248, %v683
        %v1250 = vpop.permute.xlu0 %1249
        %1252 = vset.pattern.permute.xlu0 2
        %1253 = vperm.xlu0 %1252, %v684
        %v1254 = vpop.permute.xlu0 %1253
        %1256 = vset.pattern.permute.xlu0 2
        %1257 = vperm.xlu0 %1256, %v685
        %v1258 = vpop.permute.xlu0 %1257
        %1260 = vset.pattern.permute.xlu0 2
        %1261 = vperm.xlu0 %1260, %v686
        %v1262 = vpop.permute.xlu0 %1261
        %1264 = vset.pattern.permute.xlu0 2
        %1265 = vperm.xlu0 %1264, %v687
        %v1266 = vpop.permute.xlu0 %1265
        %1268 = vset.pattern.permute.xlu0 2
        %1269 = vperm.xlu0 %1268, %v688
        %v1270 = vpop.permute.xlu0 %1269
        %1272 = vset.pattern.permute.xlu0 2
        %1273 = vperm.xlu0 %1272, %v689
        %v1274 = vpop.permute.xlu0 %1273
        %v1276 = vlaneseq
        %v1277 = vshrl.u32 %v1276, 7
        %v1278 = vsub.s32 2, %v1277
        %v1279 = vrot.slane %v754, %v1278
        %v1280 = vmul.f32 %v1150, %v1279
        %v1281 = vmul.f32 %v1154, %v1279
        %v1282 = vmul.f32 %v1158, %v1279
        %v1283 = vmul.f32 %v1162, %v1279
        %v1284 = vmul.f32 %v1166, %v1279
        %v1285 = vmul.f32 %v1170, %v1279
        %v1286 = vmul.f32 %v1174, %v1279
        %v1287 = vmul.f32 %v1178, %v1279
        %v1288 = vmul.f32 %v1182, %v1279
        %v1289 = vmul.f32 %v1186, %v1279
        %v1290 = vmul.f32 %v1190, %v1279
        %v1291 = vmul.f32 %v1194, %v1279
        %v1292 = vmul.f32 %v1198, %v1279
        %v1293 = vmul.f32 %v1202, %v1279
        %v1294 = vmul.f32 %v1206, %v1279
        %v1295 = vmul.f32 %v1210, %v1279
        %v1296 = vmul.f32 %v1214, %v1279
        %v1297 = vmul.f32 %v1218, %v1279
        %v1298 = vmul.f32 %v1222, %v1279
        %v1299 = vmul.f32 %v1226, %v1279
        %v1300 = vmul.f32 %v1230, %v1279
        %v1301 = vmul.f32 %v1234, %v1279
        %v1302 = vmul.f32 %v1238, %v1279
        %v1303 = vmul.f32 %v1242, %v1279
        %v1304 = vmul.f32 %v1246, %v1279
        %v1305 = vmul.f32 %v1250, %v1279
        %v1306 = vmul.f32 %v1254, %v1279
        %v1307 = vmul.f32 %v1258, %v1279
        %v1308 = vmul.f32 %v1262, %v1279
        %v1309 = vmul.f32 %v1266, %v1279
        %v1310 = vmul.f32 %v1270, %v1279
        %v1311 = vmul.f32 %v1274, %v1279
        %v1312 = vadd.f32 %v1116, %v1280
        %v1313 = vadd.f32 %v1117, %v1281
        %v1314 = vadd.f32 %v1118, %v1282
        %v1315 = vadd.f32 %v1119, %v1283
        %v1316 = vadd.f32 %v1120, %v1284
        %v1317 = vadd.f32 %v1121, %v1285
        %v1318 = vadd.f32 %v1122, %v1286
        %v1319 = vadd.f32 %v1123, %v1287
        %v1320 = vadd.f32 %v1124, %v1288
        %v1321 = vadd.f32 %v1125, %v1289
        %v1322 = vadd.f32 %v1126, %v1290
        %v1323 = vadd.f32 %v1127, %v1291
        %v1324 = vadd.f32 %v1128, %v1292
        %v1325 = vadd.f32 %v1129, %v1293
        %v1326 = vadd.f32 %v1130, %v1294
        %v1327 = vadd.f32 %v1131, %v1295
        %v1328 = vadd.f32 %v1132, %v1296
        %v1329 = vadd.f32 %v1133, %v1297
        %v1330 = vadd.f32 %v1134, %v1298
        %v1331 = vadd.f32 %v1135, %v1299
        %v1332 = vadd.f32 %v1136, %v1300
        %v1333 = vadd.f32 %v1137, %v1301
        %v1334 = vadd.f32 %v1138, %v1302
        %v1335 = vadd.f32 %v1139, %v1303
        %v1336 = vadd.f32 %v1140, %v1304
        %v1337 = vadd.f32 %v1141, %v1305
        %v1338 = vadd.f32 %v1142, %v1306
        %v1339 = vadd.f32 %v1143, %v1307
        %v1340 = vadd.f32 %v1144, %v1308
        %v1341 = vadd.f32 %v1145, %v1309
        %v1342 = vadd.f32 %v1146, %v1310
        %v1343 = vadd.f32 %v1147, %v1311
        %v1344 = vld [vmem:[%s3] sm:$0x1]
        %v1346 = vlaneseq
        %v1347 = vshrl.u32 %v1346, 7
        %v1348 = vsub.s32 0, %v1347
        %v1349 = vrot.slane %v1344, %v1348
        %v1351 = vadd.f32 %v1312, %v1349
        %v1352 = vadd.f32 %v1313, %v1349
        %v1353 = vadd.f32 %v1314, %v1349
        %v1354 = vadd.f32 %v1315, %v1349
        %v1355 = vadd.f32 %v1316, %v1349
        %v1356 = vadd.f32 %v1317, %v1349
        %v1357 = vadd.f32 %v1318, %v1349
        %v1358 = vadd.f32 %v1319, %v1349
        %v1359 = vadd.f32 %v1320, %v1349
        %v1360 = vadd.f32 %v1321, %v1349
        %v1361 = vadd.f32 %v1322, %v1349
        %v1362 = vadd.f32 %v1323, %v1349
        %v1363 = vadd.f32 %v1324, %v1349
        %v1364 = vadd.f32 %v1325, %v1349
        %v1365 = vadd.f32 %v1326, %v1349
        %v1366 = vadd.f32 %v1327, %v1349
        %v1367 = vadd.f32 %v1328, %v1349
        %v1368 = vadd.f32 %v1329, %v1349
        %v1369 = vadd.f32 %v1330, %v1349
        %v1370 = vadd.f32 %v1331, %v1349
        %v1371 = vadd.f32 %v1332, %v1349
        %v1372 = vadd.f32 %v1333, %v1349
        %v1373 = vadd.f32 %v1334, %v1349
        %v1374 = vadd.f32 %v1335, %v1349
        %v1375 = vadd.f32 %v1336, %v1349
        %v1376 = vadd.f32 %v1337, %v1349
        %v1377 = vadd.f32 %v1338, %v1349
        %v1378 = vadd.f32 %v1339, %v1349
        %v1379 = vadd.f32 %v1340, %v1349
        %v1380 = vadd.f32 %v1341, %v1349
        %v1381 = vadd.f32 %v1342, %v1349
        %v1382 = vadd.f32 %v1343, %v1349
        %1384 = vset.pattern.permute.xlu0 0
        %1385 = vperm.xlu0 %1384, %v722
        %v1386 = vpop.permute.xlu0 %1385
        %1389 = vset.pattern.permute.xlu0 0
        %1390 = vperm.xlu0 %1389, %v723
        %v1391 = vpop.permute.xlu0 %1390
        %1394 = vset.pattern.permute.xlu0 0
        %1395 = vperm.xlu0 %1394, %v724
        %v1396 = vpop.permute.xlu0 %1395
        %1399 = vset.pattern.permute.xlu0 0
        %1400 = vperm.xlu0 %1399, %v725
        %v1401 = vpop.permute.xlu0 %1400
        %1404 = vset.pattern.permute.xlu0 0
        %1405 = vperm.xlu0 %1404, %v726
        %v1406 = vpop.permute.xlu0 %1405
        %1409 = vset.pattern.permute.xlu0 0
        %1410 = vperm.xlu0 %1409, %v727
        %v1411 = vpop.permute.xlu0 %1410
        %1414 = vset.pattern.permute.xlu0 0
        %1415 = vperm.xlu0 %1414, %v728
        %v1416 = vpop.permute.xlu0 %1415
        %1419 = vset.pattern.permute.xlu0 0
        %1420 = vperm.xlu0 %1419, %v729
        %v1421 = vpop.permute.xlu0 %1420
        %1424 = vset.pattern.permute.xlu0 0
        %1425 = vperm.xlu0 %1424, %v730
        %v1426 = vpop.permute.xlu0 %1425
        %1429 = vset.pattern.permute.xlu0 0
        %1430 = vperm.xlu0 %1429, %v731
        %v1431 = vpop.permute.xlu0 %1430
        %1434 = vset.pattern.permute.xlu0 0
        %1435 = vperm.xlu0 %1434, %v732
        %v1436 = vpop.permute.xlu0 %1435
        %1439 = vset.pattern.permute.xlu0 0
        %1440 = vperm.xlu0 %1439, %v733
        %v1441 = vpop.permute.xlu0 %1440
        %1444 = vset.pattern.permute.xlu0 0
        %1445 = vperm.xlu0 %1444, %v734
        %v1446 = vpop.permute.xlu0 %1445
        %1449 = vset.pattern.permute.xlu0 0
        %1450 = vperm.xlu0 %1449, %v735
        %v1451 = vpop.permute.xlu0 %1450
        %1454 = vset.pattern.permute.xlu0 0
        %1455 = vperm.xlu0 %1454, %v736
        %v1456 = vpop.permute.xlu0 %1455
        %1459 = vset.pattern.permute.xlu0 0
        %1460 = vperm.xlu0 %1459, %v737
        %v1461 = vpop.permute.xlu0 %1460
        %1464 = vset.pattern.permute.xlu0 0
        %1465 = vperm.xlu0 %1464, %v738
        %v1466 = vpop.permute.xlu0 %1465
        %1469 = vset.pattern.permute.xlu0 0
        %1470 = vperm.xlu0 %1469, %v739
        %v1471 = vpop.permute.xlu0 %1470
        %1474 = vset.pattern.permute.xlu0 0
        %1475 = vperm.xlu0 %1474, %v740
        %v1476 = vpop.permute.xlu0 %1475
        %1479 = vset.pattern.permute.xlu0 0
        %1480 = vperm.xlu0 %1479, %v741
        %v1481 = vpop.permute.xlu0 %1480
        %1484 = vset.pattern.permute.xlu0 0
        %1485 = vperm.xlu0 %1484, %v742
        %v1486 = vpop.permute.xlu0 %1485
        %1489 = vset.pattern.permute.xlu0 0
        %1490 = vperm.xlu0 %1489, %v743
        %v1491 = vpop.permute.xlu0 %1490
        %1494 = vset.pattern.permute.xlu0 0
        %1495 = vperm.xlu0 %1494, %v744
        %v1496 = vpop.permute.xlu0 %1495
        %1499 = vset.pattern.permute.xlu0 0
        %1500 = vperm.xlu0 %1499, %v745
        %v1501 = vpop.permute.xlu0 %1500
        %1504 = vset.pattern.permute.xlu0 0
        %1505 = vperm.xlu0 %1504, %v746
        %v1506 = vpop.permute.xlu0 %1505
        %1509 = vset.pattern.permute.xlu0 0
        %1510 = vperm.xlu0 %1509, %v747
        %v1511 = vpop.permute.xlu0 %1510
        %1514 = vset.pattern.permute.xlu0 0
        %1515 = vperm.xlu0 %1514, %v748
        %v1516 = vpop.permute.xlu0 %1515
        %1519 = vset.pattern.permute.xlu0 0
        %1520 = vperm.xlu0 %1519, %v749
        %v1521 = vpop.permute.xlu0 %1520
        %1524 = vset.pattern.permute.xlu0 0
        %1525 = vperm.xlu0 %1524, %v750
        %v1526 = vpop.permute.xlu0 %1525
        %1529 = vset.pattern.permute.xlu0 0
        %1530 = vperm.xlu0 %1529, %v751
        %v1531 = vpop.permute.xlu0 %1530
        %1534 = vset.pattern.permute.xlu0 0
        %1535 = vperm.xlu0 %1534, %v752
        %v1536 = vpop.permute.xlu0 %1535
        %1539 = vset.pattern.permute.xlu0 0
        %1540 = vperm.xlu0 %1539, %v753
        %v1541 = vpop.permute.xlu0 %1540
        %v1543 = vlaneseq
        %v1544 = vshrl.u32 %v1543, 7
        %v1545 = vsub.s32 0, %v1544
        %v1546 = vrot.slane %v755, %v1545
        %v1547 = vmul.f32 %v1386, %v1546
        %v1548 = vmul.f32 %v1391, %v1546
        %v1549 = vmul.f32 %v1396, %v1546
        %v1550 = vmul.f32 %v1401, %v1546
        %v1551 = vmul.f32 %v1406, %v1546
        %v1552 = vmul.f32 %v1411, %v1546
        %v1553 = vmul.f32 %v1416, %v1546
        %v1554 = vmul.f32 %v1421, %v1546
        %v1555 = vmul.f32 %v1426, %v1546
        %v1556 = vmul.f32 %v1431, %v1546
        %v1557 = vmul.f32 %v1436, %v1546
        %v1558 = vmul.f32 %v1441, %v1546
        %v1559 = vmul.f32 %v1446, %v1546
        %v1560 = vmul.f32 %v1451, %v1546
        %v1561 = vmul.f32 %v1456, %v1546
        %v1562 = vmul.f32 %v1461, %v1546
        %v1563 = vmul.f32 %v1466, %v1546
        %v1564 = vmul.f32 %v1471, %v1546
        %v1565 = vmul.f32 %v1476, %v1546
        %v1566 = vmul.f32 %v1481, %v1546
        %v1567 = vmul.f32 %v1486, %v1546
        %v1568 = vmul.f32 %v1491, %v1546
        %v1569 = vmul.f32 %v1496, %v1546
        %v1570 = vmul.f32 %v1501, %v1546
        %v1571 = vmul.f32 %v1506, %v1546
        %v1572 = vmul.f32 %v1511, %v1546
        %v1573 = vmul.f32 %v1516, %v1546
        %v1574 = vmul.f32 %v1521, %v1546
        %v1575 = vmul.f32 %v1526, %v1546
        %v1576 = vmul.f32 %v1531, %v1546
        %v1577 = vmul.f32 %v1536, %v1546
        %v1578 = vmul.f32 %v1541, %v1546
        %1579 = vset.pattern.permute.xlu0 1
        %1580 = vperm.xlu0 %1579, %v722
        %v1581 = vpop.permute.xlu0 %1580
        %1583 = vset.pattern.permute.xlu0 1
        %1584 = vperm.xlu0 %1583, %v723
        %v1585 = vpop.permute.xlu0 %1584
        %1587 = vset.pattern.permute.xlu0 1
        %1588 = vperm.xlu0 %1587, %v724
        %v1589 = vpop.permute.xlu0 %1588
        %1591 = vset.pattern.permute.xlu0 1
        %1592 = vperm.xlu0 %1591, %v725
        %v1593 = vpop.permute.xlu0 %1592
        %1595 = vset.pattern.permute.xlu0 1
        %1596 = vperm.xlu0 %1595, %v726
        %v1597 = vpop.permute.xlu0 %1596
        %1599 = vset.pattern.permute.xlu0 1
        %1600 = vperm.xlu0 %1599, %v727
        %v1601 = vpop.permute.xlu0 %1600
        %1603 = vset.pattern.permute.xlu0 1
        %1604 = vperm.xlu0 %1603, %v728
        %v1605 = vpop.permute.xlu0 %1604
        %1607 = vset.pattern.permute.xlu0 1
        %1608 = vperm.xlu0 %1607, %v729
        %v1609 = vpop.permute.xlu0 %1608
        %1611 = vset.pattern.permute.xlu0 1
        %1612 = vperm.xlu0 %1611, %v730
        %v1613 = vpop.permute.xlu0 %1612
        %1615 = vset.pattern.permute.xlu0 1
        %1616 = vperm.xlu0 %1615, %v731
        %v1617 = vpop.permute.xlu0 %1616
        %1619 = vset.pattern.permute.xlu0 1
        %1620 = vperm.xlu0 %1619, %v732
        %v1621 = vpop.permute.xlu0 %1620
        %1623 = vset.pattern.permute.xlu0 1
        %1624 = vperm.xlu0 %1623, %v733
        %v1625 = vpop.permute.xlu0 %1624
        %1627 = vset.pattern.permute.xlu0 1
        %1628 = vperm.xlu0 %1627, %v734
        %v1629 = vpop.permute.xlu0 %1628
        %1631 = vset.pattern.permute.xlu0 1
        %1632 = vperm.xlu0 %1631, %v735
        %v1633 = vpop.permute.xlu0 %1632
        %1635 = vset.pattern.permute.xlu0 1
        %1636 = vperm.xlu0 %1635, %v736
        %v1637 = vpop.permute.xlu0 %1636
        %1639 = vset.pattern.permute.xlu0 1
        %1640 = vperm.xlu0 %1639, %v737
        %v1641 = vpop.permute.xlu0 %1640
        %1643 = vset.pattern.permute.xlu0 1
        %1644 = vperm.xlu0 %1643, %v738
        %v1645 = vpop.permute.xlu0 %1644
        %1647 = vset.pattern.permute.xlu0 1
        %1648 = vperm.xlu0 %1647, %v739
        %v1649 = vpop.permute.xlu0 %1648
        %1651 = vset.pattern.permute.xlu0 1
        %1652 = vperm.xlu0 %1651, %v740
        %v1653 = vpop.permute.xlu0 %1652
        %1655 = vset.pattern.permute.xlu0 1
        %1656 = vperm.xlu0 %1655, %v741
        %v1657 = vpop.permute.xlu0 %1656
        %1659 = vset.pattern.permute.xlu0 1
        %1660 = vperm.xlu0 %1659, %v742
        %v1661 = vpop.permute.xlu0 %1660
        %1663 = vset.pattern.permute.xlu0 1
        %1664 = vperm.xlu0 %1663, %v743
        %v1665 = vpop.permute.xlu0 %1664
        %1667 = vset.pattern.permute.xlu0 1
        %1668 = vperm.xlu0 %1667, %v744
        %v1669 = vpop.permute.xlu0 %1668
        %1671 = vset.pattern.permute.xlu0 1
        %1672 = vperm.xlu0 %1671, %v745
        %v1673 = vpop.permute.xlu0 %1672
        %1675 = vset.pattern.permute.xlu0 1
        %1676 = vperm.xlu0 %1675, %v746
        %v1677 = vpop.permute.xlu0 %1676
        %1679 = vset.pattern.permute.xlu0 1
        %1680 = vperm.xlu0 %1679, %v747
        %v1681 = vpop.permute.xlu0 %1680
        %1683 = vset.pattern.permute.xlu0 1
        %1684 = vperm.xlu0 %1683, %v748
        %v1685 = vpop.permute.xlu0 %1684
        %1687 = vset.pattern.permute.xlu0 1
        %1688 = vperm.xlu0 %1687, %v749
        %v1689 = vpop.permute.xlu0 %1688
        %1691 = vset.pattern.permute.xlu0 1
        %1692 = vperm.xlu0 %1691, %v750
        %v1693 = vpop.permute.xlu0 %1692
        %1695 = vset.pattern.permute.xlu0 1
        %1696 = vperm.xlu0 %1695, %v751
        %v1697 = vpop.permute.xlu0 %1696
        %1699 = vset.pattern.permute.xlu0 1
        %1700 = vperm.xlu0 %1699, %v752
        %v1701 = vpop.permute.xlu0 %1700
        %1703 = vset.pattern.permute.xlu0 1
        %1704 = vperm.xlu0 %1703, %v753
        %v1705 = vpop.permute.xlu0 %1704
        %v1707 = vlaneseq
        %v1708 = vshrl.u32 %v1707, 7
        %v1709 = vsub.s32 1, %v1708
        %v1710 = vrot.slane %v755, %v1709
        %v1711 = vmul.f32 %v1581, %v1710
        %v1712 = vmul.f32 %v1585, %v1710
        %v1713 = vmul.f32 %v1589, %v1710
        %v1714 = vmul.f32 %v1593, %v1710
        %v1715 = vmul.f32 %v1597, %v1710
        %v1716 = vmul.f32 %v1601, %v1710
        %v1717 = vmul.f32 %v1605, %v1710
        %v1718 = vmul.f32 %v1609, %v1710
        %v1719 = vmul.f32 %v1613, %v1710
        %v1720 = vmul.f32 %v1617, %v1710
        %v1721 = vmul.f32 %v1621, %v1710
        %v1722 = vmul.f32 %v1625, %v1710
        %v1723 = vmul.f32 %v1629, %v1710
        %v1724 = vmul.f32 %v1633, %v1710
        %v1725 = vmul.f32 %v1637, %v1710
        %v1726 = vmul.f32 %v1641, %v1710
        %v1727 = vmul.f32 %v1645, %v1710
        %v1728 = vmul.f32 %v1649, %v1710
        %v1729 = vmul.f32 %v1653, %v1710
        %v1730 = vmul.f32 %v1657, %v1710
        %v1731 = vmul.f32 %v1661, %v1710
        %v1732 = vmul.f32 %v1665, %v1710
        %v1733 = vmul.f32 %v1669, %v1710
        %v1734 = vmul.f32 %v1673, %v1710
        %v1735 = vmul.f32 %v1677, %v1710
        %v1736 = vmul.f32 %v1681, %v1710
        %v1737 = vmul.f32 %v1685, %v1710
        %v1738 = vmul.f32 %v1689, %v1710
        %v1739 = vmul.f32 %v1693, %v1710
        %v1740 = vmul.f32 %v1697, %v1710
        %v1741 = vmul.f32 %v1701, %v1710
        %v1742 = vmul.f32 %v1705, %v1710
        %v1743 = vadd.f32 %v1547, %v1711
        %v1744 = vadd.f32 %v1548, %v1712
        %v1745 = vadd.f32 %v1549, %v1713
        %v1746 = vadd.f32 %v1550, %v1714
        %v1747 = vadd.f32 %v1551, %v1715
        %v1748 = vadd.f32 %v1552, %v1716
        %v1749 = vadd.f32 %v1553, %v1717
        %v1750 = vadd.f32 %v1554, %v1718
        %v1751 = vadd.f32 %v1555, %v1719
        %v1752 = vadd.f32 %v1556, %v1720
        %v1753 = vadd.f32 %v1557, %v1721
        %v1754 = vadd.f32 %v1558, %v1722
        %v1755 = vadd.f32 %v1559, %v1723
        %v1756 = vadd.f32 %v1560, %v1724
        %v1757 = vadd.f32 %v1561, %v1725
        %v1758 = vadd.f32 %v1562, %v1726
        %v1759 = vadd.f32 %v1563, %v1727
        %v1760 = vadd.f32 %v1564, %v1728
        %v1761 = vadd.f32 %v1565, %v1729
        %v1762 = vadd.f32 %v1566, %v1730
        %v1763 = vadd.f32 %v1567, %v1731
        %v1764 = vadd.f32 %v1568, %v1732
        %v1765 = vadd.f32 %v1569, %v1733
        %v1766 = vadd.f32 %v1570, %v1734
        %v1767 = vadd.f32 %v1571, %v1735
        %v1768 = vadd.f32 %v1572, %v1736
        %v1769 = vadd.f32 %v1573, %v1737
        %v1770 = vadd.f32 %v1574, %v1738
        %v1771 = vadd.f32 %v1575, %v1739
        %v1772 = vadd.f32 %v1576, %v1740
        %v1773 = vadd.f32 %v1577, %v1741
        %v1774 = vadd.f32 %v1578, %v1742
        %1775 = vset.pattern.permute.xlu0 2
        %1776 = vperm.xlu0 %1775, %v722
        %v1777 = vpop.permute.xlu0 %1776
        %1779 = vset.pattern.permute.xlu0 2
        %1780 = vperm.xlu0 %1779, %v723
        %v1781 = vpop.permute.xlu0 %1780
        %1783 = vset.pattern.permute.xlu0 2
        %1784 = vperm.xlu0 %1783, %v724
        %v1785 = vpop.permute.xlu0 %1784
        %1787 = vset.pattern.permute.xlu0 2
        %1788 = vperm.xlu0 %1787, %v725
        %v1789 = vpop.permute.xlu0 %1788
        %1791 = vset.pattern.permute.xlu0 2
        %1792 = vperm.xlu0 %1791, %v726
        %v1793 = vpop.permute.xlu0 %1792
        %1795 = vset.pattern.permute.xlu0 2
        %1796 = vperm.xlu0 %1795, %v727
        %v1797 = vpop.permute.xlu0 %1796
        %1799 = vset.pattern.permute.xlu0 2
        %1800 = vperm.xlu0 %1799, %v728
        %v1801 = vpop.permute.xlu0 %1800
        %1803 = vset.pattern.permute.xlu0 2
        %1804 = vperm.xlu0 %1803, %v729
        %v1805 = vpop.permute.xlu0 %1804
        %1807 = vset.pattern.permute.xlu0 2
        %1808 = vperm.xlu0 %1807, %v730
        %v1809 = vpop.permute.xlu0 %1808
        %1811 = vset.pattern.permute.xlu0 2
        %1812 = vperm.xlu0 %1811, %v731
        %v1813 = vpop.permute.xlu0 %1812
        %1815 = vset.pattern.permute.xlu0 2
        %1816 = vperm.xlu0 %1815, %v732
        %v1817 = vpop.permute.xlu0 %1816
        %1819 = vset.pattern.permute.xlu0 2
        %1820 = vperm.xlu0 %1819, %v733
        %v1821 = vpop.permute.xlu0 %1820
        %1823 = vset.pattern.permute.xlu0 2
        %1824 = vperm.xlu0 %1823, %v734
        %v1825 = vpop.permute.xlu0 %1824
        %1827 = vset.pattern.permute.xlu0 2
        %1828 = vperm.xlu0 %1827, %v735
        %v1829 = vpop.permute.xlu0 %1828
        %1831 = vset.pattern.permute.xlu0 2
        %1832 = vperm.xlu0 %1831, %v736
        %v1833 = vpop.permute.xlu0 %1832
        %1835 = vset.pattern.permute.xlu0 2
        %1836 = vperm.xlu0 %1835, %v737
        %v1837 = vpop.permute.xlu0 %1836
        %1839 = vset.pattern.permute.xlu0 2
        %1840 = vperm.xlu0 %1839, %v738
        %v1841 = vpop.permute.xlu0 %1840
        %1843 = vset.pattern.permute.xlu0 2
        %1844 = vperm.xlu0 %1843, %v739
        %v1845 = vpop.permute.xlu0 %1844
        %1847 = vset.pattern.permute.xlu0 2
        %1848 = vperm.xlu0 %1847, %v740
        %v1849 = vpop.permute.xlu0 %1848
        %1851 = vset.pattern.permute.xlu0 2
        %1852 = vperm.xlu0 %1851, %v741
        %v1853 = vpop.permute.xlu0 %1852
        %1855 = vset.pattern.permute.xlu0 2
        %1856 = vperm.xlu0 %1855, %v742
        %v1857 = vpop.permute.xlu0 %1856
        %1859 = vset.pattern.permute.xlu0 2
        %1860 = vperm.xlu0 %1859, %v743
        %v1861 = vpop.permute.xlu0 %1860
        %1863 = vset.pattern.permute.xlu0 2
        %1864 = vperm.xlu0 %1863, %v744
        %v1865 = vpop.permute.xlu0 %1864
        %1867 = vset.pattern.permute.xlu0 2
        %1868 = vperm.xlu0 %1867, %v745
        %v1869 = vpop.permute.xlu0 %1868
        %1871 = vset.pattern.permute.xlu0 2
        %1872 = vperm.xlu0 %1871, %v746
        %v1873 = vpop.permute.xlu0 %1872
        %1875 = vset.pattern.permute.xlu0 2
        %1876 = vperm.xlu0 %1875, %v747
        %v1877 = vpop.permute.xlu0 %1876
        %1879 = vset.pattern.permute.xlu0 2
        %1880 = vperm.xlu0 %1879, %v748
        %v1881 = vpop.permute.xlu0 %1880
        %1883 = vset.pattern.permute.xlu0 2
        %1884 = vperm.xlu0 %1883, %v749
        %v1885 = vpop.permute.xlu0 %1884
        %1887 = vset.pattern.permute.xlu0 2
        %1888 = vperm.xlu0 %1887, %v750
        %v1889 = vpop.permute.xlu0 %1888
        %1891 = vset.pattern.permute.xlu0 2
        %1892 = vperm.xlu0 %1891, %v751
        %v1893 = vpop.permute.xlu0 %1892
        %1895 = vset.pattern.permute.xlu0 2
        %1896 = vperm.xlu0 %1895, %v752
        %v1897 = vpop.permute.xlu0 %1896
        %1899 = vset.pattern.permute.xlu0 2
        %1900 = vperm.xlu0 %1899, %v753
        %v1901 = vpop.permute.xlu0 %1900
        %v1903 = vlaneseq
        %v1904 = vshrl.u32 %v1903, 7
        %v1905 = vsub.s32 2, %v1904
        %v1906 = vrot.slane %v755, %v1905
        %v1907 = vmul.f32 %v1777, %v1906
        %v1908 = vmul.f32 %v1781, %v1906
        %v1909 = vmul.f32 %v1785, %v1906
        %v1910 = vmul.f32 %v1789, %v1906
        %v1911 = vmul.f32 %v1793, %v1906
        %v1912 = vmul.f32 %v1797, %v1906
        %v1913 = vmul.f32 %v1801, %v1906
        %v1914 = vmul.f32 %v1805, %v1906
        %v1915 = vmul.f32 %v1809, %v1906
        %v1916 = vmul.f32 %v1813, %v1906
        %v1917 = vmul.f32 %v1817, %v1906
        %v1918 = vmul.f32 %v1821, %v1906
        %v1919 = vmul.f32 %v1825, %v1906
        %v1920 = vmul.f32 %v1829, %v1906
        %v1921 = vmul.f32 %v1833, %v1906
        %v1922 = vmul.f32 %v1837, %v1906
        %v1923 = vmul.f32 %v1841, %v1906
        %v1924 = vmul.f32 %v1845, %v1906
        %v1925 = vmul.f32 %v1849, %v1906
        %v1926 = vmul.f32 %v1853, %v1906
        %v1927 = vmul.f32 %v1857, %v1906
        %v1928 = vmul.f32 %v1861, %v1906
        %v1929 = vmul.f32 %v1865, %v1906
        %v1930 = vmul.f32 %v1869, %v1906
        %v1931 = vmul.f32 %v1873, %v1906
        %v1932 = vmul.f32 %v1877, %v1906
        %v1933 = vmul.f32 %v1881, %v1906
        %v1934 = vmul.f32 %v1885, %v1906
        %v1935 = vmul.f32 %v1889, %v1906
        %v1936 = vmul.f32 %v1893, %v1906
        %v1937 = vmul.f32 %v1897, %v1906
        %v1938 = vmul.f32 %v1901, %v1906
        %v1939 = vadd.f32 %v1743, %v1907
        %v1940 = vadd.f32 %v1744, %v1908
        %v1941 = vadd.f32 %v1745, %v1909
        %v1942 = vadd.f32 %v1746, %v1910
        %v1943 = vadd.f32 %v1747, %v1911
        %v1944 = vadd.f32 %v1748, %v1912
        %v1945 = vadd.f32 %v1749, %v1913
        %v1946 = vadd.f32 %v1750, %v1914
        %v1947 = vadd.f32 %v1751, %v1915
        %v1948 = vadd.f32 %v1752, %v1916
        %v1949 = vadd.f32 %v1753, %v1917
        %v1950 = vadd.f32 %v1754, %v1918
        %v1951 = vadd.f32 %v1755, %v1919
        %v1952 = vadd.f32 %v1756, %v1920
        %v1953 = vadd.f32 %v1757, %v1921
        %v1954 = vadd.f32 %v1758, %v1922
        %v1955 = vadd.f32 %v1759, %v1923
        %v1956 = vadd.f32 %v1760, %v1924
        %v1957 = vadd.f32 %v1761, %v1925
        %v1958 = vadd.f32 %v1762, %v1926
        %v1959 = vadd.f32 %v1763, %v1927
        %v1960 = vadd.f32 %v1764, %v1928
        %v1961 = vadd.f32 %v1765, %v1929
        %v1962 = vadd.f32 %v1766, %v1930
        %v1963 = vadd.f32 %v1767, %v1931
        %v1964 = vadd.f32 %v1768, %v1932
        %v1965 = vadd.f32 %v1769, %v1933
        %v1966 = vadd.f32 %v1770, %v1934
        %v1967 = vadd.f32 %v1771, %v1935
        %v1968 = vadd.f32 %v1772, %v1936
        %v1969 = vadd.f32 %v1773, %v1937
        %v1970 = vadd.f32 %v1774, %v1938
        %v1971 = vld [vmem:[%s5] sm:$0x1]
        %v1973 = vlaneseq
        %v1974 = vshrl.u32 %v1973, 7
        %v1975 = vsub.s32 0, %v1974
        %v1976 = vrot.slane %v1971, %v1975
        %v1978 = vadd.f32 %v1939, %v1976
        %v1979 = vadd.f32 %v1940, %v1976
        %v1980 = vadd.f32 %v1941, %v1976
        %v1981 = vadd.f32 %v1942, %v1976
        %v1982 = vadd.f32 %v1943, %v1976
        %v1983 = vadd.f32 %v1944, %v1976
        %v1984 = vadd.f32 %v1945, %v1976
        %v1985 = vadd.f32 %v1946, %v1976
        %v1986 = vadd.f32 %v1947, %v1976
        %v1987 = vadd.f32 %v1948, %v1976
        %v1988 = vadd.f32 %v1949, %v1976
        %v1989 = vadd.f32 %v1950, %v1976
        %v1990 = vadd.f32 %v1951, %v1976
        %v1991 = vadd.f32 %v1952, %v1976
        %v1992 = vadd.f32 %v1953, %v1976
        %v1993 = vadd.f32 %v1954, %v1976
        %v1994 = vadd.f32 %v1955, %v1976
        %v1995 = vadd.f32 %v1956, %v1976
        %v1996 = vadd.f32 %v1957, %v1976
        %v1997 = vadd.f32 %v1958, %v1976
        %v1998 = vadd.f32 %v1959, %v1976
        %v1999 = vadd.f32 %v1960, %v1976
        %v2000 = vadd.f32 %v1961, %v1976
        %v2001 = vadd.f32 %v1962, %v1976
        %v2002 = vadd.f32 %v1963, %v1976
        %v2003 = vadd.f32 %v1964, %v1976
        %v2004 = vadd.f32 %v1965, %v1976
        %v2005 = vadd.f32 %v1966, %v1976
        %v2006 = vadd.f32 %v1967, %v1976
        %v2007 = vadd.f32 %v1968, %v1976
        %v2008 = vadd.f32 %v1969, %v1976
        %v2009 = vadd.f32 %v1970, %v1976
        %v2010 = vpack.c.bf16 %v1352, %v1351
        %v2011 = vpack.c.bf16 %v1354, %v1353
        %v2012 = vpack.c.bf16 %v1356, %v1355
        %v2013 = vpack.c.bf16 %v1358, %v1357
        %v2014 = vpack.c.bf16 %v1360, %v1359
        %v2015 = vpack.c.bf16 %v1362, %v1361
        %v2016 = vpack.c.bf16 %v1364, %v1363
        %v2017 = vpack.c.bf16 %v1366, %v1365
        %v2018 = vpack.c.bf16 %v1368, %v1367
        %v2019 = vpack.c.bf16 %v1370, %v1369
        %v2020 = vpack.c.bf16 %v1372, %v1371
        %v2021 = vpack.c.bf16 %v1374, %v1373
        %v2022 = vpack.c.bf16 %v1376, %v1375
        %v2023 = vpack.c.bf16 %v1378, %v1377
        %v2024 = vpack.c.bf16 %v1380, %v1379
        %v2025 = vpack.c.bf16 %v1382, %v1381
        %v2026 = vpack.c.bf16 %v1979, %v1978
        %v2027 = vpack.c.bf16 %v1981, %v1980
        %v2028 = vpack.c.bf16 %v1983, %v1982
        %v2029 = vpack.c.bf16 %v1985, %v1984
        %v2030 = vpack.c.bf16 %v1987, %v1986
        %v2031 = vpack.c.bf16 %v1989, %v1988
        %v2032 = vpack.c.bf16 %v1991, %v1990
        %v2033 = vpack.c.bf16 %v1993, %v1992
        %v2034 = vpack.c.bf16 %v1995, %v1994
        %v2035 = vpack.c.bf16 %v1997, %v1996
        %v2036 = vpack.c.bf16 %v1999, %v1998
        %v2037 = vpack.c.bf16 %v2001, %v2000
        %v2038 = vpack.c.bf16 %v2003, %v2002
        %v2039 = vpack.c.bf16 %v2005, %v2004
        %v2040 = vpack.c.bf16 %v2007, %v2006
        %v2041 = vpack.c.bf16 %v2009, %v2008
        %v2042 = vld [vmem:[%s8] sm:$0xf]
        %v2043 = vld [vmem:[%s8 + $0x4] sm:$0xf]
        %v2044 = vld [vmem:[%s8 + $0x8] sm:$0xf]
        %v2045 = vld [vmem:[%s8 + $0xc] sm:$0xf]
        %v2046 = vld [vmem:[%s8 + $0x10] sm:$0xf]
        %v2047 = vld [vmem:[%s8 + $0x14] sm:$0xf]
        %v2048 = vld [vmem:[%s8 + $0x18] sm:$0xf]
        %v2049 = vld [vmem:[%s8 + $0x1c] sm:$0xf]
        %v2050 = vld [vmem:[%s8 + $0x20] sm:$0xf]
        %v2051 = vld [vmem:[%s8 + $0x24] sm:$0xf]
        %v2052 = vld [vmem:[%s8 + $0x28] sm:$0xf]
        %v2053 = vld [vmem:[%s8 + $0x2c] sm:$0xf]
        %v2054 = vld [vmem:[%s8 + $0x30] sm:$0xf]
        %v2055 = vld [vmem:[%s8 + $0x34] sm:$0xf]
        %v2056 = vld [vmem:[%s8 + $0x38] sm:$0xf]
        %v2057 = vld [vmem:[%s8 + $0x3c] sm:$0xf]
        %v2074 = vunpack.c.l.b16 %v2042
        %v2075 = vunpack.c.l.b16 %v2043
        %v2076 = vunpack.c.l.b16 %v2044
        %v2077 = vunpack.c.l.b16 %v2045
        %v2078 = vunpack.c.l.b16 %v2046
        %v2079 = vunpack.c.l.b16 %v2047
        %v2080 = vunpack.c.l.b16 %v2048
        %v2081 = vunpack.c.l.b16 %v2049
        %v2082 = vunpack.c.l.b16 %v2050
        %v2083 = vunpack.c.l.b16 %v2051
        %v2084 = vunpack.c.l.b16 %v2052
        %v2085 = vunpack.c.l.b16 %v2053
        %v2086 = vunpack.c.l.b16 %v2054
        %v2087 = vunpack.c.l.b16 %v2055
        %v2088 = vunpack.c.l.b16 %v2056
        %v2089 = vunpack.c.l.b16 %v2057
        %v2090 = vpack.c.b16 %v2075, %v2074
        %v2091 = vpack.c.b16 %v2077, %v2076
        %v2092 = vpack.c.b16 %v2079, %v2078
        %v2093 = vpack.c.b16 %v2081, %v2080
        %v2094 = vpack.c.b16 %v2083, %v2082
        %v2095 = vpack.c.b16 %v2085, %v2084
        %v2096 = vpack.c.b16 %v2087, %v2086
        %v2097 = vpack.c.b16 %v2089, %v2088
        %2106 = vmatprep.subr.bf16.mxu0 0
        %2107 = vmatpush1.bf16.msra.mxu0 %v2097
        %2108 = vmatprep.subr.bf16.mxu0 0
        %2109 = vmatpush1.bf16.msra.mxu0 %v2096
        %2110 = vmatprep.subr.bf16.mxu0 0
        %2111 = vmatpush1.bf16.msra.mxu0 %v2095
        %2112 = vmatprep.subr.bf16.mxu0 0
        %2113 = vmatpush1.bf16.msra.mxu0 %v2094
        %2114 = vmatprep.subr.bf16.mxu0 0
        %2115 = vmatpush1.bf16.msra.mxu0 %v2093
        %2116 = vmatprep.subr.bf16.mxu0 0
        %2117 = vmatpush1.bf16.msra.mxu0 %v2092
        %2118 = vmatprep.subr.bf16.mxu0 0
        %2119 = vmatpush1.bf16.msra.mxu0 %v2091
        %2120 = vmatprep.subr.bf16.mxu0 0
        %2121 = vmatpush1.bf16.msra.mxu0 %v2090
        %2122 = vmatprep.subr.bf16.mxu0 0
        %2123 = vmatpush2.bf16.msra.mxu0 0
        %2124 = vmatprep.subr.bf16.mxu0 0
        %2125 = vmatpush2.bf16.msra.mxu0 0
        %2126 = vmatprep.subr.bf16.mxu0 0
        %2127 = vmatpush2.bf16.msra.mxu0 0
        %2128 = vmatprep.subr.bf16.mxu0 0
        %2129 = vmatpush2.bf16.msra.mxu0 0
        %2130 = vmatprep.subr.bf16.mxu0 0
        %2131 = vmatpush2.bf16.msra.mxu0 0
        %2132 = vmatprep.subr.bf16.mxu0 0
        %2133 = vmatpush2.bf16.msra.mxu0 0
        %2134 = vmatprep.subr.bf16.mxu0 0
        %2135 = vmatpush2.bf16.msra.mxu0 0
        %2136 = vmatprep.subr.bf16.mxu0 0
        %2137 = vmatpush2.bf16.msra.mxu0 0
        %2138 = vmatprep.mubr.bf16.mxu0 0
        %2139 = vmatmul.mubr.bf16.gmra.mxu0 %v2026
        %v2140 = vpop.f32.mrf.mxu0
        %v2141 = vadd.f32 0.0, %v2140
        %v2142 = vpop.f32.mrf.mxu0
        %v2143 = vpop.f32.mrf.mxu0
        %v2144 = vadd.f32 0.0, %v2143
        %v2145 = vpop.f32.mrf.mxu0
        %2146 = vmatprep.mubr.bf16.mxu0 0
        %2147 = vmatmul.mubr.bf16.gmra.mxu0 %v2027
        %v2148 = vpop.f32.mrf.mxu0
        %v2149 = vadd.f32 0.0, %v2148
        %v2150 = vpop.f32.mrf.mxu0
        %v2151 = vpop.f32.mrf.mxu0
        %v2152 = vadd.f32 0.0, %v2151
        %v2153 = vpop.f32.mrf.mxu0
        %2154 = vmatprep.mubr.bf16.mxu0 0
        %2155 = vmatmul.mubr.bf16.gmra.mxu0 %v2028
        %v2156 = vpop.f32.mrf.mxu0
        %v2157 = vadd.f32 0.0, %v2156
        %v2158 = vpop.f32.mrf.mxu0
        %v2159 = vpop.f32.mrf.mxu0
        %v2160 = vadd.f32 0.0, %v2159
        %v2161 = vpop.f32.mrf.mxu0
        %2162 = vmatprep.mubr.bf16.mxu0 0
        %2163 = vmatmul.mubr.bf16.gmra.mxu0 %v2029
        %v2164 = vpop.f32.mrf.mxu0
        %v2165 = vadd.f32 0.0, %v2164
        %v2166 = vpop.f32.mrf.mxu0
        %v2167 = vpop.f32.mrf.mxu0
        %v2168 = vadd.f32 0.0, %v2167
        %v2169 = vpop.f32.mrf.mxu0
        %2170 = vmatprep.mubr.bf16.mxu0 0
        %2171 = vmatmul.mubr.bf16.gmra.mxu0 %v2030
        %v2172 = vpop.f32.mrf.mxu0
        %v2173 = vadd.f32 0.0, %v2172
        %v2174 = vpop.f32.mrf.mxu0
        %v2175 = vpop.f32.mrf.mxu0
        %v2176 = vadd.f32 0.0, %v2175
        %v2177 = vpop.f32.mrf.mxu0
        %2178 = vmatprep.mubr.bf16.mxu0 0
        %2179 = vmatmul.mubr.bf16.gmra.mxu0 %v2031
        %v2180 = vpop.f32.mrf.mxu0
        %v2181 = vadd.f32 0.0, %v2180
        %v2182 = vpop.f32.mrf.mxu0
        %v2183 = vpop.f32.mrf.mxu0
        %v2184 = vadd.f32 0.0, %v2183
        %v2185 = vpop.f32.mrf.mxu0
        %2186 = vmatprep.mubr.bf16.mxu0 0
        %2187 = vmatmul.mubr.bf16.gmra.mxu0 %v2032
        %v2188 = vpop.f32.mrf.mxu0
        %v2189 = vadd.f32 0.0, %v2188
        %v2190 = vpop.f32.mrf.mxu0
        %v2191 = vpop.f32.mrf.mxu0
        %v2192 = vadd.f32 0.0, %v2191
        %v2193 = vpop.f32.mrf.mxu0
        %2194 = vmatprep.mubr.bf16.mxu0 0
        %2195 = vmatmul.mubr.bf16.gmra.mxu0 %v2033
        %v2196 = vpop.f32.mrf.mxu0
        %v2197 = vadd.f32 0.0, %v2196
        %v2198 = vpop.f32.mrf.mxu0
        %v2199 = vpop.f32.mrf.mxu0
        %v2200 = vadd.f32 0.0, %v2199
        %v2201 = vpop.f32.mrf.mxu0
        %2202 = vmatprep.mubr.bf16.mxu0 0
        %2203 = vmatmul.mubr.bf16.gmra.mxu0 %v2034
        %v2204 = vpop.f32.mrf.mxu0
        %v2205 = vadd.f32 0.0, %v2204
        %v2206 = vpop.f32.mrf.mxu0
        %v2207 = vpop.f32.mrf.mxu0
        %v2208 = vadd.f32 0.0, %v2207
        %v2209 = vpop.f32.mrf.mxu0
        %2210 = vmatprep.mubr.bf16.mxu0 0
        %2211 = vmatmul.mubr.bf16.gmra.mxu0 %v2035
        %v2212 = vpop.f32.mrf.mxu0
        %v2213 = vadd.f32 0.0, %v2212
        %v2214 = vpop.f32.mrf.mxu0
        %v2215 = vpop.f32.mrf.mxu0
        %v2216 = vadd.f32 0.0, %v2215
        %v2217 = vpop.f32.mrf.mxu0
        %2218 = vmatprep.mubr.bf16.mxu0 0
        %2219 = vmatmul.mubr.bf16.gmra.mxu0 %v2036
        %v2220 = vpop.f32.mrf.mxu0
        %v2221 = vadd.f32 0.0, %v2220
        %v2222 = vpop.f32.mrf.mxu0
        %v2223 = vpop.f32.mrf.mxu0
        %v2224 = vadd.f32 0.0, %v2223
        %v2225 = vpop.f32.mrf.mxu0
        %2226 = vmatprep.mubr.bf16.mxu0 0
        %2227 = vmatmul.mubr.bf16.gmra.mxu0 %v2037
        %v2228 = vpop.f32.mrf.mxu0
        %v2229 = vadd.f32 0.0, %v2228
        %v2230 = vpop.f32.mrf.mxu0
        %v2231 = vpop.f32.mrf.mxu0
        %v2232 = vadd.f32 0.0, %v2231
        %v2233 = vpop.f32.mrf.mxu0
        %2234 = vmatprep.mubr.bf16.mxu0 0
        %2235 = vmatmul.mubr.bf16.gmra.mxu0 %v2038
        %v2236 = vpop.f32.mrf.mxu0
        %v2237 = vadd.f32 0.0, %v2236
        %v2238 = vpop.f32.mrf.mxu0
        %v2239 = vpop.f32.mrf.mxu0
        %v2240 = vadd.f32 0.0, %v2239
        %v2241 = vpop.f32.mrf.mxu0
        %2242 = vmatprep.mubr.bf16.mxu0 0
        %2243 = vmatmul.mubr.bf16.gmra.mxu0 %v2039
        %v2244 = vpop.f32.mrf.mxu0
        %v2245 = vadd.f32 0.0, %v2244
        %v2246 = vpop.f32.mrf.mxu0
        %v2247 = vpop.f32.mrf.mxu0
        %v2248 = vadd.f32 0.0, %v2247
        %v2249 = vpop.f32.mrf.mxu0
        %2250 = vmatprep.mubr.bf16.mxu0 0
        %2251 = vmatmul.mubr.bf16.gmra.mxu0 %v2040
        %v2252 = vpop.f32.mrf.mxu0
        %v2253 = vadd.f32 0.0, %v2252
        %v2254 = vpop.f32.mrf.mxu0
        %v2255 = vpop.f32.mrf.mxu0
        %v2256 = vadd.f32 0.0, %v2255
        %v2257 = vpop.f32.mrf.mxu0
        %2258 = vmatprep.mubr.bf16.mxu0 0
        %2259 = vmatmul.mubr.bf16.gmra.mxu0 %v2041
        %v2260 = vpop.f32.mrf.mxu0
        %v2261 = vadd.f32 0.0, %v2260
        %v2262 = vpop.f32.mrf.mxu0
        %v2263 = vpop.f32.mrf.mxu0
        %v2264 = vadd.f32 0.0, %v2263
        %v2265 = vpop.f32.mrf.mxu0
        %2266 = vdwg.mxu0
        %v2267 = vadd.f32 %v1351, %v2141
        %v2268 = vadd.f32 %v1352, %v2144
        %v2269 = vadd.f32 %v1353, %v2149
        %v2270 = vadd.f32 %v1354, %v2152
        %v2271 = vadd.f32 %v1355, %v2157
        %v2272 = vadd.f32 %v1356, %v2160
        %v2273 = vadd.f32 %v1357, %v2165
        %v2274 = vadd.f32 %v1358, %v2168
        %v2275 = vadd.f32 %v1359, %v2173
        %v2276 = vadd.f32 %v1360, %v2176
        %v2277 = vadd.f32 %v1361, %v2181
        %v2278 = vadd.f32 %v1362, %v2184
        %v2279 = vadd.f32 %v1363, %v2189
        %v2280 = vadd.f32 %v1364, %v2192
        %v2281 = vadd.f32 %v1365, %v2197
        %v2282 = vadd.f32 %v1366, %v2200
        %v2283 = vadd.f32 %v1367, %v2205
        %v2284 = vadd.f32 %v1368, %v2208
        %v2285 = vadd.f32 %v1369, %v2213
        %v2286 = vadd.f32 %v1370, %v2216
        %v2287 = vadd.f32 %v1371, %v2221
        %v2288 = vadd.f32 %v1372, %v2224
        %v2289 = vadd.f32 %v1373, %v2229
        %v2290 = vadd.f32 %v1374, %v2232
        %v2291 = vadd.f32 %v1375, %v2237
        %v2292 = vadd.f32 %v1376, %v2240
        %v2293 = vadd.f32 %v1377, %v2245
        %v2294 = vadd.f32 %v1378, %v2248
        %v2295 = vadd.f32 %v1379, %v2253
        %v2296 = vadd.f32 %v1380, %v2256
        %v2297 = vadd.f32 %v1381, %v2261
        %v2298 = vadd.f32 %v1382, %v2264
        %v2299 = vld [vmem:[%s9] sm:$0x1]
        %v2301 = vlaneseq
        %v2302 = vshrl.u32 %v2301, 7
        %v2303 = vsub.s32 0, %v2302
        %v2304 = vrot.slane %v2299, %v2303
        %v2306 = vadd.f32 %v2267, %v2304
        %v2307 = vadd.f32 %v2268, %v2304
        %v2308 = vadd.f32 %v2269, %v2304
        %v2309 = vadd.f32 %v2270, %v2304
        %v2310 = vadd.f32 %v2271, %v2304
        %v2311 = vadd.f32 %v2272, %v2304
        %v2312 = vadd.f32 %v2273, %v2304
        %v2313 = vadd.f32 %v2274, %v2304
        %v2314 = vadd.f32 %v2275, %v2304
        %v2315 = vadd.f32 %v2276, %v2304
        %v2316 = vadd.f32 %v2277, %v2304
        %v2317 = vadd.f32 %v2278, %v2304
        %v2318 = vadd.f32 %v2279, %v2304
        %v2319 = vadd.f32 %v2280, %v2304
        %v2320 = vadd.f32 %v2281, %v2304
        %v2321 = vadd.f32 %v2282, %v2304
        %v2322 = vadd.f32 %v2283, %v2304
        %v2323 = vadd.f32 %v2284, %v2304
        %v2324 = vadd.f32 %v2285, %v2304
        %v2325 = vadd.f32 %v2286, %v2304
        %v2326 = vadd.f32 %v2287, %v2304
        %v2327 = vadd.f32 %v2288, %v2304
        %v2328 = vadd.f32 %v2289, %v2304
        %v2329 = vadd.f32 %v2290, %v2304
        %v2330 = vadd.f32 %v2291, %v2304
        %v2331 = vadd.f32 %v2292, %v2304
        %v2332 = vadd.f32 %v2293, %v2304
        %v2333 = vadd.f32 %v2294, %v2304
        %v2334 = vadd.f32 %v2295, %v2304
        %v2335 = vadd.f32 %v2296, %v2304
        %v2336 = vadd.f32 %v2297, %v2304
        %v2337 = vadd.f32 %v2298, %v2304
        %v2338 = vld [vmem:[%s6] sm:$0xf]
        %v2339 = vld [vmem:[%s6 + $0x4] sm:$0xf]
        %v2340 = vld [vmem:[%s6 + $0x8] sm:$0xf]
        %v2341 = vld [vmem:[%s6 + $0xc] sm:$0xf]
        %v2342 = vld [vmem:[%s6 + $0x10] sm:$0xf]
        %v2343 = vld [vmem:[%s6 + $0x14] sm:$0xf]
        %v2344 = vld [vmem:[%s6 + $0x18] sm:$0xf]
        %v2345 = vld [vmem:[%s6 + $0x1c] sm:$0xf]
        %v2346 = vld [vmem:[%s6 + $0x20] sm:$0xf]
        %v2347 = vld [vmem:[%s6 + $0x24] sm:$0xf]
        %v2348 = vld [vmem:[%s6 + $0x28] sm:$0xf]
        %v2349 = vld [vmem:[%s6 + $0x2c] sm:$0xf]
        %v2350 = vld [vmem:[%s6 + $0x30] sm:$0xf]
        %v2351 = vld [vmem:[%s6 + $0x34] sm:$0xf]
        %v2352 = vld [vmem:[%s6 + $0x38] sm:$0xf]
        %v2353 = vld [vmem:[%s6 + $0x3c] sm:$0xf]
        %v2370 = vunpack.c.l.b16 %v2338
        %v2371 = vunpack.c.l.b16 %v2339
        %v2372 = vunpack.c.l.b16 %v2340
        %v2373 = vunpack.c.l.b16 %v2341
        %v2374 = vunpack.c.l.b16 %v2342
        %v2375 = vunpack.c.l.b16 %v2343
        %v2376 = vunpack.c.l.b16 %v2344
        %v2377 = vunpack.c.l.b16 %v2345
        %v2378 = vunpack.c.l.b16 %v2346
        %v2379 = vunpack.c.l.b16 %v2347
        %v2380 = vunpack.c.l.b16 %v2348
        %v2381 = vunpack.c.l.b16 %v2349
        %v2382 = vunpack.c.l.b16 %v2350
        %v2383 = vunpack.c.l.b16 %v2351
        %v2384 = vunpack.c.l.b16 %v2352
        %v2385 = vunpack.c.l.b16 %v2353
        %v2386 = vpack.c.b16 %v2371, %v2370
        %v2387 = vpack.c.b16 %v2373, %v2372
        %v2388 = vpack.c.b16 %v2375, %v2374
        %v2389 = vpack.c.b16 %v2377, %v2376
        %v2390 = vpack.c.b16 %v2379, %v2378
        %v2391 = vpack.c.b16 %v2381, %v2380
        %v2392 = vpack.c.b16 %v2383, %v2382
        %v2393 = vpack.c.b16 %v2385, %v2384
        %2402 = vmatprep.subr.bf16.mxu0 0
        %2403 = vmatpush1.bf16.msra.mxu0 %v2393
        %2404 = vmatprep.subr.bf16.mxu0 0
        %2405 = vmatpush1.bf16.msra.mxu0 %v2392
        %2406 = vmatprep.subr.bf16.mxu0 0
        %2407 = vmatpush1.bf16.msra.mxu0 %v2391
        %2408 = vmatprep.subr.bf16.mxu0 0
        %2409 = vmatpush1.bf16.msra.mxu0 %v2390
        %2410 = vmatprep.subr.bf16.mxu0 0
        %2411 = vmatpush1.bf16.msra.mxu0 %v2389
        %2412 = vmatprep.subr.bf16.mxu0 0
        %2413 = vmatpush1.bf16.msra.mxu0 %v2388
        %2414 = vmatprep.subr.bf16.mxu0 0
        %2415 = vmatpush1.bf16.msra.mxu0 %v2387
        %2416 = vmatprep.subr.bf16.mxu0 0
        %2417 = vmatpush1.bf16.msra.mxu0 %v2386
        %2418 = vmatprep.subr.bf16.mxu0 0
        %2419 = vmatpush2.bf16.msra.mxu0 0
        %2420 = vmatprep.subr.bf16.mxu0 0
        %2421 = vmatpush2.bf16.msra.mxu0 0
        %2422 = vmatprep.subr.bf16.mxu0 0
        %2423 = vmatpush2.bf16.msra.mxu0 0
        %2424 = vmatprep.subr.bf16.mxu0 0
        %2425 = vmatpush2.bf16.msra.mxu0 0
        %2426 = vmatprep.subr.bf16.mxu0 0
        %2427 = vmatpush2.bf16.msra.mxu0 0
        %2428 = vmatprep.subr.bf16.mxu0 0
        %2429 = vmatpush2.bf16.msra.mxu0 0
        %2430 = vmatprep.subr.bf16.mxu0 0
        %2431 = vmatpush2.bf16.msra.mxu0 0
        %2432 = vmatprep.subr.bf16.mxu0 0
        %2433 = vmatpush2.bf16.msra.mxu0 0
        %2434 = vmatprep.mubr.bf16.mxu0 0
        %2435 = vmatmul.mubr.bf16.gmra.mxu0 %v2010
        %v2436 = vpop.f32.mrf.mxu0
        %v2437 = vadd.f32 0.0, %v2436
        %v2438 = vpop.f32.mrf.mxu0
        %v2439 = vpop.f32.mrf.mxu0
        %v2440 = vadd.f32 0.0, %v2439
        %v2441 = vpop.f32.mrf.mxu0
        %2442 = vmatprep.mubr.bf16.mxu0 0
        %2443 = vmatmul.mubr.bf16.gmra.mxu0 %v2011
        %v2444 = vpop.f32.mrf.mxu0
        %v2445 = vadd.f32 0.0, %v2444
        %v2446 = vpop.f32.mrf.mxu0
        %v2447 = vpop.f32.mrf.mxu0
        %v2448 = vadd.f32 0.0, %v2447
        %v2449 = vpop.f32.mrf.mxu0
        %2450 = vmatprep.mubr.bf16.mxu0 0
        %2451 = vmatmul.mubr.bf16.gmra.mxu0 %v2012
        %v2452 = vpop.f32.mrf.mxu0
        %v2453 = vadd.f32 0.0, %v2452
        %v2454 = vpop.f32.mrf.mxu0
        %v2455 = vpop.f32.mrf.mxu0
        %v2456 = vadd.f32 0.0, %v2455
        %v2457 = vpop.f32.mrf.mxu0
        %2458 = vmatprep.mubr.bf16.mxu0 0
        %2459 = vmatmul.mubr.bf16.gmra.mxu0 %v2013
        %v2460 = vpop.f32.mrf.mxu0
        %v2461 = vadd.f32 0.0, %v2460
        %v2462 = vpop.f32.mrf.mxu0
        %v2463 = vpop.f32.mrf.mxu0
        %v2464 = vadd.f32 0.0, %v2463
        %v2465 = vpop.f32.mrf.mxu0
        %2466 = vmatprep.mubr.bf16.mxu0 0
        %2467 = vmatmul.mubr.bf16.gmra.mxu0 %v2014
        %v2468 = vpop.f32.mrf.mxu0
        %v2469 = vadd.f32 0.0, %v2468
        %v2470 = vpop.f32.mrf.mxu0
        %v2471 = vpop.f32.mrf.mxu0
        %v2472 = vadd.f32 0.0, %v2471
        %v2473 = vpop.f32.mrf.mxu0
        %2474 = vmatprep.mubr.bf16.mxu0 0
        %2475 = vmatmul.mubr.bf16.gmra.mxu0 %v2015
        %v2476 = vpop.f32.mrf.mxu0
        %v2477 = vadd.f32 0.0, %v2476
        %v2478 = vpop.f32.mrf.mxu0
        %v2479 = vpop.f32.mrf.mxu0
        %v2480 = vadd.f32 0.0, %v2479
        %v2481 = vpop.f32.mrf.mxu0
        %2482 = vmatprep.mubr.bf16.mxu0 0
        %2483 = vmatmul.mubr.bf16.gmra.mxu0 %v2016
        %v2484 = vpop.f32.mrf.mxu0
        %v2485 = vadd.f32 0.0, %v2484
        %v2486 = vpop.f32.mrf.mxu0
        %v2487 = vpop.f32.mrf.mxu0
        %v2488 = vadd.f32 0.0, %v2487
        %v2489 = vpop.f32.mrf.mxu0
        %2490 = vmatprep.mubr.bf16.mxu0 0
        %2491 = vmatmul.mubr.bf16.gmra.mxu0 %v2017
        %v2492 = vpop.f32.mrf.mxu0
        %v2493 = vadd.f32 0.0, %v2492
        %v2494 = vpop.f32.mrf.mxu0
        %v2495 = vpop.f32.mrf.mxu0
        %v2496 = vadd.f32 0.0, %v2495
        %v2497 = vpop.f32.mrf.mxu0
        %2498 = vmatprep.mubr.bf16.mxu0 0
        %2499 = vmatmul.mubr.bf16.gmra.mxu0 %v2018
        %v2500 = vpop.f32.mrf.mxu0
        %v2501 = vadd.f32 0.0, %v2500
        %v2502 = vpop.f32.mrf.mxu0
        %v2503 = vpop.f32.mrf.mxu0
        %v2504 = vadd.f32 0.0, %v2503
        %v2505 = vpop.f32.mrf.mxu0
        %2506 = vmatprep.mubr.bf16.mxu0 0
        %2507 = vmatmul.mubr.bf16.gmra.mxu0 %v2019
        %v2508 = vpop.f32.mrf.mxu0
        %v2509 = vadd.f32 0.0, %v2508
        %v2510 = vpop.f32.mrf.mxu0
        %v2511 = vpop.f32.mrf.mxu0
        %v2512 = vadd.f32 0.0, %v2511
        %v2513 = vpop.f32.mrf.mxu0
        %2514 = vmatprep.mubr.bf16.mxu0 0
        %2515 = vmatmul.mubr.bf16.gmra.mxu0 %v2020
        %v2516 = vpop.f32.mrf.mxu0
        %v2517 = vadd.f32 0.0, %v2516
        %v2518 = vpop.f32.mrf.mxu0
        %v2519 = vpop.f32.mrf.mxu0
        %v2520 = vadd.f32 0.0, %v2519
        %v2521 = vpop.f32.mrf.mxu0
        %2522 = vmatprep.mubr.bf16.mxu0 0
        %2523 = vmatmul.mubr.bf16.gmra.mxu0 %v2021
        %v2524 = vpop.f32.mrf.mxu0
        %v2525 = vadd.f32 0.0, %v2524
        %v2526 = vpop.f32.mrf.mxu0
        %v2527 = vpop.f32.mrf.mxu0
        %v2528 = vadd.f32 0.0, %v2527
        %v2529 = vpop.f32.mrf.mxu0
        %2530 = vmatprep.mubr.bf16.mxu0 0
        %2531 = vmatmul.mubr.bf16.gmra.mxu0 %v2022
        %v2532 = vpop.f32.mrf.mxu0
        %v2533 = vadd.f32 0.0, %v2532
        %v2534 = vpop.f32.mrf.mxu0
        %v2535 = vpop.f32.mrf.mxu0
        %v2536 = vadd.f32 0.0, %v2535
        %v2537 = vpop.f32.mrf.mxu0
        %2538 = vmatprep.mubr.bf16.mxu0 0
        %2539 = vmatmul.mubr.bf16.gmra.mxu0 %v2023
        %v2540 = vpop.f32.mrf.mxu0
        %v2541 = vadd.f32 0.0, %v2540
        %v2542 = vpop.f32.mrf.mxu0
        %v2543 = vpop.f32.mrf.mxu0
        %v2544 = vadd.f32 0.0, %v2543
        %v2545 = vpop.f32.mrf.mxu0
        %2546 = vmatprep.mubr.bf16.mxu0 0
        %2547 = vmatmul.mubr.bf16.gmra.mxu0 %v2024
        %v2548 = vpop.f32.mrf.mxu0
        %v2549 = vadd.f32 0.0, %v2548
        %v2550 = vpop.f32.mrf.mxu0
        %v2551 = vpop.f32.mrf.mxu0
        %v2552 = vadd.f32 0.0, %v2551
        %v2553 = vpop.f32.mrf.mxu0
        %2554 = vmatprep.mubr.bf16.mxu0 0
        %2555 = vmatmul.mubr.bf16.gmra.mxu0 %v2025
        %v2556 = vpop.f32.mrf.mxu0
        %v2557 = vadd.f32 0.0, %v2556
        %v2558 = vpop.f32.mrf.mxu0
        %v2559 = vpop.f32.mrf.mxu0
        %v2560 = vadd.f32 0.0, %v2559
        %v2561 = vpop.f32.mrf.mxu0
        %2562 = vdwg.mxu0
        %v2563 = vadd.f32 %v1978, %v2437
        %v2564 = vadd.f32 %v1979, %v2440
        %v2565 = vadd.f32 %v1980, %v2445
        %v2566 = vadd.f32 %v1981, %v2448
        %v2567 = vadd.f32 %v1982, %v2453
        %v2568 = vadd.f32 %v1983, %v2456
        %v2569 = vadd.f32 %v1984, %v2461
        %v2570 = vadd.f32 %v1985, %v2464
        %v2571 = vadd.f32 %v1986, %v2469
        %v2572 = vadd.f32 %v1987, %v2472
        %v2573 = vadd.f32 %v1988, %v2477
        %v2574 = vadd.f32 %v1989, %v2480
        %v2575 = vadd.f32 %v1990, %v2485
        %v2576 = vadd.f32 %v1991, %v2488
        %v2577 = vadd.f32 %v1992, %v2493
        %v2578 = vadd.f32 %v1993, %v2496
        %v2579 = vadd.f32 %v1994, %v2501
        %v2580 = vadd.f32 %v1995, %v2504
        %v2581 = vadd.f32 %v1996, %v2509
        %v2582 = vadd.f32 %v1997, %v2512
        %v2583 = vadd.f32 %v1998, %v2517
        %v2584 = vadd.f32 %v1999, %v2520
        %v2585 = vadd.f32 %v2000, %v2525
        %v2586 = vadd.f32 %v2001, %v2528
        %v2587 = vadd.f32 %v2002, %v2533
        %v2588 = vadd.f32 %v2003, %v2536
        %v2589 = vadd.f32 %v2004, %v2541
        %v2590 = vadd.f32 %v2005, %v2544
        %v2591 = vadd.f32 %v2006, %v2549
        %v2592 = vadd.f32 %v2007, %v2552
        %v2593 = vadd.f32 %v2008, %v2557
        %v2594 = vadd.f32 %v2009, %v2560
        %v2595 = vld [vmem:[%s7] sm:$0x1]
        %v2597 = vlaneseq
        %v2598 = vshrl.u32 %v2597, 7
        %v2599 = vsub.s32 0, %v2598
        %v2600 = vrot.slane %v2595, %v2599
        %v2602 = vadd.f32 %v2563, %v2600
        %v2603 = vadd.f32 %v2564, %v2600
        %v2604 = vadd.f32 %v2565, %v2600
        %v2605 = vadd.f32 %v2566, %v2600
        %v2606 = vadd.f32 %v2567, %v2600
        %v2607 = vadd.f32 %v2568, %v2600
        %v2608 = vadd.f32 %v2569, %v2600
        %v2609 = vadd.f32 %v2570, %v2600
        %v2610 = vadd.f32 %v2571, %v2600
        %v2611 = vadd.f32 %v2572, %v2600
        %v2612 = vadd.f32 %v2573, %v2600
        %v2613 = vadd.f32 %v2574, %v2600
        %v2614 = vadd.f32 %v2575, %v2600
        %v2615 = vadd.f32 %v2576, %v2600
        %v2616 = vadd.f32 %v2577, %v2600
        %v2617 = vadd.f32 %v2578, %v2600
        %v2618 = vadd.f32 %v2579, %v2600
        %v2619 = vadd.f32 %v2580, %v2600
        %v2620 = vadd.f32 %v2581, %v2600
        %v2621 = vadd.f32 %v2582, %v2600
        %v2622 = vadd.f32 %v2583, %v2600
        %v2623 = vadd.f32 %v2584, %v2600
        %v2624 = vadd.f32 %v2585, %v2600
        %v2625 = vadd.f32 %v2586, %v2600
        %v2626 = vadd.f32 %v2587, %v2600
        %v2627 = vadd.f32 %v2588, %v2600
        %v2628 = vadd.f32 %v2589, %v2600
        %v2629 = vadd.f32 %v2590, %v2600
        %v2630 = vadd.f32 %v2591, %v2600
        %v2631 = vadd.f32 %v2592, %v2600
        %v2632 = vadd.f32 %v2593, %v2600
        %v2633 = vadd.f32 %v2594, %v2600
        %v2634 = vpack.c.bf16 %v2307, %v2306
        %v2635 = vpack.c.bf16 %v2309, %v2308
        %v2636 = vpack.c.bf16 %v2311, %v2310
        %v2637 = vpack.c.bf16 %v2313, %v2312
        %v2638 = vpack.c.bf16 %v2315, %v2314
        %v2639 = vpack.c.bf16 %v2317, %v2316
        %v2640 = vpack.c.bf16 %v2319, %v2318
        %v2641 = vpack.c.bf16 %v2321, %v2320
        %v2642 = vpack.c.bf16 %v2323, %v2322
        %v2643 = vpack.c.bf16 %v2325, %v2324
        %v2644 = vpack.c.bf16 %v2327, %v2326
        %v2645 = vpack.c.bf16 %v2329, %v2328
        %v2646 = vpack.c.bf16 %v2331, %v2330
        %v2647 = vpack.c.bf16 %v2333, %v2332
        %v2648 = vpack.c.bf16 %v2335, %v2334
        %v2649 = vpack.c.bf16 %v2337, %v2336
        %v2650 = vld [vmem:[%s10] sm:$0xff]
        %v2651 = vld [vmem:[%s10 + $0x8] sm:$0xff]
        %v2652 = vld [vmem:[%s10 + $0x10] sm:$0xff]
        %v2653 = vld [vmem:[%s10 + $0x18] sm:$0xff]
        %v2654 = vld [vmem:[%s10 + $0x20] sm:$0xff]
        %v2655 = vld [vmem:[%s10 + $0x28] sm:$0xff]
        %v2656 = vld [vmem:[%s10 + $0x30] sm:$0xff]
        %v2657 = vld [vmem:[%s10 + $0x38] sm:$0xff]
        %v2658 = vld [vmem:[%s10 + $0x40] sm:$0xff]
        %v2659 = vld [vmem:[%s10 + $0x48] sm:$0xff]
        %v2660 = vld [vmem:[%s10 + $0x50] sm:$0xff]
        %v2661 = vld [vmem:[%s10 + $0x58] sm:$0xff]
        %v2662 = vld [vmem:[%s10 + $0x60] sm:$0xff]
        %v2663 = vld [vmem:[%s10 + $0x68] sm:$0xff]
        %v2664 = vld [vmem:[%s10 + $0x70] sm:$0xff]
        %v2665 = vld [vmem:[%s10 + $0x78] sm:$0xff]
        %v2666 = vld [vmem:[%s10 + $0x80] sm:$0xff]
        %v2667 = vld [vmem:[%s10 + $0x88] sm:$0xff]
        %v2668 = vld [vmem:[%s10 + $0x90] sm:$0xff]
        %v2669 = vld [vmem:[%s10 + $0x98] sm:$0xff]
        %v2670 = vld [vmem:[%s10 + $0xa0] sm:$0xff]
        %v2671 = vld [vmem:[%s10 + $0xa8] sm:$0xff]
        %v2672 = vld [vmem:[%s10 + $0xb0] sm:$0xff]
        %v2673 = vld [vmem:[%s10 + $0xb8] sm:$0xff]
        %v2674 = vld [vmem:[%s10 + $0xc0] sm:$0xff]
        %v2675 = vld [vmem:[%s10 + $0xc8] sm:$0xff]
        %v2676 = vld [vmem:[%s10 + $0xd0] sm:$0xff]
        %v2677 = vld [vmem:[%s10 + $0xd8] sm:$0xff]
        %v2678 = vld [vmem:[%s10 + $0xe0] sm:$0xff]
        %v2679 = vld [vmem:[%s10 + $0xe8] sm:$0xff]
        %v2680 = vld [vmem:[%s10 + $0xf0] sm:$0xff]
        %v2681 = vld [vmem:[%s10 + $0xf8] sm:$0xff]
        %v2682 = vld [vmem:[%s10 + $0x100] sm:$0xff]
        %v2683 = vld [vmem:[%s10 + $0x108] sm:$0xff]
        %v2684 = vld [vmem:[%s10 + $0x110] sm:$0xff]
        %v2685 = vld [vmem:[%s10 + $0x118] sm:$0xff]
        %v2686 = vld [vmem:[%s10 + $0x120] sm:$0xff]
        %v2687 = vld [vmem:[%s10 + $0x128] sm:$0xff]
        %v2688 = vld [vmem:[%s10 + $0x130] sm:$0xff]
        %v2689 = vld [vmem:[%s10 + $0x138] sm:$0xff]
        %v2690 = vld [vmem:[%s10 + $0x140] sm:$0xff]
        %v2691 = vld [vmem:[%s10 + $0x148] sm:$0xff]
        %v2692 = vld [vmem:[%s10 + $0x150] sm:$0xff]
        %v2693 = vld [vmem:[%s10 + $0x158] sm:$0xff]
        %v2694 = vld [vmem:[%s10 + $0x160] sm:$0xff]
        %v2695 = vld [vmem:[%s10 + $0x168] sm:$0xff]
        %v2696 = vld [vmem:[%s10 + $0x170] sm:$0xff]
        %v2697 = vld [vmem:[%s10 + $0x178] sm:$0xff]
        %v2698 = vld [vmem:[%s10 + $0x180] sm:$0xff]
        %v2699 = vld [vmem:[%s10 + $0x188] sm:$0xff]
        %v2700 = vld [vmem:[%s10 + $0x190] sm:$0xff]
        %v2701 = vld [vmem:[%s10 + $0x198] sm:$0xff]
        %v2702 = vld [vmem:[%s10 + $0x1a0] sm:$0xff]
        %v2703 = vld [vmem:[%s10 + $0x1a8] sm:$0xff]
        %v2704 = vld [vmem:[%s10 + $0x1b0] sm:$0xff]
        %v2705 = vld [vmem:[%s10 + $0x1b8] sm:$0xff]
        %v2706 = vld [vmem:[%s10 + $0x1c0] sm:$0xff]
        %v2707 = vld [vmem:[%s10 + $0x1c8] sm:$0xff]
        %v2708 = vld [vmem:[%s10 + $0x1d0] sm:$0xff]
        %v2709 = vld [vmem:[%s10 + $0x1d8] sm:$0xff]
        %v2710 = vld [vmem:[%s10 + $0x1e0] sm:$0xff]
        %v2711 = vld [vmem:[%s10 + $0x1e8] sm:$0xff]
        %v2712 = vld [vmem:[%s10 + $0x1f0] sm:$0xff]
        %v2713 = vld [vmem:[%s10 + $0x1f8] sm:$0xff]
        %v2714 = vld [vmem:[%s10 + $0x200] sm:$0xff]
        %v2715 = vld [vmem:[%s10 + $0x208] sm:$0xff]
        %v2716 = vld [vmem:[%s10 + $0x210] sm:$0xff]
        %v2717 = vld [vmem:[%s10 + $0x218] sm:$0xff]
        %v2718 = vld [vmem:[%s10 + $0x220] sm:$0xff]
        %v2719 = vld [vmem:[%s10 + $0x228] sm:$0xff]
        %v2720 = vld [vmem:[%s10 + $0x230] sm:$0xff]
        %v2721 = vld [vmem:[%s10 + $0x238] sm:$0xff]
        %v2722 = vld [vmem:[%s10 + $0x240] sm:$0xff]
        %v2723 = vld [vmem:[%s10 + $0x248] sm:$0xff]
        %v2724 = vld [vmem:[%s10 + $0x250] sm:$0xff]
        %v2725 = vld [vmem:[%s10 + $0x258] sm:$0xff]
        %v2726 = vld [vmem:[%s10 + $0x260] sm:$0xff]
        %v2727 = vld [vmem:[%s10 + $0x268] sm:$0xff]
        %v2728 = vld [vmem:[%s10 + $0x270] sm:$0xff]
        %v2729 = vld [vmem:[%s10 + $0x278] sm:$0xff]
        %v2730 = vld [vmem:[%s11] sm:$0xff]
        %v2731 = vld [vmem:[%s11 + $0x8] sm:$0x3]
        %v2734 = vlaneseq
        %v2735 = vshrl.u32 %v2734, 7
        %v2736 = vsub.s32 0, %v2735
        %v2737 = vrot.slane %v2730, %v2736
        %v2738 = vlaneseq
        %v2739 = vshrl.u32 %v2738, 7
        %v2740 = vsub.s32 1, %v2739
        %v2741 = vrot.slane %v2730, %v2740
        %v2742 = vlaneseq
        %v2743 = vshrl.u32 %v2742, 7
        %v2744 = vsub.s32 2, %v2743
        %v2745 = vrot.slane %v2730, %v2744
        %v2746 = vlaneseq
        %v2747 = vshrl.u32 %v2746, 7
        %v2748 = vsub.s32 3, %v2747
        %v2749 = vrot.slane %v2730, %v2748
        %v2750 = vlaneseq
        %v2751 = vshrl.u32 %v2750, 7
        %v2752 = vsub.s32 4, %v2751
        %v2753 = vrot.slane %v2730, %v2752
        %v2754 = vlaneseq
        %v2755 = vshrl.u32 %v2754, 7
        %v2756 = vsub.s32 5, %v2755
        %v2757 = vrot.slane %v2730, %v2756
        %v2758 = vlaneseq
        %v2759 = vshrl.u32 %v2758, 7
        %v2760 = vsub.s32 6, %v2759
        %v2761 = vrot.slane %v2730, %v2760
        %v2762 = vlaneseq
        %v2763 = vshrl.u32 %v2762, 7
        %v2764 = vsub.s32 7, %v2763
        %v2765 = vrot.slane %v2730, %v2764
        %v2766 = vlaneseq
        %v2767 = vshrl.u32 %v2766, 7
        %v2768 = vsub.s32 0, %v2767
        %v2769 = vrot.slane %v2731, %v2768
        %v2770 = vlaneseq
        %v2771 = vshrl.u32 %v2770, 7
        %v2772 = vsub.s32 1, %v2771
        %v2773 = vrot.slane %v2731, %v2772
        %v2864 = vunpack.c.l.b16 %v2650
        %v2865 = vunpack.c.h.b16 %v2650
        %v2866 = vunpack.c.l.b16 %v2651
        %v2867 = vunpack.c.h.b16 %v2651
        %v2868 = vunpack.c.l.b16 %v2652
        %v2869 = vunpack.c.h.b16 %v2652
        %v2870 = vunpack.c.l.b16 %v2653
        %v2871 = vunpack.c.h.b16 %v2653
        %v2872 = vunpack.c.l.b16 %v2654
        %v2873 = vunpack.c.h.b16 %v2654
        %v2874 = vunpack.c.l.b16 %v2655
        %v2875 = vunpack.c.h.b16 %v2655
        %v2876 = vunpack.c.l.b16 %v2656
        %v2877 = vunpack.c.h.b16 %v2656
        %v2878 = vunpack.c.l.b16 %v2657
        %v2879 = vunpack.c.h.b16 %v2657
        %v2880 = vunpack.c.l.b16 %v2658
        %v2881 = vunpack.c.h.b16 %v2658
        %v2882 = vunpack.c.l.b16 %v2659
        %v2883 = vunpack.c.h.b16 %v2659
        %v2884 = vunpack.c.l.b16 %v2660
        %v2885 = vunpack.c.h.b16 %v2660
        %v2886 = vunpack.c.l.b16 %v2661
        %v2887 = vunpack.c.h.b16 %v2661
        %v2888 = vunpack.c.l.b16 %v2662
        %v2889 = vunpack.c.h.b16 %v2662
        %v2890 = vunpack.c.l.b16 %v2663
        %v2891 = vunpack.c.h.b16 %v2663
        %v2892 = vunpack.c.l.b16 %v2664
        %v2893 = vunpack.c.h.b16 %v2664
        %v2894 = vunpack.c.l.b16 %v2665
        %v2895 = vunpack.c.h.b16 %v2665
        %v2896 = vunpack.c.l.b16 %v2666
        %v2897 = vunpack.c.h.b16 %v2666
        %v2898 = vunpack.c.l.b16 %v2667
        %v2899 = vunpack.c.h.b16 %v2667
        %v2900 = vunpack.c.l.b16 %v2668
        %v2901 = vunpack.c.h.b16 %v2668
        %v2902 = vunpack.c.l.b16 %v2669
        %v2903 = vunpack.c.h.b16 %v2669
        %v2904 = vunpack.c.l.b16 %v2670
        %v2905 = vunpack.c.h.b16 %v2670
        %v2906 = vunpack.c.l.b16 %v2671
        %v2907 = vunpack.c.h.b16 %v2671
        %v2908 = vunpack.c.l.b16 %v2672
        %v2909 = vunpack.c.h.b16 %v2672
        %v2910 = vunpack.c.l.b16 %v2673
        %v2911 = vunpack.c.h.b16 %v2673
        %v2912 = vunpack.c.l.b16 %v2674
        %v2913 = vunpack.c.h.b16 %v2674
        %v2914 = vunpack.c.l.b16 %v2675
        %v2915 = vunpack.c.h.b16 %v2675
        %v2916 = vunpack.c.l.b16 %v2676
        %v2917 = vunpack.c.h.b16 %v2676
        %v2918 = vunpack.c.l.b16 %v2677
        %v2919 = vunpack.c.h.b16 %v2677
        %v2920 = vunpack.c.l.b16 %v2678
        %v2921 = vunpack.c.h.b16 %v2678
        %v2922 = vunpack.c.l.b16 %v2679
        %v2923 = vunpack.c.h.b16 %v2679
        %v2924 = vunpack.c.l.b16 %v2680
        %v2925 = vunpack.c.h.b16 %v2680
        %v2926 = vunpack.c.l.b16 %v2681
        %v2927 = vunpack.c.h.b16 %v2681
        %v2928 = vunpack.c.l.b16 %v2682
        %v2929 = vunpack.c.h.b16 %v2682
        %v2930 = vunpack.c.l.b16 %v2683
        %v2931 = vunpack.c.h.b16 %v2683
        %v2932 = vunpack.c.l.b16 %v2684
        %v2933 = vunpack.c.h.b16 %v2684
        %v2934 = vunpack.c.l.b16 %v2685
        %v2935 = vunpack.c.h.b16 %v2685
        %v2936 = vunpack.c.l.b16 %v2686
        %v2937 = vunpack.c.h.b16 %v2686
        %v2938 = vunpack.c.l.b16 %v2687
        %v2939 = vunpack.c.h.b16 %v2687
        %v2940 = vunpack.c.l.b16 %v2688
        %v2941 = vunpack.c.h.b16 %v2688
        %v2942 = vunpack.c.l.b16 %v2689
        %v2943 = vunpack.c.h.b16 %v2689
        %v2944 = vunpack.c.l.b16 %v2690
        %v2945 = vunpack.c.h.b16 %v2690
        %v2946 = vunpack.c.l.b16 %v2691
        %v2947 = vunpack.c.h.b16 %v2691
        %v2948 = vunpack.c.l.b16 %v2692
        %v2949 = vunpack.c.h.b16 %v2692
        %v2950 = vunpack.c.l.b16 %v2693
        %v2951 = vunpack.c.h.b16 %v2693
        %v2952 = vunpack.c.l.b16 %v2694
        %v2953 = vunpack.c.h.b16 %v2694
        %v2954 = vunpack.c.l.b16 %v2695
        %v2955 = vunpack.c.h.b16 %v2695
        %v2956 = vunpack.c.l.b16 %v2696
        %v2957 = vunpack.c.h.b16 %v2696
        %v2958 = vunpack.c.l.b16 %v2697
        %v2959 = vunpack.c.h.b16 %v2697
        %v2960 = vunpack.c.l.b16 %v2698
        %v2961 = vunpack.c.h.b16 %v2698
        %v2962 = vunpack.c.l.b16 %v2699
        %v2963 = vunpack.c.h.b16 %v2699
        %v2964 = vunpack.c.l.b16 %v2700
        %v2965 = vunpack.c.h.b16 %v2700
        %v2966 = vunpack.c.l.b16 %v2701
        %v2967 = vunpack.c.h.b16 %v2701
        %v2968 = vunpack.c.l.b16 %v2702
        %v2969 = vunpack.c.h.b16 %v2702
        %v2970 = vunpack.c.l.b16 %v2703
        %v2971 = vunpack.c.h.b16 %v2703
        %v2972 = vunpack.c.l.b16 %v2704
        %v2973 = vunpack.c.h.b16 %v2704
        %v2974 = vunpack.c.l.b16 %v2705
        %v2975 = vunpack.c.h.b16 %v2705
        %v2976 = vunpack.c.l.b16 %v2706
        %v2977 = vunpack.c.h.b16 %v2706
        %v2978 = vunpack.c.l.b16 %v2707
        %v2979 = vunpack.c.h.b16 %v2707
        %v2980 = vunpack.c.l.b16 %v2708
        %v2981 = vunpack.c.h.b16 %v2708
        %v2982 = vunpack.c.l.b16 %v2709
        %v2983 = vunpack.c.h.b16 %v2709
        %v2984 = vunpack.c.l.b16 %v2710
        %v2985 = vunpack.c.h.b16 %v2710
        %v2986 = vunpack.c.l.b16 %v2711
        %v2987 = vunpack.c.h.b16 %v2711
        %v2988 = vunpack.c.l.b16 %v2712
        %v2989 = vunpack.c.h.b16 %v2712
        %v2990 = vunpack.c.l.b16 %v2713
        %v2991 = vunpack.c.h.b16 %v2713
        %v2992 = vunpack.c.l.b16 %v2714
        %v2993 = vunpack.c.h.b16 %v2714
        %v2994 = vunpack.c.l.b16 %v2715
        %v2995 = vunpack.c.h.b16 %v2715
        %v2996 = vunpack.c.l.b16 %v2716
        %v2997 = vunpack.c.h.b16 %v2716
        %v2998 = vunpack.c.l.b16 %v2717
        %v2999 = vunpack.c.h.b16 %v2717
        %v3000 = vunpack.c.l.b16 %v2718
        %v3001 = vunpack.c.h.b16 %v2718
        %v3002 = vunpack.c.l.b16 %v2719
        %v3003 = vunpack.c.h.b16 %v2719
        %v3004 = vunpack.c.l.b16 %v2720
        %v3005 = vunpack.c.h.b16 %v2720
        %v3006 = vunpack.c.l.b16 %v2721
        %v3007 = vunpack.c.h.b16 %v2721
        %v3008 = vunpack.c.l.b16 %v2722
        %v3009 = vunpack.c.h.b16 %v2722
        %v3010 = vunpack.c.l.b16 %v2723
        %v3011 = vunpack.c.h.b16 %v2723
        %v3012 = vunpack.c.l.b16 %v2724
        %v3013 = vunpack.c.h.b16 %v2724
        %v3014 = vunpack.c.l.b16 %v2725
        %v3015 = vunpack.c.h.b16 %v2725
        %v3016 = vunpack.c.l.b16 %v2726
        %v3017 = vunpack.c.h.b16 %v2726
        %v3018 = vunpack.c.l.b16 %v2727
        %v3019 = vunpack.c.h.b16 %v2727
        %v3020 = vunpack.c.l.b16 %v2728
        %v3021 = vunpack.c.h.b16 %v2728
        %v3022 = vunpack.c.l.b16 %v2729
        %v3023 = vunpack.c.h.b16 %v2729
        %v3024 = vpack.c.b16 %v2874, %v2864
        %v3025 = vpack.c.b16 %v2875, %v2865
        %v3026 = vpack.c.b16 %v2876, %v2866
        %v3027 = vpack.c.b16 %v2877, %v2867
        %v3028 = vpack.c.b16 %v2878, %v2868
        %v3029 = vpack.c.b16 %v2879, %v2869
        %v3030 = vpack.c.b16 %v2880, %v2870
        %v3031 = vpack.c.b16 %v2881, %v2871
        %v3032 = vpack.c.b16 %v2882, %v2872
        %v3033 = vpack.c.b16 %v2883, %v2873
        %v3034 = vpack.c.b16 %v2894, %v2884
        %v3035 = vpack.c.b16 %v2895, %v2885
        %v3036 = vpack.c.b16 %v2896, %v2886
        %v3037 = vpack.c.b16 %v2897, %v2887
        %v3038 = vpack.c.b16 %v2898, %v2888
        %v3039 = vpack.c.b16 %v2899, %v2889
        %v3040 = vpack.c.b16 %v2900, %v2890
        %v3041 = vpack.c.b16 %v2901, %v2891
        %v3042 = vpack.c.b16 %v2902, %v2892
        %v3043 = vpack.c.b16 %v2903, %v2893
        %v3044 = vpack.c.b16 %v2914, %v2904
        %v3045 = vpack.c.b16 %v2915, %v2905
        %v3046 = vpack.c.b16 %v2916, %v2906
        %v3047 = vpack.c.b16 %v2917, %v2907
        %v3048 = vpack.c.b16 %v2918, %v2908
        %v3049 = vpack.c.b16 %v2919, %v2909
        %v3050 = vpack.c.b16 %v2920, %v2910
        %v3051 = vpack.c.b16 %v2921, %v2911
        %v3052 = vpack.c.b16 %v2922, %v2912
        %v3053 = vpack.c.b16 %v2923, %v2913
        %v3054 = vpack.c.b16 %v2934, %v2924
        %v3055 = vpack.c.b16 %v2935, %v2925
        %v3056 = vpack.c.b16 %v2936, %v2926
        %v3057 = vpack.c.b16 %v2937, %v2927
        %v3058 = vpack.c.b16 %v2938, %v2928
        %v3059 = vpack.c.b16 %v2939, %v2929
        %v3060 = vpack.c.b16 %v2940, %v2930
        %v3061 = vpack.c.b16 %v2941, %v2931
        %v3062 = vpack.c.b16 %v2942, %v2932
        %v3063 = vpack.c.b16 %v2943, %v2933
        %v3064 = vpack.c.b16 %v2954, %v2944
        %v3065 = vpack.c.b16 %v2955, %v2945
        %v3066 = vpack.c.b16 %v2956, %v2946
        %v3067 = vpack.c.b16 %v2957, %v2947
        %v3068 = vpack.c.b16 %v2958, %v2948
        %v3069 = vpack.c.b16 %v2959, %v2949
        %v3070 = vpack.c.b16 %v2960, %v2950
        %v3071 = vpack.c.b16 %v2961, %v2951
        %v3072 = vpack.c.b16 %v2962, %v2952
        %v3073 = vpack.c.b16 %v2963, %v2953
        %v3074 = vpack.c.b16 %v2974, %v2964
        %v3075 = vpack.c.b16 %v2975, %v2965
        %v3076 = vpack.c.b16 %v2976, %v2966
        %v3077 = vpack.c.b16 %v2977, %v2967
        %v3078 = vpack.c.b16 %v2978, %v2968
        %v3079 = vpack.c.b16 %v2979, %v2969
        %v3080 = vpack.c.b16 %v2980, %v2970
        %v3081 = vpack.c.b16 %v2981, %v2971
        %v3082 = vpack.c.b16 %v2982, %v2972
        %v3083 = vpack.c.b16 %v2983, %v2973
        %v3084 = vpack.c.b16 %v2994, %v2984
        %v3085 = vpack.c.b16 %v2995, %v2985
        %v3086 = vpack.c.b16 %v2996, %v2986
        %v3087 = vpack.c.b16 %v2997, %v2987
        %v3088 = vpack.c.b16 %v2998, %v2988
        %v3089 = vpack.c.b16 %v2999, %v2989
        %v3090 = vpack.c.b16 %v3000, %v2990
        %v3091 = vpack.c.b16 %v3001, %v2991
        %v3092 = vpack.c.b16 %v3002, %v2992
        %v3093 = vpack.c.b16 %v3003, %v2993
        %v3094 = vpack.c.b16 %v3014, %v3004
        %v3095 = vpack.c.b16 %v3015, %v3005
        %v3096 = vpack.c.b16 %v3016, %v3006
        %v3097 = vpack.c.b16 %v3017, %v3007
        %v3098 = vpack.c.b16 %v3018, %v3008
        %v3099 = vpack.c.b16 %v3019, %v3009
        %v3100 = vpack.c.b16 %v3020, %v3010
        %v3101 = vpack.c.b16 %v3021, %v3011
        %v3102 = vpack.c.b16 %v3022, %v3012
        %v3103 = vpack.c.b16 %v3023, %v3013
        %3184 = vmatprep.subr.bf16.mxu0 %v3095
        %3185 = vmatpush1.bf16.msra.mxu0 %v3094
        %3186 = vmatprep.subr.bf16.mxu0 %v3085
        %3187 = vmatpush1.bf16.msra.mxu0 %v3084
        %3188 = vmatprep.subr.bf16.mxu0 %v3075
        %3189 = vmatpush1.bf16.msra.mxu0 %v3074
        %3190 = vmatprep.subr.bf16.mxu0 %v3065
        %3191 = vmatpush1.bf16.msra.mxu0 %v3064
        %3192 = vmatprep.subr.bf16.mxu0 %v3055
        %3193 = vmatpush1.bf16.msra.mxu0 %v3054
        %3194 = vmatprep.subr.bf16.mxu0 %v3045
        %3195 = vmatpush1.bf16.msra.mxu0 %v3044
        %3196 = vmatprep.subr.bf16.mxu0 %v3035
        %3197 = vmatpush1.bf16.msra.mxu0 %v3034
        %3198 = vmatprep.subr.bf16.mxu0 %v3025
        %3199 = vmatpush1.bf16.msra.mxu0 %v3024
        %3200 = vmatprep.subr.bf16.mxu0 0
        %3201 = vmatpush2.bf16.msra.mxu0 0
        %3202 = vmatprep.subr.bf16.mxu0 0
        %3203 = vmatpush2.bf16.msra.mxu0 0
        %3204 = vmatprep.subr.bf16.mxu0 0
        %3205 = vmatpush2.bf16.msra.mxu0 0
        %3206 = vmatprep.subr.bf16.mxu0 0
        %3207 = vmatpush2.bf16.msra.mxu0 0
        %3208 = vmatprep.subr.bf16.mxu0 0
        %3209 = vmatpush2.bf16.msra.mxu0 0
        %3210 = vmatprep.subr.bf16.mxu0 0
        %3211 = vmatpush2.bf16.msra.mxu0 0
        %3212 = vmatprep.subr.bf16.mxu0 0
        %3213 = vmatpush2.bf16.msra.mxu0 0
        %3214 = vmatprep.subr.bf16.mxu0 0
        %3215 = vmatpush2.bf16.msra.mxu0 0
        %3216 = vmatprep.mubr.bf16.mxu0 0
        %3217 = vmatmul.mubr.bf16.gmra.mxu0 %v2634
        %v3218 = vpop.f32.mrf.mxu0
        %v3219 = vadd.f32 %v2737, %v3218
        %v3220 = vpop.f32.mrf.mxu0
        %v3221 = vadd.f32 %v2741, %v3220
        %v3222 = vpop.f32.mrf.mxu0
        %v3223 = vadd.f32 %v2737, %v3222
        %v3224 = vpop.f32.mrf.mxu0
        %v3225 = vadd.f32 %v2741, %v3224
        %3226 = vmatprep.mubr.bf16.mxu0 0
        %3227 = vmatmul.mubr.bf16.gmra.mxu0 %v2635
        %v3228 = vpop.f32.mrf.mxu0
        %v3229 = vadd.f32 %v2737, %v3228
        %v3230 = vpop.f32.mrf.mxu0
        %v3231 = vadd.f32 %v2741, %v3230
        %v3232 = vpop.f32.mrf.mxu0
        %v3233 = vadd.f32 %v2737, %v3232
        %v3234 = vpop.f32.mrf.mxu0
        %v3235 = vadd.f32 %v2741, %v3234
        %3236 = vmatprep.mubr.bf16.mxu0 0
        %3237 = vmatmul.mubr.bf16.gmra.mxu0 %v2636
        %v3238 = vpop.f32.mrf.mxu0
        %v3239 = vadd.f32 %v2737, %v3238
        %v3240 = vpop.f32.mrf.mxu0
        %v3241 = vadd.f32 %v2741, %v3240
        %v3242 = vpop.f32.mrf.mxu0
        %v3243 = vadd.f32 %v2737, %v3242
        %v3244 = vpop.f32.mrf.mxu0
        %v3245 = vadd.f32 %v2741, %v3244
        %3246 = vmatprep.mubr.bf16.mxu0 0
        %3247 = vmatmul.mubr.bf16.gmra.mxu0 %v2637
        %v3248 = vpop.f32.mrf.mxu0
        %v3249 = vadd.f32 %v2737, %v3248
        %v3250 = vpop.f32.mrf.mxu0
        %v3251 = vadd.f32 %v2741, %v3250
        %v3252 = vpop.f32.mrf.mxu0
        %v3253 = vadd.f32 %v2737, %v3252
        %v3254 = vpop.f32.mrf.mxu0
        %v3255 = vadd.f32 %v2741, %v3254
        %3256 = vmatprep.mubr.bf16.mxu0 0
        %3257 = vmatmul.mubr.bf16.gmra.mxu0 %v2638
        %v3258 = vpop.f32.mrf.mxu0
        %v3259 = vadd.f32 %v2737, %v3258
        %v3260 = vpop.f32.mrf.mxu0
        %v3261 = vadd.f32 %v2741, %v3260
        %v3262 = vpop.f32.mrf.mxu0
        %v3263 = vadd.f32 %v2737, %v3262
        %v3264 = vpop.f32.mrf.mxu0
        %v3265 = vadd.f32 %v2741, %v3264
        %3266 = vmatprep.mubr.bf16.mxu0 0
        %3267 = vmatmul.mubr.bf16.gmra.mxu0 %v2639
        %v3268 = vpop.f32.mrf.mxu0
        %v3269 = vadd.f32 %v2737, %v3268
        %v3270 = vpop.f32.mrf.mxu0
        %v3271 = vadd.f32 %v2741, %v3270
        %v3272 = vpop.f32.mrf.mxu0
        %v3273 = vadd.f32 %v2737, %v3272
        %v3274 = vpop.f32.mrf.mxu0
        %v3275 = vadd.f32 %v2741, %v3274
        %3276 = vmatprep.mubr.bf16.mxu0 0
        %3277 = vmatmul.mubr.bf16.gmra.mxu0 %v2640
        %v3278 = vpop.f32.mrf.mxu0
        %v3279 = vadd.f32 %v2737, %v3278
        %v3280 = vpop.f32.mrf.mxu0
        %v3281 = vadd.f32 %v2741, %v3280
        %v3282 = vpop.f32.mrf.mxu0
        %v3283 = vadd.f32 %v2737, %v3282
        %v3284 = vpop.f32.mrf.mxu0
        %v3285 = vadd.f32 %v2741, %v3284
        %3286 = vmatprep.mubr.bf16.mxu0 0
        %3287 = vmatmul.mubr.bf16.gmra.mxu0 %v2641
        %v3288 = vpop.f32.mrf.mxu0
        %v3289 = vadd.f32 %v2737, %v3288
        %v3290 = vpop.f32.mrf.mxu0
        %v3291 = vadd.f32 %v2741, %v3290
        %v3292 = vpop.f32.mrf.mxu0
        %v3293 = vadd.f32 %v2737, %v3292
        %v3294 = vpop.f32.mrf.mxu0
        %v3295 = vadd.f32 %v2741, %v3294
        %3296 = vmatprep.mubr.bf16.mxu0 0
        %3297 = vmatmul.mubr.bf16.gmra.mxu0 %v2642
        %v3298 = vpop.f32.mrf.mxu0
        %v3299 = vadd.f32 %v2737, %v3298
        %v3300 = vpop.f32.mrf.mxu0
        %v3301 = vadd.f32 %v2741, %v3300
        %v3302 = vpop.f32.mrf.mxu0
        %v3303 = vadd.f32 %v2737, %v3302
        %v3304 = vpop.f32.mrf.mxu0
        %v3305 = vadd.f32 %v2741, %v3304
        %3306 = vmatprep.mubr.bf16.mxu0 0
        %3307 = vmatmul.mubr.bf16.gmra.mxu0 %v2643
        %v3308 = vpop.f32.mrf.mxu0
        %v3309 = vadd.f32 %v2737, %v3308
        %v3310 = vpop.f32.mrf.mxu0
        %v3311 = vadd.f32 %v2741, %v3310
        %v3312 = vpop.f32.mrf.mxu0
        %v3313 = vadd.f32 %v2737, %v3312
        %v3314 = vpop.f32.mrf.mxu0
        %v3315 = vadd.f32 %v2741, %v3314
        %3316 = vmatprep.mubr.bf16.mxu0 0
        %3317 = vmatmul.mubr.bf16.gmra.mxu0 %v2644
        %v3318 = vpop.f32.mrf.mxu0
        %v3319 = vadd.f32 %v2737, %v3318
        %v3320 = vpop.f32.mrf.mxu0
        %v3321 = vadd.f32 %v2741, %v3320
        %v3322 = vpop.f32.mrf.mxu0
        %v3323 = vadd.f32 %v2737, %v3322
        %v3324 = vpop.f32.mrf.mxu0
        %v3325 = vadd.f32 %v2741, %v3324
        %3326 = vmatprep.mubr.bf16.mxu0 0
        %3327 = vmatmul.mubr.bf16.gmra.mxu0 %v2645
        %v3328 = vpop.f32.mrf.mxu0
        %v3329 = vadd.f32 %v2737, %v3328
        %v3330 = vpop.f32.mrf.mxu0
        %v3331 = vadd.f32 %v2741, %v3330
        %v3332 = vpop.f32.mrf.mxu0
        %v3333 = vadd.f32 %v2737, %v3332
        %v3334 = vpop.f32.mrf.mxu0
        %v3335 = vadd.f32 %v2741, %v3334
        %3336 = vmatprep.mubr.bf16.mxu0 0
        %3337 = vmatmul.mubr.bf16.gmra.mxu0 %v2646
        %v3338 = vpop.f32.mrf.mxu0
        %v3339 = vadd.f32 %v2737, %v3338
        %v3340 = vpop.f32.mrf.mxu0
        %v3341 = vadd.f32 %v2741, %v3340
        %v3342 = vpop.f32.mrf.mxu0
        %v3343 = vadd.f32 %v2737, %v3342
        %v3344 = vpop.f32.mrf.mxu0
        %v3345 = vadd.f32 %v2741, %v3344
        %3346 = vmatprep.mubr.bf16.mxu0 0
        %3347 = vmatmul.mubr.bf16.gmra.mxu0 %v2647
        %v3348 = vpop.f32.mrf.mxu0
        %v3349 = vadd.f32 %v2737, %v3348
        %v3350 = vpop.f32.mrf.mxu0
        %v3351 = vadd.f32 %v2741, %v3350
        %v3352 = vpop.f32.mrf.mxu0
        %v3353 = vadd.f32 %v2737, %v3352
        %v3354 = vpop.f32.mrf.mxu0
        %v3355 = vadd.f32 %v2741, %v3354
        %3356 = vmatprep.mubr.bf16.mxu0 0
        %3357 = vmatmul.mubr.bf16.gmra.mxu0 %v2648
        %v3358 = vpop.f32.mrf.mxu0
        %v3359 = vadd.f32 %v2737, %v3358
        %v3360 = vpop.f32.mrf.mxu0
        %v3361 = vadd.f32 %v2741, %v3360
        %v3362 = vpop.f32.mrf.mxu0
        %v3363 = vadd.f32 %v2737, %v3362
        %v3364 = vpop.f32.mrf.mxu0
        %v3365 = vadd.f32 %v2741, %v3364
        %3366 = vmatprep.mubr.bf16.mxu0 0
        %3367 = vmatmul.mubr.bf16.gmra.mxu0 %v2649
        %v3368 = vpop.f32.mrf.mxu0
        %v3369 = vadd.f32 %v2737, %v3368
        %v3370 = vpop.f32.mrf.mxu0
        %v3371 = vadd.f32 %v2741, %v3370
        %v3372 = vpop.f32.mrf.mxu0
        %v3373 = vadd.f32 %v2737, %v3372
        %v3374 = vpop.f32.mrf.mxu0
        %v3375 = vadd.f32 %v2741, %v3374
        %3376 = vdwg.mxu0
        %3377 = vmatprep.subr.bf16.mxu0 %v3097
        %3378 = vmatpush1.bf16.msra.mxu0 %v3096
        %3379 = vmatprep.subr.bf16.mxu0 %v3087
        %3380 = vmatpush1.bf16.msra.mxu0 %v3086
        %3381 = vmatprep.subr.bf16.mxu0 %v3077
        %3382 = vmatpush1.bf16.msra.mxu0 %v3076
        %3383 = vmatprep.subr.bf16.mxu0 %v3067
        %3384 = vmatpush1.bf16.msra.mxu0 %v3066
        %3385 = vmatprep.subr.bf16.mxu0 %v3057
        %3386 = vmatpush1.bf16.msra.mxu0 %v3056
        %3387 = vmatprep.subr.bf16.mxu0 %v3047
        %3388 = vmatpush1.bf16.msra.mxu0 %v3046
        %3389 = vmatprep.subr.bf16.mxu0 %v3037
        %3390 = vmatpush1.bf16.msra.mxu0 %v3036
        %3391 = vmatprep.subr.bf16.mxu0 %v3027
        %3392 = vmatpush1.bf16.msra.mxu0 %v3026
        %3393 = vmatprep.subr.bf16.mxu0 0
        %3394 = vmatpush2.bf16.msra.mxu0 0
        %3395 = vmatprep.subr.bf16.mxu0 0
        %3396 = vmatpush2.bf16.msra.mxu0 0
        %3397 = vmatprep.subr.bf16.mxu0 0
        %3398 = vmatpush2.bf16.msra.mxu0 0
        %3399 = vmatprep.subr.bf16.mxu0 0
        %3400 = vmatpush2.bf16.msra.mxu0 0
        %3401 = vmatprep.subr.bf16.mxu0 0
        %3402 = vmatpush2.bf16.msra.mxu0 0
        %3403 = vmatprep.subr.bf16.mxu0 0
        %3404 = vmatpush2.bf16.msra.mxu0 0
        %3405 = vmatprep.subr.bf16.mxu0 0
        %3406 = vmatpush2.bf16.msra.mxu0 0
        %3407 = vmatprep.subr.bf16.mxu0 0
        %3408 = vmatpush2.bf16.msra.mxu0 0
        %3409 = vmatprep.mubr.bf16.mxu0 0
        %3410 = vmatmul.mubr.bf16.gmra.mxu0 %v2634
        %v3411 = vpop.f32.mrf.mxu0
        %v3412 = vadd.f32 %v2745, %v3411
        %v3413 = vpop.f32.mrf.mxu0
        %v3414 = vadd.f32 %v2749, %v3413
        %v3415 = vpop.f32.mrf.mxu0
        %v3416 = vadd.f32 %v2745, %v3415
        %v3417 = vpop.f32.mrf.mxu0
        %v3418 = vadd.f32 %v2749, %v3417
        %3419 = vmatprep.mubr.bf16.mxu0 0
        %3420 = vmatmul.mubr.bf16.gmra.mxu0 %v2635
        %v3421 = vpop.f32.mrf.mxu0
        %v3422 = vadd.f32 %v2745, %v3421
        %v3423 = vpop.f32.mrf.mxu0
        %v3424 = vadd.f32 %v2749, %v3423
        %v3425 = vpop.f32.mrf.mxu0
        %v3426 = vadd.f32 %v2745, %v3425
        %v3427 = vpop.f32.mrf.mxu0
        %v3428 = vadd.f32 %v2749, %v3427
        %3429 = vmatprep.mubr.bf16.mxu0 0
        %3430 = vmatmul.mubr.bf16.gmra.mxu0 %v2636
        %v3431 = vpop.f32.mrf.mxu0
        %v3432 = vadd.f32 %v2745, %v3431
        %v3433 = vpop.f32.mrf.mxu0
        %v3434 = vadd.f32 %v2749, %v3433
        %v3435 = vpop.f32.mrf.mxu0
        %v3436 = vadd.f32 %v2745, %v3435
        %v3437 = vpop.f32.mrf.mxu0
        %v3438 = vadd.f32 %v2749, %v3437
        %3439 = vmatprep.mubr.bf16.mxu0 0
        %3440 = vmatmul.mubr.bf16.gmra.mxu0 %v2637
        %v3441 = vpop.f32.mrf.mxu0
        %v3442 = vadd.f32 %v2745, %v3441
        %v3443 = vpop.f32.mrf.mxu0
        %v3444 = vadd.f32 %v2749, %v3443
        %v3445 = vpop.f32.mrf.mxu0
        %v3446 = vadd.f32 %v2745, %v3445
        %v3447 = vpop.f32.mrf.mxu0
        %v3448 = vadd.f32 %v2749, %v3447
        %3449 = vmatprep.mubr.bf16.mxu0 0
        %3450 = vmatmul.mubr.bf16.gmra.mxu0 %v2638
        %v3451 = vpop.f32.mrf.mxu0
        %v3452 = vadd.f32 %v2745, %v3451
        %v3453 = vpop.f32.mrf.mxu0
        %v3454 = vadd.f32 %v2749, %v3453
        %v3455 = vpop.f32.mrf.mxu0
        %v3456 = vadd.f32 %v2745, %v3455
        %v3457 = vpop.f32.mrf.mxu0
        %v3458 = vadd.f32 %v2749, %v3457
        %3459 = vmatprep.mubr.bf16.mxu0 0
        %3460 = vmatmul.mubr.bf16.gmra.mxu0 %v2639
        %v3461 = vpop.f32.mrf.mxu0
        %v3462 = vadd.f32 %v2745, %v3461
        %v3463 = vpop.f32.mrf.mxu0
        %v3464 = vadd.f32 %v2749, %v3463
        %v3465 = vpop.f32.mrf.mxu0
        %v3466 = vadd.f32 %v2745, %v3465
        %v3467 = vpop.f32.mrf.mxu0
        %v3468 = vadd.f32 %v2749, %v3467
        %3469 = vmatprep.mubr.bf16.mxu0 0
        %3470 = vmatmul.mubr.bf16.gmra.mxu0 %v2640
        %v3471 = vpop.f32.mrf.mxu0
        %v3472 = vadd.f32 %v2745, %v3471
        %v3473 = vpop.f32.mrf.mxu0
        %v3474 = vadd.f32 %v2749, %v3473
        %v3475 = vpop.f32.mrf.mxu0
        %v3476 = vadd.f32 %v2745, %v3475
        %v3477 = vpop.f32.mrf.mxu0
        %v3478 = vadd.f32 %v2749, %v3477
        %3479 = vmatprep.mubr.bf16.mxu0 0
        %3480 = vmatmul.mubr.bf16.gmra.mxu0 %v2641
        %v3481 = vpop.f32.mrf.mxu0
        %v3482 = vadd.f32 %v2745, %v3481
        %v3483 = vpop.f32.mrf.mxu0
        %v3484 = vadd.f32 %v2749, %v3483
        %v3485 = vpop.f32.mrf.mxu0
        %v3486 = vadd.f32 %v2745, %v3485
        %v3487 = vpop.f32.mrf.mxu0
        %v3488 = vadd.f32 %v2749, %v3487
        %3489 = vmatprep.mubr.bf16.mxu0 0
        %3490 = vmatmul.mubr.bf16.gmra.mxu0 %v2642
        %v3491 = vpop.f32.mrf.mxu0
        %v3492 = vadd.f32 %v2745, %v3491
        %v3493 = vpop.f32.mrf.mxu0
        %v3494 = vadd.f32 %v2749, %v3493
        %v3495 = vpop.f32.mrf.mxu0
        %v3496 = vadd.f32 %v2745, %v3495
        %v3497 = vpop.f32.mrf.mxu0
        %v3498 = vadd.f32 %v2749, %v3497
        %3499 = vmatprep.mubr.bf16.mxu0 0
        %3500 = vmatmul.mubr.bf16.gmra.mxu0 %v2643
        %v3501 = vpop.f32.mrf.mxu0
        %v3502 = vadd.f32 %v2745, %v3501
        %v3503 = vpop.f32.mrf.mxu0
        %v3504 = vadd.f32 %v2749, %v3503
        %v3505 = vpop.f32.mrf.mxu0
        %v3506 = vadd.f32 %v2745, %v3505
        %v3507 = vpop.f32.mrf.mxu0
        %v3508 = vadd.f32 %v2749, %v3507
        %3509 = vmatprep.mubr.bf16.mxu0 0
        %3510 = vmatmul.mubr.bf16.gmra.mxu0 %v2644
        %v3511 = vpop.f32.mrf.mxu0
        %v3512 = vadd.f32 %v2745, %v3511
        %v3513 = vpop.f32.mrf.mxu0
        %v3514 = vadd.f32 %v2749, %v3513
        %v3515 = vpop.f32.mrf.mxu0
        %v3516 = vadd.f32 %v2745, %v3515
        %v3517 = vpop.f32.mrf.mxu0
        %v3518 = vadd.f32 %v2749, %v3517
        %3519 = vmatprep.mubr.bf16.mxu0 0
        %3520 = vmatmul.mubr.bf16.gmra.mxu0 %v2645
        %v3521 = vpop.f32.mrf.mxu0
        %v3522 = vadd.f32 %v2745, %v3521
        %v3523 = vpop.f32.mrf.mxu0
        %v3524 = vadd.f32 %v2749, %v3523
        %v3525 = vpop.f32.mrf.mxu0
        %v3526 = vadd.f32 %v2745, %v3525
        %v3527 = vpop.f32.mrf.mxu0
        %v3528 = vadd.f32 %v2749, %v3527
        %3529 = vmatprep.mubr.bf16.mxu0 0
        %3530 = vmatmul.mubr.bf16.gmra.mxu0 %v2646
        %v3531 = vpop.f32.mrf.mxu0
        %v3532 = vadd.f32 %v2745, %v3531
        %v3533 = vpop.f32.mrf.mxu0
        %v3534 = vadd.f32 %v2749, %v3533
        %v3535 = vpop.f32.mrf.mxu0
        %v3536 = vadd.f32 %v2745, %v3535
        %v3537 = vpop.f32.mrf.mxu0
        %v3538 = vadd.f32 %v2749, %v3537
        %3539 = vmatprep.mubr.bf16.mxu0 0
        %3540 = vmatmul.mubr.bf16.gmra.mxu0 %v2647
        %v3541 = vpop.f32.mrf.mxu0
        %v3542 = vadd.f32 %v2745, %v3541
        %v3543 = vpop.f32.mrf.mxu0
        %v3544 = vadd.f32 %v2749, %v3543
        %v3545 = vpop.f32.mrf.mxu0
        %v3546 = vadd.f32 %v2745, %v3545
        %v3547 = vpop.f32.mrf.mxu0
        %v3548 = vadd.f32 %v2749, %v3547
        %3549 = vmatprep.mubr.bf16.mxu0 0
        %3550 = vmatmul.mubr.bf16.gmra.mxu0 %v2648
        %v3551 = vpop.f32.mrf.mxu0
        %v3552 = vadd.f32 %v2745, %v3551
        %v3553 = vpop.f32.mrf.mxu0
        %v3554 = vadd.f32 %v2749, %v3553
        %v3555 = vpop.f32.mrf.mxu0
        %v3556 = vadd.f32 %v2745, %v3555
        %v3557 = vpop.f32.mrf.mxu0
        %v3558 = vadd.f32 %v2749, %v3557
        %3559 = vmatprep.mubr.bf16.mxu0 0
        %3560 = vmatmul.mubr.bf16.gmra.mxu0 %v2649
        %v3561 = vpop.f32.mrf.mxu0
        %v3562 = vadd.f32 %v2745, %v3561
        %v3563 = vpop.f32.mrf.mxu0
        %v3564 = vadd.f32 %v2749, %v3563
        %v3565 = vpop.f32.mrf.mxu0
        %v3566 = vadd.f32 %v2745, %v3565
        %v3567 = vpop.f32.mrf.mxu0
        %v3568 = vadd.f32 %v2749, %v3567
        %3569 = vdwg.mxu0
        %3570 = vmatprep.subr.bf16.mxu0 %v3099
        %3571 = vmatpush1.bf16.msra.mxu0 %v3098
        %3572 = vmatprep.subr.bf16.mxu0 %v3089
        %3573 = vmatpush1.bf16.msra.mxu0 %v3088
        %3574 = vmatprep.subr.bf16.mxu0 %v3079
        %3575 = vmatpush1.bf16.msra.mxu0 %v3078
        %3576 = vmatprep.subr.bf16.mxu0 %v3069
        %3577 = vmatpush1.bf16.msra.mxu0 %v3068
        %3578 = vmatprep.subr.bf16.mxu0 %v3059
        %3579 = vmatpush1.bf16.msra.mxu0 %v3058
        %3580 = vmatprep.subr.bf16.mxu0 %v3049
        %3581 = vmatpush1.bf16.msra.mxu0 %v3048
        %3582 = vmatprep.subr.bf16.mxu0 %v3039
        %3583 = vmatpush1.bf16.msra.mxu0 %v3038
        %3584 = vmatprep.subr.bf16.mxu0 %v3029
        %3585 = vmatpush1.bf16.msra.mxu0 %v3028
        %3586 = vmatprep.subr.bf16.mxu0 0
        %3587 = vmatpush2.bf16.msra.mxu0 0
        %3588 = vmatprep.subr.bf16.mxu0 0
        %3589 = vmatpush2.bf16.msra.mxu0 0
        %3590 = vmatprep.subr.bf16.mxu0 0
        %3591 = vmatpush2.bf16.msra.mxu0 0
        %3592 = vmatprep.subr.bf16.mxu0 0
        %3593 = vmatpush2.bf16.msra.mxu0 0
        %3594 = vmatprep.subr.bf16.mxu0 0
        %3595 = vmatpush2.bf16.msra.mxu0 0
        %3596 = vmatprep.subr.bf16.mxu0 0
        %3597 = vmatpush2.bf16.msra.mxu0 0
        %3598 = vmatprep.subr.bf16.mxu0 0
        %3599 = vmatpush2.bf16.msra.mxu0 0
        %3600 = vmatprep.subr.bf16.mxu0 0
        %3601 = vmatpush2.bf16.msra.mxu0 0
        %3602 = vmatprep.mubr.bf16.mxu0 0
        %3603 = vmatmul.mubr.bf16.gmra.mxu0 %v2634
        %v3604 = vpop.f32.mrf.mxu0
        %v3605 = vadd.f32 %v2753, %v3604
        %v3606 = vpop.f32.mrf.mxu0
        %v3607 = vadd.f32 %v2757, %v3606
        %v3608 = vpop.f32.mrf.mxu0
        %v3609 = vadd.f32 %v2753, %v3608
        %v3610 = vpop.f32.mrf.mxu0
        %v3611 = vadd.f32 %v2757, %v3610
        %3612 = vmatprep.mubr.bf16.mxu0 0
        %3613 = vmatmul.mubr.bf16.gmra.mxu0 %v2635
        %v3614 = vpop.f32.mrf.mxu0
        %v3615 = vadd.f32 %v2753, %v3614
        %v3616 = vpop.f32.mrf.mxu0
        %v3617 = vadd.f32 %v2757, %v3616
        %v3618 = vpop.f32.mrf.mxu0
        %v3619 = vadd.f32 %v2753, %v3618
        %v3620 = vpop.f32.mrf.mxu0
        %v3621 = vadd.f32 %v2757, %v3620
        %3622 = vmatprep.mubr.bf16.mxu0 0
        %3623 = vmatmul.mubr.bf16.gmra.mxu0 %v2636
        %v3624 = vpop.f32.mrf.mxu0
        %v3625 = vadd.f32 %v2753, %v3624
        %v3626 = vpop.f32.mrf.mxu0
        %v3627 = vadd.f32 %v2757, %v3626
        %v3628 = vpop.f32.mrf.mxu0
        %v3629 = vadd.f32 %v2753, %v3628
        %v3630 = vpop.f32.mrf.mxu0
        %v3631 = vadd.f32 %v2757, %v3630
        %3632 = vmatprep.mubr.bf16.mxu0 0
        %3633 = vmatmul.mubr.bf16.gmra.mxu0 %v2637
        %v3634 = vpop.f32.mrf.mxu0
        %v3635 = vadd.f32 %v2753, %v3634
        %v3636 = vpop.f32.mrf.mxu0
        %v3637 = vadd.f32 %v2757, %v3636
        %v3638 = vpop.f32.mrf.mxu0
        %v3639 = vadd.f32 %v2753, %v3638
        %v3640 = vpop.f32.mrf.mxu0
        %v3641 = vadd.f32 %v2757, %v3640
        %3642 = vmatprep.mubr.bf16.mxu0 0
        %3643 = vmatmul.mubr.bf16.gmra.mxu0 %v2638
        %v3644 = vpop.f32.mrf.mxu0
        %v3645 = vadd.f32 %v2753, %v3644
        %v3646 = vpop.f32.mrf.mxu0
        %v3647 = vadd.f32 %v2757, %v3646
        %v3648 = vpop.f32.mrf.mxu0
        %v3649 = vadd.f32 %v2753, %v3648
        %v3650 = vpop.f32.mrf.mxu0
        %v3651 = vadd.f32 %v2757, %v3650
        %3652 = vmatprep.mubr.bf16.mxu0 0
        %3653 = vmatmul.mubr.bf16.gmra.mxu0 %v2639
        %v3654 = vpop.f32.mrf.mxu0
        %v3655 = vadd.f32 %v2753, %v3654
        %v3656 = vpop.f32.mrf.mxu0
        %v3657 = vadd.f32 %v2757, %v3656
        %v3658 = vpop.f32.mrf.mxu0
        %v3659 = vadd.f32 %v2753, %v3658
        %v3660 = vpop.f32.mrf.mxu0
        %v3661 = vadd.f32 %v2757, %v3660
        %3662 = vmatprep.mubr.bf16.mxu0 0
        %3663 = vmatmul.mubr.bf16.gmra.mxu0 %v2640
        %v3664 = vpop.f32.mrf.mxu0
        %v3665 = vadd.f32 %v2753, %v3664
        %v3666 = vpop.f32.mrf.mxu0
        %v3667 = vadd.f32 %v2757, %v3666
        %v3668 = vpop.f32.mrf.mxu0
        %v3669 = vadd.f32 %v2753, %v3668
        %v3670 = vpop.f32.mrf.mxu0
        %v3671 = vadd.f32 %v2757, %v3670
        %3672 = vmatprep.mubr.bf16.mxu0 0
        %3673 = vmatmul.mubr.bf16.gmra.mxu0 %v2641
        %v3674 = vpop.f32.mrf.mxu0
        %v3675 = vadd.f32 %v2753, %v3674
        %v3676 = vpop.f32.mrf.mxu0
        %v3677 = vadd.f32 %v2757, %v3676
        %v3678 = vpop.f32.mrf.mxu0
        %v3679 = vadd.f32 %v2753, %v3678
        %v3680 = vpop.f32.mrf.mxu0
        %v3681 = vadd.f32 %v2757, %v3680
        %3682 = vmatprep.mubr.bf16.mxu0 0
        %3683 = vmatmul.mubr.bf16.gmra.mxu0 %v2642
        %v3684 = vpop.f32.mrf.mxu0
        %v3685 = vadd.f32 %v2753, %v3684
        %v3686 = vpop.f32.mrf.mxu0
        %v3687 = vadd.f32 %v2757, %v3686
        %v3688 = vpop.f32.mrf.mxu0
        %v3689 = vadd.f32 %v2753, %v3688
        %v3690 = vpop.f32.mrf.mxu0
        %v3691 = vadd.f32 %v2757, %v3690
        %3692 = vmatprep.mubr.bf16.mxu0 0
        %3693 = vmatmul.mubr.bf16.gmra.mxu0 %v2643
        %v3694 = vpop.f32.mrf.mxu0
        %v3695 = vadd.f32 %v2753, %v3694
        %v3696 = vpop.f32.mrf.mxu0
        %v3697 = vadd.f32 %v2757, %v3696
        %v3698 = vpop.f32.mrf.mxu0
        %v3699 = vadd.f32 %v2753, %v3698
        %v3700 = vpop.f32.mrf.mxu0
        %v3701 = vadd.f32 %v2757, %v3700
        %3702 = vmatprep.mubr.bf16.mxu0 0
        %3703 = vmatmul.mubr.bf16.gmra.mxu0 %v2644
        %v3704 = vpop.f32.mrf.mxu0
        %v3705 = vadd.f32 %v2753, %v3704
        %v3706 = vpop.f32.mrf.mxu0
        %v3707 = vadd.f32 %v2757, %v3706
        %v3708 = vpop.f32.mrf.mxu0
        %v3709 = vadd.f32 %v2753, %v3708
        %v3710 = vpop.f32.mrf.mxu0
        %v3711 = vadd.f32 %v2757, %v3710
        %3712 = vmatprep.mubr.bf16.mxu0 0
        %3713 = vmatmul.mubr.bf16.gmra.mxu0 %v2645
        %v3714 = vpop.f32.mrf.mxu0
        %v3715 = vadd.f32 %v2753, %v3714
        %v3716 = vpop.f32.mrf.mxu0
        %v3717 = vadd.f32 %v2757, %v3716
        %v3718 = vpop.f32.mrf.mxu0
        %v3719 = vadd.f32 %v2753, %v3718
        %v3720 = vpop.f32.mrf.mxu0
        %v3721 = vadd.f32 %v2757, %v3720
        %3722 = vmatprep.mubr.bf16.mxu0 0
        %3723 = vmatmul.mubr.bf16.gmra.mxu0 %v2646
        %v3724 = vpop.f32.mrf.mxu0
        %v3725 = vadd.f32 %v2753, %v3724
        %v3726 = vpop.f32.mrf.mxu0
        %v3727 = vadd.f32 %v2757, %v3726
        %v3728 = vpop.f32.mrf.mxu0
        %v3729 = vadd.f32 %v2753, %v3728
        %v3730 = vpop.f32.mrf.mxu0
        %v3731 = vadd.f32 %v2757, %v3730
        %3732 = vmatprep.mubr.bf16.mxu0 0
        %3733 = vmatmul.mubr.bf16.gmra.mxu0 %v2647
        %v3734 = vpop.f32.mrf.mxu0
        %v3735 = vadd.f32 %v2753, %v3734
        %v3736 = vpop.f32.mrf.mxu0
        %v3737 = vadd.f32 %v2757, %v3736
        %v3738 = vpop.f32.mrf.mxu0
        %v3739 = vadd.f32 %v2753, %v3738
        %v3740 = vpop.f32.mrf.mxu0
        %v3741 = vadd.f32 %v2757, %v3740
        %3742 = vmatprep.mubr.bf16.mxu0 0
        %3743 = vmatmul.mubr.bf16.gmra.mxu0 %v2648
        %v3744 = vpop.f32.mrf.mxu0
        %v3745 = vadd.f32 %v2753, %v3744
        %v3746 = vpop.f32.mrf.mxu0
        %v3747 = vadd.f32 %v2757, %v3746
        %v3748 = vpop.f32.mrf.mxu0
        %v3749 = vadd.f32 %v2753, %v3748
        %v3750 = vpop.f32.mrf.mxu0
        %v3751 = vadd.f32 %v2757, %v3750
        %3752 = vmatprep.mubr.bf16.mxu0 0
        %3753 = vmatmul.mubr.bf16.gmra.mxu0 %v2649
        %v3754 = vpop.f32.mrf.mxu0
        %v3755 = vadd.f32 %v2753, %v3754
        %v3756 = vpop.f32.mrf.mxu0
        %v3757 = vadd.f32 %v2757, %v3756
        %v3758 = vpop.f32.mrf.mxu0
        %v3759 = vadd.f32 %v2753, %v3758
        %v3760 = vpop.f32.mrf.mxu0
        %v3761 = vadd.f32 %v2757, %v3760
        %3762 = vdwg.mxu0
        %3763 = vmatprep.subr.bf16.mxu0 %v3101
        %3764 = vmatpush1.bf16.msra.mxu0 %v3100
        %3765 = vmatprep.subr.bf16.mxu0 %v3091
        %3766 = vmatpush1.bf16.msra.mxu0 %v3090
        %3767 = vmatprep.subr.bf16.mxu0 %v3081
        %3768 = vmatpush1.bf16.msra.mxu0 %v3080
        %3769 = vmatprep.subr.bf16.mxu0 %v3071
        %3770 = vmatpush1.bf16.msra.mxu0 %v3070
        %3771 = vmatprep.subr.bf16.mxu0 %v3061
        %3772 = vmatpush1.bf16.msra.mxu0 %v3060
        %3773 = vmatprep.subr.bf16.mxu0 %v3051
        %3774 = vmatpush1.bf16.msra.mxu0 %v3050
        %3775 = vmatprep.subr.bf16.mxu0 %v3041
        %3776 = vmatpush1.bf16.msra.mxu0 %v3040
        %3777 = vmatprep.subr.bf16.mxu0 %v3031
        %3778 = vmatpush1.bf16.msra.mxu0 %v3030
        %3779 = vmatprep.subr.bf16.mxu0 0
        %3780 = vmatpush2.bf16.msra.mxu0 0
        %3781 = vmatprep.subr.bf16.mxu0 0
        %3782 = vmatpush2.bf16.msra.mxu0 0
        %3783 = vmatprep.subr.bf16.mxu0 0
        %3784 = vmatpush2.bf16.msra.mxu0 0
        %3785 = vmatprep.subr.bf16.mxu0 0
        %3786 = vmatpush2.bf16.msra.mxu0 0
        %3787 = vmatprep.subr.bf16.mxu0 0
        %3788 = vmatpush2.bf16.msra.mxu0 0
        %3789 = vmatprep.subr.bf16.mxu0 0
        %3790 = vmatpush2.bf16.msra.mxu0 0
        %3791 = vmatprep.subr.bf16.mxu0 0
        %3792 = vmatpush2.bf16.msra.mxu0 0
        %3793 = vmatprep.subr.bf16.mxu0 0
        %3794 = vmatpush2.bf16.msra.mxu0 0
        %3795 = vmatprep.mubr.bf16.mxu0 0
        %3796 = vmatmul.mubr.bf16.gmra.mxu0 %v2634
        %v3797 = vpop.f32.mrf.mxu0
        %v3798 = vadd.f32 %v2761, %v3797
        %v3799 = vpop.f32.mrf.mxu0
        %v3800 = vadd.f32 %v2765, %v3799
        %v3801 = vpop.f32.mrf.mxu0
        %v3802 = vadd.f32 %v2761, %v3801
        %v3803 = vpop.f32.mrf.mxu0
        %v3804 = vadd.f32 %v2765, %v3803
        %3805 = vmatprep.mubr.bf16.mxu0 0
        %3806 = vmatmul.mubr.bf16.gmra.mxu0 %v2635
        %v3807 = vpop.f32.mrf.mxu0
        %v3808 = vadd.f32 %v2761, %v3807
        %v3809 = vpop.f32.mrf.mxu0
        %v3810 = vadd.f32 %v2765, %v3809
        %v3811 = vpop.f32.mrf.mxu0
        %v3812 = vadd.f32 %v2761, %v3811
        %v3813 = vpop.f32.mrf.mxu0
        %v3814 = vadd.f32 %v2765, %v3813
        %3815 = vmatprep.mubr.bf16.mxu0 0
        %3816 = vmatmul.mubr.bf16.gmra.mxu0 %v2636
        %v3817 = vpop.f32.mrf.mxu0
        %v3818 = vadd.f32 %v2761, %v3817
        %v3819 = vpop.f32.mrf.mxu0
        %v3820 = vadd.f32 %v2765, %v3819
        %v3821 = vpop.f32.mrf.mxu0
        %v3822 = vadd.f32 %v2761, %v3821
        %v3823 = vpop.f32.mrf.mxu0
        %v3824 = vadd.f32 %v2765, %v3823
        %3825 = vmatprep.mubr.bf16.mxu0 0
        %3826 = vmatmul.mubr.bf16.gmra.mxu0 %v2637
        %v3827 = vpop.f32.mrf.mxu0
        %v3828 = vadd.f32 %v2761, %v3827
        %v3829 = vpop.f32.mrf.mxu0
        %v3830 = vadd.f32 %v2765, %v3829
        %v3831 = vpop.f32.mrf.mxu0
        %v3832 = vadd.f32 %v2761, %v3831
        %v3833 = vpop.f32.mrf.mxu0
        %v3834 = vadd.f32 %v2765, %v3833
        %3835 = vmatprep.mubr.bf16.mxu0 0
        %3836 = vmatmul.mubr.bf16.gmra.mxu0 %v2638
        %v3837 = vpop.f32.mrf.mxu0
        %v3838 = vadd.f32 %v2761, %v3837
        %v3839 = vpop.f32.mrf.mxu0
        %v3840 = vadd.f32 %v2765, %v3839
        %v3841 = vpop.f32.mrf.mxu0
        %v3842 = vadd.f32 %v2761, %v3841
        %v3843 = vpop.f32.mrf.mxu0
        %v3844 = vadd.f32 %v2765, %v3843
        %3845 = vmatprep.mubr.bf16.mxu0 0
        %3846 = vmatmul.mubr.bf16.gmra.mxu0 %v2639
        %v3847 = vpop.f32.mrf.mxu0
        %v3848 = vadd.f32 %v2761, %v3847
        %v3849 = vpop.f32.mrf.mxu0
        %v3850 = vadd.f32 %v2765, %v3849
        %v3851 = vpop.f32.mrf.mxu0
        %v3852 = vadd.f32 %v2761, %v3851
        %v3853 = vpop.f32.mrf.mxu0
        %v3854 = vadd.f32 %v2765, %v3853
        %3855 = vmatprep.mubr.bf16.mxu0 0
        %3856 = vmatmul.mubr.bf16.gmra.mxu0 %v2640
        %v3857 = vpop.f32.mrf.mxu0
        %v3858 = vadd.f32 %v2761, %v3857
        %v3859 = vpop.f32.mrf.mxu0
        %v3860 = vadd.f32 %v2765, %v3859
        %v3861 = vpop.f32.mrf.mxu0
        %v3862 = vadd.f32 %v2761, %v3861
        %v3863 = vpop.f32.mrf.mxu0
        %v3864 = vadd.f32 %v2765, %v3863
        %3865 = vmatprep.mubr.bf16.mxu0 0
        %3866 = vmatmul.mubr.bf16.gmra.mxu0 %v2641
        %v3867 = vpop.f32.mrf.mxu0
        %v3868 = vadd.f32 %v2761, %v3867
        %v3869 = vpop.f32.mrf.mxu0
        %v3870 = vadd.f32 %v2765, %v3869
        %v3871 = vpop.f32.mrf.mxu0
        %v3872 = vadd.f32 %v2761, %v3871
        %v3873 = vpop.f32.mrf.mxu0
        %v3874 = vadd.f32 %v2765, %v3873
        %3875 = vmatprep.mubr.bf16.mxu0 0
        %3876 = vmatmul.mubr.bf16.gmra.mxu0 %v2642
        %v3877 = vpop.f32.mrf.mxu0
        %v3878 = vadd.f32 %v2761, %v3877
        %v3879 = vpop.f32.mrf.mxu0
        %v3880 = vadd.f32 %v2765, %v3879
        %v3881 = vpop.f32.mrf.mxu0
        %v3882 = vadd.f32 %v2761, %v3881
        %v3883 = vpop.f32.mrf.mxu0
        %v3884 = vadd.f32 %v2765, %v3883
        %3885 = vmatprep.mubr.bf16.mxu0 0
        %3886 = vmatmul.mubr.bf16.gmra.mxu0 %v2643
        %v3887 = vpop.f32.mrf.mxu0
        %v3888 = vadd.f32 %v2761, %v3887
        %v3889 = vpop.f32.mrf.mxu0
        %v3890 = vadd.f32 %v2765, %v3889
        %v3891 = vpop.f32.mrf.mxu0
        %v3892 = vadd.f32 %v2761, %v3891
        %v3893 = vpop.f32.mrf.mxu0
        %v3894 = vadd.f32 %v2765, %v3893
        %3895 = vmatprep.mubr.bf16.mxu0 0
        %3896 = vmatmul.mubr.bf16.gmra.mxu0 %v2644
        %v3897 = vpop.f32.mrf.mxu0
        %v3898 = vadd.f32 %v2761, %v3897
        %v3899 = vpop.f32.mrf.mxu0
        %v3900 = vadd.f32 %v2765, %v3899
        %v3901 = vpop.f32.mrf.mxu0
        %v3902 = vadd.f32 %v2761, %v3901
        %v3903 = vpop.f32.mrf.mxu0
        %v3904 = vadd.f32 %v2765, %v3903
        %3905 = vmatprep.mubr.bf16.mxu0 0
        %3906 = vmatmul.mubr.bf16.gmra.mxu0 %v2645
        %v3907 = vpop.f32.mrf.mxu0
        %v3908 = vadd.f32 %v2761, %v3907
        %v3909 = vpop.f32.mrf.mxu0
        %v3910 = vadd.f32 %v2765, %v3909
        %v3911 = vpop.f32.mrf.mxu0
        %v3912 = vadd.f32 %v2761, %v3911
        %v3913 = vpop.f32.mrf.mxu0
        %v3914 = vadd.f32 %v2765, %v3913
        %3915 = vmatprep.mubr.bf16.mxu0 0
        %3916 = vmatmul.mubr.bf16.gmra.mxu0 %v2646
        %v3917 = vpop.f32.mrf.mxu0
        %v3918 = vadd.f32 %v2761, %v3917
        %v3919 = vpop.f32.mrf.mxu0
        %v3920 = vadd.f32 %v2765, %v3919
        %v3921 = vpop.f32.mrf.mxu0
        %v3922 = vadd.f32 %v2761, %v3921
        %v3923 = vpop.f32.mrf.mxu0
        %v3924 = vadd.f32 %v2765, %v3923
        %3925 = vmatprep.mubr.bf16.mxu0 0
        %3926 = vmatmul.mubr.bf16.gmra.mxu0 %v2647
        %v3927 = vpop.f32.mrf.mxu0
        %v3928 = vadd.f32 %v2761, %v3927
        %v3929 = vpop.f32.mrf.mxu0
        %v3930 = vadd.f32 %v2765, %v3929
        %v3931 = vpop.f32.mrf.mxu0
        %v3932 = vadd.f32 %v2761, %v3931
        %v3933 = vpop.f32.mrf.mxu0
        %v3934 = vadd.f32 %v2765, %v3933
        %3935 = vmatprep.mubr.bf16.mxu0 0
        %3936 = vmatmul.mubr.bf16.gmra.mxu0 %v2648
        %v3937 = vpop.f32.mrf.mxu0
        %v3938 = vadd.f32 %v2761, %v3937
        %v3939 = vpop.f32.mrf.mxu0
        %v3940 = vadd.f32 %v2765, %v3939
        %v3941 = vpop.f32.mrf.mxu0
        %v3942 = vadd.f32 %v2761, %v3941
        %v3943 = vpop.f32.mrf.mxu0
        %v3944 = vadd.f32 %v2765, %v3943
        %3945 = vmatprep.mubr.bf16.mxu0 0
        %3946 = vmatmul.mubr.bf16.gmra.mxu0 %v2649
        %v3947 = vpop.f32.mrf.mxu0
        %v3948 = vadd.f32 %v2761, %v3947
        %v3949 = vpop.f32.mrf.mxu0
        %v3950 = vadd.f32 %v2765, %v3949
        %v3951 = vpop.f32.mrf.mxu0
        %v3952 = vadd.f32 %v2761, %v3951
        %v3953 = vpop.f32.mrf.mxu0
        %v3954 = vadd.f32 %v2765, %v3953
        %3955 = vdwg.mxu0
        %3956 = vmatprep.subr.bf16.mxu0 %v3103
        %3957 = vmatpush1.bf16.msra.mxu0 %v3102
        %3958 = vmatprep.subr.bf16.mxu0 %v3093
        %3959 = vmatpush1.bf16.msra.mxu0 %v3092
        %3960 = vmatprep.subr.bf16.mxu0 %v3083
        %3961 = vmatpush1.bf16.msra.mxu0 %v3082
        %3962 = vmatprep.subr.bf16.mxu0 %v3073
        %3963 = vmatpush1.bf16.msra.mxu0 %v3072
        %3964 = vmatprep.subr.bf16.mxu0 %v3063
        %3965 = vmatpush1.bf16.msra.mxu0 %v3062
        %3966 = vmatprep.subr.bf16.mxu0 %v3053
        %3967 = vmatpush1.bf16.msra.mxu0 %v3052
        %3968 = vmatprep.subr.bf16.mxu0 %v3043
        %3969 = vmatpush1.bf16.msra.mxu0 %v3042
        %3970 = vmatprep.subr.bf16.mxu0 %v3033
        %3971 = vmatpush1.bf16.msra.mxu0 %v3032
        %3972 = vmatprep.subr.bf16.mxu0 0
        %3973 = vmatpush2.bf16.msra.mxu0 0
        %3974 = vmatprep.subr.bf16.mxu0 0
        %3975 = vmatpush2.bf16.msra.mxu0 0
        %3976 = vmatprep.subr.bf16.mxu0 0
        %3977 = vmatpush2.bf16.msra.mxu0 0
        %3978 = vmatprep.subr.bf16.mxu0 0
        %3979 = vmatpush2.bf16.msra.mxu0 0
        %3980 = vmatprep.subr.bf16.mxu0 0
        %3981 = vmatpush2.bf16.msra.mxu0 0
        %3982 = vmatprep.subr.bf16.mxu0 0
        %3983 = vmatpush2.bf16.msra.mxu0 0
        %3984 = vmatprep.subr.bf16.mxu0 0
        %3985 = vmatpush2.bf16.msra.mxu0 0
        %3986 = vmatprep.subr.bf16.mxu0 0
        %3987 = vmatpush2.bf16.msra.mxu0 0
        %3988 = vmatprep.mubr.bf16.mxu0 0
        %3989 = vmatmul.mubr.bf16.gmra.mxu0 %v2634
        %v3990 = vpop.f32.mrf.mxu0
        %v3991 = vadd.f32 %v2769, %v3990
        %v3992 = vpop.f32.mrf.mxu0
        %v3993 = vadd.f32 %v2773, %v3992
        %v3994 = vpop.f32.mrf.mxu0
        %v3995 = vadd.f32 %v2769, %v3994
        %v3996 = vpop.f32.mrf.mxu0
        %v3997 = vadd.f32 %v2773, %v3996
        %3998 = vmatprep.mubr.bf16.mxu0 0
        %3999 = vmatmul.mubr.bf16.gmra.mxu0 %v2635
        %v4000 = vpop.f32.mrf.mxu0
        %v4001 = vadd.f32 %v2769, %v4000
        %v4002 = vpop.f32.mrf.mxu0
        %v4003 = vadd.f32 %v2773, %v4002
        %v4004 = vpop.f32.mrf.mxu0
        %v4005 = vadd.f32 %v2769, %v4004
        %v4006 = vpop.f32.mrf.mxu0
        %v4007 = vadd.f32 %v2773, %v4006
        %4008 = vmatprep.mubr.bf16.mxu0 0
        %4009 = vmatmul.mubr.bf16.gmra.mxu0 %v2636
        %v4010 = vpop.f32.mrf.mxu0
        %v4011 = vadd.f32 %v2769, %v4010
        %v4012 = vpop.f32.mrf.mxu0
        %v4013 = vadd.f32 %v2773, %v4012
        %v4014 = vpop.f32.mrf.mxu0
        %v4015 = vadd.f32 %v2769, %v4014
        %v4016 = vpop.f32.mrf.mxu0
        %v4017 = vadd.f32 %v2773, %v4016
        %4018 = vmatprep.mubr.bf16.mxu0 0
        %4019 = vmatmul.mubr.bf16.gmra.mxu0 %v2637
        %v4020 = vpop.f32.mrf.mxu0
        %v4021 = vadd.f32 %v2769, %v4020
        %v4022 = vpop.f32.mrf.mxu0
        %v4023 = vadd.f32 %v2773, %v4022
        %v4024 = vpop.f32.mrf.mxu0
        %v4025 = vadd.f32 %v2769, %v4024
        %v4026 = vpop.f32.mrf.mxu0
        %v4027 = vadd.f32 %v2773, %v4026
        %4028 = vmatprep.mubr.bf16.mxu0 0
        %4029 = vmatmul.mubr.bf16.gmra.mxu0 %v2638
        %v4030 = vpop.f32.mrf.mxu0
        %v4031 = vadd.f32 %v2769, %v4030
        %v4032 = vpop.f32.mrf.mxu0
        %v4033 = vadd.f32 %v2773, %v4032
        %v4034 = vpop.f32.mrf.mxu0
        %v4035 = vadd.f32 %v2769, %v4034
        %v4036 = vpop.f32.mrf.mxu0
        %v4037 = vadd.f32 %v2773, %v4036
        %4038 = vmatprep.mubr.bf16.mxu0 0
        %4039 = vmatmul.mubr.bf16.gmra.mxu0 %v2639
        %v4040 = vpop.f32.mrf.mxu0
        %v4041 = vadd.f32 %v2769, %v4040
        %v4042 = vpop.f32.mrf.mxu0
        %v4043 = vadd.f32 %v2773, %v4042
        %v4044 = vpop.f32.mrf.mxu0
        %v4045 = vadd.f32 %v2769, %v4044
        %v4046 = vpop.f32.mrf.mxu0
        %v4047 = vadd.f32 %v2773, %v4046
        %4048 = vmatprep.mubr.bf16.mxu0 0
        %4049 = vmatmul.mubr.bf16.gmra.mxu0 %v2640
        %v4050 = vpop.f32.mrf.mxu0
        %v4051 = vadd.f32 %v2769, %v4050
        %v4052 = vpop.f32.mrf.mxu0
        %v4053 = vadd.f32 %v2773, %v4052
        %v4054 = vpop.f32.mrf.mxu0
        %v4055 = vadd.f32 %v2769, %v4054
        %v4056 = vpop.f32.mrf.mxu0
        %v4057 = vadd.f32 %v2773, %v4056
        %4058 = vmatprep.mubr.bf16.mxu0 0
        %4059 = vmatmul.mubr.bf16.gmra.mxu0 %v2641
        %v4060 = vpop.f32.mrf.mxu0
        %v4061 = vadd.f32 %v2769, %v4060
        %v4062 = vpop.f32.mrf.mxu0
        %v4063 = vadd.f32 %v2773, %v4062
        %v4064 = vpop.f32.mrf.mxu0
        %v4065 = vadd.f32 %v2769, %v4064
        %v4066 = vpop.f32.mrf.mxu0
        %v4067 = vadd.f32 %v2773, %v4066
        %4068 = vmatprep.mubr.bf16.mxu0 0
        %4069 = vmatmul.mubr.bf16.gmra.mxu0 %v2642
        %v4070 = vpop.f32.mrf.mxu0
        %v4071 = vadd.f32 %v2769, %v4070
        %v4072 = vpop.f32.mrf.mxu0
        %v4073 = vadd.f32 %v2773, %v4072
        %v4074 = vpop.f32.mrf.mxu0
        %v4075 = vadd.f32 %v2769, %v4074
        %v4076 = vpop.f32.mrf.mxu0
        %v4077 = vadd.f32 %v2773, %v4076
        %4078 = vmatprep.mubr.bf16.mxu0 0
        %4079 = vmatmul.mubr.bf16.gmra.mxu0 %v2643
        %v4080 = vpop.f32.mrf.mxu0
        %v4081 = vadd.f32 %v2769, %v4080
        %v4082 = vpop.f32.mrf.mxu0
        %v4083 = vadd.f32 %v2773, %v4082
        %v4084 = vpop.f32.mrf.mxu0
        %v4085 = vadd.f32 %v2769, %v4084
        %v4086 = vpop.f32.mrf.mxu0
        %v4087 = vadd.f32 %v2773, %v4086
        %4088 = vmatprep.mubr.bf16.mxu0 0
        %4089 = vmatmul.mubr.bf16.gmra.mxu0 %v2644
        %v4090 = vpop.f32.mrf.mxu0
        %v4091 = vadd.f32 %v2769, %v4090
        %v4092 = vpop.f32.mrf.mxu0
        %v4093 = vadd.f32 %v2773, %v4092
        %v4094 = vpop.f32.mrf.mxu0
        %v4095 = vadd.f32 %v2769, %v4094
        %v4096 = vpop.f32.mrf.mxu0
        %v4097 = vadd.f32 %v2773, %v4096
        %4098 = vmatprep.mubr.bf16.mxu0 0
        %4099 = vmatmul.mubr.bf16.gmra.mxu0 %v2645
        %v4100 = vpop.f32.mrf.mxu0
        %v4101 = vadd.f32 %v2769, %v4100
        %v4102 = vpop.f32.mrf.mxu0
        %v4103 = vadd.f32 %v2773, %v4102
        %v4104 = vpop.f32.mrf.mxu0
        %v4105 = vadd.f32 %v2769, %v4104
        %v4106 = vpop.f32.mrf.mxu0
        %v4107 = vadd.f32 %v2773, %v4106
        %4108 = vmatprep.mubr.bf16.mxu0 0
        %4109 = vmatmul.mubr.bf16.gmra.mxu0 %v2646
        %v4110 = vpop.f32.mrf.mxu0
        %v4111 = vadd.f32 %v2769, %v4110
        %v4112 = vpop.f32.mrf.mxu0
        %v4113 = vadd.f32 %v2773, %v4112
        %v4114 = vpop.f32.mrf.mxu0
        %v4115 = vadd.f32 %v2769, %v4114
        %v4116 = vpop.f32.mrf.mxu0
        %v4117 = vadd.f32 %v2773, %v4116
        %4118 = vmatprep.mubr.bf16.mxu0 0
        %4119 = vmatmul.mubr.bf16.gmra.mxu0 %v2647
        %v4120 = vpop.f32.mrf.mxu0
        %v4121 = vadd.f32 %v2769, %v4120
        %v4122 = vpop.f32.mrf.mxu0
        %v4123 = vadd.f32 %v2773, %v4122
        %v4124 = vpop.f32.mrf.mxu0
        %v4125 = vadd.f32 %v2769, %v4124
        %v4126 = vpop.f32.mrf.mxu0
        %v4127 = vadd.f32 %v2773, %v4126
        %4128 = vmatprep.mubr.bf16.mxu0 0
        %4129 = vmatmul.mubr.bf16.gmra.mxu0 %v2648
        %v4130 = vpop.f32.mrf.mxu0
        %v4131 = vadd.f32 %v2769, %v4130
        %v4132 = vpop.f32.mrf.mxu0
        %v4133 = vadd.f32 %v2773, %v4132
        %v4134 = vpop.f32.mrf.mxu0
        %v4135 = vadd.f32 %v2769, %v4134
        %v4136 = vpop.f32.mrf.mxu0
        %v4137 = vadd.f32 %v2773, %v4136
        %4138 = vmatprep.mubr.bf16.mxu0 0
        %4139 = vmatmul.mubr.bf16.gmra.mxu0 %v2649
        %v4140 = vpop.f32.mrf.mxu0
        %v4141 = vadd.f32 %v2769, %v4140
        %v4142 = vpop.f32.mrf.mxu0
        %v4143 = vadd.f32 %v2773, %v4142
        %v4144 = vpop.f32.mrf.mxu0
        %v4145 = vadd.f32 %v2769, %v4144
        %v4146 = vpop.f32.mrf.mxu0
        %v4147 = vadd.f32 %v2773, %v4146
        %4148 = vdwg.mxu0
        %v4149 = vpack.c.bf16 %v2603, %v2602
        %v4150 = vpack.c.bf16 %v2605, %v2604
        %v4151 = vpack.c.bf16 %v2607, %v2606
        %v4152 = vpack.c.bf16 %v2609, %v2608
        %v4153 = vpack.c.bf16 %v2611, %v2610
        %v4154 = vpack.c.bf16 %v2613, %v2612
        %v4155 = vpack.c.bf16 %v2615, %v2614
        %v4156 = vpack.c.bf16 %v2617, %v2616
        %v4157 = vpack.c.bf16 %v2619, %v2618
        %v4158 = vpack.c.bf16 %v2621, %v2620
        %v4159 = vpack.c.bf16 %v2623, %v2622
        %v4160 = vpack.c.bf16 %v2625, %v2624
        %v4161 = vpack.c.bf16 %v2627, %v2626
        %v4162 = vpack.c.bf16 %v2629, %v2628
        %v4163 = vpack.c.bf16 %v2631, %v2630
        %v4164 = vpack.c.bf16 %v2633, %v2632
        %v4165 = vld [vmem:[#allocation5] sm:$0xff]
        %v4166 = vld [vmem:[#allocation5 + $0x8] sm:$0xff]
        %v4167 = vld [vmem:[#allocation5 + $0x10] sm:$0xff]
        %v4168 = vld [vmem:[#allocation5 + $0x18] sm:$0xff]
        %v4169 = vld [vmem:[#allocation5 + $0x20] sm:$0xff]
        %v4170 = vld [vmem:[#allocation5 + $0x28] sm:$0xff]
        %v4171 = vld [vmem:[#allocation5 + $0x30] sm:$0xff]
        %v4172 = vld [vmem:[#allocation5 + $0x38] sm:$0xff]
        %v4173 = vld [vmem:[#allocation5 + $0x40] sm:$0xff]
        %v4174 = vld [vmem:[#allocation5 + $0x48] sm:$0xff]
        %v4175 = vld [vmem:[#allocation5 + $0x50] sm:$0xff]
        %v4176 = vld [vmem:[#allocation5 + $0x58] sm:$0xff]
        %v4177 = vld [vmem:[#allocation5 + $0x60] sm:$0xff]
        %v4178 = vld [vmem:[#allocation5 + $0x68] sm:$0xff]
        %v4179 = vld [vmem:[#allocation5 + $0x70] sm:$0xff]
        %v4180 = vld [vmem:[#allocation5 + $0x78] sm:$0xff]
        %v4181 = vld [vmem:[#allocation5 + $0x80] sm:$0xff]
        %v4182 = vld [vmem:[#allocation5 + $0x88] sm:$0xff]
        %v4183 = vld [vmem:[#allocation5 + $0x90] sm:$0xff]
        %v4184 = vld [vmem:[#allocation5 + $0x98] sm:$0xff]
        %v4185 = vld [vmem:[#allocation5 + $0xa0] sm:$0xff]
        %v4186 = vld [vmem:[#allocation5 + $0xa8] sm:$0xff]
        %v4187 = vld [vmem:[#allocation5 + $0xb0] sm:$0xff]
        %v4188 = vld [vmem:[#allocation5 + $0xb8] sm:$0xff]
        %v4189 = vld [vmem:[#allocation5 + $0xc0] sm:$0xff]
        %v4190 = vld [vmem:[#allocation5 + $0xc8] sm:$0xff]
        %v4191 = vld [vmem:[#allocation5 + $0xd0] sm:$0xff]
        %v4192 = vld [vmem:[#allocation5 + $0xd8] sm:$0xff]
        %v4193 = vld [vmem:[#allocation5 + $0xe0] sm:$0xff]
        %v4194 = vld [vmem:[#allocation5 + $0xe8] sm:$0xff]
        %v4195 = vld [vmem:[#allocation5 + $0xf0] sm:$0xff]
        %v4196 = vld [vmem:[#allocation5 + $0xf8] sm:$0xff]
        %v4197 = vld [vmem:[#allocation5 + $0x100] sm:$0xff]
        %v4198 = vld [vmem:[#allocation5 + $0x108] sm:$0xff]
        %v4199 = vld [vmem:[#allocation5 + $0x110] sm:$0xff]
        %v4200 = vld [vmem:[#allocation5 + $0x118] sm:$0xff]
        %v4201 = vld [vmem:[#allocation5 + $0x120] sm:$0xff]
        %v4202 = vld [vmem:[#allocation5 + $0x128] sm:$0xff]
        %v4203 = vld [vmem:[#allocation5 + $0x130] sm:$0xff]
        %v4204 = vld [vmem:[#allocation5 + $0x138] sm:$0xff]
        %v4205 = vld [vmem:[#allocation5 + $0x140] sm:$0xff]
        %v4206 = vld [vmem:[#allocation5 + $0x148] sm:$0xff]
        %v4207 = vld [vmem:[#allocation5 + $0x150] sm:$0xff]
        %v4208 = vld [vmem:[#allocation5 + $0x158] sm:$0xff]
        %v4209 = vld [vmem:[#allocation5 + $0x160] sm:$0xff]
        %v4210 = vld [vmem:[#allocation5 + $0x168] sm:$0xff]
        %v4211 = vld [vmem:[#allocation5 + $0x170] sm:$0xff]
        %v4212 = vld [vmem:[#allocation5 + $0x178] sm:$0xff]
        %v4213 = vld [vmem:[#allocation5 + $0x180] sm:$0xff]
        %v4214 = vld [vmem:[#allocation5 + $0x188] sm:$0xff]
        %v4215 = vld [vmem:[#allocation5 + $0x190] sm:$0xff]
        %v4216 = vld [vmem:[#allocation5 + $0x198] sm:$0xff]
        %v4217 = vld [vmem:[#allocation5 + $0x1a0] sm:$0xff]
        %v4218 = vld [vmem:[#allocation5 + $0x1a8] sm:$0xff]
        %v4219 = vld [vmem:[#allocation5 + $0x1b0] sm:$0xff]
        %v4220 = vld [vmem:[#allocation5 + $0x1b8] sm:$0xff]
        %v4221 = vld [vmem:[#allocation5 + $0x1c0] sm:$0xff]
        %v4222 = vld [vmem:[#allocation5 + $0x1c8] sm:$0xff]
        %v4223 = vld [vmem:[#allocation5 + $0x1d0] sm:$0xff]
        %v4224 = vld [vmem:[#allocation5 + $0x1d8] sm:$0xff]
        %v4225 = vld [vmem:[#allocation5 + $0x1e0] sm:$0xff]
        %v4226 = vld [vmem:[#allocation5 + $0x1e8] sm:$0xff]
        %v4227 = vld [vmem:[#allocation5 + $0x1f0] sm:$0xff]
        %v4228 = vld [vmem:[#allocation5 + $0x1f8] sm:$0xff]
        %v4229 = vld [vmem:[#allocation5 + $0x200] sm:$0xff]
        %v4230 = vld [vmem:[#allocation5 + $0x208] sm:$0xff]
        %v4231 = vld [vmem:[#allocation5 + $0x210] sm:$0xff]
        %v4232 = vld [vmem:[#allocation5 + $0x218] sm:$0xff]
        %v4233 = vld [vmem:[#allocation5 + $0x220] sm:$0xff]
        %v4234 = vld [vmem:[#allocation5 + $0x228] sm:$0xff]
        %v4235 = vld [vmem:[#allocation5 + $0x230] sm:$0xff]
        %v4236 = vld [vmem:[#allocation5 + $0x238] sm:$0xff]
        %v4237 = vld [vmem:[#allocation5 + $0x240] sm:$0xff]
        %v4238 = vld [vmem:[#allocation5 + $0x248] sm:$0xff]
        %v4239 = vld [vmem:[#allocation5 + $0x250] sm:$0xff]
        %v4240 = vld [vmem:[#allocation5 + $0x258] sm:$0xff]
        %v4241 = vld [vmem:[#allocation5 + $0x260] sm:$0xff]
        %v4242 = vld [vmem:[#allocation5 + $0x268] sm:$0xff]
        %v4243 = vld [vmem:[#allocation5 + $0x270] sm:$0xff]
        %v4244 = vld [vmem:[#allocation5 + $0x278] sm:$0xff]
        %v4245 = vld [vmem:[%s13] sm:$0xff]
        %v4246 = vld [vmem:[%s13 + $0x8] sm:$0x3]
        %v4249 = vlaneseq
        %v4250 = vshrl.u32 %v4249, 7
        %v4251 = vsub.s32 0, %v4250
        %v4252 = vrot.slane %v4245, %v4251
        %v4253 = vlaneseq
        %v4254 = vshrl.u32 %v4253, 7
        %v4255 = vsub.s32 1, %v4254
        %v4256 = vrot.slane %v4245, %v4255
        %v4257 = vlaneseq
        %v4258 = vshrl.u32 %v4257, 7
        %v4259 = vsub.s32 2, %v4258
        %v4260 = vrot.slane %v4245, %v4259
        %v4261 = vlaneseq
        %v4262 = vshrl.u32 %v4261, 7
        %v4263 = vsub.s32 3, %v4262
        %v4264 = vrot.slane %v4245, %v4263
        %v4265 = vlaneseq
        %v4266 = vshrl.u32 %v4265, 7
        %v4267 = vsub.s32 4, %v4266
        %v4268 = vrot.slane %v4245, %v4267
        %v4269 = vlaneseq
        %v4270 = vshrl.u32 %v4269, 7
        %v4271 = vsub.s32 5, %v4270
        %v4272 = vrot.slane %v4245, %v4271
        %v4273 = vlaneseq
        %v4274 = vshrl.u32 %v4273, 7
        %v4275 = vsub.s32 6, %v4274
        %v4276 = vrot.slane %v4245, %v4275
        %v4277 = vlaneseq
        %v4278 = vshrl.u32 %v4277, 7
        %v4279 = vsub.s32 7, %v4278
        %v4280 = vrot.slane %v4245, %v4279
        %v4281 = vlaneseq
        %v4282 = vshrl.u32 %v4281, 7
        %v4283 = vsub.s32 0, %v4282
        %v4284 = vrot.slane %v4246, %v4283
        %v4285 = vlaneseq
        %v4286 = vshrl.u32 %v4285, 7
        %v4287 = vsub.s32 1, %v4286
        %v4288 = vrot.slane %v4246, %v4287
        %v4379 = vunpack.c.l.b16 %v4165
        %v4380 = vunpack.c.h.b16 %v4165
        %v4381 = vunpack.c.l.b16 %v4166
        %v4382 = vunpack.c.h.b16 %v4166
        %v4383 = vunpack.c.l.b16 %v4167
        %v4384 = vunpack.c.h.b16 %v4167
        %v4385 = vunpack.c.l.b16 %v4168
        %v4386 = vunpack.c.h.b16 %v4168
        %v4387 = vunpack.c.l.b16 %v4169
        %v4388 = vunpack.c.h.b16 %v4169
        %v4389 = vunpack.c.l.b16 %v4170
        %v4390 = vunpack.c.h.b16 %v4170
        %v4391 = vunpack.c.l.b16 %v4171
        %v4392 = vunpack.c.h.b16 %v4171
        %v4393 = vunpack.c.l.b16 %v4172
        %v4394 = vunpack.c.h.b16 %v4172
        %v4395 = vunpack.c.l.b16 %v4173
        %v4396 = vunpack.c.h.b16 %v4173
        %v4397 = vunpack.c.l.b16 %v4174
        %v4398 = vunpack.c.h.b16 %v4174
        %v4399 = vunpack.c.l.b16 %v4175
        %v4400 = vunpack.c.h.b16 %v4175
        %v4401 = vunpack.c.l.b16 %v4176
        %v4402 = vunpack.c.h.b16 %v4176
        %v4403 = vunpack.c.l.b16 %v4177
        %v4404 = vunpack.c.h.b16 %v4177
        %v4405 = vunpack.c.l.b16 %v4178
        %v4406 = vunpack.c.h.b16 %v4178
        %v4407 = vunpack.c.l.b16 %v4179
        %v4408 = vunpack.c.h.b16 %v4179
        %v4409 = vunpack.c.l.b16 %v4180
        %v4410 = vunpack.c.h.b16 %v4180
        %v4411 = vunpack.c.l.b16 %v4181
        %v4412 = vunpack.c.h.b16 %v4181
        %v4413 = vunpack.c.l.b16 %v4182
        %v4414 = vunpack.c.h.b16 %v4182
        %v4415 = vunpack.c.l.b16 %v4183
        %v4416 = vunpack.c.h.b16 %v4183
        %v4417 = vunpack.c.l.b16 %v4184
        %v4418 = vunpack.c.h.b16 %v4184
        %v4419 = vunpack.c.l.b16 %v4185
        %v4420 = vunpack.c.h.b16 %v4185
        %v4421 = vunpack.c.l.b16 %v4186
        %v4422 = vunpack.c.h.b16 %v4186
        %v4423 = vunpack.c.l.b16 %v4187
        %v4424 = vunpack.c.h.b16 %v4187
        %v4425 = vunpack.c.l.b16 %v4188
        %v4426 = vunpack.c.h.b16 %v4188
        %v4427 = vunpack.c.l.b16 %v4189
        %v4428 = vunpack.c.h.b16 %v4189
        %v4429 = vunpack.c.l.b16 %v4190
        %v4430 = vunpack.c.h.b16 %v4190
        %v4431 = vunpack.c.l.b16 %v4191
        %v4432 = vunpack.c.h.b16 %v4191
        %v4433 = vunpack.c.l.b16 %v4192
        %v4434 = vunpack.c.h.b16 %v4192
        %v4435 = vunpack.c.l.b16 %v4193
        %v4436 = vunpack.c.h.b16 %v4193
        %v4437 = vunpack.c.l.b16 %v4194
        %v4438 = vunpack.c.h.b16 %v4194
        %v4439 = vunpack.c.l.b16 %v4195
        %v4440 = vunpack.c.h.b16 %v4195
        %v4441 = vunpack.c.l.b16 %v4196
        %v4442 = vunpack.c.h.b16 %v4196
        %v4443 = vunpack.c.l.b16 %v4197
        %v4444 = vunpack.c.h.b16 %v4197
        %v4445 = vunpack.c.l.b16 %v4198
        %v4446 = vunpack.c.h.b16 %v4198
        %v4447 = vunpack.c.l.b16 %v4199
        %v4448 = vunpack.c.h.b16 %v4199
        %v4449 = vunpack.c.l.b16 %v4200
        %v4450 = vunpack.c.h.b16 %v4200
        %v4451 = vunpack.c.l.b16 %v4201
        %v4452 = vunpack.c.h.b16 %v4201
        %v4453 = vunpack.c.l.b16 %v4202
        %v4454 = vunpack.c.h.b16 %v4202
        %v4455 = vunpack.c.l.b16 %v4203
        %v4456 = vunpack.c.h.b16 %v4203
        %v4457 = vunpack.c.l.b16 %v4204
        %v4458 = vunpack.c.h.b16 %v4204
        %v4459 = vunpack.c.l.b16 %v4205
        %v4460 = vunpack.c.h.b16 %v4205
        %v4461 = vunpack.c.l.b16 %v4206
        %v4462 = vunpack.c.h.b16 %v4206
        %v4463 = vunpack.c.l.b16 %v4207
        %v4464 = vunpack.c.h.b16 %v4207
        %v4465 = vunpack.c.l.b16 %v4208
        %v4466 = vunpack.c.h.b16 %v4208
        %v4467 = vunpack.c.l.b16 %v4209
        %v4468 = vunpack.c.h.b16 %v4209
        %v4469 = vunpack.c.l.b16 %v4210
        %v4470 = vunpack.c.h.b16 %v4210
        %v4471 = vunpack.c.l.b16 %v4211
        %v4472 = vunpack.c.h.b16 %v4211
        %v4473 = vunpack.c.l.b16 %v4212
        %v4474 = vunpack.c.h.b16 %v4212
        %v4475 = vunpack.c.l.b16 %v4213
        %v4476 = vunpack.c.h.b16 %v4213
        %v4477 = vunpack.c.l.b16 %v4214
        %v4478 = vunpack.c.h.b16 %v4214
        %v4479 = vunpack.c.l.b16 %v4215
        %v4480 = vunpack.c.h.b16 %v4215
        %v4481 = vunpack.c.l.b16 %v4216
        %v4482 = vunpack.c.h.b16 %v4216
        %v4483 = vunpack.c.l.b16 %v4217
        %v4484 = vunpack.c.h.b16 %v4217
        %v4485 = vunpack.c.l.b16 %v4218
        %v4486 = vunpack.c.h.b16 %v4218
        %v4487 = vunpack.c.l.b16 %v4219
        %v4488 = vunpack.c.h.b16 %v4219
        %v4489 = vunpack.c.l.b16 %v4220
        %v4490 = vunpack.c.h.b16 %v4220
        %v4491 = vunpack.c.l.b16 %v4221
        %v4492 = vunpack.c.h.b16 %v4221
        %v4493 = vunpack.c.l.b16 %v4222
        %v4494 = vunpack.c.h.b16 %v4222
        %v4495 = vunpack.c.l.b16 %v4223
        %v4496 = vunpack.c.h.b16 %v4223
        %v4497 = vunpack.c.l.b16 %v4224
        %v4498 = vunpack.c.h.b16 %v4224
        %v4499 = vunpack.c.l.b16 %v4225
        %v4500 = vunpack.c.h.b16 %v4225
        %v4501 = vunpack.c.l.b16 %v4226
        %v4502 = vunpack.c.h.b16 %v4226
        %v4503 = vunpack.c.l.b16 %v4227
        %v4504 = vunpack.c.h.b16 %v4227
        %v4505 = vunpack.c.l.b16 %v4228
        %v4506 = vunpack.c.h.b16 %v4228
        %v4507 = vunpack.c.l.b16 %v4229
        %v4508 = vunpack.c.h.b16 %v4229
        %v4509 = vunpack.c.l.b16 %v4230
        %v4510 = vunpack.c.h.b16 %v4230
        %v4511 = vunpack.c.l.b16 %v4231
        %v4512 = vunpack.c.h.b16 %v4231
        %v4513 = vunpack.c.l.b16 %v4232
        %v4514 = vunpack.c.h.b16 %v4232
        %v4515 = vunpack.c.l.b16 %v4233
        %v4516 = vunpack.c.h.b16 %v4233
        %v4517 = vunpack.c.l.b16 %v4234
        %v4518 = vunpack.c.h.b16 %v4234
        %v4519 = vunpack.c.l.b16 %v4235
        %v4520 = vunpack.c.h.b16 %v4235
        %v4521 = vunpack.c.l.b16 %v4236
        %v4522 = vunpack.c.h.b16 %v4236
        %v4523 = vunpack.c.l.b16 %v4237
        %v4524 = vunpack.c.h.b16 %v4237
        %v4525 = vunpack.c.l.b16 %v4238
        %v4526 = vunpack.c.h.b16 %v4238
        %v4527 = vunpack.c.l.b16 %v4239
        %v4528 = vunpack.c.h.b16 %v4239
        %v4529 = vunpack.c.l.b16 %v4240
        %v4530 = vunpack.c.h.b16 %v4240
        %v4531 = vunpack.c.l.b16 %v4241
        %v4532 = vunpack.c.h.b16 %v4241
        %v4533 = vunpack.c.l.b16 %v4242
        %v4534 = vunpack.c.h.b16 %v4242
        %v4535 = vunpack.c.l.b16 %v4243
        %v4536 = vunpack.c.h.b16 %v4243
        %v4537 = vunpack.c.l.b16 %v4244
        %v4538 = vunpack.c.h.b16 %v4244
        %v4539 = vpack.c.b16 %v4389, %v4379
        %v4540 = vpack.c.b16 %v4390, %v4380
        %v4541 = vpack.c.b16 %v4391, %v4381
        %v4542 = vpack.c.b16 %v4392, %v4382
        %v4543 = vpack.c.b16 %v4393, %v4383
        %v4544 = vpack.c.b16 %v4394, %v4384
        %v4545 = vpack.c.b16 %v4395, %v4385
        %v4546 = vpack.c.b16 %v4396, %v4386
        %v4547 = vpack.c.b16 %v4397, %v4387
        %v4548 = vpack.c.b16 %v4398, %v4388
        %v4549 = vpack.c.b16 %v4409, %v4399
        %v4550 = vpack.c.b16 %v4410, %v4400
        %v4551 = vpack.c.b16 %v4411, %v4401
        %v4552 = vpack.c.b16 %v4412, %v4402
        %v4553 = vpack.c.b16 %v4413, %v4403
        %v4554 = vpack.c.b16 %v4414, %v4404
        %v4555 = vpack.c.b16 %v4415, %v4405
        %v4556 = vpack.c.b16 %v4416, %v4406
        %v4557 = vpack.c.b16 %v4417, %v4407
        %v4558 = vpack.c.b16 %v4418, %v4408
        %v4559 = vpack.c.b16 %v4429, %v4419
        %v4560 = vpack.c.b16 %v4430, %v4420
        %v4561 = vpack.c.b16 %v4431, %v4421
        %v4562 = vpack.c.b16 %v4432, %v4422
        %v4563 = vpack.c.b16 %v4433, %v4423
        %v4564 = vpack.c.b16 %v4434, %v4424
        %v4565 = vpack.c.b16 %v4435, %v4425
        %v4566 = vpack.c.b16 %v4436, %v4426
        %v4567 = vpack.c.b16 %v4437, %v4427
        %v4568 = vpack.c.b16 %v4438, %v4428
        %v4569 = vpack.c.b16 %v4449, %v4439
        %v4570 = vpack.c.b16 %v4450, %v4440
        %v4571 = vpack.c.b16 %v4451, %v4441
        %v4572 = vpack.c.b16 %v4452, %v4442
        %v4573 = vpack.c.b16 %v4453, %v4443
        %v4574 = vpack.c.b16 %v4454, %v4444
        %v4575 = vpack.c.b16 %v4455, %v4445
        %v4576 = vpack.c.b16 %v4456, %v4446
        %v4577 = vpack.c.b16 %v4457, %v4447
        %v4578 = vpack.c.b16 %v4458, %v4448
        %v4579 = vpack.c.b16 %v4469, %v4459
        %v4580 = vpack.c.b16 %v4470, %v4460
        %v4581 = vpack.c.b16 %v4471, %v4461
        %v4582 = vpack.c.b16 %v4472, %v4462
        %v4583 = vpack.c.b16 %v4473, %v4463
        %v4584 = vpack.c.b16 %v4474, %v4464
        %v4585 = vpack.c.b16 %v4475, %v4465
        %v4586 = vpack.c.b16 %v4476, %v4466
        %v4587 = vpack.c.b16 %v4477, %v4467
        %v4588 = vpack.c.b16 %v4478, %v4468
        %v4589 = vpack.c.b16 %v4489, %v4479
        %v4590 = vpack.c.b16 %v4490, %v4480
        %v4591 = vpack.c.b16 %v4491, %v4481
        %v4592 = vpack.c.b16 %v4492, %v4482
        %v4593 = vpack.c.b16 %v4493, %v4483
        %v4594 = vpack.c.b16 %v4494, %v4484
        %v4595 = vpack.c.b16 %v4495, %v4485
        %v4596 = vpack.c.b16 %v4496, %v4486
        %v4597 = vpack.c.b16 %v4497, %v4487
        %v4598 = vpack.c.b16 %v4498, %v4488
        %v4599 = vpack.c.b16 %v4509, %v4499
        %v4600 = vpack.c.b16 %v4510, %v4500
        %v4601 = vpack.c.b16 %v4511, %v4501
        %v4602 = vpack.c.b16 %v4512, %v4502
        %v4603 = vpack.c.b16 %v4513, %v4503
        %v4604 = vpack.c.b16 %v4514, %v4504
        %v4605 = vpack.c.b16 %v4515, %v4505
        %v4606 = vpack.c.b16 %v4516, %v4506
        %v4607 = vpack.c.b16 %v4517, %v4507
        %v4608 = vpack.c.b16 %v4518, %v4508
        %v4609 = vpack.c.b16 %v4529, %v4519
        %v4610 = vpack.c.b16 %v4530, %v4520
        %v4611 = vpack.c.b16 %v4531, %v4521
        %v4612 = vpack.c.b16 %v4532, %v4522
        %v4613 = vpack.c.b16 %v4533, %v4523
        %v4614 = vpack.c.b16 %v4534, %v4524
        %v4615 = vpack.c.b16 %v4535, %v4525
        %v4616 = vpack.c.b16 %v4536, %v4526
        %v4617 = vpack.c.b16 %v4537, %v4527
        %v4618 = vpack.c.b16 %v4538, %v4528
        %4699 = vmatprep.subr.bf16.mxu0 %v4610
        %4700 = vmatpush1.bf16.msra.mxu0 %v4609
        %4701 = vmatprep.subr.bf16.mxu0 %v4600
        %4702 = vmatpush1.bf16.msra.mxu0 %v4599
        %4703 = vmatprep.subr.bf16.mxu0 %v4590
        %4704 = vmatpush1.bf16.msra.mxu0 %v4589
        %4705 = vmatprep.subr.bf16.mxu0 %v4580
        %4706 = vmatpush1.bf16.msra.mxu0 %v4579
        %4707 = vmatprep.subr.bf16.mxu0 %v4570
        %4708 = vmatpush1.bf16.msra.mxu0 %v4569
        %4709 = vmatprep.subr.bf16.mxu0 %v4560
        %4710 = vmatpush1.bf16.msra.mxu0 %v4559
        %4711 = vmatprep.subr.bf16.mxu0 %v4550
        %4712 = vmatpush1.bf16.msra.mxu0 %v4549
        %4713 = vmatprep.subr.bf16.mxu0 %v4540
        %4714 = vmatpush1.bf16.msra.mxu0 %v4539
        %4715 = vmatprep.subr.bf16.mxu0 0
        %4716 = vmatpush2.bf16.msra.mxu0 0
        %4717 = vmatprep.subr.bf16.mxu0 0
        %4718 = vmatpush2.bf16.msra.mxu0 0
        %4719 = vmatprep.subr.bf16.mxu0 0
        %4720 = vmatpush2.bf16.msra.mxu0 0
        %4721 = vmatprep.subr.bf16.mxu0 0
        %4722 = vmatpush2.bf16.msra.mxu0 0
        %4723 = vmatprep.subr.bf16.mxu0 0
        %4724 = vmatpush2.bf16.msra.mxu0 0
        %4725 = vmatprep.subr.bf16.mxu0 0
        %4726 = vmatpush2.bf16.msra.mxu0 0
        %4727 = vmatprep.subr.bf16.mxu0 0
        %4728 = vmatpush2.bf16.msra.mxu0 0
        %4729 = vmatprep.subr.bf16.mxu0 0
        %4730 = vmatpush2.bf16.msra.mxu0 0
        %4731 = vmatprep.mubr.bf16.mxu0 0
        %4732 = vmatmul.mubr.bf16.gmra.mxu0 %v4149
        %v4733 = vpop.f32.mrf.mxu0
        %v4734 = vadd.f32 %v4252, %v4733
        %v4735 = vpop.f32.mrf.mxu0
        %v4736 = vadd.f32 %v4256, %v4735
        %v4737 = vpop.f32.mrf.mxu0
        %v4738 = vadd.f32 %v4252, %v4737
        %v4739 = vpop.f32.mrf.mxu0
        %v4740 = vadd.f32 %v4256, %v4739
        %4741 = vmatprep.mubr.bf16.mxu0 0
        %4742 = vmatmul.mubr.bf16.gmra.mxu0 %v4150
        %v4743 = vpop.f32.mrf.mxu0
        %v4744 = vadd.f32 %v4252, %v4743
        %v4745 = vpop.f32.mrf.mxu0
        %v4746 = vadd.f32 %v4256, %v4745
        %v4747 = vpop.f32.mrf.mxu0
        %v4748 = vadd.f32 %v4252, %v4747
        %v4749 = vpop.f32.mrf.mxu0
        %v4750 = vadd.f32 %v4256, %v4749
        %4751 = vmatprep.mubr.bf16.mxu0 0
        %4752 = vmatmul.mubr.bf16.gmra.mxu0 %v4151
        %v4753 = vpop.f32.mrf.mxu0
        %v4754 = vadd.f32 %v4252, %v4753
        %v4755 = vpop.f32.mrf.mxu0
        %v4756 = vadd.f32 %v4256, %v4755
        %v4757 = vpop.f32.mrf.mxu0
        %v4758 = vadd.f32 %v4252, %v4757
        %v4759 = vpop.f32.mrf.mxu0
        %v4760 = vadd.f32 %v4256, %v4759
        %4761 = vmatprep.mubr.bf16.mxu0 0
        %4762 = vmatmul.mubr.bf16.gmra.mxu0 %v4152
        %v4763 = vpop.f32.mrf.mxu0
        %v4764 = vadd.f32 %v4252, %v4763
        %v4765 = vpop.f32.mrf.mxu0
        %v4766 = vadd.f32 %v4256, %v4765
        %v4767 = vpop.f32.mrf.mxu0
        %v4768 = vadd.f32 %v4252, %v4767
        %v4769 = vpop.f32.mrf.mxu0
        %v4770 = vadd.f32 %v4256, %v4769
        %4771 = vmatprep.mubr.bf16.mxu0 0
        %4772 = vmatmul.mubr.bf16.gmra.mxu0 %v4153
        %v4773 = vpop.f32.mrf.mxu0
        %v4774 = vadd.f32 %v4252, %v4773
        %v4775 = vpop.f32.mrf.mxu0
        %v4776 = vadd.f32 %v4256, %v4775
        %v4777 = vpop.f32.mrf.mxu0
        %v4778 = vadd.f32 %v4252, %v4777
        %v4779 = vpop.f32.mrf.mxu0
        %v4780 = vadd.f32 %v4256, %v4779
        %4781 = vmatprep.mubr.bf16.mxu0 0
        %4782 = vmatmul.mubr.bf16.gmra.mxu0 %v4154
        %v4783 = vpop.f32.mrf.mxu0
        %v4784 = vadd.f32 %v4252, %v4783
        %v4785 = vpop.f32.mrf.mxu0
        %v4786 = vadd.f32 %v4256, %v4785
        %v4787 = vpop.f32.mrf.mxu0
        %v4788 = vadd.f32 %v4252, %v4787
        %v4789 = vpop.f32.mrf.mxu0
        %v4790 = vadd.f32 %v4256, %v4789
        %4791 = vmatprep.mubr.bf16.mxu0 0
        %4792 = vmatmul.mubr.bf16.gmra.mxu0 %v4155
        %v4793 = vpop.f32.mrf.mxu0
        %v4794 = vadd.f32 %v4252, %v4793
        %v4795 = vpop.f32.mrf.mxu0
        %v4796 = vadd.f32 %v4256, %v4795
        %v4797 = vpop.f32.mrf.mxu0
        %v4798 = vadd.f32 %v4252, %v4797
        %v4799 = vpop.f32.mrf.mxu0
        %v4800 = vadd.f32 %v4256, %v4799
        %4801 = vmatprep.mubr.bf16.mxu0 0
        %4802 = vmatmul.mubr.bf16.gmra.mxu0 %v4156
        %v4803 = vpop.f32.mrf.mxu0
        %v4804 = vadd.f32 %v4252, %v4803
        %v4805 = vpop.f32.mrf.mxu0
        %v4806 = vadd.f32 %v4256, %v4805
        %v4807 = vpop.f32.mrf.mxu0
        %v4808 = vadd.f32 %v4252, %v4807
        %v4809 = vpop.f32.mrf.mxu0
        %v4810 = vadd.f32 %v4256, %v4809
        %4811 = vmatprep.mubr.bf16.mxu0 0
        %4812 = vmatmul.mubr.bf16.gmra.mxu0 %v4157
        %v4813 = vpop.f32.mrf.mxu0
        %v4814 = vadd.f32 %v4252, %v4813
        %v4815 = vpop.f32.mrf.mxu0
        %v4816 = vadd.f32 %v4256, %v4815
        %v4817 = vpop.f32.mrf.mxu0
        %v4818 = vadd.f32 %v4252, %v4817
        %v4819 = vpop.f32.mrf.mxu0
        %v4820 = vadd.f32 %v4256, %v4819
        %4821 = vmatprep.mubr.bf16.mxu0 0
        %4822 = vmatmul.mubr.bf16.gmra.mxu0 %v4158
        %v4823 = vpop.f32.mrf.mxu0
        %v4824 = vadd.f32 %v4252, %v4823
        %v4825 = vpop.f32.mrf.mxu0
        %v4826 = vadd.f32 %v4256, %v4825
        %v4827 = vpop.f32.mrf.mxu0
        %v4828 = vadd.f32 %v4252, %v4827
        %v4829 = vpop.f32.mrf.mxu0
        %v4830 = vadd.f32 %v4256, %v4829
        %4831 = vmatprep.mubr.bf16.mxu0 0
        %4832 = vmatmul.mubr.bf16.gmra.mxu0 %v4159
        %v4833 = vpop.f32.mrf.mxu0
        %v4834 = vadd.f32 %v4252, %v4833
        %v4835 = vpop.f32.mrf.mxu0
        %v4836 = vadd.f32 %v4256, %v4835
        %v4837 = vpop.f32.mrf.mxu0
        %v4838 = vadd.f32 %v4252, %v4837
        %v4839 = vpop.f32.mrf.mxu0
        %v4840 = vadd.f32 %v4256, %v4839
        %4841 = vmatprep.mubr.bf16.mxu0 0
        %4842 = vmatmul.mubr.bf16.gmra.mxu0 %v4160
        %v4843 = vpop.f32.mrf.mxu0
        %v4844 = vadd.f32 %v4252, %v4843
        %v4845 = vpop.f32.mrf.mxu0
        %v4846 = vadd.f32 %v4256, %v4845
        %v4847 = vpop.f32.mrf.mxu0
        %v4848 = vadd.f32 %v4252, %v4847
        %v4849 = vpop.f32.mrf.mxu0
        %v4850 = vadd.f32 %v4256, %v4849
        %4851 = vmatprep.mubr.bf16.mxu0 0
        %4852 = vmatmul.mubr.bf16.gmra.mxu0 %v4161
        %v4853 = vpop.f32.mrf.mxu0
        %v4854 = vadd.f32 %v4252, %v4853
        %v4855 = vpop.f32.mrf.mxu0
        %v4856 = vadd.f32 %v4256, %v4855
        %v4857 = vpop.f32.mrf.mxu0
        %v4858 = vadd.f32 %v4252, %v4857
        %v4859 = vpop.f32.mrf.mxu0
        %v4860 = vadd.f32 %v4256, %v4859
        %4861 = vmatprep.mubr.bf16.mxu0 0
        %4862 = vmatmul.mubr.bf16.gmra.mxu0 %v4162
        %v4863 = vpop.f32.mrf.mxu0
        %v4864 = vadd.f32 %v4252, %v4863
        %v4865 = vpop.f32.mrf.mxu0
        %v4866 = vadd.f32 %v4256, %v4865
        %v4867 = vpop.f32.mrf.mxu0
        %v4868 = vadd.f32 %v4252, %v4867
        %v4869 = vpop.f32.mrf.mxu0
        %v4870 = vadd.f32 %v4256, %v4869
        %4871 = vmatprep.mubr.bf16.mxu0 0
        %4872 = vmatmul.mubr.bf16.gmra.mxu0 %v4163
        %v4873 = vpop.f32.mrf.mxu0
        %v4874 = vadd.f32 %v4252, %v4873
        %v4875 = vpop.f32.mrf.mxu0
        %v4876 = vadd.f32 %v4256, %v4875
        %v4877 = vpop.f32.mrf.mxu0
        %v4878 = vadd.f32 %v4252, %v4877
        %v4879 = vpop.f32.mrf.mxu0
        %v4880 = vadd.f32 %v4256, %v4879
        %4881 = vmatprep.mubr.bf16.mxu0 0
        %4882 = vmatmul.mubr.bf16.gmra.mxu0 %v4164
        %v4883 = vpop.f32.mrf.mxu0
        %v4884 = vadd.f32 %v4252, %v4883
        %v4885 = vpop.f32.mrf.mxu0
        %v4886 = vadd.f32 %v4256, %v4885
        %v4887 = vpop.f32.mrf.mxu0
        %v4888 = vadd.f32 %v4252, %v4887
        %v4889 = vpop.f32.mrf.mxu0
        %v4890 = vadd.f32 %v4256, %v4889
        %4891 = vdwg.mxu0
        %4892 = vmatprep.subr.bf16.mxu0 %v4612
        %4893 = vmatpush1.bf16.msra.mxu0 %v4611
        %4894 = vmatprep.subr.bf16.mxu0 %v4602
        %4895 = vmatpush1.bf16.msra.mxu0 %v4601
        %4896 = vmatprep.subr.bf16.mxu0 %v4592
        %4897 = vmatpush1.bf16.msra.mxu0 %v4591
        %4898 = vmatprep.subr.bf16.mxu0 %v4582
        %4899 = vmatpush1.bf16.msra.mxu0 %v4581
        %4900 = vmatprep.subr.bf16.mxu0 %v4572
        %4901 = vmatpush1.bf16.msra.mxu0 %v4571
        %4902 = vmatprep.subr.bf16.mxu0 %v4562
        %4903 = vmatpush1.bf16.msra.mxu0 %v4561
        %4904 = vmatprep.subr.bf16.mxu0 %v4552
        %4905 = vmatpush1.bf16.msra.mxu0 %v4551
        %4906 = vmatprep.subr.bf16.mxu0 %v4542
        %4907 = vmatpush1.bf16.msra.mxu0 %v4541
        %4908 = vmatprep.subr.bf16.mxu0 0
        %4909 = vmatpush2.bf16.msra.mxu0 0
        %4910 = vmatprep.subr.bf16.mxu0 0
        %4911 = vmatpush2.bf16.msra.mxu0 0
        %4912 = vmatprep.subr.bf16.mxu0 0
        %4913 = vmatpush2.bf16.msra.mxu0 0
        %4914 = vmatprep.subr.bf16.mxu0 0
        %4915 = vmatpush2.bf16.msra.mxu0 0
        %4916 = vmatprep.subr.bf16.mxu0 0
        %4917 = vmatpush2.bf16.msra.mxu0 0
        %4918 = vmatprep.subr.bf16.mxu0 0
        %4919 = vmatpush2.bf16.msra.mxu0 0
        %4920 = vmatprep.subr.bf16.mxu0 0
        %4921 = vmatpush2.bf16.msra.mxu0 0
        %4922 = vmatprep.subr.bf16.mxu0 0
        %4923 = vmatpush2.bf16.msra.mxu0 0
        %4924 = vmatprep.mubr.bf16.mxu0 0
        %4925 = vmatmul.mubr.bf16.gmra.mxu0 %v4149
        %v4926 = vpop.f32.mrf.mxu0
        %v4927 = vadd.f32 %v4260, %v4926
        %v4928 = vpop.f32.mrf.mxu0
        %v4929 = vadd.f32 %v4264, %v4928
        %v4930 = vpop.f32.mrf.mxu0
        %v4931 = vadd.f32 %v4260, %v4930
        %v4932 = vpop.f32.mrf.mxu0
        %v4933 = vadd.f32 %v4264, %v4932
        %4934 = vmatprep.mubr.bf16.mxu0 0
        %4935 = vmatmul.mubr.bf16.gmra.mxu0 %v4150
        %v4936 = vpop.f32.mrf.mxu0
        %v4937 = vadd.f32 %v4260, %v4936
        %v4938 = vpop.f32.mrf.mxu0
        %v4939 = vadd.f32 %v4264, %v4938
        %v4940 = vpop.f32.mrf.mxu0
        %v4941 = vadd.f32 %v4260, %v4940
        %v4942 = vpop.f32.mrf.mxu0
        %v4943 = vadd.f32 %v4264, %v4942
        %4944 = vmatprep.mubr.bf16.mxu0 0
        %4945 = vmatmul.mubr.bf16.gmra.mxu0 %v4151
        %v4946 = vpop.f32.mrf.mxu0
        %v4947 = vadd.f32 %v4260, %v4946
        %v4948 = vpop.f32.mrf.mxu0
        %v4949 = vadd.f32 %v4264, %v4948
        %v4950 = vpop.f32.mrf.mxu0
        %v4951 = vadd.f32 %v4260, %v4950
        %v4952 = vpop.f32.mrf.mxu0
        %v4953 = vadd.f32 %v4264, %v4952
        %4954 = vmatprep.mubr.bf16.mxu0 0
        %4955 = vmatmul.mubr.bf16.gmra.mxu0 %v4152
        %v4956 = vpop.f32.mrf.mxu0
        %v4957 = vadd.f32 %v4260, %v4956
        %v4958 = vpop.f32.mrf.mxu0
        %v4959 = vadd.f32 %v4264, %v4958
        %v4960 = vpop.f32.mrf.mxu0
        %v4961 = vadd.f32 %v4260, %v4960
        %v4962 = vpop.f32.mrf.mxu0
        %v4963 = vadd.f32 %v4264, %v4962
        %4964 = vmatprep.mubr.bf16.mxu0 0
        %4965 = vmatmul.mubr.bf16.gmra.mxu0 %v4153
        %v4966 = vpop.f32.mrf.mxu0
        %v4967 = vadd.f32 %v4260, %v4966
        %v4968 = vpop.f32.mrf.mxu0
        %v4969 = vadd.f32 %v4264, %v4968
        %v4970 = vpop.f32.mrf.mxu0
        %v4971 = vadd.f32 %v4260, %v4970
        %v4972 = vpop.f32.mrf.mxu0
        %v4973 = vadd.f32 %v4264, %v4972
        %4974 = vmatprep.mubr.bf16.mxu0 0
        %4975 = vmatmul.mubr.bf16.gmra.mxu0 %v4154
        %v4976 = vpop.f32.mrf.mxu0
        %v4977 = vadd.f32 %v4260, %v4976
        %v4978 = vpop.f32.mrf.mxu0
        %v4979 = vadd.f32 %v4264, %v4978
        %v4980 = vpop.f32.mrf.mxu0
        %v4981 = vadd.f32 %v4260, %v4980
        %v4982 = vpop.f32.mrf.mxu0
        %v4983 = vadd.f32 %v4264, %v4982
        %4984 = vmatprep.mubr.bf16.mxu0 0
        %4985 = vmatmul.mubr.bf16.gmra.mxu0 %v4155
        %v4986 = vpop.f32.mrf.mxu0
        %v4987 = vadd.f32 %v4260, %v4986
        %v4988 = vpop.f32.mrf.mxu0
        %v4989 = vadd.f32 %v4264, %v4988
        %v4990 = vpop.f32.mrf.mxu0
        %v4991 = vadd.f32 %v4260, %v4990
        %v4992 = vpop.f32.mrf.mxu0
        %v4993 = vadd.f32 %v4264, %v4992
        %4994 = vmatprep.mubr.bf16.mxu0 0
        %4995 = vmatmul.mubr.bf16.gmra.mxu0 %v4156
        %v4996 = vpop.f32.mrf.mxu0
        %v4997 = vadd.f32 %v4260, %v4996
        %v4998 = vpop.f32.mrf.mxu0
        %v4999 = vadd.f32 %v4264, %v4998
        %v5000 = vpop.f32.mrf.mxu0
        %v5001 = vadd.f32 %v4260, %v5000
        %v5002 = vpop.f32.mrf.mxu0
        %v5003 = vadd.f32 %v4264, %v5002
        %5004 = vmatprep.mubr.bf16.mxu0 0
        %5005 = vmatmul.mubr.bf16.gmra.mxu0 %v4157
        %v5006 = vpop.f32.mrf.mxu0
        %v5007 = vadd.f32 %v4260, %v5006
        %v5008 = vpop.f32.mrf.mxu0
        %v5009 = vadd.f32 %v4264, %v5008
        %v5010 = vpop.f32.mrf.mxu0
        %v5011 = vadd.f32 %v4260, %v5010
        %v5012 = vpop.f32.mrf.mxu0
        %v5013 = vadd.f32 %v4264, %v5012
        %5014 = vmatprep.mubr.bf16.mxu0 0
        %5015 = vmatmul.mubr.bf16.gmra.mxu0 %v4158
        %v5016 = vpop.f32.mrf.mxu0
        %v5017 = vadd.f32 %v4260, %v5016
        %v5018 = vpop.f32.mrf.mxu0
        %v5019 = vadd.f32 %v4264, %v5018
        %v5020 = vpop.f32.mrf.mxu0
        %v5021 = vadd.f32 %v4260, %v5020
        %v5022 = vpop.f32.mrf.mxu0
        %v5023 = vadd.f32 %v4264, %v5022
        %5024 = vmatprep.mubr.bf16.mxu0 0
        %5025 = vmatmul.mubr.bf16.gmra.mxu0 %v4159
        %v5026 = vpop.f32.mrf.mxu0
        %v5027 = vadd.f32 %v4260, %v5026
        %v5028 = vpop.f32.mrf.mxu0
        %v5029 = vadd.f32 %v4264, %v5028
        %v5030 = vpop.f32.mrf.mxu0
        %v5031 = vadd.f32 %v4260, %v5030
        %v5032 = vpop.f32.mrf.mxu0
        %v5033 = vadd.f32 %v4264, %v5032
        %5034 = vmatprep.mubr.bf16.mxu0 0
        %5035 = vmatmul.mubr.bf16.gmra.mxu0 %v4160
        %v5036 = vpop.f32.mrf.mxu0
        %v5037 = vadd.f32 %v4260, %v5036
        %v5038 = vpop.f32.mrf.mxu0
        %v5039 = vadd.f32 %v4264, %v5038
        %v5040 = vpop.f32.mrf.mxu0
        %v5041 = vadd.f32 %v4260, %v5040
        %v5042 = vpop.f32.mrf.mxu0
        %v5043 = vadd.f32 %v4264, %v5042
        %5044 = vmatprep.mubr.bf16.mxu0 0
        %5045 = vmatmul.mubr.bf16.gmra.mxu0 %v4161
        %v5046 = vpop.f32.mrf.mxu0
        %v5047 = vadd.f32 %v4260, %v5046
        %v5048 = vpop.f32.mrf.mxu0
        %v5049 = vadd.f32 %v4264, %v5048
        %v5050 = vpop.f32.mrf.mxu0
        %v5051 = vadd.f32 %v4260, %v5050
        %v5052 = vpop.f32.mrf.mxu0
        %v5053 = vadd.f32 %v4264, %v5052
        %5054 = vmatprep.mubr.bf16.mxu0 0
        %5055 = vmatmul.mubr.bf16.gmra.mxu0 %v4162
        %v5056 = vpop.f32.mrf.mxu0
        %v5057 = vadd.f32 %v4260, %v5056
        %v5058 = vpop.f32.mrf.mxu0
        %v5059 = vadd.f32 %v4264, %v5058
        %v5060 = vpop.f32.mrf.mxu0
        %v5061 = vadd.f32 %v4260, %v5060
        %v5062 = vpop.f32.mrf.mxu0
        %v5063 = vadd.f32 %v4264, %v5062
        %5064 = vmatprep.mubr.bf16.mxu0 0
        %5065 = vmatmul.mubr.bf16.gmra.mxu0 %v4163
        %v5066 = vpop.f32.mrf.mxu0
        %v5067 = vadd.f32 %v4260, %v5066
        %v5068 = vpop.f32.mrf.mxu0
        %v5069 = vadd.f32 %v4264, %v5068
        %v5070 = vpop.f32.mrf.mxu0
        %v5071 = vadd.f32 %v4260, %v5070
        %v5072 = vpop.f32.mrf.mxu0
        %v5073 = vadd.f32 %v4264, %v5072
        %5074 = vmatprep.mubr.bf16.mxu0 0
        %5075 = vmatmul.mubr.bf16.gmra.mxu0 %v4164
        %v5076 = vpop.f32.mrf.mxu0
        %v5077 = vadd.f32 %v4260, %v5076
        %v5078 = vpop.f32.mrf.mxu0
        %v5079 = vadd.f32 %v4264, %v5078
        %v5080 = vpop.f32.mrf.mxu0
        %v5081 = vadd.f32 %v4260, %v5080
        %v5082 = vpop.f32.mrf.mxu0
        %v5083 = vadd.f32 %v4264, %v5082
        %5084 = vdwg.mxu0
        %5085 = vmatprep.subr.bf16.mxu0 %v4614
        %5086 = vmatpush1.bf16.msra.mxu0 %v4613
        %5087 = vmatprep.subr.bf16.mxu0 %v4604
        %5088 = vmatpush1.bf16.msra.mxu0 %v4603
        %5089 = vmatprep.subr.bf16.mxu0 %v4594
        %5090 = vmatpush1.bf16.msra.mxu0 %v4593
        %5091 = vmatprep.subr.bf16.mxu0 %v4584
        %5092 = vmatpush1.bf16.msra.mxu0 %v4583
        %5093 = vmatprep.subr.bf16.mxu0 %v4574
        %5094 = vmatpush1.bf16.msra.mxu0 %v4573
        %5095 = vmatprep.subr.bf16.mxu0 %v4564
        %5096 = vmatpush1.bf16.msra.mxu0 %v4563
        %5097 = vmatprep.subr.bf16.mxu0 %v4554
        %5098 = vmatpush1.bf16.msra.mxu0 %v4553
        %5099 = vmatprep.subr.bf16.mxu0 %v4544
        %5100 = vmatpush1.bf16.msra.mxu0 %v4543
        %5101 = vmatprep.subr.bf16.mxu0 0
        %5102 = vmatpush2.bf16.msra.mxu0 0
        %5103 = vmatprep.subr.bf16.mxu0 0
        %5104 = vmatpush2.bf16.msra.mxu0 0
        %5105 = vmatprep.subr.bf16.mxu0 0
        %5106 = vmatpush2.bf16.msra.mxu0 0
        %5107 = vmatprep.subr.bf16.mxu0 0
        %5108 = vmatpush2.bf16.msra.mxu0 0
        %5109 = vmatprep.subr.bf16.mxu0 0
        %5110 = vmatpush2.bf16.msra.mxu0 0
        %5111 = vmatprep.subr.bf16.mxu0 0
        %5112 = vmatpush2.bf16.msra.mxu0 0
        %5113 = vmatprep.subr.bf16.mxu0 0
        %5114 = vmatpush2.bf16.msra.mxu0 0
        %5115 = vmatprep.subr.bf16.mxu0 0
        %5116 = vmatpush2.bf16.msra.mxu0 0
        %5117 = vmatprep.mubr.bf16.mxu0 0
        %5118 = vmatmul.mubr.bf16.gmra.mxu0 %v4149
        %v5119 = vpop.f32.mrf.mxu0
        %v5120 = vadd.f32 %v4268, %v5119
        %v5121 = vpop.f32.mrf.mxu0
        %v5122 = vadd.f32 %v4272, %v5121
        %v5123 = vpop.f32.mrf.mxu0
        %v5124 = vadd.f32 %v4268, %v5123
        %v5125 = vpop.f32.mrf.mxu0
        %v5126 = vadd.f32 %v4272, %v5125
        %5127 = vmatprep.mubr.bf16.mxu0 0
        %5128 = vmatmul.mubr.bf16.gmra.mxu0 %v4150
        %v5129 = vpop.f32.mrf.mxu0
        %v5130 = vadd.f32 %v4268, %v5129
        %v5131 = vpop.f32.mrf.mxu0
        %v5132 = vadd.f32 %v4272, %v5131
        %v5133 = vpop.f32.mrf.mxu0
        %v5134 = vadd.f32 %v4268, %v5133
        %v5135 = vpop.f32.mrf.mxu0
        %v5136 = vadd.f32 %v4272, %v5135
        %5137 = vmatprep.mubr.bf16.mxu0 0
        %5138 = vmatmul.mubr.bf16.gmra.mxu0 %v4151
        %v5139 = vpop.f32.mrf.mxu0
        %v5140 = vadd.f32 %v4268, %v5139
        %v5141 = vpop.f32.mrf.mxu0
        %v5142 = vadd.f32 %v4272, %v5141
        %v5143 = vpop.f32.mrf.mxu0
        %v5144 = vadd.f32 %v4268, %v5143
        %v5145 = vpop.f32.mrf.mxu0
        %v5146 = vadd.f32 %v4272, %v5145
        %5147 = vmatprep.mubr.bf16.mxu0 0
        %5148 = vmatmul.mubr.bf16.gmra.mxu0 %v4152
        %v5149 = vpop.f32.mrf.mxu0
        %v5150 = vadd.f32 %v4268, %v5149
        %v5151 = vpop.f32.mrf.mxu0
        %v5152 = vadd.f32 %v4272, %v5151
        %v5153 = vpop.f32.mrf.mxu0
        %v5154 = vadd.f32 %v4268, %v5153
        %v5155 = vpop.f32.mrf.mxu0
        %v5156 = vadd.f32 %v4272, %v5155
        %5157 = vmatprep.mubr.bf16.mxu0 0
        %5158 = vmatmul.mubr.bf16.gmra.mxu0 %v4153
        %v5159 = vpop.f32.mrf.mxu0
        %v5160 = vadd.f32 %v4268, %v5159
        %v5161 = vpop.f32.mrf.mxu0
        %v5162 = vadd.f32 %v4272, %v5161
        %v5163 = vpop.f32.mrf.mxu0
        %v5164 = vadd.f32 %v4268, %v5163
        %v5165 = vpop.f32.mrf.mxu0
        %v5166 = vadd.f32 %v4272, %v5165
        %5167 = vmatprep.mubr.bf16.mxu0 0
        %5168 = vmatmul.mubr.bf16.gmra.mxu0 %v4154
        %v5169 = vpop.f32.mrf.mxu0
        %v5170 = vadd.f32 %v4268, %v5169
        %v5171 = vpop.f32.mrf.mxu0
        %v5172 = vadd.f32 %v4272, %v5171
        %v5173 = vpop.f32.mrf.mxu0
        %v5174 = vadd.f32 %v4268, %v5173
        %v5175 = vpop.f32.mrf.mxu0
        %v5176 = vadd.f32 %v4272, %v5175
        %5177 = vmatprep.mubr.bf16.mxu0 0
        %5178 = vmatmul.mubr.bf16.gmra.mxu0 %v4155
        %v5179 = vpop.f32.mrf.mxu0
        %v5180 = vadd.f32 %v4268, %v5179
        %v5181 = vpop.f32.mrf.mxu0
        %v5182 = vadd.f32 %v4272, %v5181
        %v5183 = vpop.f32.mrf.mxu0
        %v5184 = vadd.f32 %v4268, %v5183
        %v5185 = vpop.f32.mrf.mxu0
        %v5186 = vadd.f32 %v4272, %v5185
        %5187 = vmatprep.mubr.bf16.mxu0 0
        %5188 = vmatmul.mubr.bf16.gmra.mxu0 %v4156
        %v5189 = vpop.f32.mrf.mxu0
        %v5190 = vadd.f32 %v4268, %v5189
        %v5191 = vpop.f32.mrf.mxu0
        %v5192 = vadd.f32 %v4272, %v5191
        %v5193 = vpop.f32.mrf.mxu0
        %v5194 = vadd.f32 %v4268, %v5193
        %v5195 = vpop.f32.mrf.mxu0
        %v5196 = vadd.f32 %v4272, %v5195
        %5197 = vmatprep.mubr.bf16.mxu0 0
        %5198 = vmatmul.mubr.bf16.gmra.mxu0 %v4157
        %v5199 = vpop.f32.mrf.mxu0
        %v5200 = vadd.f32 %v4268, %v5199
        %v5201 = vpop.f32.mrf.mxu0
        %v5202 = vadd.f32 %v4272, %v5201
        %v5203 = vpop.f32.mrf.mxu0
        %v5204 = vadd.f32 %v4268, %v5203
        %v5205 = vpop.f32.mrf.mxu0
        %v5206 = vadd.f32 %v4272, %v5205
        %5207 = vmatprep.mubr.bf16.mxu0 0
        %5208 = vmatmul.mubr.bf16.gmra.mxu0 %v4158
        %v5209 = vpop.f32.mrf.mxu0
        %v5210 = vadd.f32 %v4268, %v5209
        %v5211 = vpop.f32.mrf.mxu0
        %v5212 = vadd.f32 %v4272, %v5211
        %v5213 = vpop.f32.mrf.mxu0
        %v5214 = vadd.f32 %v4268, %v5213
        %v5215 = vpop.f32.mrf.mxu0
        %v5216 = vadd.f32 %v4272, %v5215
        %5217 = vmatprep.mubr.bf16.mxu0 0
        %5218 = vmatmul.mubr.bf16.gmra.mxu0 %v4159
        %v5219 = vpop.f32.mrf.mxu0
        %v5220 = vadd.f32 %v4268, %v5219
        %v5221 = vpop.f32.mrf.mxu0
        %v5222 = vadd.f32 %v4272, %v5221
        %v5223 = vpop.f32.mrf.mxu0
        %v5224 = vadd.f32 %v4268, %v5223
        %v5225 = vpop.f32.mrf.mxu0
        %v5226 = vadd.f32 %v4272, %v5225
        %5227 = vmatprep.mubr.bf16.mxu0 0
        %5228 = vmatmul.mubr.bf16.gmra.mxu0 %v4160
        %v5229 = vpop.f32.mrf.mxu0
        %v5230 = vadd.f32 %v4268, %v5229
        %v5231 = vpop.f32.mrf.mxu0
        %v5232 = vadd.f32 %v4272, %v5231
        %v5233 = vpop.f32.mrf.mxu0
        %v5234 = vadd.f32 %v4268, %v5233
        %v5235 = vpop.f32.mrf.mxu0
        %v5236 = vadd.f32 %v4272, %v5235
        %5237 = vmatprep.mubr.bf16.mxu0 0
        %5238 = vmatmul.mubr.bf16.gmra.mxu0 %v4161
        %v5239 = vpop.f32.mrf.mxu0
        %v5240 = vadd.f32 %v4268, %v5239
        %v5241 = vpop.f32.mrf.mxu0
        %v5242 = vadd.f32 %v4272, %v5241
        %v5243 = vpop.f32.mrf.mxu0
        %v5244 = vadd.f32 %v4268, %v5243
        %v5245 = vpop.f32.mrf.mxu0
        %v5246 = vadd.f32 %v4272, %v5245
        %5247 = vmatprep.mubr.bf16.mxu0 0
        %5248 = vmatmul.mubr.bf16.gmra.mxu0 %v4162
        %v5249 = vpop.f32.mrf.mxu0
        %v5250 = vadd.f32 %v4268, %v5249
        %v5251 = vpop.f32.mrf.mxu0
        %v5252 = vadd.f32 %v4272, %v5251
        %v5253 = vpop.f32.mrf.mxu0
        %v5254 = vadd.f32 %v4268, %v5253
        %v5255 = vpop.f32.mrf.mxu0
        %v5256 = vadd.f32 %v4272, %v5255
        %5257 = vmatprep.mubr.bf16.mxu0 0
        %5258 = vmatmul.mubr.bf16.gmra.mxu0 %v4163
        %v5259 = vpop.f32.mrf.mxu0
        %v5260 = vadd.f32 %v4268, %v5259
        %v5261 = vpop.f32.mrf.mxu0
        %v5262 = vadd.f32 %v4272, %v5261
        %v5263 = vpop.f32.mrf.mxu0
        %v5264 = vadd.f32 %v4268, %v5263
        %v5265 = vpop.f32.mrf.mxu0
        %v5266 = vadd.f32 %v4272, %v5265
        %5267 = vmatprep.mubr.bf16.mxu0 0
        %5268 = vmatmul.mubr.bf16.gmra.mxu0 %v4164
        %v5269 = vpop.f32.mrf.mxu0
        %v5270 = vadd.f32 %v4268, %v5269
        %v5271 = vpop.f32.mrf.mxu0
        %v5272 = vadd.f32 %v4272, %v5271
        %v5273 = vpop.f32.mrf.mxu0
        %v5274 = vadd.f32 %v4268, %v5273
        %v5275 = vpop.f32.mrf.mxu0
        %v5276 = vadd.f32 %v4272, %v5275
        %5277 = vdwg.mxu0
        %5278 = vmatprep.subr.bf16.mxu0 %v4616
        %5279 = vmatpush1.bf16.msra.mxu0 %v4615
        %5280 = vmatprep.subr.bf16.mxu0 %v4606
        %5281 = vmatpush1.bf16.msra.mxu0 %v4605
        %5282 = vmatprep.subr.bf16.mxu0 %v4596
        %5283 = vmatpush1.bf16.msra.mxu0 %v4595
        %5284 = vmatprep.subr.bf16.mxu0 %v4586
        %5285 = vmatpush1.bf16.msra.mxu0 %v4585
        %5286 = vmatprep.subr.bf16.mxu0 %v4576
        %5287 = vmatpush1.bf16.msra.mxu0 %v4575
        %5288 = vmatprep.subr.bf16.mxu0 %v4566
        %5289 = vmatpush1.bf16.msra.mxu0 %v4565
        %5290 = vmatprep.subr.bf16.mxu0 %v4556
        %5291 = vmatpush1.bf16.msra.mxu0 %v4555
        %5292 = vmatprep.subr.bf16.mxu0 %v4546
        %5293 = vmatpush1.bf16.msra.mxu0 %v4545
        %5294 = vmatprep.subr.bf16.mxu0 0
        %5295 = vmatpush2.bf16.msra.mxu0 0
        %5296 = vmatprep.subr.bf16.mxu0 0
        %5297 = vmatpush2.bf16.msra.mxu0 0
        %5298 = vmatprep.subr.bf16.mxu0 0
        %5299 = vmatpush2.bf16.msra.mxu0 0
        %5300 = vmatprep.subr.bf16.mxu0 0
        %5301 = vmatpush2.bf16.msra.mxu0 0
        %5302 = vmatprep.subr.bf16.mxu0 0
        %5303 = vmatpush2.bf16.msra.mxu0 0
        %5304 = vmatprep.subr.bf16.mxu0 0
        %5305 = vmatpush2.bf16.msra.mxu0 0
        %5306 = vmatprep.subr.bf16.mxu0 0
        %5307 = vmatpush2.bf16.msra.mxu0 0
        %5308 = vmatprep.subr.bf16.mxu0 0
        %5309 = vmatpush2.bf16.msra.mxu0 0
        %5310 = vmatprep.mubr.bf16.mxu0 0
        %5311 = vmatmul.mubr.bf16.gmra.mxu0 %v4149
        %v5312 = vpop.f32.mrf.mxu0
        %v5313 = vadd.f32 %v4276, %v5312
        %v5314 = vpop.f32.mrf.mxu0
        %v5315 = vadd.f32 %v4280, %v5314
        %v5316 = vpop.f32.mrf.mxu0
        %v5317 = vadd.f32 %v4276, %v5316
        %v5318 = vpop.f32.mrf.mxu0
        %v5319 = vadd.f32 %v4280, %v5318
        %5320 = vmatprep.mubr.bf16.mxu0 0
        %5321 = vmatmul.mubr.bf16.gmra.mxu0 %v4150
        %v5322 = vpop.f32.mrf.mxu0
        %v5323 = vadd.f32 %v4276, %v5322
        %v5324 = vpop.f32.mrf.mxu0
        %v5325 = vadd.f32 %v4280, %v5324
        %v5326 = vpop.f32.mrf.mxu0
        %v5327 = vadd.f32 %v4276, %v5326
        %v5328 = vpop.f32.mrf.mxu0
        %v5329 = vadd.f32 %v4280, %v5328
        %5330 = vmatprep.mubr.bf16.mxu0 0
        %5331 = vmatmul.mubr.bf16.gmra.mxu0 %v4151
        %v5332 = vpop.f32.mrf.mxu0
        %v5333 = vadd.f32 %v4276, %v5332
        %v5334 = vpop.f32.mrf.mxu0
        %v5335 = vadd.f32 %v4280, %v5334
        %v5336 = vpop.f32.mrf.mxu0
        %v5337 = vadd.f32 %v4276, %v5336
        %v5338 = vpop.f32.mrf.mxu0
        %v5339 = vadd.f32 %v4280, %v5338
        %5340 = vmatprep.mubr.bf16.mxu0 0
        %5341 = vmatmul.mubr.bf16.gmra.mxu0 %v4152
        %v5342 = vpop.f32.mrf.mxu0
        %v5343 = vadd.f32 %v4276, %v5342
        %v5344 = vpop.f32.mrf.mxu0
        %v5345 = vadd.f32 %v4280, %v5344
        %v5346 = vpop.f32.mrf.mxu0
        %v5347 = vadd.f32 %v4276, %v5346
        %v5348 = vpop.f32.mrf.mxu0
        %v5349 = vadd.f32 %v4280, %v5348
        %5350 = vmatprep.mubr.bf16.mxu0 0
        %5351 = vmatmul.mubr.bf16.gmra.mxu0 %v4153
        %v5352 = vpop.f32.mrf.mxu0
        %v5353 = vadd.f32 %v4276, %v5352
        %v5354 = vpop.f32.mrf.mxu0
        %v5355 = vadd.f32 %v4280, %v5354
        %v5356 = vpop.f32.mrf.mxu0
        %v5357 = vadd.f32 %v4276, %v5356
        %v5358 = vpop.f32.mrf.mxu0
        %v5359 = vadd.f32 %v4280, %v5358
        %5360 = vmatprep.mubr.bf16.mxu0 0
        %5361 = vmatmul.mubr.bf16.gmra.mxu0 %v4154
        %v5362 = vpop.f32.mrf.mxu0
        %v5363 = vadd.f32 %v4276, %v5362
        %v5364 = vpop.f32.mrf.mxu0
        %v5365 = vadd.f32 %v4280, %v5364
        %v5366 = vpop.f32.mrf.mxu0
        %v5367 = vadd.f32 %v4276, %v5366
        %v5368 = vpop.f32.mrf.mxu0
        %v5369 = vadd.f32 %v4280, %v5368
        %5370 = vmatprep.mubr.bf16.mxu0 0
        %5371 = vmatmul.mubr.bf16.gmra.mxu0 %v4155
        %v5372 = vpop.f32.mrf.mxu0
        %v5373 = vadd.f32 %v4276, %v5372
        %v5374 = vpop.f32.mrf.mxu0
        %v5375 = vadd.f32 %v4280, %v5374
        %v5376 = vpop.f32.mrf.mxu0
        %v5377 = vadd.f32 %v4276, %v5376
        %v5378 = vpop.f32.mrf.mxu0
        %v5379 = vadd.f32 %v4280, %v5378
        %5380 = vmatprep.mubr.bf16.mxu0 0
        %5381 = vmatmul.mubr.bf16.gmra.mxu0 %v4156
        %v5382 = vpop.f32.mrf.mxu0
        %v5383 = vadd.f32 %v4276, %v5382
        %v5384 = vpop.f32.mrf.mxu0
        %v5385 = vadd.f32 %v4280, %v5384
        %v5386 = vpop.f32.mrf.mxu0
        %v5387 = vadd.f32 %v4276, %v5386
        %v5388 = vpop.f32.mrf.mxu0
        %v5389 = vadd.f32 %v4280, %v5388
        %5390 = vmatprep.mubr.bf16.mxu0 0
        %5391 = vmatmul.mubr.bf16.gmra.mxu0 %v4157
        %v5392 = vpop.f32.mrf.mxu0
        %v5393 = vadd.f32 %v4276, %v5392
        %v5394 = vpop.f32.mrf.mxu0
        %v5395 = vadd.f32 %v4280, %v5394
        %v5396 = vpop.f32.mrf.mxu0
        %v5397 = vadd.f32 %v4276, %v5396
        %v5398 = vpop.f32.mrf.mxu0
        %v5399 = vadd.f32 %v4280, %v5398
        %5400 = vmatprep.mubr.bf16.mxu0 0
        %5401 = vmatmul.mubr.bf16.gmra.mxu0 %v4158
        %v5402 = vpop.f32.mrf.mxu0
        %v5403 = vadd.f32 %v4276, %v5402
        %v5404 = vpop.f32.mrf.mxu0
        %v5405 = vadd.f32 %v4280, %v5404
        %v5406 = vpop.f32.mrf.mxu0
        %v5407 = vadd.f32 %v4276, %v5406
        %v5408 = vpop.f32.mrf.mxu0
        %v5409 = vadd.f32 %v4280, %v5408
        %5410 = vmatprep.mubr.bf16.mxu0 0
        %5411 = vmatmul.mubr.bf16.gmra.mxu0 %v4159
        %v5412 = vpop.f32.mrf.mxu0
        %v5413 = vadd.f32 %v4276, %v5412
        %v5414 = vpop.f32.mrf.mxu0
        %v5415 = vadd.f32 %v4280, %v5414
        %v5416 = vpop.f32.mrf.mxu0
        %v5417 = vadd.f32 %v4276, %v5416
        %v5418 = vpop.f32.mrf.mxu0
        %v5419 = vadd.f32 %v4280, %v5418
        %5420 = vmatprep.mubr.bf16.mxu0 0
        %5421 = vmatmul.mubr.bf16.gmra.mxu0 %v4160
        %v5422 = vpop.f32.mrf.mxu0
        %v5423 = vadd.f32 %v4276, %v5422
        %v5424 = vpop.f32.mrf.mxu0
        %v5425 = vadd.f32 %v4280, %v5424
        %v5426 = vpop.f32.mrf.mxu0
        %v5427 = vadd.f32 %v4276, %v5426
        %v5428 = vpop.f32.mrf.mxu0
        %v5429 = vadd.f32 %v4280, %v5428
        %5430 = vmatprep.mubr.bf16.mxu0 0
        %5431 = vmatmul.mubr.bf16.gmra.mxu0 %v4161
        %v5432 = vpop.f32.mrf.mxu0
        %v5433 = vadd.f32 %v4276, %v5432
        %v5434 = vpop.f32.mrf.mxu0
        %v5435 = vadd.f32 %v4280, %v5434
        %v5436 = vpop.f32.mrf.mxu0
        %v5437 = vadd.f32 %v4276, %v5436
        %v5438 = vpop.f32.mrf.mxu0
        %v5439 = vadd.f32 %v4280, %v5438
        %5440 = vmatprep.mubr.bf16.mxu0 0
        %5441 = vmatmul.mubr.bf16.gmra.mxu0 %v4162
        %v5442 = vpop.f32.mrf.mxu0
        %v5443 = vadd.f32 %v4276, %v5442
        %v5444 = vpop.f32.mrf.mxu0
        %v5445 = vadd.f32 %v4280, %v5444
        %v5446 = vpop.f32.mrf.mxu0
        %v5447 = vadd.f32 %v4276, %v5446
        %v5448 = vpop.f32.mrf.mxu0
        %v5449 = vadd.f32 %v4280, %v5448
        %5450 = vmatprep.mubr.bf16.mxu0 0
        %5451 = vmatmul.mubr.bf16.gmra.mxu0 %v4163
        %v5452 = vpop.f32.mrf.mxu0
        %v5453 = vadd.f32 %v4276, %v5452
        %v5454 = vpop.f32.mrf.mxu0
        %v5455 = vadd.f32 %v4280, %v5454
        %v5456 = vpop.f32.mrf.mxu0
        %v5457 = vadd.f32 %v4276, %v5456
        %v5458 = vpop.f32.mrf.mxu0
        %v5459 = vadd.f32 %v4280, %v5458
        %5460 = vmatprep.mubr.bf16.mxu0 0
        %5461 = vmatmul.mubr.bf16.gmra.mxu0 %v4164
        %v5462 = vpop.f32.mrf.mxu0
        %v5463 = vadd.f32 %v4276, %v5462
        %v5464 = vpop.f32.mrf.mxu0
        %v5465 = vadd.f32 %v4280, %v5464
        %v5466 = vpop.f32.mrf.mxu0
        %v5467 = vadd.f32 %v4276, %v5466
        %v5468 = vpop.f32.mrf.mxu0
        %v5469 = vadd.f32 %v4280, %v5468
        %5470 = vdwg.mxu0
        %5471 = vmatprep.subr.bf16.mxu0 %v4618
        %5472 = vmatpush1.bf16.msra.mxu0 %v4617
        %5473 = vmatprep.subr.bf16.mxu0 %v4608
        %5474 = vmatpush1.bf16.msra.mxu0 %v4607
        %5475 = vmatprep.subr.bf16.mxu0 %v4598
        %5476 = vmatpush1.bf16.msra.mxu0 %v4597
        %5477 = vmatprep.subr.bf16.mxu0 %v4588
        %5478 = vmatpush1.bf16.msra.mxu0 %v4587
        %5479 = vmatprep.subr.bf16.mxu0 %v4578
        %5480 = vmatpush1.bf16.msra.mxu0 %v4577
        %5481 = vmatprep.subr.bf16.mxu0 %v4568
        %5482 = vmatpush1.bf16.msra.mxu0 %v4567
        %5483 = vmatprep.subr.bf16.mxu0 %v4558
        %5484 = vmatpush1.bf16.msra.mxu0 %v4557
        %5485 = vmatprep.subr.bf16.mxu0 %v4548
        %5486 = vmatpush1.bf16.msra.mxu0 %v4547
        %5487 = vmatprep.subr.bf16.mxu0 0
        %5488 = vmatpush2.bf16.msra.mxu0 0
        %5489 = vmatprep.subr.bf16.mxu0 0
        %5490 = vmatpush2.bf16.msra.mxu0 0
        %5491 = vmatprep.subr.bf16.mxu0 0
        %5492 = vmatpush2.bf16.msra.mxu0 0
        %5493 = vmatprep.subr.bf16.mxu0 0
        %5494 = vmatpush2.bf16.msra.mxu0 0
        %5495 = vmatprep.subr.bf16.mxu0 0
        %5496 = vmatpush2.bf16.msra.mxu0 0
        %5497 = vmatprep.subr.bf16.mxu0 0
        %5498 = vmatpush2.bf16.msra.mxu0 0
        %5499 = vmatprep.subr.bf16.mxu0 0
        %5500 = vmatpush2.bf16.msra.mxu0 0
        %5501 = vmatprep.subr.bf16.mxu0 0
        %5502 = vmatpush2.bf16.msra.mxu0 0
        %5503 = vmatprep.mubr.bf16.mxu0 0
        %5504 = vmatmul.mubr.bf16.gmra.mxu0 %v4149
        %v5505 = vpop.f32.mrf.mxu0
        %v5506 = vadd.f32 %v4284, %v5505
        %v5507 = vpop.f32.mrf.mxu0
        %v5508 = vadd.f32 %v4288, %v5507
        %v5509 = vpop.f32.mrf.mxu0
        %v5510 = vadd.f32 %v4284, %v5509
        %v5511 = vpop.f32.mrf.mxu0
        %v5512 = vadd.f32 %v4288, %v5511
        %5513 = vmatprep.mubr.bf16.mxu0 0
        %5514 = vmatmul.mubr.bf16.gmra.mxu0 %v4150
        %v5515 = vpop.f32.mrf.mxu0
        %v5516 = vadd.f32 %v4284, %v5515
        %v5517 = vpop.f32.mrf.mxu0
        %v5518 = vadd.f32 %v4288, %v5517
        %v5519 = vpop.f32.mrf.mxu0
        %v5520 = vadd.f32 %v4284, %v5519
        %v5521 = vpop.f32.mrf.mxu0
        %v5522 = vadd.f32 %v4288, %v5521
        %5523 = vmatprep.mubr.bf16.mxu0 0
        %5524 = vmatmul.mubr.bf16.gmra.mxu0 %v4151
        %v5525 = vpop.f32.mrf.mxu0
        %v5526 = vadd.f32 %v4284, %v5525
        %v5527 = vpop.f32.mrf.mxu0
        %v5528 = vadd.f32 %v4288, %v5527
        %v5529 = vpop.f32.mrf.mxu0
        %v5530 = vadd.f32 %v4284, %v5529
        %v5531 = vpop.f32.mrf.mxu0
        %v5532 = vadd.f32 %v4288, %v5531
        %5533 = vmatprep.mubr.bf16.mxu0 0
        %5534 = vmatmul.mubr.bf16.gmra.mxu0 %v4152
        %v5535 = vpop.f32.mrf.mxu0
        %v5536 = vadd.f32 %v4284, %v5535
        %v5537 = vpop.f32.mrf.mxu0
        %v5538 = vadd.f32 %v4288, %v5537
        %v5539 = vpop.f32.mrf.mxu0
        %v5540 = vadd.f32 %v4284, %v5539
        %v5541 = vpop.f32.mrf.mxu0
        %v5542 = vadd.f32 %v4288, %v5541
        %5543 = vmatprep.mubr.bf16.mxu0 0
        %5544 = vmatmul.mubr.bf16.gmra.mxu0 %v4153
        %v5545 = vpop.f32.mrf.mxu0
        %v5546 = vadd.f32 %v4284, %v5545
        %v5547 = vpop.f32.mrf.mxu0
        %v5548 = vadd.f32 %v4288, %v5547
        %v5549 = vpop.f32.mrf.mxu0
        %v5550 = vadd.f32 %v4284, %v5549
        %v5551 = vpop.f32.mrf.mxu0
        %v5552 = vadd.f32 %v4288, %v5551
        %5553 = vmatprep.mubr.bf16.mxu0 0
        %5554 = vmatmul.mubr.bf16.gmra.mxu0 %v4154
        %v5555 = vpop.f32.mrf.mxu0
        %v5556 = vadd.f32 %v4284, %v5555
        %v5557 = vpop.f32.mrf.mxu0
        %v5558 = vadd.f32 %v4288, %v5557
        %v5559 = vpop.f32.mrf.mxu0
        %v5560 = vadd.f32 %v4284, %v5559
        %v5561 = vpop.f32.mrf.mxu0
        %v5562 = vadd.f32 %v4288, %v5561
        %5563 = vmatprep.mubr.bf16.mxu0 0
        %5564 = vmatmul.mubr.bf16.gmra.mxu0 %v4155
        %v5565 = vpop.f32.mrf.mxu0
        %v5566 = vadd.f32 %v4284, %v5565
        %v5567 = vpop.f32.mrf.mxu0
        %v5568 = vadd.f32 %v4288, %v5567
        %v5569 = vpop.f32.mrf.mxu0
        %v5570 = vadd.f32 %v4284, %v5569
        %v5571 = vpop.f32.mrf.mxu0
        %v5572 = vadd.f32 %v4288, %v5571
        %5573 = vmatprep.mubr.bf16.mxu0 0
        %5574 = vmatmul.mubr.bf16.gmra.mxu0 %v4156
        %v5575 = vpop.f32.mrf.mxu0
        %v5576 = vadd.f32 %v4284, %v5575
        %v5577 = vpop.f32.mrf.mxu0
        %v5578 = vadd.f32 %v4288, %v5577
        %v5579 = vpop.f32.mrf.mxu0
        %v5580 = vadd.f32 %v4284, %v5579
        %v5581 = vpop.f32.mrf.mxu0
        %v5582 = vadd.f32 %v4288, %v5581
        %5583 = vmatprep.mubr.bf16.mxu0 0
        %5584 = vmatmul.mubr.bf16.gmra.mxu0 %v4157
        %v5585 = vpop.f32.mrf.mxu0
        %v5586 = vadd.f32 %v4284, %v5585
        %v5587 = vpop.f32.mrf.mxu0
        %v5588 = vadd.f32 %v4288, %v5587
        %v5589 = vpop.f32.mrf.mxu0
        %v5590 = vadd.f32 %v4284, %v5589
        %v5591 = vpop.f32.mrf.mxu0
        %v5592 = vadd.f32 %v4288, %v5591
        %5593 = vmatprep.mubr.bf16.mxu0 0
        %5594 = vmatmul.mubr.bf16.gmra.mxu0 %v4158
        %v5595 = vpop.f32.mrf.mxu0
        %v5596 = vadd.f32 %v4284, %v5595
        %v5597 = vpop.f32.mrf.mxu0
        %v5598 = vadd.f32 %v4288, %v5597
        %v5599 = vpop.f32.mrf.mxu0
        %v5600 = vadd.f32 %v4284, %v5599
        %v5601 = vpop.f32.mrf.mxu0
        %v5602 = vadd.f32 %v4288, %v5601
        %5603 = vmatprep.mubr.bf16.mxu0 0
        %5604 = vmatmul.mubr.bf16.gmra.mxu0 %v4159
        %v5605 = vpop.f32.mrf.mxu0
        %v5606 = vadd.f32 %v4284, %v5605
        %v5607 = vpop.f32.mrf.mxu0
        %v5608 = vadd.f32 %v4288, %v5607
        %v5609 = vpop.f32.mrf.mxu0
        %v5610 = vadd.f32 %v4284, %v5609
        %v5611 = vpop.f32.mrf.mxu0
        %v5612 = vadd.f32 %v4288, %v5611
        %5613 = vmatprep.mubr.bf16.mxu0 0
        %5614 = vmatmul.mubr.bf16.gmra.mxu0 %v4160
        %v5615 = vpop.f32.mrf.mxu0
        %v5616 = vadd.f32 %v4284, %v5615
        %v5617 = vpop.f32.mrf.mxu0
        %v5618 = vadd.f32 %v4288, %v5617
        %v5619 = vpop.f32.mrf.mxu0
        %v5620 = vadd.f32 %v4284, %v5619
        %v5621 = vpop.f32.mrf.mxu0
        %v5622 = vadd.f32 %v4288, %v5621
        %5623 = vmatprep.mubr.bf16.mxu0 0
        %5624 = vmatmul.mubr.bf16.gmra.mxu0 %v4161
        %v5625 = vpop.f32.mrf.mxu0
        %v5626 = vadd.f32 %v4284, %v5625
        %v5627 = vpop.f32.mrf.mxu0
        %v5628 = vadd.f32 %v4288, %v5627
        %v5629 = vpop.f32.mrf.mxu0
        %v5630 = vadd.f32 %v4284, %v5629
        %v5631 = vpop.f32.mrf.mxu0
        %v5632 = vadd.f32 %v4288, %v5631
        %5633 = vmatprep.mubr.bf16.mxu0 0
        %5634 = vmatmul.mubr.bf16.gmra.mxu0 %v4162
        %v5635 = vpop.f32.mrf.mxu0
        %v5636 = vadd.f32 %v4284, %v5635
        %v5637 = vpop.f32.mrf.mxu0
        %v5638 = vadd.f32 %v4288, %v5637
        %v5639 = vpop.f32.mrf.mxu0
        %v5640 = vadd.f32 %v4284, %v5639
        %v5641 = vpop.f32.mrf.mxu0
        %v5642 = vadd.f32 %v4288, %v5641
        %5643 = vmatprep.mubr.bf16.mxu0 0
        %5644 = vmatmul.mubr.bf16.gmra.mxu0 %v4163
        %v5645 = vpop.f32.mrf.mxu0
        %v5646 = vadd.f32 %v4284, %v5645
        %v5647 = vpop.f32.mrf.mxu0
        %v5648 = vadd.f32 %v4288, %v5647
        %v5649 = vpop.f32.mrf.mxu0
        %v5650 = vadd.f32 %v4284, %v5649
        %v5651 = vpop.f32.mrf.mxu0
        %v5652 = vadd.f32 %v4288, %v5651
        %5653 = vmatprep.mubr.bf16.mxu0 0
        %5654 = vmatmul.mubr.bf16.gmra.mxu0 %v4164
        %v5655 = vpop.f32.mrf.mxu0
        %v5656 = vadd.f32 %v4284, %v5655
        %v5657 = vpop.f32.mrf.mxu0
        %v5658 = vadd.f32 %v4288, %v5657
        %v5659 = vpop.f32.mrf.mxu0
        %v5660 = vadd.f32 %v4284, %v5659
        %v5661 = vpop.f32.mrf.mxu0
        %v5662 = vadd.f32 %v4288, %v5661
        %5663 = vdwg.mxu0
        %v5664 = vmax.f32 %v3219, 0.0
        %v5665 = vmax.f32 %v3221, 0.0
        %v5666 = vmax.f32 %v3412, 0.0
        %v5667 = vmax.f32 %v3414, 0.0
        %v5668 = vmax.f32 %v3605, 0.0
        %v5669 = vmax.f32 %v3607, 0.0
        %v5670 = vmax.f32 %v3798, 0.0
        %v5671 = vmax.f32 %v3800, 0.0
        %v5672 = vmax.f32 %v3991, 0.0
        %v5673 = vmax.f32 %v3993, 0.0
        %v5674 = vmax.f32 %v3223, 0.0
        %v5675 = vmax.f32 %v3225, 0.0
        %v5676 = vmax.f32 %v3416, 0.0
        %v5677 = vmax.f32 %v3418, 0.0
        %v5678 = vmax.f32 %v3609, 0.0
        %v5679 = vmax.f32 %v3611, 0.0
        %v5680 = vmax.f32 %v3802, 0.0
        %v5681 = vmax.f32 %v3804, 0.0
        %v5682 = vmax.f32 %v3995, 0.0
        %v5683 = vmax.f32 %v3997, 0.0
        %v5684 = vmax.f32 %v3229, 0.0
        %v5685 = vmax.f32 %v3231, 0.0
        %v5686 = vmax.f32 %v3422, 0.0
        %v5687 = vmax.f32 %v3424, 0.0
        %v5688 = vmax.f32 %v3615, 0.0
        %v5689 = vmax.f32 %v3617, 0.0
        %v5690 = vmax.f32 %v3808, 0.0
        %v5691 = vmax.f32 %v3810, 0.0
        %v5692 = vmax.f32 %v4001, 0.0
        %v5693 = vmax.f32 %v4003, 0.0
        %v5694 = vmax.f32 %v3233, 0.0
        %v5695 = vmax.f32 %v3235, 0.0
        %v5696 = vmax.f32 %v3426, 0.0
        %v5697 = vmax.f32 %v3428, 0.0
        %v5698 = vmax.f32 %v3619, 0.0
        %v5699 = vmax.f32 %v3621, 0.0
        %v5700 = vmax.f32 %v3812, 0.0
        %v5701 = vmax.f32 %v3814, 0.0
        %v5702 = vmax.f32 %v4005, 0.0
        %v5703 = vmax.f32 %v4007, 0.0
        %v5704 = vmax.f32 %v3239, 0.0
        %v5705 = vmax.f32 %v3241, 0.0
        %v5706 = vmax.f32 %v3432, 0.0
        %v5707 = vmax.f32 %v3434, 0.0
        %v5708 = vmax.f32 %v3625, 0.0
        %v5709 = vmax.f32 %v3627, 0.0
        %v5710 = vmax.f32 %v3818, 0.0
        %v5711 = vmax.f32 %v3820, 0.0
        %v5712 = vmax.f32 %v4011, 0.0
        %v5713 = vmax.f32 %v4013, 0.0
        %v5714 = vmax.f32 %v3243, 0.0
        %v5715 = vmax.f32 %v3245, 0.0
        %v5716 = vmax.f32 %v3436, 0.0
        %v5717 = vmax.f32 %v3438, 0.0
        %v5718 = vmax.f32 %v3629, 0.0
        %v5719 = vmax.f32 %v3631, 0.0
        %v5720 = vmax.f32 %v3822, 0.0
        %v5721 = vmax.f32 %v3824, 0.0
        %v5722 = vmax.f32 %v4015, 0.0
        %v5723 = vmax.f32 %v4017, 0.0
        %v5724 = vmax.f32 %v3249, 0.0
        %v5725 = vmax.f32 %v3251, 0.0
        %v5726 = vmax.f32 %v3442, 0.0
        %v5727 = vmax.f32 %v3444, 0.0
        %v5728 = vmax.f32 %v3635, 0.0
        %v5729 = vmax.f32 %v3637, 0.0
        %v5730 = vmax.f32 %v3828, 0.0
        %v5731 = vmax.f32 %v3830, 0.0
        %v5732 = vmax.f32 %v4021, 0.0
        %v5733 = vmax.f32 %v4023, 0.0
        %v5734 = vmax.f32 %v3253, 0.0
        %v5735 = vmax.f32 %v3255, 0.0
        %v5736 = vmax.f32 %v3446, 0.0
        %v5737 = vmax.f32 %v3448, 0.0
        %v5738 = vmax.f32 %v3639, 0.0
        %v5739 = vmax.f32 %v3641, 0.0
        %v5740 = vmax.f32 %v3832, 0.0
        %v5741 = vmax.f32 %v3834, 0.0
        %v5742 = vmax.f32 %v4025, 0.0
        %v5743 = vmax.f32 %v4027, 0.0
        %v5744 = vmax.f32 %v3259, 0.0
        %v5745 = vmax.f32 %v3261, 0.0
        %v5746 = vmax.f32 %v3452, 0.0
        %v5747 = vmax.f32 %v3454, 0.0
        %v5748 = vmax.f32 %v3645, 0.0
        %v5749 = vmax.f32 %v3647, 0.0
        %v5750 = vmax.f32 %v3838, 0.0
        %v5751 = vmax.f32 %v3840, 0.0
        %v5752 = vmax.f32 %v4031, 0.0
        %v5753 = vmax.f32 %v4033, 0.0
        %v5754 = vmax.f32 %v3263, 0.0
        %v5755 = vmax.f32 %v3265, 0.0
        %v5756 = vmax.f32 %v3456, 0.0
        %v5757 = vmax.f32 %v3458, 0.0
        %v5758 = vmax.f32 %v3649, 0.0
        %v5759 = vmax.f32 %v3651, 0.0
        %v5760 = vmax.f32 %v3842, 0.0
        %v5761 = vmax.f32 %v3844, 0.0
        %v5762 = vmax.f32 %v4035, 0.0
        %v5763 = vmax.f32 %v4037, 0.0
        %v5764 = vmax.f32 %v3269, 0.0
        %v5765 = vmax.f32 %v3271, 0.0
        %v5766 = vmax.f32 %v3462, 0.0
        %v5767 = vmax.f32 %v3464, 0.0
        %v5768 = vmax.f32 %v3655, 0.0
        %v5769 = vmax.f32 %v3657, 0.0
        %v5770 = vmax.f32 %v3848, 0.0
        %v5771 = vmax.f32 %v3850, 0.0
        %v5772 = vmax.f32 %v4041, 0.0
        %v5773 = vmax.f32 %v4043, 0.0
        %v5774 = vmax.f32 %v3273, 0.0
        %v5775 = vmax.f32 %v3275, 0.0
        %v5776 = vmax.f32 %v3466, 0.0
        %v5777 = vmax.f32 %v3468, 0.0
        %v5778 = vmax.f32 %v3659, 0.0
        %v5779 = vmax.f32 %v3661, 0.0
        %v5780 = vmax.f32 %v3852, 0.0
        %v5781 = vmax.f32 %v3854, 0.0
        %v5782 = vmax.f32 %v4045, 0.0
        %v5783 = vmax.f32 %v4047, 0.0
        %v5784 = vmax.f32 %v3279, 0.0
        %v5785 = vmax.f32 %v3281, 0.0
        %v5786 = vmax.f32 %v3472, 0.0
        %v5787 = vmax.f32 %v3474, 0.0
        %v5788 = vmax.f32 %v3665, 0.0
        %v5789 = vmax.f32 %v3667, 0.0
        %v5790 = vmax.f32 %v3858, 0.0
        %v5791 = vmax.f32 %v3860, 0.0
        %v5792 = vmax.f32 %v4051, 0.0
        %v5793 = vmax.f32 %v4053, 0.0
        %v5794 = vmax.f32 %v3283, 0.0
        %v5795 = vmax.f32 %v3285, 0.0
        %v5796 = vmax.f32 %v3476, 0.0
        %v5797 = vmax.f32 %v3478, 0.0
        %v5798 = vmax.f32 %v3669, 0.0
        %v5799 = vmax.f32 %v3671, 0.0
        %v5800 = vmax.f32 %v3862, 0.0
        %v5801 = vmax.f32 %v3864, 0.0
        %v5802 = vmax.f32 %v4055, 0.0
        %v5803 = vmax.f32 %v4057, 0.0
        %v5804 = vmax.f32 %v3289, 0.0
        %v5805 = vmax.f32 %v3291, 0.0
        %v5806 = vmax.f32 %v3482, 0.0
        %v5807 = vmax.f32 %v3484, 0.0
        %v5808 = vmax.f32 %v3675, 0.0
        %v5809 = vmax.f32 %v3677, 0.0
        %v5810 = vmax.f32 %v3868, 0.0
        %v5811 = vmax.f32 %v3870, 0.0
        %v5812 = vmax.f32 %v4061, 0.0
        %v5813 = vmax.f32 %v4063, 0.0
        %v5814 = vmax.f32 %v3293, 0.0
        %v5815 = vmax.f32 %v3295, 0.0
        %v5816 = vmax.f32 %v3486, 0.0
        %v5817 = vmax.f32 %v3488, 0.0
        %v5818 = vmax.f32 %v3679, 0.0
        %v5819 = vmax.f32 %v3681, 0.0
        %v5820 = vmax.f32 %v3872, 0.0
        %v5821 = vmax.f32 %v3874, 0.0
        %v5822 = vmax.f32 %v4065, 0.0
        %v5823 = vmax.f32 %v4067, 0.0
        %v5824 = vmax.f32 %v3299, 0.0
        %v5825 = vmax.f32 %v3301, 0.0
        %v5826 = vmax.f32 %v3492, 0.0
        %v5827 = vmax.f32 %v3494, 0.0
        %v5828 = vmax.f32 %v3685, 0.0
        %v5829 = vmax.f32 %v3687, 0.0
        %v5830 = vmax.f32 %v3878, 0.0
        %v5831 = vmax.f32 %v3880, 0.0
        %v5832 = vmax.f32 %v4071, 0.0
        %v5833 = vmax.f32 %v4073, 0.0
        %v5834 = vmax.f32 %v3303, 0.0
        %v5835 = vmax.f32 %v3305, 0.0
        %v5836 = vmax.f32 %v3496, 0.0
        %v5837 = vmax.f32 %v3498, 0.0
        %v5838 = vmax.f32 %v3689, 0.0
        %v5839 = vmax.f32 %v3691, 0.0
        %v5840 = vmax.f32 %v3882, 0.0
        %v5841 = vmax.f32 %v3884, 0.0
        %v5842 = vmax.f32 %v4075, 0.0
        %v5843 = vmax.f32 %v4077, 0.0
        %v5844 = vmax.f32 %v3309, 0.0
        %v5845 = vmax.f32 %v3311, 0.0
        %v5846 = vmax.f32 %v3502, 0.0
        %v5847 = vmax.f32 %v3504, 0.0
        %v5848 = vmax.f32 %v3695, 0.0
        %v5849 = vmax.f32 %v3697, 0.0
        %v5850 = vmax.f32 %v3888, 0.0
        %v5851 = vmax.f32 %v3890, 0.0
        %v5852 = vmax.f32 %v4081, 0.0
        %v5853 = vmax.f32 %v4083, 0.0
        %v5854 = vmax.f32 %v3313, 0.0
        %v5855 = vmax.f32 %v3315, 0.0
        %v5856 = vmax.f32 %v3506, 0.0
        %v5857 = vmax.f32 %v3508, 0.0
        %v5858 = vmax.f32 %v3699, 0.0
        %v5859 = vmax.f32 %v3701, 0.0
        %v5860 = vmax.f32 %v3892, 0.0
        %v5861 = vmax.f32 %v3894, 0.0
        %v5862 = vmax.f32 %v4085, 0.0
        %v5863 = vmax.f32 %v4087, 0.0
        %v5864 = vmax.f32 %v3319, 0.0
        %v5865 = vmax.f32 %v3321, 0.0
        %v5866 = vmax.f32 %v3512, 0.0
        %v5867 = vmax.f32 %v3514, 0.0
        %v5868 = vmax.f32 %v3705, 0.0
        %v5869 = vmax.f32 %v3707, 0.0
        %v5870 = vmax.f32 %v3898, 0.0
        %v5871 = vmax.f32 %v3900, 0.0
        %v5872 = vmax.f32 %v4091, 0.0
        %v5873 = vmax.f32 %v4093, 0.0
        %v5874 = vmax.f32 %v3323, 0.0
        %v5875 = vmax.f32 %v3325, 0.0
        %v5876 = vmax.f32 %v3516, 0.0
        %v5877 = vmax.f32 %v3518, 0.0
        %v5878 = vmax.f32 %v3709, 0.0
        %v5879 = vmax.f32 %v3711, 0.0
        %v5880 = vmax.f32 %v3902, 0.0
        %v5881 = vmax.f32 %v3904, 0.0
        %v5882 = vmax.f32 %v4095, 0.0
        %v5883 = vmax.f32 %v4097, 0.0
        %v5884 = vmax.f32 %v3329, 0.0
        %v5885 = vmax.f32 %v3331, 0.0
        %v5886 = vmax.f32 %v3522, 0.0
        %v5887 = vmax.f32 %v3524, 0.0
        %v5888 = vmax.f32 %v3715, 0.0
        %v5889 = vmax.f32 %v3717, 0.0
        %v5890 = vmax.f32 %v3908, 0.0
        %v5891 = vmax.f32 %v3910, 0.0
        %v5892 = vmax.f32 %v4101, 0.0
        %v5893 = vmax.f32 %v4103, 0.0
        %v5894 = vmax.f32 %v3333, 0.0
        %v5895 = vmax.f32 %v3335, 0.0
        %v5896 = vmax.f32 %v3526, 0.0
        %v5897 = vmax.f32 %v3528, 0.0
        %v5898 = vmax.f32 %v3719, 0.0
        %v5899 = vmax.f32 %v3721, 0.0
        %v5900 = vmax.f32 %v3912, 0.0
        %v5901 = vmax.f32 %v3914, 0.0
        %v5902 = vmax.f32 %v4105, 0.0
        %v5903 = vmax.f32 %v4107, 0.0
        %v5904 = vmax.f32 %v3339, 0.0
        %v5905 = vmax.f32 %v3341, 0.0
        %v5906 = vmax.f32 %v3532, 0.0
        %v5907 = vmax.f32 %v3534, 0.0
        %v5908 = vmax.f32 %v3725, 0.0
        %v5909 = vmax.f32 %v3727, 0.0
        %v5910 = vmax.f32 %v3918, 0.0
        %v5911 = vmax.f32 %v3920, 0.0
        %v5912 = vmax.f32 %v4111, 0.0
        %v5913 = vmax.f32 %v4113, 0.0
        %v5914 = vmax.f32 %v3343, 0.0
        %v5915 = vmax.f32 %v3345, 0.0
        %v5916 = vmax.f32 %v3536, 0.0
        %v5917 = vmax.f32 %v3538, 0.0
        %v5918 = vmax.f32 %v3729, 0.0
        %v5919 = vmax.f32 %v3731, 0.0
        %v5920 = vmax.f32 %v3922, 0.0
        %v5921 = vmax.f32 %v3924, 0.0
        %v5922 = vmax.f32 %v4115, 0.0
        %v5923 = vmax.f32 %v4117, 0.0
        %v5924 = vmax.f32 %v3349, 0.0
        %v5925 = vmax.f32 %v3351, 0.0
        %v5926 = vmax.f32 %v3542, 0.0
        %v5927 = vmax.f32 %v3544, 0.0
        %v5928 = vmax.f32 %v3735, 0.0
        %v5929 = vmax.f32 %v3737, 0.0
        %v5930 = vmax.f32 %v3928, 0.0
        %v5931 = vmax.f32 %v3930, 0.0
        %v5932 = vmax.f32 %v4121, 0.0
        %v5933 = vmax.f32 %v4123, 0.0
        %v5934 = vmax.f32 %v3353, 0.0
        %v5935 = vmax.f32 %v3355, 0.0
        %v5936 = vmax.f32 %v3546, 0.0
        %v5937 = vmax.f32 %v3548, 0.0
        %v5938 = vmax.f32 %v3739, 0.0
        %v5939 = vmax.f32 %v3741, 0.0
        %v5940 = vmax.f32 %v3932, 0.0
        %v5941 = vmax.f32 %v3934, 0.0
        %v5942 = vmax.f32 %v4125, 0.0
        %v5943 = vmax.f32 %v4127, 0.0
        %v5944 = vmax.f32 %v3359, 0.0
        %v5945 = vmax.f32 %v3361, 0.0
        %v5946 = vmax.f32 %v3552, 0.0
        %v5947 = vmax.f32 %v3554, 0.0
        %v5948 = vmax.f32 %v3745, 0.0
        %v5949 = vmax.f32 %v3747, 0.0
        %v5950 = vmax.f32 %v3938, 0.0
        %v5951 = vmax.f32 %v3940, 0.0
        %v5952 = vmax.f32 %v4131, 0.0
        %v5953 = vmax.f32 %v4133, 0.0
        %v5954 = vmax.f32 %v3363, 0.0
        %v5955 = vmax.f32 %v3365, 0.0
        %v5956 = vmax.f32 %v3556, 0.0
        %v5957 = vmax.f32 %v3558, 0.0
        %v5958 = vmax.f32 %v3749, 0.0
        %v5959 = vmax.f32 %v3751, 0.0
        %v5960 = vmax.f32 %v3942, 0.0
        %v5961 = vmax.f32 %v3944, 0.0
        %v5962 = vmax.f32 %v4135, 0.0
        %v5963 = vmax.f32 %v4137, 0.0
        %v5964 = vmax.f32 %v3369, 0.0
        %v5965 = vmax.f32 %v3371, 0.0
        %v5966 = vmax.f32 %v3562, 0.0
        %v5967 = vmax.f32 %v3564, 0.0
        %v5968 = vmax.f32 %v3755, 0.0
        %v5969 = vmax.f32 %v3757, 0.0
        %v5970 = vmax.f32 %v3948, 0.0
        %v5971 = vmax.f32 %v3950, 0.0
        %v5972 = vmax.f32 %v4141, 0.0
        %v5973 = vmax.f32 %v4143, 0.0
        %v5974 = vmax.f32 %v3373, 0.0
        %v5975 = vmax.f32 %v3375, 0.0
        %v5976 = vmax.f32 %v3566, 0.0
        %v5977 = vmax.f32 %v3568, 0.0
        %v5978 = vmax.f32 %v3759, 0.0
        %v5979 = vmax.f32 %v3761, 0.0
        %v5980 = vmax.f32 %v3952, 0.0
        %v5981 = vmax.f32 %v3954, 0.0
        %v5982 = vmax.f32 %v4145, 0.0
        %v5983 = vmax.f32 %v4147, 0.0
        %v5984 = vmax.f32 %v4734, 0.0
        %v5985 = vmax.f32 %v4736, 0.0
        %v5986 = vmax.f32 %v4927, 0.0
        %v5987 = vmax.f32 %v4929, 0.0
        %v5988 = vmax.f32 %v5120, 0.0
        %v5989 = vmax.f32 %v5122, 0.0
        %v5990 = vmax.f32 %v5313, 0.0
        %v5991 = vmax.f32 %v5315, 0.0
        %v5992 = vmax.f32 %v5506, 0.0
        %v5993 = vmax.f32 %v5508, 0.0
        %v5994 = vmax.f32 %v4738, 0.0
        %v5995 = vmax.f32 %v4740, 0.0
        %v5996 = vmax.f32 %v4931, 0.0
        %v5997 = vmax.f32 %v4933, 0.0
        %v5998 = vmax.f32 %v5124, 0.0
        %v5999 = vmax.f32 %v5126, 0.0
        %v6000 = vmax.f32 %v5317, 0.0
        %v6001 = vmax.f32 %v5319, 0.0
        %v6002 = vmax.f32 %v5510, 0.0
        %v6003 = vmax.f32 %v5512, 0.0
        %v6004 = vmax.f32 %v4744, 0.0
        %v6005 = vmax.f32 %v4746, 0.0
        %v6006 = vmax.f32 %v4937, 0.0
        %v6007 = vmax.f32 %v4939, 0.0
        %v6008 = vmax.f32 %v5130, 0.0
        %v6009 = vmax.f32 %v5132, 0.0
        %v6010 = vmax.f32 %v5323, 0.0
        %v6011 = vmax.f32 %v5325, 0.0
        %v6012 = vmax.f32 %v5516, 0.0
        %v6013 = vmax.f32 %v5518, 0.0
        %v6014 = vmax.f32 %v4748, 0.0
        %v6015 = vmax.f32 %v4750, 0.0
        %v6016 = vmax.f32 %v4941, 0.0
        %v6017 = vmax.f32 %v4943, 0.0
        %v6018 = vmax.f32 %v5134, 0.0
        %v6019 = vmax.f32 %v5136, 0.0
        %v6020 = vmax.f32 %v5327, 0.0
        %v6021 = vmax.f32 %v5329, 0.0
        %v6022 = vmax.f32 %v5520, 0.0
        %v6023 = vmax.f32 %v5522, 0.0
        %v6024 = vmax.f32 %v4754, 0.0
        %v6025 = vmax.f32 %v4756, 0.0
        %v6026 = vmax.f32 %v4947, 0.0
        %v6027 = vmax.f32 %v4949, 0.0
        %v6028 = vmax.f32 %v5140, 0.0
        %v6029 = vmax.f32 %v5142, 0.0
        %v6030 = vmax.f32 %v5333, 0.0
        %v6031 = vmax.f32 %v5335, 0.0
        %v6032 = vmax.f32 %v5526, 0.0
        %v6033 = vmax.f32 %v5528, 0.0
        %v6034 = vmax.f32 %v4758, 0.0
        %v6035 = vmax.f32 %v4760, 0.0
        %v6036 = vmax.f32 %v4951, 0.0
        %v6037 = vmax.f32 %v4953, 0.0
        %v6038 = vmax.f32 %v5144, 0.0
        %v6039 = vmax.f32 %v5146, 0.0
        %v6040 = vmax.f32 %v5337, 0.0
        %v6041 = vmax.f32 %v5339, 0.0
        %v6042 = vmax.f32 %v5530, 0.0
        %v6043 = vmax.f32 %v5532, 0.0
        %v6044 = vmax.f32 %v4764, 0.0
        %v6045 = vmax.f32 %v4766, 0.0
        %v6046 = vmax.f32 %v4957, 0.0
        %v6047 = vmax.f32 %v4959, 0.0
        %v6048 = vmax.f32 %v5150, 0.0
        %v6049 = vmax.f32 %v5152, 0.0
        %v6050 = vmax.f32 %v5343, 0.0
        %v6051 = vmax.f32 %v5345, 0.0
        %v6052 = vmax.f32 %v5536, 0.0
        %v6053 = vmax.f32 %v5538, 0.0
        %v6054 = vmax.f32 %v4768, 0.0
        %v6055 = vmax.f32 %v4770, 0.0
        %v6056 = vmax.f32 %v4961, 0.0
        %v6057 = vmax.f32 %v4963, 0.0
        %v6058 = vmax.f32 %v5154, 0.0
        %v6059 = vmax.f32 %v5156, 0.0
        %v6060 = vmax.f32 %v5347, 0.0
        %v6061 = vmax.f32 %v5349, 0.0
        %v6062 = vmax.f32 %v5540, 0.0
        %v6063 = vmax.f32 %v5542, 0.0
        %v6064 = vmax.f32 %v4774, 0.0
        %v6065 = vmax.f32 %v4776, 0.0
        %v6066 = vmax.f32 %v4967, 0.0
        %v6067 = vmax.f32 %v4969, 0.0
        %v6068 = vmax.f32 %v5160, 0.0
        %v6069 = vmax.f32 %v5162, 0.0
        %v6070 = vmax.f32 %v5353, 0.0
        %v6071 = vmax.f32 %v5355, 0.0
        %v6072 = vmax.f32 %v5546, 0.0
        %v6073 = vmax.f32 %v5548, 0.0
        %v6074 = vmax.f32 %v4778, 0.0
        %v6075 = vmax.f32 %v4780, 0.0
        %v6076 = vmax.f32 %v4971, 0.0
        %v6077 = vmax.f32 %v4973, 0.0
        %v6078 = vmax.f32 %v5164, 0.0
        %v6079 = vmax.f32 %v5166, 0.0
        %v6080 = vmax.f32 %v5357, 0.0
        %v6081 = vmax.f32 %v5359, 0.0
        %v6082 = vmax.f32 %v5550, 0.0
        %v6083 = vmax.f32 %v5552, 0.0
        %v6084 = vmax.f32 %v4784, 0.0
        %v6085 = vmax.f32 %v4786, 0.0
        %v6086 = vmax.f32 %v4977, 0.0
        %v6087 = vmax.f32 %v4979, 0.0
        %v6088 = vmax.f32 %v5170, 0.0
        %v6089 = vmax.f32 %v5172, 0.0
        %v6090 = vmax.f32 %v5363, 0.0
        %v6091 = vmax.f32 %v5365, 0.0
        %v6092 = vmax.f32 %v5556, 0.0
        %v6093 = vmax.f32 %v5558, 0.0
        %v6094 = vmax.f32 %v4788, 0.0
        %v6095 = vmax.f32 %v4790, 0.0
        %v6096 = vmax.f32 %v4981, 0.0
        %v6097 = vmax.f32 %v4983, 0.0
        %v6098 = vmax.f32 %v5174, 0.0
        %v6099 = vmax.f32 %v5176, 0.0
        %v6100 = vmax.f32 %v5367, 0.0
        %v6101 = vmax.f32 %v5369, 0.0
        %v6102 = vmax.f32 %v5560, 0.0
        %v6103 = vmax.f32 %v5562, 0.0
        %v6104 = vmax.f32 %v4794, 0.0
        %v6105 = vmax.f32 %v4796, 0.0
        %v6106 = vmax.f32 %v4987, 0.0
        %v6107 = vmax.f32 %v4989, 0.0
        %v6108 = vmax.f32 %v5180, 0.0
        %v6109 = vmax.f32 %v5182, 0.0
        %v6110 = vmax.f32 %v5373, 0.0
        %v6111 = vmax.f32 %v5375, 0.0
        %v6112 = vmax.f32 %v5566, 0.0
        %v6113 = vmax.f32 %v5568, 0.0
        %v6114 = vmax.f32 %v4798, 0.0
        %v6115 = vmax.f32 %v4800, 0.0
        %v6116 = vmax.f32 %v4991, 0.0
        %v6117 = vmax.f32 %v4993, 0.0
        %v6118 = vmax.f32 %v5184, 0.0
        %v6119 = vmax.f32 %v5186, 0.0
        %v6120 = vmax.f32 %v5377, 0.0
        %v6121 = vmax.f32 %v5379, 0.0
        %v6122 = vmax.f32 %v5570, 0.0
        %v6123 = vmax.f32 %v5572, 0.0
        %v6124 = vmax.f32 %v4804, 0.0
        %v6125 = vmax.f32 %v4806, 0.0
        %v6126 = vmax.f32 %v4997, 0.0
        %v6127 = vmax.f32 %v4999, 0.0
        %v6128 = vmax.f32 %v5190, 0.0
        %v6129 = vmax.f32 %v5192, 0.0
        %v6130 = vmax.f32 %v5383, 0.0
        %v6131 = vmax.f32 %v5385, 0.0
        %v6132 = vmax.f32 %v5576, 0.0
        %v6133 = vmax.f32 %v5578, 0.0
        %v6134 = vmax.f32 %v4808, 0.0
        %v6135 = vmax.f32 %v4810, 0.0
        %v6136 = vmax.f32 %v5001, 0.0
        %v6137 = vmax.f32 %v5003, 0.0
        %v6138 = vmax.f32 %v5194, 0.0
        %v6139 = vmax.f32 %v5196, 0.0
        %v6140 = vmax.f32 %v5387, 0.0
        %v6141 = vmax.f32 %v5389, 0.0
        %v6142 = vmax.f32 %v5580, 0.0
        %v6143 = vmax.f32 %v5582, 0.0
        %v6144 = vmax.f32 %v4814, 0.0
        %v6145 = vmax.f32 %v4816, 0.0
        %v6146 = vmax.f32 %v5007, 0.0
        %v6147 = vmax.f32 %v5009, 0.0
        %v6148 = vmax.f32 %v5200, 0.0
        %v6149 = vmax.f32 %v5202, 0.0
        %v6150 = vmax.f32 %v5393, 0.0
        %v6151 = vmax.f32 %v5395, 0.0
        %v6152 = vmax.f32 %v5586, 0.0
        %v6153 = vmax.f32 %v5588, 0.0
        %v6154 = vmax.f32 %v4818, 0.0
        %v6155 = vmax.f32 %v4820, 0.0
        %v6156 = vmax.f32 %v5011, 0.0
        %v6157 = vmax.f32 %v5013, 0.0
        %v6158 = vmax.f32 %v5204, 0.0
        %v6159 = vmax.f32 %v5206, 0.0
        %v6160 = vmax.f32 %v5397, 0.0
        %v6161 = vmax.f32 %v5399, 0.0
        %v6162 = vmax.f32 %v5590, 0.0
        %v6163 = vmax.f32 %v5592, 0.0
        %v6164 = vmax.f32 %v4824, 0.0
        %v6165 = vmax.f32 %v4826, 0.0
        %v6166 = vmax.f32 %v5017, 0.0
        %v6167 = vmax.f32 %v5019, 0.0
        %v6168 = vmax.f32 %v5210, 0.0
        %v6169 = vmax.f32 %v5212, 0.0
        %v6170 = vmax.f32 %v5403, 0.0
        %v6171 = vmax.f32 %v5405, 0.0
        %v6172 = vmax.f32 %v5596, 0.0
        %v6173 = vmax.f32 %v5598, 0.0
        %v6174 = vmax.f32 %v4828, 0.0
        %v6175 = vmax.f32 %v4830, 0.0
        %v6176 = vmax.f32 %v5021, 0.0
        %v6177 = vmax.f32 %v5023, 0.0
        %v6178 = vmax.f32 %v5214, 0.0
        %v6179 = vmax.f32 %v5216, 0.0
        %v6180 = vmax.f32 %v5407, 0.0
        %v6181 = vmax.f32 %v5409, 0.0
        %v6182 = vmax.f32 %v5600, 0.0
        %v6183 = vmax.f32 %v5602, 0.0
        %v6184 = vmax.f32 %v4834, 0.0
        %v6185 = vmax.f32 %v4836, 0.0
        %v6186 = vmax.f32 %v5027, 0.0
        %v6187 = vmax.f32 %v5029, 0.0
        %v6188 = vmax.f32 %v5220, 0.0
        %v6189 = vmax.f32 %v5222, 0.0
        %v6190 = vmax.f32 %v5413, 0.0
        %v6191 = vmax.f32 %v5415, 0.0
        %v6192 = vmax.f32 %v5606, 0.0
        %v6193 = vmax.f32 %v5608, 0.0
        %v6194 = vmax.f32 %v4838, 0.0
        %v6195 = vmax.f32 %v4840, 0.0
        %v6196 = vmax.f32 %v5031, 0.0
        %v6197 = vmax.f32 %v5033, 0.0
        %v6198 = vmax.f32 %v5224, 0.0
        %v6199 = vmax.f32 %v5226, 0.0
        %v6200 = vmax.f32 %v5417, 0.0
        %v6201 = vmax.f32 %v5419, 0.0
        %v6202 = vmax.f32 %v5610, 0.0
        %v6203 = vmax.f32 %v5612, 0.0
        %v6204 = vmax.f32 %v4844, 0.0
        %v6205 = vmax.f32 %v4846, 0.0
        %v6206 = vmax.f32 %v5037, 0.0
        %v6207 = vmax.f32 %v5039, 0.0
        %v6208 = vmax.f32 %v5230, 0.0
        %v6209 = vmax.f32 %v5232, 0.0
        %v6210 = vmax.f32 %v5423, 0.0
        %v6211 = vmax.f32 %v5425, 0.0
        %v6212 = vmax.f32 %v5616, 0.0
        %v6213 = vmax.f32 %v5618, 0.0
        %v6214 = vmax.f32 %v4848, 0.0
        %v6215 = vmax.f32 %v4850, 0.0
        %v6216 = vmax.f32 %v5041, 0.0
        %v6217 = vmax.f32 %v5043, 0.0
        %v6218 = vmax.f32 %v5234, 0.0
        %v6219 = vmax.f32 %v5236, 0.0
        %v6220 = vmax.f32 %v5427, 0.0
        %v6221 = vmax.f32 %v5429, 0.0
        %v6222 = vmax.f32 %v5620, 0.0
        %v6223 = vmax.f32 %v5622, 0.0
        %v6224 = vmax.f32 %v4854, 0.0
        %v6225 = vmax.f32 %v4856, 0.0
        %v6226 = vmax.f32 %v5047, 0.0
        %v6227 = vmax.f32 %v5049, 0.0
        %v6228 = vmax.f32 %v5240, 0.0
        %v6229 = vmax.f32 %v5242, 0.0
        %v6230 = vmax.f32 %v5433, 0.0
        %v6231 = vmax.f32 %v5435, 0.0
        %v6232 = vmax.f32 %v5626, 0.0
        %v6233 = vmax.f32 %v5628, 0.0
        %v6234 = vmax.f32 %v4858, 0.0
        %v6235 = vmax.f32 %v4860, 0.0
        %v6236 = vmax.f32 %v5051, 0.0
        %v6237 = vmax.f32 %v5053, 0.0
        %v6238 = vmax.f32 %v5244, 0.0
        %v6239 = vmax.f32 %v5246, 0.0
        %v6240 = vmax.f32 %v5437, 0.0
        %v6241 = vmax.f32 %v5439, 0.0
        %v6242 = vmax.f32 %v5630, 0.0
        %v6243 = vmax.f32 %v5632, 0.0
        %v6244 = vmax.f32 %v4864, 0.0
        %v6245 = vmax.f32 %v4866, 0.0
        %v6246 = vmax.f32 %v5057, 0.0
        %v6247 = vmax.f32 %v5059, 0.0
        %v6248 = vmax.f32 %v5250, 0.0
        %v6249 = vmax.f32 %v5252, 0.0
        %v6250 = vmax.f32 %v5443, 0.0
        %v6251 = vmax.f32 %v5445, 0.0
        %v6252 = vmax.f32 %v5636, 0.0
        %v6253 = vmax.f32 %v5638, 0.0
        %v6254 = vmax.f32 %v4868, 0.0
        %v6255 = vmax.f32 %v4870, 0.0
        %v6256 = vmax.f32 %v5061, 0.0
        %v6257 = vmax.f32 %v5063, 0.0
        %v6258 = vmax.f32 %v5254, 0.0
        %v6259 = vmax.f32 %v5256, 0.0
        %v6260 = vmax.f32 %v5447, 0.0
        %v6261 = vmax.f32 %v5449, 0.0
        %v6262 = vmax.f32 %v5640, 0.0
        %v6263 = vmax.f32 %v5642, 0.0
        %v6264 = vmax.f32 %v4874, 0.0
        %v6265 = vmax.f32 %v4876, 0.0
        %v6266 = vmax.f32 %v5067, 0.0
        %v6267 = vmax.f32 %v5069, 0.0
        %v6268 = vmax.f32 %v5260, 0.0
        %v6269 = vmax.f32 %v5262, 0.0
        %v6270 = vmax.f32 %v5453, 0.0
        %v6271 = vmax.f32 %v5455, 0.0
        %v6272 = vmax.f32 %v5646, 0.0
        %v6273 = vmax.f32 %v5648, 0.0
        %v6274 = vmax.f32 %v4878, 0.0
        %v6275 = vmax.f32 %v4880, 0.0
        %v6276 = vmax.f32 %v5071, 0.0
        %v6277 = vmax.f32 %v5073, 0.0
        %v6278 = vmax.f32 %v5264, 0.0
        %v6279 = vmax.f32 %v5266, 0.0
        %v6280 = vmax.f32 %v5457, 0.0
        %v6281 = vmax.f32 %v5459, 0.0
        %v6282 = vmax.f32 %v5650, 0.0
        %v6283 = vmax.f32 %v5652, 0.0
        %v6284 = vmax.f32 %v4884, 0.0
        %v6285 = vmax.f32 %v4886, 0.0
        %v6286 = vmax.f32 %v5077, 0.0
        %v6287 = vmax.f32 %v5079, 0.0
        %v6288 = vmax.f32 %v5270, 0.0
        %v6289 = vmax.f32 %v5272, 0.0
        %v6290 = vmax.f32 %v5463, 0.0
        %v6291 = vmax.f32 %v5465, 0.0
        %v6292 = vmax.f32 %v5656, 0.0
        %v6293 = vmax.f32 %v5658, 0.0
        %v6294 = vmax.f32 %v4888, 0.0
        %v6295 = vmax.f32 %v4890, 0.0
        %v6296 = vmax.f32 %v5081, 0.0
        %v6297 = vmax.f32 %v5083, 0.0
        %v6298 = vmax.f32 %v5274, 0.0
        %v6299 = vmax.f32 %v5276, 0.0
        %v6300 = vmax.f32 %v5467, 0.0
        %v6301 = vmax.f32 %v5469, 0.0
        %v6302 = vmax.f32 %v5660, 0.0
        %v6303 = vmax.f32 %v5662, 0.0
        %v6304 = vld [vmem:[#allocation2] sm:$0xff]
        %v6305 = vld [vmem:[#allocation2 + $0x8] sm:$0xff]
        %v6306 = vld [vmem:[#allocation2 + $0x10] sm:$0xff]
        %v6307 = vld [vmem:[#allocation2 + $0x18] sm:$0xff]
        %v6308 = vld [vmem:[#allocation2 + $0x20] sm:$0xff]
        %v6309 = vld [vmem:[#allocation2 + $0x28] sm:$0xff]
        %v6310 = vld [vmem:[#allocation2 + $0x30] sm:$0xff]
        %v6311 = vld [vmem:[#allocation2 + $0x38] sm:$0xff]
        %v6312 = vld [vmem:[#allocation2 + $0x40] sm:$0xff]
        %v6313 = vld [vmem:[#allocation2 + $0x48] sm:$0xff]
        %v6314 = vadd.f32 %v5664, %v5674
        %v6315 = vadd.f32 %v6314, %v5684
        %v6316 = vadd.f32 %v6315, %v5694
        %v6317 = vadd.f32 %v6316, %v5704
        %v6318 = vadd.f32 %v6317, %v5714
        %v6319 = vadd.f32 %v6318, %v5724
        %v6320 = vadd.f32 %v6319, %v5734
        %v6321 = vadd.f32 %v6320, %v5744
        %v6322 = vadd.f32 %v6321, %v5754
        %v6323 = vadd.f32 %v6322, %v5764
        %v6324 = vadd.f32 %v6323, %v5774
        %v6325 = vadd.f32 %v6324, %v5784
        %v6326 = vadd.f32 %v6325, %v5794
        %v6327 = vadd.f32 %v6326, %v5804
        %v6328 = vadd.f32 %v6327, %v5814
        %v6329 = vadd.f32 %v6328, %v5824
        %v6330 = vadd.f32 %v6329, %v5834
        %v6331 = vadd.f32 %v6330, %v5844
        %v6332 = vadd.f32 %v6331, %v5854
        %v6333 = vadd.f32 %v6332, %v5864
        %v6334 = vadd.f32 %v6333, %v5874
        %v6335 = vadd.f32 %v6334, %v5884
        %v6336 = vadd.f32 %v6335, %v5894
        %v6337 = vadd.f32 %v6336, %v5904
        %v6338 = vadd.f32 %v6337, %v5914
        %v6339 = vadd.f32 %v6338, %v5924
        %v6340 = vadd.f32 %v6339, %v5934
        %v6341 = vadd.f32 %v6340, %v5944
        %v6342 = vadd.f32 %v6341, %v5954
        %v6343 = vadd.f32 %v6342, %v5964
        %v6344 = vadd.f32 %v6343, %v5974
        %v6345 = vadd.f32 %v5665, %v5675
        %v6346 = vadd.f32 %v6345, %v5685
        %v6347 = vadd.f32 %v6346, %v5695
        %v6348 = vadd.f32 %v6347, %v5705
        %v6349 = vadd.f32 %v6348, %v5715
        %v6350 = vadd.f32 %v6349, %v5725
        %v6351 = vadd.f32 %v6350, %v5735
        %v6352 = vadd.f32 %v6351, %v5745
        %v6353 = vadd.f32 %v6352, %v5755
        %v6354 = vadd.f32 %v6353, %v5765
        %v6355 = vadd.f32 %v6354, %v5775
        %v6356 = vadd.f32 %v6355, %v5785
        %v6357 = vadd.f32 %v6356, %v5795
        %v6358 = vadd.f32 %v6357, %v5805
        %v6359 = vadd.f32 %v6358, %v5815
        %v6360 = vadd.f32 %v6359, %v5825
        %v6361 = vadd.f32 %v6360, %v5835
        %v6362 = vadd.f32 %v6361, %v5845
        %v6363 = vadd.f32 %v6362, %v5855
        %v6364 = vadd.f32 %v6363, %v5865
        %v6365 = vadd.f32 %v6364, %v5875
        %v6366 = vadd.f32 %v6365, %v5885
        %v6367 = vadd.f32 %v6366, %v5895
        %v6368 = vadd.f32 %v6367, %v5905
        %v6369 = vadd.f32 %v6368, %v5915
        %v6370 = vadd.f32 %v6369, %v5925
        %v6371 = vadd.f32 %v6370, %v5935
        %v6372 = vadd.f32 %v6371, %v5945
        %v6373 = vadd.f32 %v6372, %v5955
        %v6374 = vadd.f32 %v6373, %v5965
        %v6375 = vadd.f32 %v6374, %v5975
        %v6376 = vadd.f32 %v5666, %v5676
        %v6377 = vadd.f32 %v6376, %v5686
        %v6378 = vadd.f32 %v6377, %v5696
        %v6379 = vadd.f32 %v6378, %v5706
        %v6380 = vadd.f32 %v6379, %v5716
        %v6381 = vadd.f32 %v6380, %v5726
        %v6382 = vadd.f32 %v6381, %v5736
        %v6383 = vadd.f32 %v6382, %v5746
        %v6384 = vadd.f32 %v6383, %v5756
        %v6385 = vadd.f32 %v6384, %v5766
        %v6386 = vadd.f32 %v6385, %v5776
        %v6387 = vadd.f32 %v6386, %v5786
        %v6388 = vadd.f32 %v6387, %v5796
        %v6389 = vadd.f32 %v6388, %v5806
        %v6390 = vadd.f32 %v6389, %v5816
        %v6391 = vadd.f32 %v6390, %v5826
        %v6392 = vadd.f32 %v6391, %v5836
        %v6393 = vadd.f32 %v6392, %v5846
        %v6394 = vadd.f32 %v6393, %v5856
        %v6395 = vadd.f32 %v6394, %v5866
        %v6396 = vadd.f32 %v6395, %v5876
        %v6397 = vadd.f32 %v6396, %v5886
        %v6398 = vadd.f32 %v6397, %v5896
        %v6399 = vadd.f32 %v6398, %v5906
        %v6400 = vadd.f32 %v6399, %v5916
        %v6401 = vadd.f32 %v6400, %v5926
        %v6402 = vadd.f32 %v6401, %v5936
        %v6403 = vadd.f32 %v6402, %v5946
        %v6404 = vadd.f32 %v6403, %v5956
        %v6405 = vadd.f32 %v6404, %v5966
        %v6406 = vadd.f32 %v6405, %v5976
        %v6407 = vadd.f32 %v5667, %v5677
        %v6408 = vadd.f32 %v6407, %v5687
        %v6409 = vadd.f32 %v6408, %v5697
        %v6410 = vadd.f32 %v6409, %v5707
        %v6411 = vadd.f32 %v6410, %v5717
        %v6412 = vadd.f32 %v6411, %v5727
        %v6413 = vadd.f32 %v6412, %v5737
        %v6414 = vadd.f32 %v6413, %v5747
        %v6415 = vadd.f32 %v6414, %v5757
        %v6416 = vadd.f32 %v6415, %v5767
        %v6417 = vadd.f32 %v6416, %v5777
        %v6418 = vadd.f32 %v6417, %v5787
        %v6419 = vadd.f32 %v6418, %v5797
        %v6420 = vadd.f32 %v6419, %v5807
        %v6421 = vadd.f32 %v6420, %v5817
        %v6422 = vadd.f32 %v6421, %v5827
        %v6423 = vadd.f32 %v6422, %v5837
        %v6424 = vadd.f32 %v6423, %v5847
        %v6425 = vadd.f32 %v6424, %v5857
        %v6426 = vadd.f32 %v6425, %v5867
        %v6427 = vadd.f32 %v6426, %v5877
        %v6428 = vadd.f32 %v6427, %v5887
        %v6429 = vadd.f32 %v6428, %v5897
        %v6430 = vadd.f32 %v6429, %v5907
        %v6431 = vadd.f32 %v6430, %v5917
        %v6432 = vadd.f32 %v6431, %v5927
        %v6433 = vadd.f32 %v6432, %v5937
        %v6434 = vadd.f32 %v6433, %v5947
        %v6435 = vadd.f32 %v6434, %v5957
        %v6436 = vadd.f32 %v6435, %v5967
        %v6437 = vadd.f32 %v6436, %v5977
        %v6438 = vadd.f32 %v5668, %v5678
        %v6439 = vadd.f32 %v6438, %v5688
        %v6440 = vadd.f32 %v6439, %v5698
        %v6441 = vadd.f32 %v6440, %v5708
        %v6442 = vadd.f32 %v6441, %v5718
        %v6443 = vadd.f32 %v6442, %v5728
        %v6444 = vadd.f32 %v6443, %v5738
        %v6445 = vadd.f32 %v6444, %v5748
        %v6446 = vadd.f32 %v6445, %v5758
        %v6447 = vadd.f32 %v6446, %v5768
        %v6448 = vadd.f32 %v6447, %v5778
        %v6449 = vadd.f32 %v6448, %v5788
        %v6450 = vadd.f32 %v6449, %v5798
        %v6451 = vadd.f32 %v6450, %v5808
        %v6452 = vadd.f32 %v6451, %v5818
        %v6453 = vadd.f32 %v6452, %v5828
        %v6454 = vadd.f32 %v6453, %v5838
        %v6455 = vadd.f32 %v6454, %v5848
        %v6456 = vadd.f32 %v6455, %v5858
        %v6457 = vadd.f32 %v6456, %v5868
        %v6458 = vadd.f32 %v6457, %v5878
        %v6459 = vadd.f32 %v6458, %v5888
        %v6460 = vadd.f32 %v6459, %v5898
        %v6461 = vadd.f32 %v6460, %v5908
        %v6462 = vadd.f32 %v6461, %v5918
        %v6463 = vadd.f32 %v6462, %v5928
        %v6464 = vadd.f32 %v6463, %v5938
        %v6465 = vadd.f32 %v6464, %v5948
        %v6466 = vadd.f32 %v6465, %v5958
        %v6467 = vadd.f32 %v6466, %v5968
        %v6468 = vadd.f32 %v6467, %v5978
        %v6469 = vadd.f32 %v5669, %v5679
        %v6470 = vadd.f32 %v6469, %v5689
        %v6471 = vadd.f32 %v6470, %v5699
        %v6472 = vadd.f32 %v6471, %v5709
        %v6473 = vadd.f32 %v6472, %v5719
        %v6474 = vadd.f32 %v6473, %v5729
        %v6475 = vadd.f32 %v6474, %v5739
        %v6476 = vadd.f32 %v6475, %v5749
        %v6477 = vadd.f32 %v6476, %v5759
        %v6478 = vadd.f32 %v6477, %v5769
        %v6479 = vadd.f32 %v6478, %v5779
        %v6480 = vadd.f32 %v6479, %v5789
        %v6481 = vadd.f32 %v6480, %v5799
        %v6482 = vadd.f32 %v6481, %v5809
        %v6483 = vadd.f32 %v6482, %v5819
        %v6484 = vadd.f32 %v6483, %v5829
        %v6485 = vadd.f32 %v6484, %v5839
        %v6486 = vadd.f32 %v6485, %v5849
        %v6487 = vadd.f32 %v6486, %v5859
        %v6488 = vadd.f32 %v6487, %v5869
        %v6489 = vadd.f32 %v6488, %v5879
        %v6490 = vadd.f32 %v6489, %v5889
        %v6491 = vadd.f32 %v6490, %v5899
        %v6492 = vadd.f32 %v6491, %v5909
        %v6493 = vadd.f32 %v6492, %v5919
        %v6494 = vadd.f32 %v6493, %v5929
        %v6495 = vadd.f32 %v6494, %v5939
        %v6496 = vadd.f32 %v6495, %v5949
        %v6497 = vadd.f32 %v6496, %v5959
        %v6498 = vadd.f32 %v6497, %v5969
        %v6499 = vadd.f32 %v6498, %v5979
        %v6500 = vadd.f32 %v5670, %v5680
        %v6501 = vadd.f32 %v6500, %v5690
        %v6502 = vadd.f32 %v6501, %v5700
        %v6503 = vadd.f32 %v6502, %v5710
        %v6504 = vadd.f32 %v6503, %v5720
        %v6505 = vadd.f32 %v6504, %v5730
        %v6506 = vadd.f32 %v6505, %v5740
        %v6507 = vadd.f32 %v6506, %v5750
        %v6508 = vadd.f32 %v6507, %v5760
        %v6509 = vadd.f32 %v6508, %v5770
        %v6510 = vadd.f32 %v6509, %v5780
        %v6511 = vadd.f32 %v6510, %v5790
        %v6512 = vadd.f32 %v6511, %v5800
        %v6513 = vadd.f32 %v6512, %v5810
        %v6514 = vadd.f32 %v6513, %v5820
        %v6515 = vadd.f32 %v6514, %v5830
        %v6516 = vadd.f32 %v6515, %v5840
        %v6517 = vadd.f32 %v6516, %v5850
        %v6518 = vadd.f32 %v6517, %v5860
        %v6519 = vadd.f32 %v6518, %v5870
        %v6520 = vadd.f32 %v6519, %v5880
        %v6521 = vadd.f32 %v6520, %v5890
        %v6522 = vadd.f32 %v6521, %v5900
        %v6523 = vadd.f32 %v6522, %v5910
        %v6524 = vadd.f32 %v6523, %v5920
        %v6525 = vadd.f32 %v6524, %v5930
        %v6526 = vadd.f32 %v6525, %v5940
        %v6527 = vadd.f32 %v6526, %v5950
        %v6528 = vadd.f32 %v6527, %v5960
        %v6529 = vadd.f32 %v6528, %v5970
        %v6530 = vadd.f32 %v6529, %v5980
        %v6531 = vadd.f32 %v5671, %v5681
        %v6532 = vadd.f32 %v6531, %v5691
        %v6533 = vadd.f32 %v6532, %v5701
        %v6534 = vadd.f32 %v6533, %v5711
        %v6535 = vadd.f32 %v6534, %v5721
        %v6536 = vadd.f32 %v6535, %v5731
        %v6537 = vadd.f32 %v6536, %v5741
        %v6538 = vadd.f32 %v6537, %v5751
        %v6539 = vadd.f32 %v6538, %v5761
        %v6540 = vadd.f32 %v6539, %v5771
        %v6541 = vadd.f32 %v6540, %v5781
        %v6542 = vadd.f32 %v6541, %v5791
        %v6543 = vadd.f32 %v6542, %v5801
        %v6544 = vadd.f32 %v6543, %v5811
        %v6545 = vadd.f32 %v6544, %v5821
        %v6546 = vadd.f32 %v6545, %v5831
        %v6547 = vadd.f32 %v6546, %v5841
        %v6548 = vadd.f32 %v6547, %v5851
        %v6549 = vadd.f32 %v6548, %v5861
        %v6550 = vadd.f32 %v6549, %v5871
        %v6551 = vadd.f32 %v6550, %v5881
        %v6552 = vadd.f32 %v6551, %v5891
        %v6553 = vadd.f32 %v6552, %v5901
        %v6554 = vadd.f32 %v6553, %v5911
        %v6555 = vadd.f32 %v6554, %v5921
        %v6556 = vadd.f32 %v6555, %v5931
        %v6557 = vadd.f32 %v6556, %v5941
        %v6558 = vadd.f32 %v6557, %v5951
        %v6559 = vadd.f32 %v6558, %v5961
        %v6560 = vadd.f32 %v6559, %v5971
        %v6561 = vadd.f32 %v6560, %v5981
        %v6562 = vadd.f32 %v5672, %v5682
        %v6563 = vadd.f32 %v6562, %v5692
        %v6564 = vadd.f32 %v6563, %v5702
        %v6565 = vadd.f32 %v6564, %v5712
        %v6566 = vadd.f32 %v6565, %v5722
        %v6567 = vadd.f32 %v6566, %v5732
        %v6568 = vadd.f32 %v6567, %v5742
        %v6569 = vadd.f32 %v6568, %v5752
        %v6570 = vadd.f32 %v6569, %v5762
        %v6571 = vadd.f32 %v6570, %v5772
        %v6572 = vadd.f32 %v6571, %v5782
        %v6573 = vadd.f32 %v6572, %v5792
        %v6574 = vadd.f32 %v6573, %v5802
        %v6575 = vadd.f32 %v6574, %v5812
        %v6576 = vadd.f32 %v6575, %v5822
        %v6577 = vadd.f32 %v6576, %v5832
        %v6578 = vadd.f32 %v6577, %v5842
        %v6579 = vadd.f32 %v6578, %v5852
        %v6580 = vadd.f32 %v6579, %v5862
        %v6581 = vadd.f32 %v6580, %v5872
        %v6582 = vadd.f32 %v6581, %v5882
        %v6583 = vadd.f32 %v6582, %v5892
        %v6584 = vadd.f32 %v6583, %v5902
        %v6585 = vadd.f32 %v6584, %v5912
        %v6586 = vadd.f32 %v6585, %v5922
        %v6587 = vadd.f32 %v6586, %v5932
        %v6588 = vadd.f32 %v6587, %v5942
        %v6589 = vadd.f32 %v6588, %v5952
        %v6590 = vadd.f32 %v6589, %v5962
        %v6591 = vadd.f32 %v6590, %v5972
        %v6592 = vadd.f32 %v6591, %v5982
        %v6593 = vadd.f32 %v5673, %v5683
        %v6594 = vadd.f32 %v6593, %v5693
        %v6595 = vadd.f32 %v6594, %v5703
        %v6596 = vadd.f32 %v6595, %v5713
        %v6597 = vadd.f32 %v6596, %v5723
        %v6598 = vadd.f32 %v6597, %v5733
        %v6599 = vadd.f32 %v6598, %v5743
        %v6600 = vadd.f32 %v6599, %v5753
        %v6601 = vadd.f32 %v6600, %v5763
        %v6602 = vadd.f32 %v6601, %v5773
        %v6603 = vadd.f32 %v6602, %v5783
        %v6604 = vadd.f32 %v6603, %v5793
        %v6605 = vadd.f32 %v6604, %v5803
        %v6606 = vadd.f32 %v6605, %v5813
        %v6607 = vadd.f32 %v6606, %v5823
        %v6608 = vadd.f32 %v6607, %v5833
        %v6609 = vadd.f32 %v6608, %v5843
        %v6610 = vadd.f32 %v6609, %v5853
        %v6611 = vadd.f32 %v6610, %v5863
        %v6612 = vadd.f32 %v6611, %v5873
        %v6613 = vadd.f32 %v6612, %v5883
        %v6614 = vadd.f32 %v6613, %v5893
        %v6615 = vadd.f32 %v6614, %v5903
        %v6616 = vadd.f32 %v6615, %v5913
        %v6617 = vadd.f32 %v6616, %v5923
        %v6618 = vadd.f32 %v6617, %v5933
        %v6619 = vadd.f32 %v6618, %v5943
        %v6620 = vadd.f32 %v6619, %v5953
        %v6621 = vadd.f32 %v6620, %v5963
        %v6622 = vadd.f32 %v6621, %v5973
        %v6623 = vadd.f32 %v6622, %v5983
        %v6624 = vadd.f32 %v6304, %v6344
        %v6625 = vadd.f32 %v6305, %v6375
        %v6626 = vadd.f32 %v6306, %v6406
        %v6627 = vadd.f32 %v6307, %v6437
        %v6628 = vadd.f32 %v6308, %v6468
        %v6629 = vadd.f32 %v6309, %v6499
        %v6630 = vadd.f32 %v6310, %v6530
        %v6631 = vadd.f32 %v6311, %v6561
        %v6632 = vadd.f32 %v6312, %v6592
        %v6633 = vadd.f32 %v6313, %v6623
        %6634 = vst [vmem:[#allocation2] sm:$0xff] %v6624
        %6635 = vst [vmem:[#allocation2 + $0x8] sm:$0xff] %v6625
        %6636 = vst [vmem:[#allocation2 + $0x10] sm:$0xff] %v6626
        %6637 = vst [vmem:[#allocation2 + $0x18] sm:$0xff] %v6627
        %6638 = vst [vmem:[#allocation2 + $0x20] sm:$0xff] %v6628
        %6639 = vst [vmem:[#allocation2 + $0x28] sm:$0xff] %v6629
        %6640 = vst [vmem:[#allocation2 + $0x30] sm:$0xff] %v6630
        %6641 = vst [vmem:[#allocation2 + $0x38] sm:$0xff] %v6631
        %6642 = vst [vmem:[#allocation2 + $0x40] sm:$0xff] %v6632
        %6643 = vst [vmem:[#allocation2 + $0x48] sm:$0xff] %v6633
        %v6644 = vld [vmem:[#allocation3] sm:$0xff]
        %v6645 = vld [vmem:[#allocation3 + $0x8] sm:$0xff]
        %v6646 = vld [vmem:[#allocation3 + $0x10] sm:$0xff]
        %v6647 = vld [vmem:[#allocation3 + $0x18] sm:$0xff]
        %v6648 = vld [vmem:[#allocation3 + $0x20] sm:$0xff]
        %v6649 = vld [vmem:[#allocation3 + $0x28] sm:$0xff]
        %v6650 = vld [vmem:[#allocation3 + $0x30] sm:$0xff]
        %v6651 = vld [vmem:[#allocation3 + $0x38] sm:$0xff]
        %v6652 = vld [vmem:[#allocation3 + $0x40] sm:$0xff]
        %v6653 = vld [vmem:[#allocation3 + $0x48] sm:$0xff]
        %v6654 = vadd.f32 %v5984, %v5994
        %v6655 = vadd.f32 %v6654, %v6004
        %v6656 = vadd.f32 %v6655, %v6014
        %v6657 = vadd.f32 %v6656, %v6024
        %v6658 = vadd.f32 %v6657, %v6034
        %v6659 = vadd.f32 %v6658, %v6044
        %v6660 = vadd.f32 %v6659, %v6054
        %v6661 = vadd.f32 %v6660, %v6064
        %v6662 = vadd.f32 %v6661, %v6074
        %v6663 = vadd.f32 %v6662, %v6084
        %v6664 = vadd.f32 %v6663, %v6094
        %v6665 = vadd.f32 %v6664, %v6104
        %v6666 = vadd.f32 %v6665, %v6114
        %v6667 = vadd.f32 %v6666, %v6124
        %v6668 = vadd.f32 %v6667, %v6134
        %v6669 = vadd.f32 %v6668, %v6144
        %v6670 = vadd.f32 %v6669, %v6154
        %v6671 = vadd.f32 %v6670, %v6164
        %v6672 = vadd.f32 %v6671, %v6174
        %v6673 = vadd.f32 %v6672, %v6184
        %v6674 = vadd.f32 %v6673, %v6194
        %v6675 = vadd.f32 %v6674, %v6204
        %v6676 = vadd.f32 %v6675, %v6214
        %v6677 = vadd.f32 %v6676, %v6224
        %v6678 = vadd.f32 %v6677, %v6234
        %v6679 = vadd.f32 %v6678, %v6244
        %v6680 = vadd.f32 %v6679, %v6254
        %v6681 = vadd.f32 %v6680, %v6264
        %v6682 = vadd.f32 %v6681, %v6274
        %v6683 = vadd.f32 %v6682, %v6284
        %v6684 = vadd.f32 %v6683, %v6294
        %v6685 = vadd.f32 %v5985, %v5995
        %v6686 = vadd.f32 %v6685, %v6005
        %v6687 = vadd.f32 %v6686, %v6015
        %v6688 = vadd.f32 %v6687, %v6025
        %v6689 = vadd.f32 %v6688, %v6035
        %v6690 = vadd.f32 %v6689, %v6045
        %v6691 = vadd.f32 %v6690, %v6055
        %v6692 = vadd.f32 %v6691, %v6065
        %v6693 = vadd.f32 %v6692, %v6075
        %v6694 = vadd.f32 %v6693, %v6085
        %v6695 = vadd.f32 %v6694, %v6095
        %v6696 = vadd.f32 %v6695, %v6105
        %v6697 = vadd.f32 %v6696, %v6115
        %v6698 = vadd.f32 %v6697, %v6125
        %v6699 = vadd.f32 %v6698, %v6135
        %v6700 = vadd.f32 %v6699, %v6145
        %v6701 = vadd.f32 %v6700, %v6155
        %v6702 = vadd.f32 %v6701, %v6165
        %v6703 = vadd.f32 %v6702, %v6175
        %v6704 = vadd.f32 %v6703, %v6185
        %v6705 = vadd.f32 %v6704, %v6195
        %v6706 = vadd.f32 %v6705, %v6205
        %v6707 = vadd.f32 %v6706, %v6215
        %v6708 = vadd.f32 %v6707, %v6225
        %v6709 = vadd.f32 %v6708, %v6235
        %v6710 = vadd.f32 %v6709, %v6245
        %v6711 = vadd.f32 %v6710, %v6255
        %v6712 = vadd.f32 %v6711, %v6265
        %v6713 = vadd.f32 %v6712, %v6275
        %v6714 = vadd.f32 %v6713, %v6285
        %v6715 = vadd.f32 %v6714, %v6295
        %v6716 = vadd.f32 %v5986, %v5996
        %v6717 = vadd.f32 %v6716, %v6006
        %v6718 = vadd.f32 %v6717, %v6016
        %v6719 = vadd.f32 %v6718, %v6026
        %v6720 = vadd.f32 %v6719, %v6036
        %v6721 = vadd.f32 %v6720, %v6046
        %v6722 = vadd.f32 %v6721, %v6056
        %v6723 = vadd.f32 %v6722, %v6066
        %v6724 = vadd.f32 %v6723, %v6076
        %v6725 = vadd.f32 %v6724, %v6086
        %v6726 = vadd.f32 %v6725, %v6096
        %v6727 = vadd.f32 %v6726, %v6106
        %v6728 = vadd.f32 %v6727, %v6116
        %v6729 = vadd.f32 %v6728, %v6126
        %v6730 = vadd.f32 %v6729, %v6136
        %v6731 = vadd.f32 %v6730, %v6146
        %v6732 = vadd.f32 %v6731, %v6156
        %v6733 = vadd.f32 %v6732, %v6166
        %v6734 = vadd.f32 %v6733, %v6176
        %v6735 = vadd.f32 %v6734, %v6186
        %v6736 = vadd.f32 %v6735, %v6196
        %v6737 = vadd.f32 %v6736, %v6206
        %v6738 = vadd.f32 %v6737, %v6216
        %v6739 = vadd.f32 %v6738, %v6226
        %v6740 = vadd.f32 %v6739, %v6236
        %v6741 = vadd.f32 %v6740, %v6246
        %v6742 = vadd.f32 %v6741, %v6256
        %v6743 = vadd.f32 %v6742, %v6266
        %v6744 = vadd.f32 %v6743, %v6276
        %v6745 = vadd.f32 %v6744, %v6286
        %v6746 = vadd.f32 %v6745, %v6296
        %v6747 = vadd.f32 %v5987, %v5997
        %v6748 = vadd.f32 %v6747, %v6007
        %v6749 = vadd.f32 %v6748, %v6017
        %v6750 = vadd.f32 %v6749, %v6027
        %v6751 = vadd.f32 %v6750, %v6037
        %v6752 = vadd.f32 %v6751, %v6047
        %v6753 = vadd.f32 %v6752, %v6057
        %v6754 = vadd.f32 %v6753, %v6067
        %v6755 = vadd.f32 %v6754, %v6077
        %v6756 = vadd.f32 %v6755, %v6087
        %v6757 = vadd.f32 %v6756, %v6097
        %v6758 = vadd.f32 %v6757, %v6107
        %v6759 = vadd.f32 %v6758, %v6117
        %v6760 = vadd.f32 %v6759, %v6127
        %v6761 = vadd.f32 %v6760, %v6137
        %v6762 = vadd.f32 %v6761, %v6147
        %v6763 = vadd.f32 %v6762, %v6157
        %v6764 = vadd.f32 %v6763, %v6167
        %v6765 = vadd.f32 %v6764, %v6177
        %v6766 = vadd.f32 %v6765, %v6187
        %v6767 = vadd.f32 %v6766, %v6197
        %v6768 = vadd.f32 %v6767, %v6207
        %v6769 = vadd.f32 %v6768, %v6217
        %v6770 = vadd.f32 %v6769, %v6227
        %v6771 = vadd.f32 %v6770, %v6237
        %v6772 = vadd.f32 %v6771, %v6247
        %v6773 = vadd.f32 %v6772, %v6257
        %v6774 = vadd.f32 %v6773, %v6267
        %v6775 = vadd.f32 %v6774, %v6277
        %v6776 = vadd.f32 %v6775, %v6287
        %v6777 = vadd.f32 %v6776, %v6297
        %v6778 = vadd.f32 %v5988, %v5998
        %v6779 = vadd.f32 %v6778, %v6008
        %v6780 = vadd.f32 %v6779, %v6018
        %v6781 = vadd.f32 %v6780, %v6028
        %v6782 = vadd.f32 %v6781, %v6038
        %v6783 = vadd.f32 %v6782, %v6048
        %v6784 = vadd.f32 %v6783, %v6058
        %v6785 = vadd.f32 %v6784, %v6068
        %v6786 = vadd.f32 %v6785, %v6078
        %v6787 = vadd.f32 %v6786, %v6088
        %v6788 = vadd.f32 %v6787, %v6098
        %v6789 = vadd.f32 %v6788, %v6108
        %v6790 = vadd.f32 %v6789, %v6118
        %v6791 = vadd.f32 %v6790, %v6128
        %v6792 = vadd.f32 %v6791, %v6138
        %v6793 = vadd.f32 %v6792, %v6148
        %v6794 = vadd.f32 %v6793, %v6158
        %v6795 = vadd.f32 %v6794, %v6168
        %v6796 = vadd.f32 %v6795, %v6178
        %v6797 = vadd.f32 %v6796, %v6188
        %v6798 = vadd.f32 %v6797, %v6198
        %v6799 = vadd.f32 %v6798, %v6208
        %v6800 = vadd.f32 %v6799, %v6218
        %v6801 = vadd.f32 %v6800, %v6228
        %v6802 = vadd.f32 %v6801, %v6238
        %v6803 = vadd.f32 %v6802, %v6248
        %v6804 = vadd.f32 %v6803, %v6258
        %v6805 = vadd.f32 %v6804, %v6268
        %v6806 = vadd.f32 %v6805, %v6278
        %v6807 = vadd.f32 %v6806, %v6288
        %v6808 = vadd.f32 %v6807, %v6298
        %v6809 = vadd.f32 %v5989, %v5999
        %v6810 = vadd.f32 %v6809, %v6009
        %v6811 = vadd.f32 %v6810, %v6019
        %v6812 = vadd.f32 %v6811, %v6029
        %v6813 = vadd.f32 %v6812, %v6039
        %v6814 = vadd.f32 %v6813, %v6049
        %v6815 = vadd.f32 %v6814, %v6059
        %v6816 = vadd.f32 %v6815, %v6069
        %v6817 = vadd.f32 %v6816, %v6079
        %v6818 = vadd.f32 %v6817, %v6089
        %v6819 = vadd.f32 %v6818, %v6099
        %v6820 = vadd.f32 %v6819, %v6109
        %v6821 = vadd.f32 %v6820, %v6119
        %v6822 = vadd.f32 %v6821, %v6129
        %v6823 = vadd.f32 %v6822, %v6139
        %v6824 = vadd.f32 %v6823, %v6149
        %v6825 = vadd.f32 %v6824, %v6159
        %v6826 = vadd.f32 %v6825, %v6169
        %v6827 = vadd.f32 %v6826, %v6179
        %v6828 = vadd.f32 %v6827, %v6189
        %v6829 = vadd.f32 %v6828, %v6199
        %v6830 = vadd.f32 %v6829, %v6209
        %v6831 = vadd.f32 %v6830, %v6219
        %v6832 = vadd.f32 %v6831, %v6229
        %v6833 = vadd.f32 %v6832, %v6239
        %v6834 = vadd.f32 %v6833, %v6249
        %v6835 = vadd.f32 %v6834, %v6259
        %v6836 = vadd.f32 %v6835, %v6269
        %v6837 = vadd.f32 %v6836, %v6279
        %v6838 = vadd.f32 %v6837, %v6289
        %v6839 = vadd.f32 %v6838, %v6299
        %v6840 = vadd.f32 %v5990, %v6000
        %v6841 = vadd.f32 %v6840, %v6010
        %v6842 = vadd.f32 %v6841, %v6020
        %v6843 = vadd.f32 %v6842, %v6030
        %v6844 = vadd.f32 %v6843, %v6040
        %v6845 = vadd.f32 %v6844, %v6050
        %v6846 = vadd.f32 %v6845, %v6060
        %v6847 = vadd.f32 %v6846, %v6070
        %v6848 = vadd.f32 %v6847, %v6080
        %v6849 = vadd.f32 %v6848, %v6090
        %v6850 = vadd.f32 %v6849, %v6100
        %v6851 = vadd.f32 %v6850, %v6110
        %v6852 = vadd.f32 %v6851, %v6120
        %v6853 = vadd.f32 %v6852, %v6130
        %v6854 = vadd.f32 %v6853, %v6140
        %v6855 = vadd.f32 %v6854, %v6150
        %v6856 = vadd.f32 %v6855, %v6160
        %v6857 = vadd.f32 %v6856, %v6170
        %v6858 = vadd.f32 %v6857, %v6180
        %v6859 = vadd.f32 %v6858, %v6190
        %v6860 = vadd.f32 %v6859, %v6200
        %v6861 = vadd.f32 %v6860, %v6210
        %v6862 = vadd.f32 %v6861, %v6220
        %v6863 = vadd.f32 %v6862, %v6230
        %v6864 = vadd.f32 %v6863, %v6240
        %v6865 = vadd.f32 %v6864, %v6250
        %v6866 = vadd.f32 %v6865, %v6260
        %v6867 = vadd.f32 %v6866, %v6270
        %v6868 = vadd.f32 %v6867, %v6280
        %v6869 = vadd.f32 %v6868, %v6290
        %v6870 = vadd.f32 %v6869, %v6300
        %v6871 = vadd.f32 %v5991, %v6001
        %v6872 = vadd.f32 %v6871, %v6011
        %v6873 = vadd.f32 %v6872, %v6021
        %v6874 = vadd.f32 %v6873, %v6031
        %v6875 = vadd.f32 %v6874, %v6041
        %v6876 = vadd.f32 %v6875, %v6051
        %v6877 = vadd.f32 %v6876, %v6061
        %v6878 = vadd.f32 %v6877, %v6071
        %v6879 = vadd.f32 %v6878, %v6081
        %v6880 = vadd.f32 %v6879, %v6091
        %v6881 = vadd.f32 %v6880, %v6101
        %v6882 = vadd.f32 %v6881, %v6111
        %v6883 = vadd.f32 %v6882, %v6121
        %v6884 = vadd.f32 %v6883, %v6131
        %v6885 = vadd.f32 %v6884, %v6141
        %v6886 = vadd.f32 %v6885, %v6151
        %v6887 = vadd.f32 %v6886, %v6161
        %v6888 = vadd.f32 %v6887, %v6171
        %v6889 = vadd.f32 %v6888, %v6181
        %v6890 = vadd.f32 %v6889, %v6191
        %v6891 = vadd.f32 %v6890, %v6201
        %v6892 = vadd.f32 %v6891, %v6211
        %v6893 = vadd.f32 %v6892, %v6221
        %v6894 = vadd.f32 %v6893, %v6231
        %v6895 = vadd.f32 %v6894, %v6241
        %v6896 = vadd.f32 %v6895, %v6251
        %v6897 = vadd.f32 %v6896, %v6261
        %v6898 = vadd.f32 %v6897, %v6271
        %v6899 = vadd.f32 %v6898, %v6281
        %v6900 = vadd.f32 %v6899, %v6291
        %v6901 = vadd.f32 %v6900, %v6301
        %v6902 = vadd.f32 %v5992, %v6002
        %v6903 = vadd.f32 %v6902, %v6012
        %v6904 = vadd.f32 %v6903, %v6022
        %v6905 = vadd.f32 %v6904, %v6032
        %v6906 = vadd.f32 %v6905, %v6042
        %v6907 = vadd.f32 %v6906, %v6052
        %v6908 = vadd.f32 %v6907, %v6062
        %v6909 = vadd.f32 %v6908, %v6072
        %v6910 = vadd.f32 %v6909, %v6082
        %v6911 = vadd.f32 %v6910, %v6092
        %v6912 = vadd.f32 %v6911, %v6102
        %v6913 = vadd.f32 %v6912, %v6112
        %v6914 = vadd.f32 %v6913, %v6122
        %v6915 = vadd.f32 %v6914, %v6132
        %v6916 = vadd.f32 %v6915, %v6142
        %v6917 = vadd.f32 %v6916, %v6152
        %v6918 = vadd.f32 %v6917, %v6162
        %v6919 = vadd.f32 %v6918, %v6172
        %v6920 = vadd.f32 %v6919, %v6182
        %v6921 = vadd.f32 %v6920, %v6192
        %v6922 = vadd.f32 %v6921, %v6202
        %v6923 = vadd.f32 %v6922, %v6212
        %v6924 = vadd.f32 %v6923, %v6222
        %v6925 = vadd.f32 %v6924, %v6232
        %v6926 = vadd.f32 %v6925, %v6242
        %v6927 = vadd.f32 %v6926, %v6252
        %v6928 = vadd.f32 %v6927, %v6262
        %v6929 = vadd.f32 %v6928, %v6272
        %v6930 = vadd.f32 %v6929, %v6282
        %v6931 = vadd.f32 %v6930, %v6292
        %v6932 = vadd.f32 %v6931, %v6302
        %v6933 = vadd.f32 %v5993, %v6003
        %v6934 = vadd.f32 %v6933, %v6013
        %v6935 = vadd.f32 %v6934, %v6023
        %v6936 = vadd.f32 %v6935, %v6033
        %v6937 = vadd.f32 %v6936, %v6043
        %v6938 = vadd.f32 %v6937, %v6053
        %v6939 = vadd.f32 %v6938, %v6063
        %v6940 = vadd.f32 %v6939, %v6073
        %v6941 = vadd.f32 %v6940, %v6083
        %v6942 = vadd.f32 %v6941, %v6093
        %v6943 = vadd.f32 %v6942, %v6103
        %v6944 = vadd.f32 %v6943, %v6113
        %v6945 = vadd.f32 %v6944, %v6123
        %v6946 = vadd.f32 %v6945, %v6133
        %v6947 = vadd.f32 %v6946, %v6143
        %v6948 = vadd.f32 %v6947, %v6153
        %v6949 = vadd.f32 %v6948, %v6163
        %v6950 = vadd.f32 %v6949, %v6173
        %v6951 = vadd.f32 %v6950, %v6183
        %v6952 = vadd.f32 %v6951, %v6193
        %v6953 = vadd.f32 %v6952, %v6203
        %v6954 = vadd.f32 %v6953, %v6213
        %v6955 = vadd.f32 %v6954, %v6223
        %v6956 = vadd.f32 %v6955, %v6233
        %v6957 = vadd.f32 %v6956, %v6243
        %v6958 = vadd.f32 %v6957, %v6253
        %v6959 = vadd.f32 %v6958, %v6263
        %v6960 = vadd.f32 %v6959, %v6273
        %v6961 = vadd.f32 %v6960, %v6283
        %v6962 = vadd.f32 %v6961, %v6293
        %v6963 = vadd.f32 %v6962, %v6303
        %v6964 = vadd.f32 %v6644, %v6684
        %v6965 = vadd.f32 %v6645, %v6715
        %v6966 = vadd.f32 %v6646, %v6746
        %v6967 = vadd.f32 %v6647, %v6777
        %v6968 = vadd.f32 %v6648, %v6808
        %v6969 = vadd.f32 %v6649, %v6839
        %v6970 = vadd.f32 %v6650, %v6870
        %v6971 = vadd.f32 %v6651, %v6901
        %v6972 = vadd.f32 %v6652, %v6932
        %v6973 = vadd.f32 %v6653, %v6963
        %6974 = vst [vmem:[#allocation3] sm:$0xff] %v6964
        %6975 = vst [vmem:[#allocation3 + $0x8] sm:$0xff] %v6965
        %6976 = vst [vmem:[#allocation3 + $0x10] sm:$0xff] %v6966
        %6977 = vst [vmem:[#allocation3 + $0x18] sm:$0xff] %v6967
        %6978 = vst [vmem:[#allocation3 + $0x20] sm:$0xff] %v6968
        %6979 = vst [vmem:[#allocation3 + $0x28] sm:$0xff] %v6969
        %6980 = vst [vmem:[#allocation3 + $0x30] sm:$0xff] %v6970
        %6981 = vst [vmem:[#allocation3 + $0x38] sm:$0xff] %v6971
        %6982 = vst [vmem:[#allocation3 + $0x40] sm:$0xff] %v6972
        %6983 = vst [vmem:[#allocation3 + $0x48] sm:$0xff] %v6973
        // Predicated region
        $region93: #{model_forward.1} parent=83 // pred_check
          %p6984 = pneg %p602
        $region94: #{model_forward.1} parent=83 // pred_check_branch
          %6986 = sbr.rel (%p6984) target = $region96
        $region95: #{model_forward.1} parent=83 // pred_region
          %v6987 = vld [vmem:[#allocation2] sm:$0xff]
          %v6988 = vld [vmem:[#allocation2 + $0x8] sm:$0xff]
          %v6989 = vld [vmem:[#allocation2 + $0x10] sm:$0xff]
          %v6990 = vld [vmem:[#allocation2 + $0x18] sm:$0xff]
          %v6991 = vld [vmem:[#allocation2 + $0x20] sm:$0xff]
          %v6992 = vld [vmem:[#allocation2 + $0x28] sm:$0xff]
          %v6993 = vld [vmem:[#allocation2 + $0x30] sm:$0xff]
          %v6994 = vld [vmem:[#allocation2 + $0x38] sm:$0xff]
          %v6995 = vld [vmem:[#allocation2 + $0x40] sm:$0xff]
          %v6996 = vld [vmem:[#allocation2 + $0x48] sm:$0xff]
          %v6997 = vrot.slane %v6987, 4
          %v6998 = vadd.f32 %v6987, %v6997
          %v6999 = vrot.slane %v6998, 2
          %v7000 = vadd.f32 %v6998, %v6999
          %v7001 = vrot.slane %v7000, 1
          %v7002 = vadd.f32 %v7000, %v7001
          %v7003 = vrot.slane %v6988, 4
          %v7004 = vadd.f32 %v6988, %v7003
          %v7005 = vrot.slane %v7004, 2
          %v7006 = vadd.f32 %v7004, %v7005
          %v7007 = vrot.slane %v7006, 1
          %v7008 = vadd.f32 %v7006, %v7007
          %v7009 = vrot.slane %v6989, 4
          %v7010 = vadd.f32 %v6989, %v7009
          %v7011 = vrot.slane %v7010, 2
          %v7012 = vadd.f32 %v7010, %v7011
          %v7013 = vrot.slane %v7012, 1
          %v7014 = vadd.f32 %v7012, %v7013
          %v7015 = vrot.slane %v6990, 4
          %v7016 = vadd.f32 %v6990, %v7015
          %v7017 = vrot.slane %v7016, 2
          %v7018 = vadd.f32 %v7016, %v7017
          %v7019 = vrot.slane %v7018, 1
          %v7020 = vadd.f32 %v7018, %v7019
          %v7021 = vrot.slane %v6991, 4
          %v7022 = vadd.f32 %v6991, %v7021
          %v7023 = vrot.slane %v7022, 2
          %v7024 = vadd.f32 %v7022, %v7023
          %v7025 = vrot.slane %v7024, 1
          %v7026 = vadd.f32 %v7024, %v7025
          %v7027 = vrot.slane %v6992, 4
          %v7028 = vadd.f32 %v6992, %v7027
          %v7029 = vrot.slane %v7028, 2
          %v7030 = vadd.f32 %v7028, %v7029
          %v7031 = vrot.slane %v7030, 1
          %v7032 = vadd.f32 %v7030, %v7031
          %v7033 = vrot.slane %v6993, 4
          %v7034 = vadd.f32 %v6993, %v7033
          %v7035 = vrot.slane %v7034, 2
          %v7036 = vadd.f32 %v7034, %v7035
          %v7037 = vrot.slane %v7036, 1
          %v7038 = vadd.f32 %v7036, %v7037
          %v7039 = vrot.slane %v6994, 4
          %v7040 = vadd.f32 %v6994, %v7039
          %v7041 = vrot.slane %v7040, 2
          %v7042 = vadd.f32 %v7040, %v7041
          %v7043 = vrot.slane %v7042, 1
          %v7044 = vadd.f32 %v7042, %v7043
          %v7045 = vrot.slane %v6995, 4
          %v7046 = vadd.f32 %v6995, %v7045
          %v7047 = vrot.slane %v7046, 2
          %v7048 = vadd.f32 %v7046, %v7047
          %v7049 = vrot.slane %v7048, 1
          %v7050 = vadd.f32 %v7048, %v7049
          %v7051 = vrot.slane %v6996, 4
          %v7052 = vadd.f32 %v6996, %v7051
          %v7053 = vrot.slane %v7052, 2
          %v7054 = vadd.f32 %v7052, %v7053
          %v7055 = vrot.slane %v7054, 1
          %v7056 = vadd.f32 %v7054, %v7055
          %v7057 = vmul.f32 %v7002, 0.00390625
          %v7058 = vmul.f32 %v7008, 0.00390625
          %v7059 = vmul.f32 %v7014, 0.00390625
          %v7060 = vmul.f32 %v7020, 0.00390625
          %v7061 = vmul.f32 %v7026, 0.00390625
          %v7062 = vmul.f32 %v7032, 0.00390625
          %v7063 = vmul.f32 %v7038, 0.00390625
          %v7064 = vmul.f32 %v7044, 0.00390625
          %v7065 = vmul.f32 %v7050, 0.00390625
          %v7066 = vmul.f32 %v7056, 0.00390625
          %v7067 = vld [vmem:[#allocation3] sm:$0xff]
          %v7068 = vld [vmem:[#allocation3 + $0x8] sm:$0xff]
          %v7069 = vld [vmem:[#allocation3 + $0x10] sm:$0xff]
          %v7070 = vld [vmem:[#allocation3 + $0x18] sm:$0xff]
          %v7071 = vld [vmem:[#allocation3 + $0x20] sm:$0xff]
          %v7072 = vld [vmem:[#allocation3 + $0x28] sm:$0xff]
          %v7073 = vld [vmem:[#allocation3 + $0x30] sm:$0xff]
          %v7074 = vld [vmem:[#allocation3 + $0x38] sm:$0xff]
          %v7075 = vld [vmem:[#allocation3 + $0x40] sm:$0xff]
          %v7076 = vld [vmem:[#allocation3 + $0x48] sm:$0xff]
          %v7077 = vrot.slane %v7067, 4
          %v7078 = vadd.f32 %v7067, %v7077
          %v7079 = vrot.slane %v7078, 2
          %v7080 = vadd.f32 %v7078, %v7079
          %v7081 = vrot.slane %v7080, 1
          %v7082 = vadd.f32 %v7080, %v7081
          %v7083 = vrot.slane %v7068, 4
          %v7084 = vadd.f32 %v7068, %v7083
          %v7085 = vrot.slane %v7084, 2
          %v7086 = vadd.f32 %v7084, %v7085
          %v7087 = vrot.slane %v7086, 1
          %v7088 = vadd.f32 %v7086, %v7087
          %v7089 = vrot.slane %v7069, 4
          %v7090 = vadd.f32 %v7069, %v7089
          %v7091 = vrot.slane %v7090, 2
          %v7092 = vadd.f32 %v7090, %v7091
          %v7093 = vrot.slane %v7092, 1
          %v7094 = vadd.f32 %v7092, %v7093
          %v7095 = vrot.slane %v7070, 4
          %v7096 = vadd.f32 %v7070, %v7095
          %v7097 = vrot.slane %v7096, 2
          %v7098 = vadd.f32 %v7096, %v7097
          %v7099 = vrot.slane %v7098, 1
          %v7100 = vadd.f32 %v7098, %v7099
          %v7101 = vrot.slane %v7071, 4
          %v7102 = vadd.f32 %v7071, %v7101
          %v7103 = vrot.slane %v7102, 2
          %v7104 = vadd.f32 %v7102, %v7103
          %v7105 = vrot.slane %v7104, 1
          %v7106 = vadd.f32 %v7104, %v7105
          %v7107 = vrot.slane %v7072, 4
          %v7108 = vadd.f32 %v7072, %v7107
          %v7109 = vrot.slane %v7108, 2
          %v7110 = vadd.f32 %v7108, %v7109
          %v7111 = vrot.slane %v7110, 1
          %v7112 = vadd.f32 %v7110, %v7111
          %v7113 = vrot.slane %v7073, 4
          %v7114 = vadd.f32 %v7073, %v7113
          %v7115 = vrot.slane %v7114, 2
          %v7116 = vadd.f32 %v7114, %v7115
          %v7117 = vrot.slane %v7116, 1
          %v7118 = vadd.f32 %v7116, %v7117
          %v7119 = vrot.slane %v7074, 4
          %v7120 = vadd.f32 %v7074, %v7119
          %v7121 = vrot.slane %v7120, 2
          %v7122 = vadd.f32 %v7120, %v7121
          %v7123 = vrot.slane %v7122, 1
          %v7124 = vadd.f32 %v7122, %v7123
          %v7125 = vrot.slane %v7075, 4
          %v7126 = vadd.f32 %v7075, %v7125
          %v7127 = vrot.slane %v7126, 2
          %v7128 = vadd.f32 %v7126, %v7127
          %v7129 = vrot.slane %v7128, 1
          %v7130 = vadd.f32 %v7128, %v7129
          %v7131 = vrot.slane %v7076, 4
          %v7132 = vadd.f32 %v7076, %v7131
          %v7133 = vrot.slane %v7132, 2
          %v7134 = vadd.f32 %v7132, %v7133
          %v7135 = vrot.slane %v7134, 1
          %v7136 = vadd.f32 %v7134, %v7135
          %v7137 = vmul.f32 %v7082, 0.00390625
          %v7138 = vmul.f32 %v7088, 0.00390625
          %v7139 = vmul.f32 %v7094, 0.00390625
          %v7140 = vmul.f32 %v7100, 0.00390625
          %v7141 = vmul.f32 %v7106, 0.00390625
          %v7142 = vmul.f32 %v7112, 0.00390625
          %v7143 = vmul.f32 %v7118, 0.00390625
          %v7144 = vmul.f32 %v7124, 0.00390625
          %v7145 = vmul.f32 %v7130, 0.00390625
          %v7146 = vmul.f32 %v7136, 0.00390625
          %v7147 = vld [vmem:[%s14] sm:$0xff]
          %v7148 = vld [vmem:[%s14 + $0x8] sm:$0x3]
          %v7151 = vlaneseq
          %v7152 = vshrl.u32 %v7151, 7
          %v7153 = vsub.s32 0, %v7152
          %v7154 = vrot.slane %v7147, %v7153
          %v7155 = vlaneseq
          %v7156 = vshrl.u32 %v7155, 7
          %v7157 = vsub.s32 1, %v7156
          %v7158 = vrot.slane %v7147, %v7157
          %v7159 = vlaneseq
          %v7160 = vshrl.u32 %v7159, 7
          %v7161 = vsub.s32 2, %v7160
          %v7162 = vrot.slane %v7147, %v7161
          %v7163 = vlaneseq
          %v7164 = vshrl.u32 %v7163, 7
          %v7165 = vsub.s32 3, %v7164
          %v7166 = vrot.slane %v7147, %v7165
          %v7167 = vlaneseq
          %v7168 = vshrl.u32 %v7167, 7
          %v7169 = vsub.s32 4, %v7168
          %v7170 = vrot.slane %v7147, %v7169
          %v7171 = vlaneseq
          %v7172 = vshrl.u32 %v7171, 7
          %v7173 = vsub.s32 5, %v7172
          %v7174 = vrot.slane %v7147, %v7173
          %v7175 = vlaneseq
          %v7176 = vshrl.u32 %v7175, 7
          %v7177 = vsub.s32 6, %v7176
          %v7178 = vrot.slane %v7147, %v7177
          %v7179 = vlaneseq
          %v7180 = vshrl.u32 %v7179, 7
          %v7181 = vsub.s32 7, %v7180
          %v7182 = vrot.slane %v7147, %v7181
          %v7183 = vlaneseq
          %v7184 = vshrl.u32 %v7183, 7
          %v7185 = vsub.s32 0, %v7184
          %v7186 = vrot.slane %v7148, %v7185
          %v7187 = vlaneseq
          %v7188 = vshrl.u32 %v7187, 7
          %v7189 = vsub.s32 1, %v7188
          %v7190 = vrot.slane %v7148, %v7189
          %v7201 = vmul.f32 %v7057, %v7154
          %v7202 = vmul.f32 %v7058, %v7158
          %v7203 = vmul.f32 %v7059, %v7162
          %v7204 = vmul.f32 %v7060, %v7166
          %v7205 = vmul.f32 %v7061, %v7170
          %v7206 = vmul.f32 %v7062, %v7174
          %v7207 = vmul.f32 %v7063, %v7178
          %v7208 = vmul.f32 %v7064, %v7182
          %v7209 = vmul.f32 %v7065, %v7186
          %v7210 = vmul.f32 %v7066, %v7190
          %vm7211 = vcmask 1040384
          %v7212 = vsel %vm7211, %v7201, 0.0
          %v7213 = vsel %vm7211, %v7202, 0.0
          %v7214 = vadd.f32 %v7212, %v7213
          %v7215 = vsel %vm7211, %v7203, 0.0
          %v7216 = vadd.f32 %v7214, %v7215
          %v7217 = vsel %vm7211, %v7204, 0.0
          %v7218 = vadd.f32 %v7216, %v7217
          %v7219 = vsel %vm7211, %v7205, 0.0
          %v7220 = vadd.f32 %v7218, %v7219
          %v7221 = vsel %vm7211, %v7206, 0.0
          %v7222 = vadd.f32 %v7220, %v7221
          %v7223 = vsel %vm7211, %v7207, 0.0
          %v7224 = vadd.f32 %v7222, %v7223
          %v7225 = vsel %vm7211, %v7208, 0.0
          %v7226 = vadd.f32 %v7224, %v7225
          %v7227 = vsel %vm7211, %v7209, 0.0
          %v7228 = vadd.f32 %v7226, %v7227
          %v7229 = vsel %vm7211, %v7210, 0.0
          %v7230 = vadd.f32 %v7228, %v7229
          %7231 = vadd.xlane.f32.xlu0 %v7230
          %v7232 = vpop.xlane.xlu0 %7231
          %v7233 = vld [vmem:[%s14 + $0xa] sm:$0xff]
          %v7234 = vld [vmem:[%s14 + $0x12] sm:$0x3]
          %v7237 = vlaneseq
          %v7238 = vshrl.u32 %v7237, 7
          %v7239 = vsub.s32 0, %v7238
          %v7240 = vrot.slane %v7233, %v7239
          %v7241 = vlaneseq
          %v7242 = vshrl.u32 %v7241, 7
          %v7243 = vsub.s32 1, %v7242
          %v7244 = vrot.slane %v7233, %v7243
          %v7245 = vlaneseq
          %v7246 = vshrl.u32 %v7245, 7
          %v7247 = vsub.s32 2, %v7246
          %v7248 = vrot.slane %v7233, %v7247
          %v7249 = vlaneseq
          %v7250 = vshrl.u32 %v7249, 7
          %v7251 = vsub.s32 3, %v7250
          %v7252 = vrot.slane %v7233, %v7251
          %v7253 = vlaneseq
          %v7254 = vshrl.u32 %v7253, 7
          %v7255 = vsub.s32 4, %v7254
          %v7256 = vrot.slane %v7233, %v7255
          %v7257 = vlaneseq
          %v7258 = vshrl.u32 %v7257, 7
          %v7259 = vsub.s32 5, %v7258
          %v7260 = vrot.slane %v7233, %v7259
          %v7261 = vlaneseq
          %v7262 = vshrl.u32 %v7261, 7
          %v7263 = vsub.s32 6, %v7262
          %v7264 = vrot.slane %v7233, %v7263
          %v7265 = vlaneseq
          %v7266 = vshrl.u32 %v7265, 7
          %v7267 = vsub.s32 7, %v7266
          %v7268 = vrot.slane %v7233, %v7267
          %v7269 = vlaneseq
          %v7270 = vshrl.u32 %v7269, 7
          %v7271 = vsub.s32 0, %v7270
          %v7272 = vrot.slane %v7234, %v7271
          %v7273 = vlaneseq
          %v7274 = vshrl.u32 %v7273, 7
          %v7275 = vsub.s32 1, %v7274
          %v7276 = vrot.slane %v7234, %v7275
          %v7287 = vmul.f32 %v7137, %v7240
          %v7288 = vmul.f32 %v7138, %v7244
          %v7289 = vmul.f32 %v7139, %v7248
          %v7290 = vmul.f32 %v7140, %v7252
          %v7291 = vmul.f32 %v7141, %v7256
          %v7292 = vmul.f32 %v7142, %v7260
          %v7293 = vmul.f32 %v7143, %v7264
          %v7294 = vmul.f32 %v7144, %v7268
          %v7295 = vmul.f32 %v7145, %v7272
          %v7296 = vmul.f32 %v7146, %v7276
          %v7297 = vsel %vm7211, %v7287, 0.0
          %v7298 = vsel %vm7211, %v7288, 0.0
          %v7299 = vadd.f32 %v7297, %v7298
          %v7300 = vsel %vm7211, %v7289, 0.0
          %v7301 = vadd.f32 %v7299, %v7300
          %v7302 = vsel %vm7211, %v7290, 0.0
          %v7303 = vadd.f32 %v7301, %v7302
          %v7304 = vsel %vm7211, %v7291, 0.0
          %v7305 = vadd.f32 %v7303, %v7304
          %v7306 = vsel %vm7211, %v7292, 0.0
          %v7307 = vadd.f32 %v7305, %v7306
          %v7308 = vsel %vm7211, %v7293, 0.0
          %v7309 = vadd.f32 %v7307, %v7308
          %v7310 = vsel %vm7211, %v7294, 0.0
          %v7311 = vadd.f32 %v7309, %v7310
          %v7312 = vsel %vm7211, %v7295, 0.0
          %v7313 = vadd.f32 %v7311, %v7312
          %v7314 = vsel %vm7211, %v7296, 0.0
          %v7315 = vadd.f32 %v7313, %v7314
          %7316 = vadd.xlane.f32.xlu0 %v7315
          %v7317 = vpop.xlane.xlu0 %7316
          %v7318 = vadd.f32 %v7232, %v7317
          %v7319 = vld [vmem:[#allocation4] sm:$0x1]
          %v7320 = vadd.f32 %v7318, %v7319
          %v7321 = vxor.u32 %v7320, 2147483648
          %v7322 = vmul.f32 %v7321, 1.442695
          %v7323 = vpow.pop %v7322
          %v7324 = vadd.f32 %v7323, 1.0
          %v7325 = vrcp.pop %v7324
          %v7326 = vmul.f32 1.0, %v7325
          %s7328 = vtos %v7326
          %v7329 = vstv %s7328
          %v7331 = vadd.f32 %v7329, 0.0
          %7332 = vst [vmem:[%s600] sm:$0xff] %v7331
        $region96: #{model_forward.1} parent=83 // pred_fallthru
          _
        %p7333 = scmp.lt.s32.totalorder %s34, 1
        %s7334 = scalar_select %p7333, %s34, 1
        %s7335 = smul.addr %s7334, 8
        %s7336 = scalar_lea.vmem %s16, %s7335
        // Predicated region
        $region97: #{model_forward.1} parent=83 // pred_check
          %p7337 = pneg %p410
        $region98: #{model_forward.1} parent=83 // pred_check_branch
          %7339 = sbr.rel (%p7337) target = $region100
        $region99: #{model_forward.1} parent=83 // pred_region
          _
        $region100: #{model_forward.1} parent=83 // pred_fallthru
          _
      $region84: #{model_forward.1} parent=5 // pred_fallthru
        _
      %p7340 = scmp.le.s32.totalorder 2, %s25
      // Predicated region
      $region101: #{model_forward.1} parent=5 // pred_check
        %p7341 = pneg %p7340
      $region102: #{model_forward.1} parent=5 // pred_check_branch
        %7343 = sbr.rel (%p7341) target = $region104
      $region103: #{model_forward.1} parent=5 // pred_region
        %s7344 = ssub.s32 %s25, 2
        // Predicated region
        $region105: #{model_forward.1} parent=103 // pred_check
          %p7345 = pneg %p416
        $region106: #{model_forward.1} parent=103 // pred_check_branch
          %7347 = sbr.rel (%p7345) target = $region108
        $region107: #{model_forward.1} parent=103 // pred_region
          %p7348 = scmp.lt.s32.totalorder %s36, 1
          %s7349 = scalar_select %p7348, %s36, 1
          %s7350 = smul.addr %s7349, 8
          %s7351 = scalar_lea.vmem %s16, %s7350
        $region108: #{model_forward.1} parent=103 // pred_fallthru
          _
      $region104: #{model_forward.1} parent=5 // pred_fallthru
        _
    $region6: #{model_forward.1} parent=1 // loop_footer
      %s29 = sadd.s32 1, %s25
    $region7: #{model_forward.1} parent=1 // loop_footer_branch
      %24 = sbr.rel target = $region3
    $region8: #{model_forward.1} parent=1 // loop_exit
      _
    %7352 = vsyncpa [#allocation6], 1
    %s7353 = scalar_lea.sflag [#allocation6], 1
    %7354 = vsyncpa %s7353, 1

</llo_original>
